<compile_context>
chip_gen: v7x
topology: tpu7x:2x2x1
jax: 0.10.0
libtpu: 0.0.40
codegen_flags: <defaults>
</compile_context>

<pallas_src>
import functools

import jax
import jax.numpy as jnp
from jax import lax
from jax.experimental import pallas as pl
from jax.experimental.pallas import tpu as pltpu


# ----------------------------- fused Pallas kernel -----------------------------

def _fused_attention_kernel(
    x_ref,        # (1, Ppad, C)  zero-padded input pixels, row-major (Hp, Wp)
    mask_ref,     # (Ppad, 1)     1.0 on interior pixels, 0.0 on the halo
    wqkv_ref,     # (3, C, C)     [group, out, in] 1x1-conv weights (q, k, v)
    bqkv_ref,     # (3, 1, C)
    wdw_ref,      # (3, 9, C)     [group, tap(dy*3+dx), channel] depthwise 3x3
    bdw_ref,      # (3, 1, C)
    wproj_ref,    # (C, C)        [out, in] project_out 1x1 conv
    bproj_ref,    # (C, 1)
    temp_ref,     # (C, 1)        per-row temperature (head value repeated)
    bias_ref,     # (C, C)        0 on same-head blocks, -1e30 elsewhere
    o_ref,        # (1, C, HW)
    pad_ref,      # VMEM scratch (3, Hp, Wp, C)
    *, H, W, Hp, Wp,
):
    C = wproj_ref.shape[0]
    HW = H * W

    x = x_ref[0]                  # (Ppad, C)
    interior = mask_ref[...]      # (Ppad, 1)

    # ---- qkv 1x1 conv (per q/k/v group) over the padded pixel grid ----------
    # pre[p, o] = sum_i x[p, i] * w[o, i] + b[o]; halo pixels are forced to
    # zero so the depthwise conv below sees the same zero padding as F.conv2d.
    for g in range(3):
        pre = lax.dot_general(
            x, wqkv_ref[g], (((1,), (1,)), ((), ())),
            preferred_element_type=jnp.float32,
        )                                                 # (Ppad, C)
        pre = (pre + bqkv_ref[g]) * interior
        pad_ref[g] = pre.reshape(Hp, Wp, C)

    # ---- depthwise 3x3 conv (zero padding already materialized) -------------
    group_out = []
    for g in range(3):
        wdw = wdw_ref[g]                                  # (9, C)
        acc = jnp.zeros((HW, C), jnp.float32)
        for t in range(9):
            dy, dx = t // 3, t % 3
            window = pad_ref[g, dy:dy + H, dx:dx + W, :]  # (H, W, C)
            acc = acc + window.reshape(HW, C) * wdw[t:t + 1, :]
        group_out.append(acc + bdw_ref[g])                # (HW, C)
    q, k, v = group_out

    # ---- channel attention: all heads batched in one (C, C) matmul ----------
    eps2 = jnp.float32(1e-24)     # (torch F.normalize eps=1e-12) ** 2
    q_t = jnp.transpose(q)        # (C, HW)
    q_t = q_t * lax.rsqrt(
        jnp.maximum(jnp.sum(q_t * q_t, axis=-1, keepdims=True), eps2))
    kn = k * lax.rsqrt(
        jnp.maximum(jnp.sum(k * k, axis=0, keepdims=True), eps2))

    scores = lax.dot_general(
        q_t, kn, (((1,), (0,)), ((), ())),
        preferred_element_type=jnp.float32)               # (C, C)
    scores = scores * temp_ref[...] + bias_ref[...]       # temp + head mask
    scores = scores - jnp.max(scores, axis=-1, keepdims=True)
    probs = jnp.exp(scores)                               # 0 exactly off-block
    probs = probs * pl.reciprocal(
        jnp.sum(probs, axis=-1, keepdims=True), approx=True)

    out = lax.dot_general(
        probs, v, (((1,), (1,)), ((), ())),
        preferred_element_type=jnp.float32)               # (C, HW)

    # ---- project_out 1x1 conv ------------------------------------------------
    res = lax.dot_general(
        wproj_ref[...], out, (((1,), (0,)), ((), ())),
        preferred_element_type=jnp.float32) + bproj_ref[...]
    o_ref[0] = res.astype(o_ref.dtype)                    # lane-dense (C, HW)


# ----------------------------- forward (thin wrapper) -----------------------------

def attention_forward(x, params, num_heads):
    """x: (B, C, H, W) float32, NCHW (same contract as the PyTorch module)."""
    B, C, H, W = x.shape
    assert C % num_heads == 0 and W % 8 == 0 and (H * W) % 128 == 0
    c_head = C // num_heads
    HW = H * W
    Hp = H + 2
    Wp = ((W + 2 + 7) // 8) * 8            # keep in-kernel reshapes layout-friendly
    Ppad = Hp * Wp

    # One-time, cheap host-side prep (single transpose + pad; output needs none).
    xh = jnp.transpose(x, (0, 2, 3, 1))                              # (B,H,W,C)
    xh = jnp.pad(xh, ((0, 0), (1, 1), (1, Wp - W - 1), (0, 0)))      # (B,Hp,Wp,C)
    xh = xh.reshape(B, Ppad, C)

    ry = jnp.arange(Ppad, dtype=jnp.int32) // Wp
    rx = jnp.arange(Ppad, dtype=jnp.int32) % Wp
    interior = ((ry >= 1) & (ry <= H) & (rx >= 1) & (rx <= W))
    interior = interior.astype(jnp.float32).reshape(Ppad, 1)

    temp_row = jnp.repeat(params["temperature"].reshape(num_heads), c_head)
    temp_row = temp_row.reshape(C, 1).astype(jnp.float32)

    head_id = jnp.arange(C, dtype=jnp.int32) // c_head
    attn_bias = jnp.where(head_id[:, None] == head_id[None, :], 0.0, -1e30)
    attn_bias = attn_bias.astype(jnp.float32)

    kernel = functools.partial(_fused_attention_kernel, H=H, W=W, Hp=Hp, Wp=Wp)

    out3 = pl.pallas_call(
        kernel,
        out_shape=jax.ShapeDtypeStruct((B, C, HW), x.dtype),
        grid=(B,),
        in_specs=[
            pl.BlockSpec((1, Ppad, C), lambda b: (b, 0, 0)),
            pl.BlockSpec((Ppad, 1), lambda b: (0, 0)),
            pl.BlockSpec((3, C, C), lambda b: (0, 0, 0)),
            pl.BlockSpec((3, 1, C), lambda b: (0, 0, 0)),
            pl.BlockSpec((3, 9, C), lambda b: (0, 0, 0)),
            pl.BlockSpec((3, 1, C), lambda b: (0, 0, 0)),
            pl.BlockSpec((C, C), lambda b: (0, 0)),
            pl.BlockSpec((C, 1), lambda b: (0, 0)),
            pl.BlockSpec((C, 1), lambda b: (0, 0)),
            pl.BlockSpec((C, C), lambda b: (0, 0)),
        ],
        out_specs=pl.BlockSpec((1, C, HW), lambda b: (b, 0, 0)),
        scratch_shapes=[pltpu.VMEM((3, Hp, Wp, C), jnp.float32)],
        compiler_params=pltpu.CompilerParams(
            dimension_semantics=("parallel",),
        ),
    )(
        xh, interior,
        params["w_qkv"], params["b_qkv"].reshape(3, 1, C),
        params["w_dw"], params["b_dw"].reshape(3, 1, C),
        params["w_proj"], params["b_proj"].reshape(C, 1),
        temp_row, attn_bias,
    )
    return out3.reshape(B, C, H, W)


# ----------------------------- pure-JAX reference -----------------------------

def reference_forward(x, params, num_heads):
    B, C, H, W = x.shape
    w_qkv = params["w_qkv"].reshape(3 * C, C)
    b_qkv = params["b_qkv"].reshape(3 * C)
    qkv = jnp.einsum("oc,bchw->bohw", w_qkv, x) + b_qkv[None, :, None, None]

    w_dw = jnp.transpose(params["w_dw"], (0, 2, 1)).reshape(3 * C, 1, 3, 3)
    qkv = lax.conv_general_dilated(
        qkv, w_dw, window_strides=(1, 1), padding=((1, 1), (1, 1)),
        feature_group_count=3 * C,
        dimension_numbers=("NCHW", "OIHW", "NCHW"),
    ) + params["b_dw"].reshape(3 * C)[None, :, None, None]

    q, k, v = jnp.split(qkv, 3, axis=1)
    ch = C // num_heads
    rs = lambda t: t.reshape(B, num_heads, ch, H * W)
    q, k, v = rs(q), rs(k), rs(v)
    eps = 1e-12
    qn = q / jnp.maximum(jnp.linalg.norm(q, axis=-1, keepdims=True), eps)
    kn = k / jnp.maximum(jnp.linalg.norm(k, axis=-1, keepdims=True), eps)
    attn = jnp.einsum("bhcd,bhed->bhce", qn, kn) * params["temperature"][None]
    attn = jax.nn.softmax(attn, axis=-1)
    out = jnp.einsum("bhce,bhed->bhcd", attn, v).reshape(B, C, H, W)
    out = (jnp.einsum("oc,bchw->bohw", params["w_proj"], out)
           + params["b_proj"][None, :, None, None])
    return out


# ----------------------------------- main -----------------------------------

if __name__ == "__main__":
    B, C, H, W = 2, 16, 16, 16
    num_heads = 4  # c_head = 4

    key = jax.random.PRNGKey(0)
    ks = jax.random.split(key, 8)
    params = {
        # qkv: Conv2d(C, 3C, 1) weights, stored per group as [g, out, in]
        "w_qkv": 0.2 * jax.random.normal(ks[0], (3, C, C), jnp.float32),
        "b_qkv": 0.1 * jax.random.normal(ks[1], (3, C), jnp.float32),
        # qkv_dwconv: Conv2d(3C, 3C, 3, groups=3C) weights as [g, tap, channel]
        "w_dw": 0.2 * jax.random.normal(ks[2], (3, 9, C), jnp.float32),
        "b_dw": 0.1 * jax.random.normal(ks[3], (3, C), jnp.float32),
        # project_out: Conv2d(C, C, 1) weight as [out, in]
        "w_proj": 0.2 * jax.random.normal(ks[4], (C, C), jnp.float32),
        "b_proj": 0.1 * jax.random.normal(ks[5], (C,), jnp.float32),
        # temperature = nn.Parameter(torch.ones(num_heads, 1, 1)); use a
        # non-trivial value so the scaling path is actually exercised.
        "temperature": 0.5 + jax.random.uniform(ks[6], (num_heads, 1, 1),
                                                jnp.float32),
    }
    x = jax.random.normal(ks[7], (B, C, H, W), jnp.float32)

    out = jax.block_until_ready(attention_forward(x, params, num_heads))
    ref = jax.block_until_ready(reference_forward(x, params, num_heads))

    assert out.shape == (B, C, H, W)
    assert bool(jnp.allclose(out, ref, atol=1e-2, rtol=1e-2)), float(
        jnp.max(jnp.abs(out - ref)))
    print("KERNEL_OK")
</pallas_src>

<mosaic_0001>
module attributes {stable_mosaic.version = 11 : i64} {
  func.func @_fused_attention_kernel(%arg0: i32, %arg1: memref<1x432x16xf32, #tpu.memory_space<vmem>>, %arg2: memref<432x1xf32, #tpu.memory_space<vmem>>, %arg3: memref<3x16x16xf32, #tpu.memory_space<vmem>>, %arg4: memref<3x1x16xf32, #tpu.memory_space<vmem>>, %arg5: memref<3x9x16xf32, #tpu.memory_space<vmem>>, %arg6: memref<3x1x16xf32, #tpu.memory_space<vmem>>, %arg7: memref<16x16xf32, #tpu.memory_space<vmem>>, %arg8: memref<16x1xf32, #tpu.memory_space<vmem>>, %arg9: memref<16x1xf32, #tpu.memory_space<vmem>>, %arg10: memref<16x16xf32, #tpu.memory_space<vmem>>, %arg11: memref<1x16x256xf32, #tpu.memory_space<vmem>>, %arg12: memref<3x18x24x16xf32, #tpu.memory_space<vmem>>) attributes {dimension_semantics = [#tpu.dimension_semantics<parallel>], iteration_bounds = array<i64: 2>, scalar_prefetch = 0 : i64, scratch_operands = 1 : i64, tpu.core_type = #tpu.core_type<tc>, window_params = [{transform_indices = @transform_0, window_bounds = array<i64: 1, 432, 16>}, {pipeline_mode = #tpu.pipeline_mode<synchronous>, transform_indices = @transform_1, window_bounds = array<i64: 432, 1>}, {pipeline_mode = #tpu.pipeline_mode<synchronous>, transform_indices = @transform_2, window_bounds = array<i64: 3, 16, 16>}, {pipeline_mode = #tpu.pipeline_mode<synchronous>, transform_indices = @transform_3, window_bounds = array<i64: 3, 1, 16>}, {pipeline_mode = #tpu.pipeline_mode<synchronous>, transform_indices = @transform_4, window_bounds = array<i64: 3, 9, 16>}, {pipeline_mode = #tpu.pipeline_mode<synchronous>, transform_indices = @transform_5, window_bounds = array<i64: 3, 1, 16>}, {pipeline_mode = #tpu.pipeline_mode<synchronous>, transform_indices = @transform_6, window_bounds = array<i64: 16, 16>}, {pipeline_mode = #tpu.pipeline_mode<synchronous>, transform_indices = @transform_7, window_bounds = array<i64: 16, 1>}, {pipeline_mode = #tpu.pipeline_mode<synchronous>, transform_indices = @transform_8, window_bounds = array<i64: 16, 1>}, {pipeline_mode = #tpu.pipeline_mode<synchronous>, transform_indices = @transform_9, window_bounds = array<i64: 16, 16>}, {transform_indices = @transform_10, window_bounds = array<i64: 1, 16, 256>}]} {
    %c0 = arith.constant 0 : index
    %c0_0 = arith.constant 0 : index
    %c0_1 = arith.constant 0 : index
    %0 = vector.load %arg1[%c0, %c0_0, %c0_1] : memref<1x432x16xf32, #tpu.memory_space<vmem>>, vector<1x432x16xf32>
    %1 = vector.shape_cast %0 : vector<1x432x16xf32> to vector<432x16xf32>
    %c0_2 = arith.constant 0 : index
    %c0_3 = arith.constant 0 : index
    %2 = vector.load %arg2[%c0_2, %c0_3] : memref<432x1xf32, #tpu.memory_space<vmem>>, vector<432x1xf32>
    %c0_4 = arith.constant 0 : index
    %c0_5 = arith.constant 0 : index
    %c0_6 = arith.constant 0 : index
    %3 = vector.load %arg3[%c0_4, %c0_5, %c0_6] : memref<3x16x16xf32, #tpu.memory_space<vmem>>, vector<1x16x16xf32>
    %4 = vector.shape_cast %3 : vector<1x16x16xf32> to vector<16x16xf32>
    %cst = arith.constant dense<0.000000e+00> : vector<432x16xf32>
    %5 = tpu.matmul %1, %4, %cst {dimension_numbers = #tpu.dot_dimension_numbers<[1], [1], [0], [0], [0, 0, 1, 0], [], []>} : vector<432x16xf32>, vector<16x16xf32>, vector<432x16xf32> -> vector<432x16xf32>
    %c0_7 = arith.constant 0 : index
    %c0_8 = arith.constant 0 : index
    %c0_9 = arith.constant 0 : index
    %6 = vector.load %arg4[%c0_7, %c0_8, %c0_9] : memref<3x1x16xf32, #tpu.memory_space<vmem>>, vector<1x1x16xf32>
    %7 = vector.shape_cast %6 : vector<1x1x16xf32> to vector<1x16xf32>
    %8 = vector.broadcast %7 : vector<1x16xf32> to vector<432x16xf32>
    %9 = arith.addf %5, %8 : vector<432x16xf32>
    %10 = vector.broadcast %2 : vector<432x1xf32> to vector<432x16xf32>
    %11 = arith.mulf %9, %10 : vector<432x16xf32>
    %12 = vector.shape_cast %11 : vector<432x16xf32> to vector<18x24x16xf32>
    %c0_10 = arith.constant 0 : index
    %c0_11 = arith.constant 0 : index
    %c0_12 = arith.constant 0 : index
    %c0_13 = arith.constant 0 : index
    %13 = vector.load %arg12[%c0_10, %c0_11, %c0_12, %c0_13] : memref<3x18x24x16xf32, #tpu.memory_space<vmem>>, vector<1x18x24x16xf32>
    %14 = vector.shape_cast %13 : vector<1x18x24x16xf32> to vector<18x24x16xf32>
    %15 = vector.shape_cast %12 : vector<18x24x16xf32> to vector<1x18x24x16xf32>
    tpu.vector_store %arg12[%c0_10, %c0_11, %c0_12, %c0_13], %15 {strides = array<i32>} : memref<3x18x24x16xf32, #tpu.memory_space<vmem>>, vector<1x18x24x16xf32>,
    %c1 = arith.constant 1 : index
    %c0_14 = arith.constant 0 : index
    %c0_15 = arith.constant 0 : index
    %16 = vector.load %arg3[%c1, %c0_14, %c0_15] : memref<3x16x16xf32, #tpu.memory_space<vmem>>, vector<1x16x16xf32>
    %17 = vector.shape_cast %16 : vector<1x16x16xf32> to vector<16x16xf32>
    %cst_16 = arith.constant dense<0.000000e+00> : vector<432x16xf32>
    %18 = tpu.matmul %1, %17, %cst_16 {dimension_numbers = #tpu.dot_dimension_numbers<[1], [1], [0], [0], [0, 0, 1, 0], [], []>} : vector<432x16xf32>, vector<16x16xf32>, vector<432x16xf32> -> vector<432x16xf32>
    %c1_17 = arith.constant 1 : index
    %c0_18 = arith.constant 0 : index
    %c0_19 = arith.constant 0 : index
    %19 = vector.load %arg4[%c1_17, %c0_18, %c0_19] : memref<3x1x16xf32, #tpu.memory_space<vmem>>, vector<1x1x16xf32>
    %20 = vector.shape_cast %19 : vector<1x1x16xf32> to vector<1x16xf32>
    %21 = vector.broadcast %20 : vector<1x16xf32> to vector<432x16xf32>
    %22 = arith.addf %18, %21 : vector<432x16xf32>
    %23 = vector.broadcast %2 : vector<432x1xf32> to vector<432x16xf32>
    %24 = arith.mulf %22, %23 : vector<432x16xf32>
    %25 = vector.shape_cast %24 : vector<432x16xf32> to vector<18x24x16xf32>
    %c1_20 = arith.constant 1 : index
    %c0_21 = arith.constant 0 : index
    %c0_22 = arith.constant 0 : index
    %c0_23 = arith.constant 0 : index
    %26 = vector.load %arg12[%c1_20, %c0_21, %c0_22, %c0_23] : memref<3x18x24x16xf32, #tpu.memory_space<vmem>>, vector<1x18x24x16xf32>
    %27 = vector.shape_cast %26 : vector<1x18x24x16xf32> to vector<18x24x16xf32>
    %28 = vector.shape_cast %25 : vector<18x24x16xf32> to vector<1x18x24x16xf32>
    tpu.vector_store %arg12[%c1_20, %c0_21, %c0_22, %c0_23], %28 {strides = array<i32>} : memref<3x18x24x16xf32, #tpu.memory_space<vmem>>, vector<1x18x24x16xf32>,
    %c2 = arith.constant 2 : index
    %c0_24 = arith.constant 0 : index
    %c0_25 = arith.constant 0 : index
    %29 = vector.load %arg3[%c2, %c0_24, %c0_25] : memref<3x16x16xf32, #tpu.memory_space<vmem>>, vector<1x16x16xf32>
    %30 = vector.shape_cast %29 : vector<1x16x16xf32> to vector<16x16xf32>
    %cst_26 = arith.constant dense<0.000000e+00> : vector<432x16xf32>
    %31 = tpu.matmul %1, %30, %cst_26 {dimension_numbers = #tpu.dot_dimension_numbers<[1], [1], [0], [0], [0, 0, 1, 0], [], []>} : vector<432x16xf32>, vector<16x16xf32>, vector<432x16xf32> -> vector<432x16xf32>
    %c2_27 = arith.constant 2 : index
    %c0_28 = arith.constant 0 : index
    %c0_29 = arith.constant 0 : index
    %32 = vector.load %arg4[%c2_27, %c0_28, %c0_29] : memref<3x1x16xf32, #tpu.memory_space<vmem>>, vector<1x1x16xf32>
    %33 = vector.shape_cast %32 : vector<1x1x16xf32> to vector<1x16xf32>
    %34 = vector.broadcast %33 : vector<1x16xf32> to vector<432x16xf32>
    %35 = arith.addf %31, %34 : vector<432x16xf32>
    %36 = vector.broadcast %2 : vector<432x1xf32> to vector<432x16xf32>
    %37 = arith.mulf %35, %36 : vector<432x16xf32>
    %38 = vector.shape_cast %37 : vector<432x16xf32> to vector<18x24x16xf32>
    %c2_30 = arith.constant 2 : index
    %c0_31 = arith.constant 0 : index
    %c0_32 = arith.constant 0 : index
    %c0_33 = arith.constant 0 : index
    %39 = vector.load %arg12[%c2_30, %c0_31, %c0_32, %c0_33] : memref<3x18x24x16xf32, #tpu.memory_space<vmem>>, vector<1x18x24x16xf32>
    %40 = vector.shape_cast %39 : vector<1x18x24x16xf32> to vector<18x24x16xf32>
    %41 = vector.shape_cast %38 : vector<18x24x16xf32> to vector<1x18x24x16xf32>
    tpu.vector_store %arg12[%c2_30, %c0_31, %c0_32, %c0_33], %41 {strides = array<i32>} : memref<3x18x24x16xf32, #tpu.memory_space<vmem>>, vector<1x18x24x16xf32>,
    %c0_34 = arith.constant 0 : index
    %c0_35 = arith.constant 0 : index
    %c0_36 = arith.constant 0 : index
    %42 = vector.load %arg5[%c0_34, %c0_35, %c0_36] : memref<3x9x16xf32, #tpu.memory_space<vmem>>, vector<1x9x16xf32>
    %43 = vector.shape_cast %42 : vector<1x9x16xf32> to vector<9x16xf32>
    %cst_37 = arith.constant 0.000000e+00 : f32
    %44 = vector.broadcast %cst_37 : f32 to vector<256x16xf32>
    %c0_38 = arith.constant 0 : index
    %c0_39 = arith.constant 0 : index
    %c0_40 = arith.constant 0 : index
    %c0_41 = arith.constant 0 : index
    %45 = vector.load %arg12[%c0_38, %c0_39, %c0_40, %c0_41] : memref<3x18x24x16xf32, #tpu.memory_space<vmem>>, vector<1x16x16x16xf32>
    %46 = vector.shape_cast %45 : vector<1x16x16x16xf32> to vector<16x16x16xf32>
    %47 = vector.shape_cast %46 : vector<16x16x16xf32> to vector<256x16xf32>
    %48 = vector.extract_strided_slice %43 {offsets = [0, 0], sizes = [1, 16], strides = [1, 1]} : vector<9x16xf32> to vector<1x16xf32>
    %49 = vector.broadcast %48 : vector<1x16xf32> to vector<256x16xf32>
    %50 = arith.mulf %47, %49 : vector<256x16xf32>
    %51 = arith.addf %44, %50 : vector<256x16xf32>
    %c0_42 = arith.constant 0 : index
    %c0_43 = arith.constant 0 : index
    %c1_44 = arith.constant 1 : index
    %c0_45 = arith.constant 0 : index
    %52 = vector.load %arg12[%c0_42, %c0_43, %c1_44, %c0_45] : memref<3x18x24x16xf32, #tpu.memory_space<vmem>>, vector<1x16x16x16xf32>
    %53 = vector.shape_cast %52 : vector<1x16x16x16xf32> to vector<16x16x16xf32>
    %54 = vector.shape_cast %53 : vector<16x16x16xf32> to vector<256x16xf32>
    %55 = vector.extract_strided_slice %43 {offsets = [1, 0], sizes = [1, 16], strides = [1, 1]} : vector<9x16xf32> to vector<1x16xf32>
    %56 = vector.broadcast %55 : vector<1x16xf32> to vector<256x16xf32>
    %57 = arith.mulf %54, %56 : vector<256x16xf32>
    %58 = arith.addf %51, %57 : vector<256x16xf32>
    %c0_46 = arith.constant 0 : index
    %c0_47 = arith.constant 0 : index
    %c2_48 = arith.constant 2 : index
    %c0_49 = arith.constant 0 : index
    %59 = vector.load %arg12[%c0_46, %c0_47, %c2_48, %c0_49] : memref<3x18x24x16xf32, #tpu.memory_space<vmem>>, vector<1x16x16x16xf32>
    %60 = vector.shape_cast %59 : vector<1x16x16x16xf32> to vector<16x16x16xf32>
    %61 = vector.shape_cast %60 : vector<16x16x16xf32> to vector<256x16xf32>
    %62 = vector.extract_strided_slice %43 {offsets = [2, 0], sizes = [1, 16], strides = [1, 1]} : vector<9x16xf32> to vector<1x16xf32>
    %63 = vector.broadcast %62 : vector<1x16xf32> to vector<256x16xf32>
    %64 = arith.mulf %61, %63 : vector<256x16xf32>
    %65 = arith.addf %58, %64 : vector<256x16xf32>
    %c0_50 = arith.constant 0 : index
    %c1_51 = arith.constant 1 : index
    %c0_52 = arith.constant 0 : index
    %c0_53 = arith.constant 0 : index
    %66 = vector.load %arg12[%c0_50, %c1_51, %c0_52, %c0_53] : memref<3x18x24x16xf32, #tpu.memory_space<vmem>>, vector<1x16x16x16xf32>
    %67 = vector.shape_cast %66 : vector<1x16x16x16xf32> to vector<16x16x16xf32>
    %68 = vector.shape_cast %67 : vector<16x16x16xf32> to vector<256x16xf32>
    %69 = vector.extract_strided_slice %43 {offsets = [3, 0], sizes = [1, 16], strides = [1, 1]} : vector<9x16xf32> to vector<1x16xf32>
    %70 = vector.broadcast %69 : vector<1x16xf32> to vector<256x16xf32>
    %71 = arith.mulf %68, %70 : vector<256x16xf32>
    %72 = arith.addf %65, %71 : vector<256x16xf32>
    %c0_54 = arith.constant 0 : index
    %c1_55 = arith.constant 1 : index
    %c1_56 = arith.constant 1 : index
    %c0_57 = arith.constant 0 : index
    %73 = vector.load %arg12[%c0_54, %c1_55, %c1_56, %c0_57] : memref<3x18x24x16xf32, #tpu.memory_space<vmem>>, vector<1x16x16x16xf32>
    %74 = vector.shape_cast %73 : vector<1x16x16x16xf32> to vector<16x16x16xf32>
    %75 = vector.shape_cast %74 : vector<16x16x16xf32> to vector<256x16xf32>
    %76 = vector.extract_strided_slice %43 {offsets = [4, 0], sizes = [1, 16], strides = [1, 1]} : vector<9x16xf32> to vector<1x16xf32>
    %77 = vector.broadcast %76 : vector<1x16xf32> to vector<256x16xf32>
    %78 = arith.mulf %75, %77 : vector<256x16xf32>
    %79 = arith.addf %72, %78 : vector<256x16xf32>
    %c0_58 = arith.constant 0 : index
    %c1_59 = arith.constant 1 : index
    %c2_60 = arith.constant 2 : index
    %c0_61 = arith.constant 0 : index
    %80 = vector.load %arg12[%c0_58, %c1_59, %c2_60, %c0_61] : memref<3x18x24x16xf32, #tpu.memory_space<vmem>>, vector<1x16x16x16xf32>
    %81 = vector.shape_cast %80 : vector<1x16x16x16xf32> to vector<16x16x16xf32>
    %82 = vector.shape_cast %81 : vector<16x16x16xf32> to vector<256x16xf32>
    %83 = vector.extract_strided_slice %43 {offsets = [5, 0], sizes = [1, 16], strides = [1, 1]} : vector<9x16xf32> to vector<1x16xf32>
    %84 = vector.broadcast %83 : vector<1x16xf32> to vector<256x16xf32>
    %85 = arith.mulf %82, %84 : vector<256x16xf32>
    %86 = arith.addf %79, %85 : vector<256x16xf32>
    %c0_62 = arith.constant 0 : index
    %c2_63 = arith.constant 2 : index
    %c0_64 = arith.constant 0 : index
    %c0_65 = arith.constant 0 : index
    %87 = vector.load %arg12[%c0_62, %c2_63, %c0_64, %c0_65] : memref<3x18x24x16xf32, #tpu.memory_space<vmem>>, vector<1x16x16x16xf32>
    %88 = vector.shape_cast %87 : vector<1x16x16x16xf32> to vector<16x16x16xf32>
    %89 = vector.shape_cast %88 : vector<16x16x16xf32> to vector<256x16xf32>
    %90 = vector.extract_strided_slice %43 {offsets = [6, 0], sizes = [1, 16], strides = [1, 1]} : vector<9x16xf32> to vector<1x16xf32>
    %91 = vector.broadcast %90 : vector<1x16xf32> to vector<256x16xf32>
    %92 = arith.mulf %89, %91 : vector<256x16xf32>
    %93 = arith.addf %86, %92 : vector<256x16xf32>
    %c0_66 = arith.constant 0 : index
    %c2_67 = arith.constant 2 : index
    %c1_68 = arith.constant 1 : index
    %c0_69 = arith.constant 0 : index
    %94 = vector.load %arg12[%c0_66, %c2_67, %c1_68, %c0_69] : memref<3x18x24x16xf32, #tpu.memory_space<vmem>>, vector<1x16x16x16xf32>
    %95 = vector.shape_cast %94 : vector<1x16x16x16xf32> to vector<16x16x16xf32>
    %96 = vector.shape_cast %95 : vector<16x16x16xf32> to vector<256x16xf32>
    %97 = vector.extract_strided_slice %43 {offsets = [7, 0], sizes = [1, 16], strides = [1, 1]} : vector<9x16xf32> to vector<1x16xf32>
    %98 = vector.broadcast %97 : vector<1x16xf32> to vector<256x16xf32>
    %99 = arith.mulf %96, %98 : vector<256x16xf32>
    %100 = arith.addf %93, %99 : vector<256x16xf32>
    %c0_70 = arith.constant 0 : index
    %c2_71 = arith.constant 2 : index
    %c2_72 = arith.constant 2 : index
    %c0_73 = arith.constant 0 : index
    %101 = vector.load %arg12[%c0_70, %c2_71, %c2_72, %c0_73] : memref<3x18x24x16xf32, #tpu.memory_space<vmem>>, vector<1x16x16x16xf32>
    %102 = vector.shape_cast %101 : vector<1x16x16x16xf32> to vector<16x16x16xf32>
    %103 = vector.shape_cast %102 : vector<16x16x16xf32> to vector<256x16xf32>
    %104 = vector.extract_strided_slice %43 {offsets = [8, 0], sizes = [1, 16], strides = [1, 1]} : vector<9x16xf32> to vector<1x16xf32>
    %105 = vector.broadcast %104 : vector<1x16xf32> to vector<256x16xf32>
    %106 = arith.mulf %103, %105 : vector<256x16xf32>
    %107 = arith.addf %100, %106 : vector<256x16xf32>
    %c0_74 = arith.constant 0 : index
    %c0_75 = arith.constant 0 : index
    %c0_76 = arith.constant 0 : index
    %108 = vector.load %arg6[%c0_74, %c0_75, %c0_76] : memref<3x1x16xf32, #tpu.memory_space<vmem>>, vector<1x1x16xf32>
    %109 = vector.shape_cast %108 : vector<1x1x16xf32> to vector<1x16xf32>
    %110 = vector.broadcast %109 : vector<1x16xf32> to vector<256x16xf32>
    %111 = arith.addf %107, %110 : vector<256x16xf32>
    %c1_77 = arith.constant 1 : index
    %c0_78 = arith.constant 0 : index
    %c0_79 = arith.constant 0 : index
    %112 = vector.load %arg5[%c1_77, %c0_78, %c0_79] : memref<3x9x16xf32, #tpu.memory_space<vmem>>, vector<1x9x16xf32>
    %113 = vector.shape_cast %112 : vector<1x9x16xf32> to vector<9x16xf32>
    %cst_80 = arith.constant 0.000000e+00 : f32
    %114 = vector.broadcast %cst_80 : f32 to vector<256x16xf32>
    %c1_81 = arith.constant 1 : index
    %c0_82 = arith.constant 0 : index
    %c0_83 = arith.constant 0 : index
    %c0_84 = arith.constant 0 : index
    %115 = vector.load %arg12[%c1_81, %c0_82, %c0_83, %c0_84] : memref<3x18x24x16xf32, #tpu.memory_space<vmem>>, vector<1x16x16x16xf32>
    %116 = vector.shape_cast %115 : vector<1x16x16x16xf32> to vector<16x16x16xf32>
    %117 = vector.shape_cast %116 : vector<16x16x16xf32> to vector<256x16xf32>
    %118 = vector.extract_strided_slice %113 {offsets = [0, 0], sizes = [1, 16], strides = [1, 1]} : vector<9x16xf32> to vector<1x16xf32>
    %119 = vector.broadcast %118 : vector<1x16xf32> to vector<256x16xf32>
    %120 = arith.mulf %117, %119 : vector<256x16xf32>
    %121 = arith.addf %114, %120 : vector<256x16xf32>
    %c1_85 = arith.constant 1 : index
    %c0_86 = arith.constant 0 : index
    %c1_87 = arith.constant 1 : index
    %c0_88 = arith.constant 0 : index
    %122 = vector.load %arg12[%c1_85, %c0_86, %c1_87, %c0_88] : memref<3x18x24x16xf32, #tpu.memory_space<vmem>>, vector<1x16x16x16xf32>
    %123 = vector.shape_cast %122 : vector<1x16x16x16xf32> to vector<16x16x16xf32>
    %124 = vector.shape_cast %123 : vector<16x16x16xf32> to vector<256x16xf32>
    %125 = vector.extract_strided_slice %113 {offsets = [1, 0], sizes = [1, 16], strides = [1, 1]} : vector<9x16xf32> to vector<1x16xf32>
    %126 = vector.broadcast %125 : vector<1x16xf32> to vector<256x16xf32>
    %127 = arith.mulf %124, %126 : vector<256x16xf32>
    %128 = arith.addf %121, %127 : vector<256x16xf32>
    %c1_89 = arith.constant 1 : index
    %c0_90 = arith.constant 0 : index
    %c2_91 = arith.constant 2 : index
    %c0_92 = arith.constant 0 : index
    %129 = vector.load %arg12[%c1_89, %c0_90, %c2_91, %c0_92] : memref<3x18x24x16xf32, #tpu.memory_space<vmem>>, vector<1x16x16x16xf32>
    %130 = vector.shape_cast %129 : vector<1x16x16x16xf32> to vector<16x16x16xf32>
    %131 = vector.shape_cast %130 : vector<16x16x16xf32> to vector<256x16xf32>
    %132 = vector.extract_strided_slice %113 {offsets = [2, 0], sizes = [1, 16], strides = [1, 1]} : vector<9x16xf32> to vector<1x16xf32>
    %133 = vector.broadcast %132 : vector<1x16xf32> to vector<256x16xf32>
    %134 = arith.mulf %131, %133 : vector<256x16xf32>
    %135 = arith.addf %128, %134 : vector<256x16xf32>
    %c1_93 = arith.constant 1 : index
    %c1_94 = arith.constant 1 : index
    %c0_95 = arith.constant 0 : index
    %c0_96 = arith.constant 0 : index
    %136 = vector.load %arg12[%c1_93, %c1_94, %c0_95, %c0_96] : memref<3x18x24x16xf32, #tpu.memory_space<vmem>>, vector<1x16x16x16xf32>
    %137 = vector.shape_cast %136 : vector<1x16x16x16xf32> to vector<16x16x16xf32>
    %138 = vector.shape_cast %137 : vector<16x16x16xf32> to vector<256x16xf32>
    %139 = vector.extract_strided_slice %113 {offsets = [3, 0], sizes = [1, 16], strides = [1, 1]} : vector<9x16xf32> to vector<1x16xf32>
    %140 = vector.broadcast %139 : vector<1x16xf32> to vector<256x16xf32>
    %141 = arith.mulf %138, %140 : vector<256x16xf32>
    %142 = arith.addf %135, %141 : vector<256x16xf32>
    %c1_97 = arith.constant 1 : index
    %c1_98 = arith.constant 1 : index
    %c1_99 = arith.constant 1 : index
    %c0_100 = arith.constant 0 : index
    %143 = vector.load %arg12[%c1_97, %c1_98, %c1_99, %c0_100] : memref<3x18x24x16xf32, #tpu.memory_space<vmem>>, vector<1x16x16x16xf32>
    %144 = vector.shape_cast %143 : vector<1x16x16x16xf32> to vector<16x16x16xf32>
    %145 = vector.shape_cast %144 : vector<16x16x16xf32> to vector<256x16xf32>
    %146 = vector.extract_strided_slice %113 {offsets = [4, 0], sizes = [1, 16], strides = [1, 1]} : vector<9x16xf32> to vector<1x16xf32>
    %147 = vector.broadcast %146 : vector<1x16xf32> to vector<256x16xf32>
    %148 = arith.mulf %145, %147 : vector<256x16xf32>
    %149 = arith.addf %142, %148 : vector<256x16xf32>
    %c1_101 = arith.constant 1 : index
    %c1_102 = arith.constant 1 : index
    %c2_103 = arith.constant 2 : index
    %c0_104 = arith.constant 0 : index
    %150 = vector.load %arg12[%c1_101, %c1_102, %c2_103, %c0_104] : memref<3x18x24x16xf32, #tpu.memory_space<vmem>>, vector<1x16x16x16xf32>
    %151 = vector.shape_cast %150 : vector<1x16x16x16xf32> to vector<16x16x16xf32>
    %152 = vector.shape_cast %151 : vector<16x16x16xf32> to vector<256x16xf32>
    %153 = vector.extract_strided_slice %113 {offsets = [5, 0], sizes = [1, 16], strides = [1, 1]} : vector<9x16xf32> to vector<1x16xf32>
    %154 = vector.broadcast %153 : vector<1x16xf32> to vector<256x16xf32>
    %155 = arith.mulf %152, %154 : vector<256x16xf32>
    %156 = arith.addf %149, %155 : vector<256x16xf32>
    %c1_105 = arith.constant 1 : index
    %c2_106 = arith.constant 2 : index
    %c0_107 = arith.constant 0 : index
    %c0_108 = arith.constant 0 : index
    %157 = vector.load %arg12[%c1_105, %c2_106, %c0_107, %c0_108] : memref<3x18x24x16xf32, #tpu.memory_space<vmem>>, vector<1x16x16x16xf32>
    %158 = vector.shape_cast %157 : vector<1x16x16x16xf32> to vector<16x16x16xf32>
    %159 = vector.shape_cast %158 : vector<16x16x16xf32> to vector<256x16xf32>
    %160 = vector.extract_strided_slice %113 {offsets = [6, 0], sizes = [1, 16], strides = [1, 1]} : vector<9x16xf32> to vector<1x16xf32>
    %161 = vector.broadcast %160 : vector<1x16xf32> to vector<256x16xf32>
    %162 = arith.mulf %159, %161 : vector<256x16xf32>
    %163 = arith.addf %156, %162 : vector<256x16xf32>
    %c1_109 = arith.constant 1 : index
    %c2_110 = arith.constant 2 : index
    %c1_111 = arith.constant 1 : index
    %c0_112 = arith.constant 0 : index
    %164 = vector.load %arg12[%c1_109, %c2_110, %c1_111, %c0_112] : memref<3x18x24x16xf32, #tpu.memory_space<vmem>>, vector<1x16x16x16xf32>
    %165 = vector.shape_cast %164 : vector<1x16x16x16xf32> to vector<16x16x16xf32>
    %166 = vector.shape_cast %165 : vector<16x16x16xf32> to vector<256x16xf32>
    %167 = vector.extract_strided_slice %113 {offsets = [7, 0], sizes = [1, 16], strides = [1, 1]} : vector<9x16xf32> to vector<1x16xf32>
    %168 = vector.broadcast %167 : vector<1x16xf32> to vector<256x16xf32>
    %169 = arith.mulf %166, %168 : vector<256x16xf32>
    %170 = arith.addf %163, %169 : vector<256x16xf32>
    %c1_113 = arith.constant 1 : index
    %c2_114 = arith.constant 2 : index
    %c2_115 = arith.constant 2 : index
    %c0_116 = arith.constant 0 : index
    %171 = vector.load %arg12[%c1_113, %c2_114, %c2_115, %c0_116] : memref<3x18x24x16xf32, #tpu.memory_space<vmem>>, vector<1x16x16x16xf32>
    %172 = vector.shape_cast %171 : vector<1x16x16x16xf32> to vector<16x16x16xf32>
    %173 = vector.shape_cast %172 : vector<16x16x16xf32> to vector<256x16xf32>
    %174 = vector.extract_strided_slice %113 {offsets = [8, 0], sizes = [1, 16], strides = [1, 1]} : vector<9x16xf32> to vector<1x16xf32>
    %175 = vector.broadcast %174 : vector<1x16xf32> to vector<256x16xf32>
    %176 = arith.mulf %173, %175 : vector<256x16xf32>
    %177 = arith.addf %170, %176 : vector<256x16xf32>
    %c1_117 = arith.constant 1 : index
    %c0_118 = arith.constant 0 : index
    %c0_119 = arith.constant 0 : index
    %178 = vector.load %arg6[%c1_117, %c0_118, %c0_119] : memref<3x1x16xf32, #tpu.memory_space<vmem>>, vector<1x1x16xf32>
    %179 = vector.shape_cast %178 : vector<1x1x16xf32> to vector<1x16xf32>
    %180 = vector.broadcast %179 : vector<1x16xf32> to vector<256x16xf32>
    %181 = arith.addf %177, %180 : vector<256x16xf32>
    %c2_120 = arith.constant 2 : index
    %c0_121 = arith.constant 0 : index
    %c0_122 = arith.constant 0 : index
    %182 = vector.load %arg5[%c2_120, %c0_121, %c0_122] : memref<3x9x16xf32, #tpu.memory_space<vmem>>, vector<1x9x16xf32>
    %183 = vector.shape_cast %182 : vector<1x9x16xf32> to vector<9x16xf32>
    %cst_123 = arith.constant 0.000000e+00 : f32
    %184 = vector.broadcast %cst_123 : f32 to vector<256x16xf32>
    %c2_124 = arith.constant 2 : index
    %c0_125 = arith.constant 0 : index
    %c0_126 = arith.constant 0 : index
    %c0_127 = arith.constant 0 : index
    %185 = vector.load %arg12[%c2_124, %c0_125, %c0_126, %c0_127] : memref<3x18x24x16xf32, #tpu.memory_space<vmem>>, vector<1x16x16x16xf32>
    %186 = vector.shape_cast %185 : vector<1x16x16x16xf32> to vector<16x16x16xf32>
    %187 = vector.shape_cast %186 : vector<16x16x16xf32> to vector<256x16xf32>
    %188 = vector.extract_strided_slice %183 {offsets = [0, 0], sizes = [1, 16], strides = [1, 1]} : vector<9x16xf32> to vector<1x16xf32>
    %189 = vector.broadcast %188 : vector<1x16xf32> to vector<256x16xf32>
    %190 = arith.mulf %187, %189 : vector<256x16xf32>
    %191 = arith.addf %184, %190 : vector<256x16xf32>
    %c2_128 = arith.constant 2 : index
    %c0_129 = arith.constant 0 : index
    %c1_130 = arith.constant 1 : index
    %c0_131 = arith.constant 0 : index
    %192 = vector.load %arg12[%c2_128, %c0_129, %c1_130, %c0_131] : memref<3x18x24x16xf32, #tpu.memory_space<vmem>>, vector<1x16x16x16xf32>
    %193 = vector.shape_cast %192 : vector<1x16x16x16xf32> to vector<16x16x16xf32>
    %194 = vector.shape_cast %193 : vector<16x16x16xf32> to vector<256x16xf32>
    %195 = vector.extract_strided_slice %183 {offsets = [1, 0], sizes = [1, 16], strides = [1, 1]} : vector<9x16xf32> to vector<1x16xf32>
    %196 = vector.broadcast %195 : vector<1x16xf32> to vector<256x16xf32>
    %197 = arith.mulf %194, %196 : vector<256x16xf32>
    %198 = arith.addf %191, %197 : vector<256x16xf32>
    %c2_132 = arith.constant 2 : index
    %c0_133 = arith.constant 0 : index
    %c2_134 = arith.constant 2 : index
    %c0_135 = arith.constant 0 : index
    %199 = vector.load %arg12[%c2_132, %c0_133, %c2_134, %c0_135] : memref<3x18x24x16xf32, #tpu.memory_space<vmem>>, vector<1x16x16x16xf32>
    %200 = vector.shape_cast %199 : vector<1x16x16x16xf32> to vector<16x16x16xf32>
    %201 = vector.shape_cast %200 : vector<16x16x16xf32> to vector<256x16xf32>
    %202 = vector.extract_strided_slice %183 {offsets = [2, 0], sizes = [1, 16], strides = [1, 1]} : vector<9x16xf32> to vector<1x16xf32>
    %203 = vector.broadcast %202 : vector<1x16xf32> to vector<256x16xf32>
    %204 = arith.mulf %201, %203 : vector<256x16xf32>
    %205 = arith.addf %198, %204 : vector<256x16xf32>
    %c2_136 = arith.constant 2 : index
    %c1_137 = arith.constant 1 : index
    %c0_138 = arith.constant 0 : index
    %c0_139 = arith.constant 0 : index
    %206 = vector.load %arg12[%c2_136, %c1_137, %c0_138, %c0_139] : memref<3x18x24x16xf32, #tpu.memory_space<vmem>>, vector<1x16x16x16xf32>
    %207 = vector.shape_cast %206 : vector<1x16x16x16xf32> to vector<16x16x16xf32>
    %208 = vector.shape_cast %207 : vector<16x16x16xf32> to vector<256x16xf32>
    %209 = vector.extract_strided_slice %183 {offsets = [3, 0], sizes = [1, 16], strides = [1, 1]} : vector<9x16xf32> to vector<1x16xf32>
    %210 = vector.broadcast %209 : vector<1x16xf32> to vector<256x16xf32>
    %211 = arith.mulf %208, %210 : vector<256x16xf32>
    %212 = arith.addf %205, %211 : vector<256x16xf32>
    %c2_140 = arith.constant 2 : index
    %c1_141 = arith.constant 1 : index
    %c1_142 = arith.constant 1 : index
    %c0_143 = arith.constant 0 : index
    %213 = vector.load %arg12[%c2_140, %c1_141, %c1_142, %c0_143] : memref<3x18x24x16xf32, #tpu.memory_space<vmem>>, vector<1x16x16x16xf32>
    %214 = vector.shape_cast %213 : vector<1x16x16x16xf32> to vector<16x16x16xf32>
    %215 = vector.shape_cast %214 : vector<16x16x16xf32> to vector<256x16xf32>
    %216 = vector.extract_strided_slice %183 {offsets = [4, 0], sizes = [1, 16], strides = [1, 1]} : vector<9x16xf32> to vector<1x16xf32>
    %217 = vector.broadcast %216 : vector<1x16xf32> to vector<256x16xf32>
    %218 = arith.mulf %215, %217 : vector<256x16xf32>
    %219 = arith.addf %212, %218 : vector<256x16xf32>
    %c2_144 = arith.constant 2 : index
    %c1_145 = arith.constant 1 : index
    %c2_146 = arith.constant 2 : index
    %c0_147 = arith.constant 0 : index
    %220 = vector.load %arg12[%c2_144, %c1_145, %c2_146, %c0_147] : memref<3x18x24x16xf32, #tpu.memory_space<vmem>>, vector<1x16x16x16xf32>
    %221 = vector.shape_cast %220 : vector<1x16x16x16xf32> to vector<16x16x16xf32>
    %222 = vector.shape_cast %221 : vector<16x16x16xf32> to vector<256x16xf32>
    %223 = vector.extract_strided_slice %183 {offsets = [5, 0], sizes = [1, 16], strides = [1, 1]} : vector<9x16xf32> to vector<1x16xf32>
    %224 = vector.broadcast %223 : vector<1x16xf32> to vector<256x16xf32>
    %225 = arith.mulf %222, %224 : vector<256x16xf32>
    %226 = arith.addf %219, %225 : vector<256x16xf32>
    %c2_148 = arith.constant 2 : index
    %c2_149 = arith.constant 2 : index
    %c0_150 = arith.constant 0 : index
    %c0_151 = arith.constant 0 : index
    %227 = vector.load %arg12[%c2_148, %c2_149, %c0_150, %c0_151] : memref<3x18x24x16xf32, #tpu.memory_space<vmem>>, vector<1x16x16x16xf32>
    %228 = vector.shape_cast %227 : vector<1x16x16x16xf32> to vector<16x16x16xf32>
    %229 = vector.shape_cast %228 : vector<16x16x16xf32> to vector<256x16xf32>
    %230 = vector.extract_strided_slice %183 {offsets = [6, 0], sizes = [1, 16], strides = [1, 1]} : vector<9x16xf32> to vector<1x16xf32>
    %231 = vector.broadcast %230 : vector<1x16xf32> to vector<256x16xf32>
    %232 = arith.mulf %229, %231 : vector<256x16xf32>
    %233 = arith.addf %226, %232 : vector<256x16xf32>
    %c2_152 = arith.constant 2 : index
    %c2_153 = arith.constant 2 : index
    %c1_154 = arith.constant 1 : index
    %c0_155 = arith.constant 0 : index
    %234 = vector.load %arg12[%c2_152, %c2_153, %c1_154, %c0_155] : memref<3x18x24x16xf32, #tpu.memory_space<vmem>>, vector<1x16x16x16xf32>
    %235 = vector.shape_cast %234 : vector<1x16x16x16xf32> to vector<16x16x16xf32>
    %236 = vector.shape_cast %235 : vector<16x16x16xf32> to vector<256x16xf32>
    %237 = vector.extract_strided_slice %183 {offsets = [7, 0], sizes = [1, 16], strides = [1, 1]} : vector<9x16xf32> to vector<1x16xf32>
    %238 = vector.broadcast %237 : vector<1x16xf32> to vector<256x16xf32>
    %239 = arith.mulf %236, %238 : vector<256x16xf32>
    %240 = arith.addf %233, %239 : vector<256x16xf32>
    %c2_156 = arith.constant 2 : index
    %c2_157 = arith.constant 2 : index
    %c2_158 = arith.constant 2 : index
    %c0_159 = arith.constant 0 : index
    %241 = vector.load %arg12[%c2_156, %c2_157, %c2_158, %c0_159] : memref<3x18x24x16xf32, #tpu.memory_space<vmem>>, vector<1x16x16x16xf32>
    %242 = vector.shape_cast %241 : vector<1x16x16x16xf32> to vector<16x16x16xf32>
    %243 = vector.shape_cast %242 : vector<16x16x16xf32> to vector<256x16xf32>
    %244 = vector.extract_strided_slice %183 {offsets = [8, 0], sizes = [1, 16], strides = [1, 1]} : vector<9x16xf32> to vector<1x16xf32>
    %245 = vector.broadcast %244 : vector<1x16xf32> to vector<256x16xf32>
    %246 = arith.mulf %243, %245 : vector<256x16xf32>
    %247 = arith.addf %240, %246 : vector<256x16xf32>
    %c2_160 = arith.constant 2 : index
    %c0_161 = arith.constant 0 : index
    %c0_162 = arith.constant 0 : index
    %248 = vector.load %arg6[%c2_160, %c0_161, %c0_162] : memref<3x1x16xf32, #tpu.memory_space<vmem>>, vector<1x1x16xf32>
    %249 = vector.shape_cast %248 : vector<1x1x16xf32> to vector<1x16xf32>
    %250 = vector.broadcast %249 : vector<1x16xf32> to vector<256x16xf32>
    %251 = arith.addf %247, %250 : vector<256x16xf32>
    %252 = tpu.transpose %111, [1, 0] : vector<256x16xf32> -> vector<16x256xf32>
    %253 = arith.mulf %252, %252 : vector<16x256xf32>
    %cst_163 = arith.constant dense<0.000000e+00> : vector<16xf32>
    %254 = vector.multi_reduction <add>, %253, %cst_163 [1] : vector<16x256xf32> to vector<16xf32>
    %255 = vector.shape_cast %254 : vector<16xf32> to vector<16x1xf32>
    %cst_164 = arith.constant 1.000000e-24 : f32
    %256 = vector.broadcast %cst_164 : f32 to vector<16x1xf32>
    %257 = arith.maximumf %255, %256 : vector<16x1xf32>
    %258 = math.rsqrt %257 : vector<16x1xf32>
    %259 = vector.broadcast %258 : vector<16x1xf32> to vector<16x256xf32>
    %260 = arith.mulf %252, %259 : vector<16x256xf32>
    %261 = arith.mulf %181, %181 : vector<256x16xf32>
    %cst_165 = arith.constant dense<0.000000e+00> : vector<16xf32>
    %262 = vector.multi_reduction <add>, %261, %cst_165 [0] : vector<256x16xf32> to vector<16xf32>
    %263 = vector.shape_cast %262 : vector<16xf32> to vector<1x16xf32>
    %cst_166 = arith.constant 1.000000e-24 : f32
    %264 = vector.broadcast %cst_166 : f32 to vector<1x16xf32>
    %265 = arith.maximumf %263, %264 : vector<1x16xf32>
    %266 = math.rsqrt %265 : vector<1x16xf32>
    %267 = vector.broadcast %266 : vector<1x16xf32> to vector<256x16xf32>
    %268 = arith.mulf %181, %267 : vector<256x16xf32>
    %cst_167 = arith.constant dense<0.000000e+00> : vector<16x16xf32>
    %269 = tpu.matmul %260, %268, %cst_167 {dimension_numbers = #tpu.dot_dimension_numbers<[1], [0], [0], [1], [0, 0, 1, 1], [], []>} : vector<16x256xf32>, vector<256x16xf32>, vector<16x16xf32> -> vector<16x16xf32>
    %c0_168 = arith.constant 0 : index
    %c0_169 = arith.constant 0 : index
    %270 = vector.load %arg9[%c0_168, %c0_169] : memref<16x1xf32, #tpu.memory_space<vmem>>, vector<16x1xf32>
    %271 = vector.broadcast %270 : vector<16x1xf32> to vector<16x16xf32>
    %272 = arith.mulf %269, %271 : vector<16x16xf32>
    %c0_170 = arith.constant 0 : index
    %c0_171 = arith.constant 0 : index
    %273 = vector.load %arg10[%c0_170, %c0_171] : memref<16x16xf32, #tpu.memory_space<vmem>>, vector<16x16xf32>
    %274 = arith.addf %272, %273 : vector<16x16xf32>
    %cst_172 = arith.constant dense<0xFF800000> : vector<16xf32>
    %275 = vector.multi_reduction <maximumf>, %274, %cst_172 [1] : vector<16x16xf32> to vector<16xf32>
    %276 = vector.shape_cast %275 : vector<16xf32> to vector<16x1xf32>
    %277 = vector.broadcast %276 : vector<16x1xf32> to vector<16x16xf32>
    %278 = arith.subf %274, %277 : vector<16x16xf32>
    %279 = math.exp %278 : vector<16x16xf32>
    %cst_173 = arith.constant dense<0.000000e+00> : vector<16xf32>
    %280 = vector.multi_reduction <add>, %279, %cst_173 [1] : vector<16x16xf32> to vector<16xf32>
    %281 = vector.shape_cast %280 : vector<16xf32> to vector<16x1xf32>
    %282 = tpu.reciprocal %281 {approx = true} : vector<16x1xf32> -> vector<16x1xf32>
    %283 = vector.broadcast %282 : vector<16x1xf32> to vector<16x16xf32>
    %284 = arith.mulf %279, %283 : vector<16x16xf32>
    %cst_174 = arith.constant dense<0.000000e+00> : vector<16x256xf32>
    %285 = tpu.matmul %284, %251, %cst_174 {dimension_numbers = #tpu.dot_dimension_numbers<[1], [1], [0], [0], [0, 0, 1, 0], [], []>} : vector<16x16xf32>, vector<256x16xf32>, vector<16x256xf32> -> vector<16x256xf32>
    %c0_175 = arith.constant 0 : index
    %c0_176 = arith.constant 0 : index
    %286 = vector.load %arg7[%c0_175, %c0_176] : memref<16x16xf32, #tpu.memory_space<vmem>>, vector<16x16xf32>
    %cst_177 = arith.constant dense<0.000000e+00> : vector<16x256xf32>
    %287 = tpu.matmul %286, %285, %cst_177 {dimension_numbers = #tpu.dot_dimension_numbers<[1], [0], [0], [1], [0, 0, 1, 1], [], []>} : vector<16x16xf32>, vector<16x256xf32>, vector<16x256xf32> -> vector<16x256xf32>
    %c0_178 = arith.constant 0 : index
    %c0_179 = arith.constant 0 : index
    %288 = vector.load %arg8[%c0_178, %c0_179] : memref<16x1xf32, #tpu.memory_space<vmem>>, vector<16x1xf32>
    %289 = vector.broadcast %288 : vector<16x1xf32> to vector<16x256xf32>
    %290 = arith.addf %287, %289 : vector<16x256xf32>
    %c0_180 = arith.constant 0 : index
    %c0_181 = arith.constant 0 : index
    %c0_182 = arith.constant 0 : index
    %291 = vector.load %arg11[%c0_180, %c0_181, %c0_182] : memref<1x16x256xf32, #tpu.memory_space<vmem>>, vector<1x16x256xf32>
    %292 = vector.shape_cast %291 : vector<1x16x256xf32> to vector<16x256xf32>
    %293 = vector.shape_cast %290 : vector<16x256xf32> to vector<1x16x256xf32>
    tpu.vector_store %arg11[%c0_180, %c0_181, %c0_182], %293 {strides = array<i32>} : memref<1x16x256xf32, #tpu.memory_space<vmem>>, vector<1x16x256xf32>,
    return
  }
  func.func @transform_0(%arg0: i32) -> (i32, i32, i32) {
    %c0_i32 = arith.constant 0 : i32
    %c0_i32_0 = arith.constant 0 : i32
    %c0_i32_1 = arith.constant 0 : i32
    return %arg0, %c0_i32, %c0_i32_0 : i32, i32, i32
  }
  func.func @transform_1(%arg0: i32) -> (i32, i32) {
    %c0_i32 = arith.constant 0 : i32
    %c0_i32_0 = arith.constant 0 : i32
    %c0_i32_1 = arith.constant 0 : i32
    return %c0_i32, %c0_i32_0 : i32, i32
  }
  func.func @transform_2(%arg0: i32) -> (i32, i32, i32) {
    %c0_i32 = arith.constant 0 : i32
    %c0_i32_0 = arith.constant 0 : i32
    %c0_i32_1 = arith.constant 0 : i32
    %c0_i32_2 = arith.constant 0 : i32
    return %c0_i32, %c0_i32_0, %c0_i32_1 : i32, i32, i32
  }
  func.func @transform_3(%arg0: i32) -> (i32, i32, i32) {
    %c0_i32 = arith.constant 0 : i32
    %c0_i32_0 = arith.constant 0 : i32
    %c0_i32_1 = arith.constant 0 : i32
    %c0_i32_2 = arith.constant 0 : i32
    return %c0_i32, %c0_i32_0, %c0_i32_1 : i32, i32, i32
  }
  func.func @transform_4(%arg0: i32) -> (i32, i32, i32) {
    %c0_i32 = arith.constant 0 : i32
    %c0_i32_0 = arith.constant 0 : i32
    %c0_i32_1 = arith.constant 0 : i32
    %c0_i32_2 = arith.constant 0 : i32
    return %c0_i32, %c0_i32_0, %c0_i32_1 : i32, i32, i32
  }
  func.func @transform_5(%arg0: i32) -> (i32, i32, i32) {
    %c0_i32 = arith.constant 0 : i32
    %c0_i32_0 = arith.constant 0 : i32
    %c0_i32_1 = arith.constant 0 : i32
    %c0_i32_2 = arith.constant 0 : i32
    return %c0_i32, %c0_i32_0, %c0_i32_1 : i32, i32, i32
  }
  func.func @transform_6(%arg0: i32) -> (i32, i32) {
    %c0_i32 = arith.constant 0 : i32
    %c0_i32_0 = arith.constant 0 : i32
    %c0_i32_1 = arith.constant 0 : i32
    return %c0_i32, %c0_i32_0 : i32, i32
  }
  func.func @transform_7(%arg0: i32) -> (i32, i32) {
    %c0_i32 = arith.constant 0 : i32
    %c0_i32_0 = arith.constant 0 : i32
    %c0_i32_1 = arith.constant 0 : i32
    return %c0_i32, %c0_i32_0 : i32, i32
  }
  func.func @transform_8(%arg0: i32) -> (i32, i32) {
    %c0_i32 = arith.constant 0 : i32
    %c0_i32_0 = arith.constant 0 : i32
    %c0_i32_1 = arith.constant 0 : i32
    return %c0_i32, %c0_i32_0 : i32, i32
  }
  func.func @transform_9(%arg0: i32) -> (i32, i32) {
    %c0_i32 = arith.constant 0 : i32
    %c0_i32_0 = arith.constant 0 : i32
    %c0_i32_1 = arith.constant 0 : i32
    return %c0_i32, %c0_i32_0 : i32, i32
  }
  func.func @transform_10(%arg0: i32) -> (i32, i32, i32) {
    %c0_i32 = arith.constant 0 : i32
    %c0_i32_0 = arith.constant 0 : i32
    %c0_i32_1 = arith.constant 0 : i32
    return %arg0, %c0_i32, %c0_i32_0 : i32, i32, i32
  }
}

</mosaic_0001>

<llo_original>
// kernel: tpu_custom_call.1
$region0: #{tpu_custom_call.1}
  #allocation0 [shape = 'u32[]', space=smem, size = 0x4, offset = 0x4, fixed_abs, tag = 'smem constant byte address 0x4 - core index']
  #allocation1 [shape = 'u32[144,128]{1,0:T(1,128)}', space=vmem, size = 0x12000, scoped, tag = 'internal scratch']
  #allocation2 [shape = 'f32[3,18,24,16]{3,2,1,0:T(8,128)}', space=vmem, size = 0xa2000, scoped, tag = 'scratch operand']
  %s0 = inlined_call_operand.vmem [shape: f32[2,432,16], index: 0, kind: input, shape index: {}]
  %s1 = inlined_call_operand.vmem [shape: f32[432,1], index: 1, kind: input, shape index: {}]
  %s2 = inlined_call_operand.vmem [shape: f32[3,16,16], index: 2, kind: input, shape index: {}]
  %s3 = inlined_call_operand.vmem [shape: f32[3,1,16], index: 3, kind: input, shape index: {}]
  %s4 = inlined_call_operand.vmem [shape: f32[3,9,16], index: 4, kind: input, shape index: {}]
  %s5 = inlined_call_operand.vmem [shape: f32[3,1,16], index: 5, kind: input, shape index: {}]
  %s6 = inlined_call_operand.vmem [shape: f32[16,16], index: 6, kind: input, shape index: {}]
  %s7 = inlined_call_operand.vmem [shape: f32[16,1], index: 7, kind: input, shape index: {}]
  %s8 = inlined_call_operand.vmem [shape: f32[16,1], index: 8, kind: input, shape index: {}]
  %s9 = inlined_call_operand.vmem [shape: f32[16,16], index: 9, kind: input, shape index: {}]
  %s10 = inlined_call_operand.hbm [shape: f32[2,16,256], index: 10, kind: output, shape index: {}]
  %s11 = sld [smem:[#allocation0]]
  $region73: #{tpu_custom_call.1} parent=0
    _
  %s13 = ssub.s32 1, %s11
  %s14 = scalar_select 0, %s13, %s11
  $region1: #{tpu_custom_call.1} parent=0
    #allocation3 [shape = 'u8[32768]{0}', space=vmem, size = 0x8000, scoped, tag = 'output window, operand 0']
    #allocation4 [shape = 's32[2]{0}', space=sflag, size = 0x8, scoped, tag = 'scoped memory for tpu_custom_call.1']
    %15 = vsyncpa [#allocation4], 0
    %s16 = scalar_lea.sflag [#allocation4], 1
    %17 = vsyncpa %s16, 0
    loop: start=0, step=1, limit=4
    $region2: #{tpu_custom_call.1} parent=1 // loop_pre_header
      _
    $region3: #{tpu_custom_call.1} parent=1 // loop_header
      %s19 = sphi 0, %s23
      %p20 = scmp.ge.s32.totalorder %s19, 4
      %s29 = sphi 0, %s31
      %s32 = sphi 0, %s29
      %s33 = sphi 0, %s32
      %s49 = sphi 0, %s33
      %s53 = sphi 0, %s53
      %s55 = sphi 0, %s53
      %s56 = sphi 0, %s55
      %s70 = sphi 0, %s56
      %s74 = sphi 0, %s74
      %s76 = sphi 0, %s74
      %s77 = sphi 0, %s76
      %s91 = sphi 0, %s77
      %s95 = sphi 0, %s95
      %s97 = sphi 0, %s95
      %s98 = sphi 0, %s97
      %s112 = sphi 0, %s98
      %s116 = sphi 0, %s116
      %s118 = sphi 0, %s116
      %s119 = sphi 0, %s118
      %s133 = sphi 0, %s119
      %s137 = sphi 0, %s137
      %s139 = sphi 0, %s137
      %s140 = sphi 0, %s139
      %s154 = sphi 0, %s140
      %s158 = sphi 0, %s158
      %s160 = sphi 0, %s158
      %s161 = sphi 0, %s160
      %s175 = sphi 0, %s161
      %s179 = sphi 0, %s179
      %s181 = sphi 0, %s179
      %s182 = sphi 0, %s181
      %s196 = sphi 0, %s182
      %s200 = sphi 0, %s200
      %s202 = sphi 0, %s200
      %s203 = sphi 0, %s202
      %s217 = sphi 0, %s203
      %s221 = sphi 0, %s221
      %s223 = sphi 0, %s221
      %s224 = sphi 0, %s223
      %s238 = sphi 0, %s224
      %s244 = sphi 0, %s246
      %s247 = sphi 0, %s244
      %s248 = sphi 0, %s247
      %s264 = sphi 0, %s248
    $region4: #{tpu_custom_call.1} parent=1 // loop_header_branch
      %22 = sbr.rel (%p20) target = $region8
    $region5: #{tpu_custom_call.1} parent=1 // loop_body
      %s24 = ssub.s32 %s19, 1
      %s25 = ssub.s32 %s19, 2
      %s26 = sadd.s32 %s19, 1
      %s27 = ssub.s32 %s19, %s26
      %p28 = scmp.eq.s32.totalorder %s27, 0
      %s30 = sadd.s32 %s29, 1
      %s31 = scalar_select %p28, %s29, %s30
      %p34 = pneg %p28
      %p35 = scmp.eq.s32.totalorder %s19, 1
      %p36 = por %p34, %p35
      %p37 = scmp.ne.s32.totalorder %s29, %s32
      %p38 = scmp.eq.s32.totalorder %s19, 0
      %p39 = por %p37, %p38
      %p40 = scmp.ne.s32.totalorder %s29, %s32
      %p41 = scmp.eq.s32.totalorder %s24, 1
      %p42 = por %p40, %p41
      %p43 = scmp.ne.s32.totalorder %s32, %s33
      %p44 = scmp.eq.s32.totalorder %s24, 0
      %p45 = por %p43, %p44
      %p46 = scmp.ne.s32.totalorder %s32, %s33
      %p47 = scmp.eq.s32.totalorder %s25, 1
      %p48 = por %p46, %p47
      %p50 = scmp.ne.s32.totalorder %s33, %s49
      %p51 = scmp.eq.s32.totalorder %s25, 0
      %p52 = por %p50, %p51
      %s54 = sadd.s32 %s53, 1
      %p57 = scmp.eq.s32.totalorder %s19, 1
      %p58 = scmp.ne.s32.totalorder %s53, %s55
      %p59 = scmp.eq.s32.totalorder %s19, 0
      %p60 = por %p58, %p59
      %p61 = scmp.ne.s32.totalorder %s53, %s55
      %p62 = scmp.eq.s32.totalorder %s24, 1
      %p63 = por %p61, %p62
      %p64 = scmp.ne.s32.totalorder %s55, %s56
      %p65 = scmp.eq.s32.totalorder %s24, 0
      %p66 = por %p64, %p65
      %p67 = scmp.ne.s32.totalorder %s55, %s56
      %p68 = scmp.eq.s32.totalorder %s25, 1
      %p69 = por %p67, %p68
      %p71 = scmp.ne.s32.totalorder %s56, %s70
      %p72 = scmp.eq.s32.totalorder %s25, 0
      %p73 = por %p71, %p72
      %s75 = sadd.s32 %s74, 1
      %p78 = scmp.eq.s32.totalorder %s19, 1
      %p79 = scmp.ne.s32.totalorder %s74, %s76
      %p80 = scmp.eq.s32.totalorder %s19, 0
      %p81 = por %p79, %p80
      %p82 = scmp.ne.s32.totalorder %s74, %s76
      %p83 = scmp.eq.s32.totalorder %s24, 1
      %p84 = por %p82, %p83
      %p85 = scmp.ne.s32.totalorder %s76, %s77
      %p86 = scmp.eq.s32.totalorder %s24, 0
      %p87 = por %p85, %p86
      %p88 = scmp.ne.s32.totalorder %s76, %s77
      %p89 = scmp.eq.s32.totalorder %s25, 1
      %p90 = por %p88, %p89
      %p92 = scmp.ne.s32.totalorder %s77, %s91
      %p93 = scmp.eq.s32.totalorder %s25, 0
      %p94 = por %p92, %p93
      %s96 = sadd.s32 %s95, 1
      %p99 = scmp.eq.s32.totalorder %s19, 1
      %p100 = scmp.ne.s32.totalorder %s95, %s97
      %p101 = scmp.eq.s32.totalorder %s19, 0
      %p102 = por %p100, %p101
      %p103 = scmp.ne.s32.totalorder %s95, %s97
      %p104 = scmp.eq.s32.totalorder %s24, 1
      %p105 = por %p103, %p104
      %p106 = scmp.ne.s32.totalorder %s97, %s98
      %p107 = scmp.eq.s32.totalorder %s24, 0
      %p108 = por %p106, %p107
      %p109 = scmp.ne.s32.totalorder %s97, %s98
      %p110 = scmp.eq.s32.totalorder %s25, 1
      %p111 = por %p109, %p110
      %p113 = scmp.ne.s32.totalorder %s98, %s112
      %p114 = scmp.eq.s32.totalorder %s25, 0
      %p115 = por %p113, %p114
      %s117 = sadd.s32 %s116, 1
      %p120 = scmp.eq.s32.totalorder %s19, 1
      %p121 = scmp.ne.s32.totalorder %s116, %s118
      %p122 = scmp.eq.s32.totalorder %s19, 0
      %p123 = por %p121, %p122
      %p124 = scmp.ne.s32.totalorder %s116, %s118
      %p125 = scmp.eq.s32.totalorder %s24, 1
      %p126 = por %p124, %p125
      %p127 = scmp.ne.s32.totalorder %s118, %s119
      %p128 = scmp.eq.s32.totalorder %s24, 0
      %p129 = por %p127, %p128
      %p130 = scmp.ne.s32.totalorder %s118, %s119
      %p131 = scmp.eq.s32.totalorder %s25, 1
      %p132 = por %p130, %p131
      %p134 = scmp.ne.s32.totalorder %s119, %s133
      %p135 = scmp.eq.s32.totalorder %s25, 0
      %p136 = por %p134, %p135
      %s138 = sadd.s32 %s137, 1
      %p141 = scmp.eq.s32.totalorder %s19, 1
      %p142 = scmp.ne.s32.totalorder %s137, %s139
      %p143 = scmp.eq.s32.totalorder %s19, 0
      %p144 = por %p142, %p143
      %p145 = scmp.ne.s32.totalorder %s137, %s139
      %p146 = scmp.eq.s32.totalorder %s24, 1
      %p147 = por %p145, %p146
      %p148 = scmp.ne.s32.totalorder %s139, %s140
      %p149 = scmp.eq.s32.totalorder %s24, 0
      %p150 = por %p148, %p149
      %p151 = scmp.ne.s32.totalorder %s139, %s140
      %p152 = scmp.eq.s32.totalorder %s25, 1
      %p153 = por %p151, %p152
      %p155 = scmp.ne.s32.totalorder %s140, %s154
      %p156 = scmp.eq.s32.totalorder %s25, 0
      %p157 = por %p155, %p156
      %s159 = sadd.s32 %s158, 1
      %p162 = scmp.eq.s32.totalorder %s19, 1
      %p163 = scmp.ne.s32.totalorder %s158, %s160
      %p164 = scmp.eq.s32.totalorder %s19, 0
      %p165 = por %p163, %p164
      %p166 = scmp.ne.s32.totalorder %s158, %s160
      %p167 = scmp.eq.s32.totalorder %s24, 1
      %p168 = por %p166, %p167
      %p169 = scmp.ne.s32.totalorder %s160, %s161
      %p170 = scmp.eq.s32.totalorder %s24, 0
      %p171 = por %p169, %p170
      %p172 = scmp.ne.s32.totalorder %s160, %s161
      %p173 = scmp.eq.s32.totalorder %s25, 1
      %p174 = por %p172, %p173
      %p176 = scmp.ne.s32.totalorder %s161, %s175
      %p177 = scmp.eq.s32.totalorder %s25, 0
      %p178 = por %p176, %p177
      %s180 = sadd.s32 %s179, 1
      %p183 = scmp.eq.s32.totalorder %s19, 1
      %p184 = scmp.ne.s32.totalorder %s179, %s181
      %p185 = scmp.eq.s32.totalorder %s19, 0
      %p186 = por %p184, %p185
      %p187 = scmp.ne.s32.totalorder %s179, %s181
      %p188 = scmp.eq.s32.totalorder %s24, 1
      %p189 = por %p187, %p188
      %p190 = scmp.ne.s32.totalorder %s181, %s182
      %p191 = scmp.eq.s32.totalorder %s24, 0
      %p192 = por %p190, %p191
      %p193 = scmp.ne.s32.totalorder %s181, %s182
      %p194 = scmp.eq.s32.totalorder %s25, 1
      %p195 = por %p193, %p194
      %p197 = scmp.ne.s32.totalorder %s182, %s196
      %p198 = scmp.eq.s32.totalorder %s25, 0
      %p199 = por %p197, %p198
      %s201 = sadd.s32 %s200, 1
      %p204 = scmp.eq.s32.totalorder %s19, 1
      %p205 = scmp.ne.s32.totalorder %s200, %s202
      %p206 = scmp.eq.s32.totalorder %s19, 0
      %p207 = por %p205, %p206
      %p208 = scmp.ne.s32.totalorder %s200, %s202
      %p209 = scmp.eq.s32.totalorder %s24, 1
      %p210 = por %p208, %p209
      %p211 = scmp.ne.s32.totalorder %s202, %s203
      %p212 = scmp.eq.s32.totalorder %s24, 0
      %p213 = por %p211, %p212
      %p214 = scmp.ne.s32.totalorder %s202, %s203
      %p215 = scmp.eq.s32.totalorder %s25, 1
      %p216 = por %p214, %p215
      %p218 = scmp.ne.s32.totalorder %s203, %s217
      %p219 = scmp.eq.s32.totalorder %s25, 0
      %p220 = por %p218, %p219
      %s222 = sadd.s32 %s221, 1
      %p225 = scmp.eq.s32.totalorder %s19, 1
      %p226 = scmp.ne.s32.totalorder %s221, %s223
      %p227 = scmp.eq.s32.totalorder %s19, 0
      %p228 = por %p226, %p227
      %p229 = scmp.ne.s32.totalorder %s221, %s223
      %p230 = scmp.eq.s32.totalorder %s24, 1
      %p231 = por %p229, %p230
      %p232 = scmp.ne.s32.totalorder %s223, %s224
      %p233 = scmp.eq.s32.totalorder %s24, 0
      %p234 = por %p232, %p233
      %p235 = scmp.ne.s32.totalorder %s223, %s224
      %p236 = scmp.eq.s32.totalorder %s25, 1
      %p237 = por %p235, %p236
      %p239 = scmp.ne.s32.totalorder %s224, %s238
      %p240 = scmp.eq.s32.totalorder %s25, 0
      %p241 = por %p239, %p240
      %s242 = ssub.s32 %s19, %s26
      %p243 = scmp.eq.s32.totalorder %s242, 0
      %s245 = sadd.s32 %s244, 1
      %s246 = scalar_select %p243, %s244, %s245
      %p249 = pneg %p243
      %p250 = scmp.eq.s32.totalorder %s19, 1
      %p251 = por %p249, %p250
      %p252 = scmp.ne.s32.totalorder %s244, %s247
      %p253 = scmp.eq.s32.totalorder %s19, 0
      %p254 = por %p252, %p253
      %p255 = scmp.ne.s32.totalorder %s244, %s247
      %p256 = scmp.eq.s32.totalorder %s24, 1
      %p257 = por %p255, %p256
      %p258 = scmp.ne.s32.totalorder %s247, %s248
      %p259 = scmp.eq.s32.totalorder %s24, 0
      %p260 = por %p258, %p259
      %p261 = scmp.ne.s32.totalorder %s247, %s248
      %p262 = scmp.eq.s32.totalorder %s25, 1
      %p263 = por %p261, %p262
      %p265 = scmp.ne.s32.totalorder %s248, %s264
      %p266 = scmp.eq.s32.totalorder %s25, 0
      %p267 = por %p265, %p266
      %p268 = scmp.le.s32.totalorder 1, %s19
      %p269 = scmp.lt.s32.totalorder %s19, 3
      %p270 = pnand %p268, %p269
      %p271 = pneg %p270
      // Predicated region
      $region9: #{tpu_custom_call.1} parent=5 // pred_check
        _
      $region10: #{tpu_custom_call.1} parent=5 // pred_check_branch
        %273 = sbr.rel (%p270) target = $region12
      $region11: #{tpu_custom_call.1} parent=5 // pred_region
        %s274 = ssub.s32 %s19, 1
        // Predicated region
        $region13: #{tpu_custom_call.1} parent=11 // pred_check
          %p275 = pneg %p66
        $region14: #{tpu_custom_call.1} parent=11 // pred_check_branch
          %277 = sbr.rel (%p275) target = $region16
        $region15: #{tpu_custom_call.1} parent=11 // pred_region
          _
        $region16: #{tpu_custom_call.1} parent=11 // pred_fallthru
          _
        // Predicated region
        $region17: #{tpu_custom_call.1} parent=11 // pred_check
          %p278 = pneg %p87
        $region18: #{tpu_custom_call.1} parent=11 // pred_check_branch
          %280 = sbr.rel (%p278) target = $region20
        $region19: #{tpu_custom_call.1} parent=11 // pred_region
          _
        $region20: #{tpu_custom_call.1} parent=11 // pred_fallthru
          _
        // Predicated region
        $region21: #{tpu_custom_call.1} parent=11 // pred_check
          %p281 = pneg %p108
        $region22: #{tpu_custom_call.1} parent=11 // pred_check_branch
          %283 = sbr.rel (%p281) target = $region24
        $region23: #{tpu_custom_call.1} parent=11 // pred_region
          _
        $region24: #{tpu_custom_call.1} parent=11 // pred_fallthru
          _
        // Predicated region
        $region25: #{tpu_custom_call.1} parent=11 // pred_check
          %p284 = pneg %p129
        $region26: #{tpu_custom_call.1} parent=11 // pred_check_branch
          %286 = sbr.rel (%p284) target = $region28
        $region27: #{tpu_custom_call.1} parent=11 // pred_region
          _
        $region28: #{tpu_custom_call.1} parent=11 // pred_fallthru
          _
        // Predicated region
        $region29: #{tpu_custom_call.1} parent=11 // pred_check
          %p287 = pneg %p150
        $region30: #{tpu_custom_call.1} parent=11 // pred_check_branch
          %289 = sbr.rel (%p287) target = $region32
        $region31: #{tpu_custom_call.1} parent=11 // pred_region
          _
        $region32: #{tpu_custom_call.1} parent=11 // pred_fallthru
          _
        // Predicated region
        $region33: #{tpu_custom_call.1} parent=11 // pred_check
          %p290 = pneg %p171
        $region34: #{tpu_custom_call.1} parent=11 // pred_check_branch
          %292 = sbr.rel (%p290) target = $region36
        $region35: #{tpu_custom_call.1} parent=11 // pred_region
          _
        $region36: #{tpu_custom_call.1} parent=11 // pred_fallthru
          _
        // Predicated region
        $region37: #{tpu_custom_call.1} parent=11 // pred_check
          %p293 = pneg %p192
        $region38: #{tpu_custom_call.1} parent=11 // pred_check_branch
          %295 = sbr.rel (%p293) target = $region40
        $region39: #{tpu_custom_call.1} parent=11 // pred_region
          _
        $region40: #{tpu_custom_call.1} parent=11 // pred_fallthru
          _
        // Predicated region
        $region41: #{tpu_custom_call.1} parent=11 // pred_check
          %p296 = pneg %p213
        $region42: #{tpu_custom_call.1} parent=11 // pred_check_branch
          %298 = sbr.rel (%p296) target = $region44
        $region43: #{tpu_custom_call.1} parent=11 // pred_region
          _
        $region44: #{tpu_custom_call.1} parent=11 // pred_fallthru
          _
        // Predicated region
        $region45: #{tpu_custom_call.1} parent=11 // pred_check
          %p299 = pneg %p234
        $region46: #{tpu_custom_call.1} parent=11 // pred_check_branch
          %301 = sbr.rel (%p299) target = $region48
        $region47: #{tpu_custom_call.1} parent=11 // pred_region
          _
        $region48: #{tpu_custom_call.1} parent=11 // pred_fallthru
          _
      $region12: #{tpu_custom_call.1} parent=5 // pred_fallthru
        _
      %p302 = scmp.lt.s32.totalorder %s19, 2
      // Predicated region
      $region49: #{tpu_custom_call.1} parent=5 // pred_check
        %p303 = pneg %p302
      $region50: #{tpu_custom_call.1} parent=5 // pred_check_branch
        %305 = sbr.rel (%p303) target = $region52
      $region51: #{tpu_custom_call.1} parent=5 // pred_region
        // Predicated region
        $region53: #{tpu_custom_call.1} parent=51 // pred_check
          %p306 = pneg %p39
        $region54: #{tpu_custom_call.1} parent=51 // pred_check_branch
          %308 = sbr.rel (%p306) target = $region56
        $region55: #{tpu_custom_call.1} parent=51 // pred_region
          %p309 = scmp.lt.s32.totalorder %s19, 1
          %s310 = scalar_select %p309, %s19, 1
          %s311 = smul.addr %s310, 54
          %s312 = smul.addr %s311, 8
          %s313 = scalar_lea.vmem %s0, %s312
        $region56: #{tpu_custom_call.1} parent=51 // pred_fallthru
          _
      $region52: #{tpu_custom_call.1} parent=5 // pred_fallthru
        _
      %p314 = scmp.le.s32.totalorder 1, %s19
      %p315 = scmp.lt.s32.totalorder %s19, 3
      %p316 = pnand %p314, %p315
      %p317 = pneg %p316
      // Predicated region
      $region57: #{tpu_custom_call.1} parent=5 // pred_check
        _
      $region58: #{tpu_custom_call.1} parent=5 // pred_check_branch
        %319 = sbr.rel (%p316) target = $region60
      $region59: #{tpu_custom_call.1} parent=5 // pred_region
        %s320 = ssub.s32 %s19, 1
        %p321 = scmp.lt.s32.totalorder %s24, 1
        %s322 = scalar_select %p321, %s24, 1
        %s323 = smul.addr %s322, 54
        %s324 = smul.addr %s323, 8
        %s325 = scalar_lea.vmem %s0, %s324
        %p326 = pneg %p45
        %p327 = pneg %p42
        %p328 = pneg %p66
        %p329 = pneg %p63
        %p330 = pneg %p87
        %p331 = pneg %p84
        %p332 = pneg %p108
        %p333 = pneg %p105
        %p334 = pneg %p129
        %p335 = pneg %p126
        %p336 = pneg %p150
        %p337 = pneg %p147
        %p338 = pneg %p171
        %p339 = pneg %p168
        %p340 = pneg %p192
        %p341 = pneg %p189
        %p342 = pneg %p213
        %p343 = pneg %p210
        %p344 = pneg %p234
        %p345 = pneg %p231
        %p346 = pneg %p260
        %p347 = pneg %p257
        %s348 = sand.u32 %s247, 1
        %s349 = scalar_lea.sflag [#allocation4], %s348
        %s350 = sand.u32 %s247, 1
        %s351 = smul.addr %s350, 32
        %s352 = scalar_lea.vmem [#allocation3], %s351
        %p353 = scmp.lt.s32.totalorder %s24, 1
        %s354 = scalar_select %p353, %s24, 1
        %s355 = smul.addr %s354, 54
        %s356 = smul.addr %s355, 8
        %s357 = scalar_lea.vmem %s0, %s356
        %v358 = vld [vmem:[%s357] sm:$0xff]
        %v359 = vld [vmem:[%s357 + $0x8] sm:$0xff]
        %v360 = vld [vmem:[%s357 + $0x10] sm:$0xff]
        %v361 = vld [vmem:[%s357 + $0x18] sm:$0xff]
        %v362 = vld [vmem:[%s357 + $0x20] sm:$0xff]
        %v363 = vld [vmem:[%s357 + $0x28] sm:$0xff]
        %v364 = vld [vmem:[%s357 + $0x30] sm:$0xff]
        %v365 = vld [vmem:[%s357 + $0x38] sm:$0xff]
        %v366 = vld [vmem:[%s357 + $0x40] sm:$0xff]
        %v367 = vld [vmem:[%s357 + $0x48] sm:$0xff]
        %v368 = vld [vmem:[%s357 + $0x50] sm:$0xff]
        %v369 = vld [vmem:[%s357 + $0x58] sm:$0xff]
        %v370 = vld [vmem:[%s357 + $0x60] sm:$0xff]
        %v371 = vld [vmem:[%s357 + $0x68] sm:$0xff]
        %v372 = vld [vmem:[%s357 + $0x70] sm:$0xff]
        %v373 = vld [vmem:[%s357 + $0x78] sm:$0xff]
        %v374 = vld [vmem:[%s357 + $0x80] sm:$0xff]
        %v375 = vld [vmem:[%s357 + $0x88] sm:$0xff]
        %v376 = vld [vmem:[%s357 + $0x90] sm:$0xff]
        %v377 = vld [vmem:[%s357 + $0x98] sm:$0xff]
        %v378 = vld [vmem:[%s357 + $0xa0] sm:$0xff]
        %v379 = vld [vmem:[%s357 + $0xa8] sm:$0xff]
        %v380 = vld [vmem:[%s357 + $0xb0] sm:$0xff]
        %v381 = vld [vmem:[%s357 + $0xb8] sm:$0xff]
        %v382 = vld [vmem:[%s357 + $0xc0] sm:$0xff]
        %v383 = vld [vmem:[%s357 + $0xc8] sm:$0xff]
        %v384 = vld [vmem:[%s357 + $0xd0] sm:$0xff]
        %v385 = vld [vmem:[%s357 + $0xd8] sm:$0xff]
        %v386 = vld [vmem:[%s357 + $0xe0] sm:$0xff]
        %v387 = vld [vmem:[%s357 + $0xe8] sm:$0xff]
        %v388 = vld [vmem:[%s357 + $0xf0] sm:$0xff]
        %v389 = vld [vmem:[%s357 + $0xf8] sm:$0xff]
        %v390 = vld [vmem:[%s357 + $0x100] sm:$0xff]
        %v391 = vld [vmem:[%s357 + $0x108] sm:$0xff]
        %v392 = vld [vmem:[%s357 + $0x110] sm:$0xff]
        %v393 = vld [vmem:[%s357 + $0x118] sm:$0xff]
        %v394 = vld [vmem:[%s357 + $0x120] sm:$0xff]
        %v395 = vld [vmem:[%s357 + $0x128] sm:$0xff]
        %v396 = vld [vmem:[%s357 + $0x130] sm:$0xff]
        %v397 = vld [vmem:[%s357 + $0x138] sm:$0xff]
        %v398 = vld [vmem:[%s357 + $0x140] sm:$0xff]
        %v399 = vld [vmem:[%s357 + $0x148] sm:$0xff]
        %v400 = vld [vmem:[%s357 + $0x150] sm:$0xff]
        %v401 = vld [vmem:[%s357 + $0x158] sm:$0xff]
        %v402 = vld [vmem:[%s357 + $0x160] sm:$0xff]
        %v403 = vld [vmem:[%s357 + $0x168] sm:$0xff]
        %v404 = vld [vmem:[%s357 + $0x170] sm:$0xff]
        %v405 = vld [vmem:[%s357 + $0x178] sm:$0xff]
        %v406 = vld [vmem:[%s357 + $0x180] sm:$0xff]
        %v407 = vld [vmem:[%s357 + $0x188] sm:$0xff]
        %v408 = vld [vmem:[%s357 + $0x190] sm:$0xff]
        %v409 = vld [vmem:[%s357 + $0x198] sm:$0xff]
        %v410 = vld [vmem:[%s357 + $0x1a0] sm:$0xff]
        %v411 = vld [vmem:[%s357 + $0x1a8] sm:$0xff]
        %v412 = vld [vmem:[%s1] sm:$0xff]
        %v413 = vld [vmem:[%s1 + $0x8] sm:$0xff]
        %v414 = vld [vmem:[%s1 + $0x10] sm:$0xff]
        %v415 = vld [vmem:[%s1 + $0x18] sm:$0xff]
        %v416 = vld [vmem:[%s1 + $0x20] sm:$0xff]
        %v417 = vld [vmem:[%s1 + $0x28] sm:$0xff]
        %v418 = vld [vmem:[%s1 + $0x30] sm:$0xff]
        %v419 = vld [vmem:[%s1 + $0x38] sm:$0xff]
        %v420 = vld [vmem:[%s1 + $0x40] sm:$0xff]
        %v421 = vld [vmem:[%s1 + $0x48] sm:$0xff]
        %v422 = vld [vmem:[%s1 + $0x50] sm:$0xff]
        %v423 = vld [vmem:[%s1 + $0x58] sm:$0xff]
        %v424 = vld [vmem:[%s1 + $0x60] sm:$0xff]
        %v425 = vld [vmem:[%s1 + $0x68] sm:$0xff]
        %v426 = vld [vmem:[%s1 + $0x70] sm:$0xff]
        %v427 = vld [vmem:[%s1 + $0x78] sm:$0xff]
        %v428 = vld [vmem:[%s1 + $0x80] sm:$0xff]
        %v429 = vld [vmem:[%s1 + $0x88] sm:$0xff]
        %v430 = vld [vmem:[%s1 + $0x90] sm:$0xff]
        %v431 = vld [vmem:[%s1 + $0x98] sm:$0xff]
        %v432 = vld [vmem:[%s1 + $0xa0] sm:$0xff]
        %v433 = vld [vmem:[%s1 + $0xa8] sm:$0xff]
        %v434 = vld [vmem:[%s1 + $0xb0] sm:$0xff]
        %v435 = vld [vmem:[%s1 + $0xb8] sm:$0xff]
        %v436 = vld [vmem:[%s1 + $0xc0] sm:$0xff]
        %v437 = vld [vmem:[%s1 + $0xc8] sm:$0xff]
        %v438 = vld [vmem:[%s1 + $0xd0] sm:$0xff]
        %v439 = vld [vmem:[%s1 + $0xd8] sm:$0xff]
        %v440 = vld [vmem:[%s1 + $0xe0] sm:$0xff]
        %v441 = vld [vmem:[%s1 + $0xe8] sm:$0xff]
        %v442 = vld [vmem:[%s1 + $0xf0] sm:$0xff]
        %v443 = vld [vmem:[%s1 + $0xf8] sm:$0xff]
        %v444 = vld [vmem:[%s1 + $0x100] sm:$0xff]
        %v445 = vld [vmem:[%s1 + $0x108] sm:$0xff]
        %v446 = vld [vmem:[%s1 + $0x110] sm:$0xff]
        %v447 = vld [vmem:[%s1 + $0x118] sm:$0xff]
        %v448 = vld [vmem:[%s1 + $0x120] sm:$0xff]
        %v449 = vld [vmem:[%s1 + $0x128] sm:$0xff]
        %v450 = vld [vmem:[%s1 + $0x130] sm:$0xff]
        %v451 = vld [vmem:[%s1 + $0x138] sm:$0xff]
        %v452 = vld [vmem:[%s1 + $0x140] sm:$0xff]
        %v453 = vld [vmem:[%s1 + $0x148] sm:$0xff]
        %v454 = vld [vmem:[%s1 + $0x150] sm:$0xff]
        %v455 = vld [vmem:[%s1 + $0x158] sm:$0xff]
        %v456 = vld [vmem:[%s1 + $0x160] sm:$0xff]
        %v457 = vld [vmem:[%s1 + $0x168] sm:$0xff]
        %v458 = vld [vmem:[%s1 + $0x170] sm:$0xff]
        %v459 = vld [vmem:[%s1 + $0x178] sm:$0xff]
        %v460 = vld [vmem:[%s1 + $0x180] sm:$0xff]
        %v461 = vld [vmem:[%s1 + $0x188] sm:$0xff]
        %v462 = vld [vmem:[%s1 + $0x190] sm:$0xff]
        %v463 = vld [vmem:[%s1 + $0x198] sm:$0xff]
        %v464 = vld [vmem:[%s1 + $0x1a0] sm:$0xff]
        %v465 = vld [vmem:[%s1 + $0x1a8] sm:$0xff]
        %v466 = vld [vmem:[%s2] sm:$0xff]
        %v467 = vld [vmem:[%s2 + $0x8] sm:$0xff]
        %v468 = vld [vmem:[%s3] sm:$0x1]
        %v470 = vlaneseq
        %v471 = vshrl.u32 %v470, 7
        %v472 = vsub.s32 0, %v471
        %v473 = vrot.slane %v468, %v472
        %vm475 = vcmask 130048
        %v477 = vsel %vm475, %v358, 0
        %v480 = vsel %vm475, %v359, 0
        %v483 = vsel %vm475, %v360, 0
        %v486 = vsel %vm475, %v361, 0
        %v489 = vsel %vm475, %v362, 0
        %v492 = vsel %vm475, %v363, 0
        %v495 = vsel %vm475, %v364, 0
        %v498 = vsel %vm475, %v365, 0
        %v501 = vsel %vm475, %v366, 0
        %v504 = vsel %vm475, %v367, 0
        %v507 = vsel %vm475, %v368, 0
        %v510 = vsel %vm475, %v369, 0
        %v513 = vsel %vm475, %v370, 0
        %v516 = vsel %vm475, %v371, 0
        %v519 = vsel %vm475, %v372, 0
        %v522 = vsel %vm475, %v373, 0
        %v525 = vsel %vm475, %v374, 0
        %v528 = vsel %vm475, %v375, 0
        %v531 = vsel %vm475, %v376, 0
        %v534 = vsel %vm475, %v377, 0
        %v537 = vsel %vm475, %v378, 0
        %v540 = vsel %vm475, %v379, 0
        %v543 = vsel %vm475, %v380, 0
        %v546 = vsel %vm475, %v381, 0
        %v549 = vsel %vm475, %v382, 0
        %v552 = vsel %vm475, %v383, 0
        %v555 = vsel %vm475, %v384, 0
        %v558 = vsel %vm475, %v385, 0
        %v561 = vsel %vm475, %v386, 0
        %v564 = vsel %vm475, %v387, 0
        %v567 = vsel %vm475, %v388, 0
        %v570 = vsel %vm475, %v389, 0
        %v573 = vsel %vm475, %v390, 0
        %v576 = vsel %vm475, %v391, 0
        %v579 = vsel %vm475, %v392, 0
        %v582 = vsel %vm475, %v393, 0
        %v585 = vsel %vm475, %v394, 0
        %v588 = vsel %vm475, %v395, 0
        %v591 = vsel %vm475, %v396, 0
        %v594 = vsel %vm475, %v397, 0
        %v597 = vsel %vm475, %v398, 0
        %v600 = vsel %vm475, %v399, 0
        %v603 = vsel %vm475, %v400, 0
        %v606 = vsel %vm475, %v401, 0
        %v609 = vsel %vm475, %v402, 0
        %v612 = vsel %vm475, %v403, 0
        %v615 = vsel %vm475, %v404, 0
        %v618 = vsel %vm475, %v405, 0
        %v621 = vsel %vm475, %v406, 0
        %v624 = vsel %vm475, %v407, 0
        %v627 = vsel %vm475, %v408, 0
        %v630 = vsel %vm475, %v409, 0
        %v633 = vsel %vm475, %v410, 0
        %v636 = vsel %vm475, %v411, 0
        %v639 = vsel %vm475, %v466, 0
        %v642 = vsel %vm475, %v467, 0
        %644 = vmatprep.subr.mxu0 0.0
        %645 = vmatpush1.xpose.msra.mxu0 %v639
        %646 = vmatprep.subr.mxu0 0.0
        %647 = vmatpush1.xpose.msra.mxu0 %v642
        %648 = vmatprep.subr.mxu0 0.0
        %649 = vmatpush1.xpose.msra.mxu0 0.0
        %650 = vmatprep.subr.mxu0 0.0
        %651 = vmatpush1.xpose.msra.mxu0 0.0
        %652 = vmatprep.subr.mxu0 0.0
        %653 = vmatpush1.xpose.msra.mxu0 0.0
        %654 = vmatprep.subr.mxu0 0.0
        %655 = vmatpush1.xpose.msra.mxu0 0.0
        %656 = vmatprep.subr.mxu0 0.0
        %657 = vmatpush1.xpose.msra.mxu0 0.0
        %658 = vmatprep.subr.mxu0 0.0
        %659 = vmatpush1.xpose.msra.mxu0 0.0
        %660 = vmatprep.subr.mxu0 0.0
        %661 = vmatpush1.xpose.msra.mxu0 0.0
        %662 = vmatprep.subr.mxu0 0.0
        %663 = vmatpush1.xpose.msra.mxu0 0.0
        %664 = vmatprep.subr.mxu0 0.0
        %665 = vmatpush1.xpose.msra.mxu0 0.0
        %666 = vmatprep.subr.mxu0 0.0
        %667 = vmatpush1.xpose.msra.mxu0 0.0
        %668 = vmatprep.subr.mxu0 0.0
        %669 = vmatpush1.xpose.msra.mxu0 0.0
        %670 = vmatprep.subr.mxu0 0.0
        %671 = vmatpush1.xpose.msra.mxu0 0.0
        %672 = vmatprep.subr.mxu0 0.0
        %673 = vmatpush1.xpose.msra.mxu0 0.0
        %674 = vmatprep.subr.mxu0 0.0
        %675 = vmatpush1.xpose.msra.mxu0 0.0
        %676 = vmatprep.subr.mxu0 0.0
        %677 = vmatpush1.xpose.msra.mxu0 0.0
        %678 = vmatprep.subr.mxu0 0.0
        %679 = vmatpush1.xpose.msra.mxu0 0.0
        %680 = vmatprep.subr.mxu0 0.0
        %681 = vmatpush1.xpose.msra.mxu0 0.0
        %682 = vmatprep.subr.mxu0 0.0
        %683 = vmatpush1.xpose.msra.mxu0 0.0
        %684 = vmatprep.subr.mxu0 0.0
        %685 = vmatpush1.xpose.msra.mxu0 0.0
        %686 = vmatprep.subr.mxu0 0.0
        %687 = vmatpush1.xpose.msra.mxu0 0.0
        %688 = vmatprep.subr.mxu0 0.0
        %689 = vmatpush1.xpose.msra.mxu0 0.0
        %690 = vmatprep.subr.mxu0 0.0
        %691 = vmatpush1.xpose.msra.mxu0 0.0
        %692 = vmatprep.subr.mxu0 0.0
        %693 = vmatpush1.xpose.msra.mxu0 0.0
        %694 = vmatprep.subr.mxu0 0.0
        %695 = vmatpush1.xpose.msra.mxu0 0.0
        %696 = vmatprep.subr.mxu0 0.0
        %697 = vmatpush1.xpose.msra.mxu0 0.0
        %698 = vmatprep.subr.mxu0 0.0
        %699 = vmatpush1.xpose.msra.mxu0 0.0
        %700 = vmatprep.subr.mxu0 0.0
        %701 = vmatpush1.xpose.msra.mxu0 0.0
        %702 = vmatprep.subr.mxu0 0.0
        %703 = vmatpush1.xpose.msra.mxu0 0.0
        %704 = vmatprep.subr.mxu0 0.0
        %705 = vmatpush1.xpose.msra.mxu0 0.0
        %706 = vmatprep.subr.mxu0 0.0
        %707 = vmatpush1.xpose.msra.mxu0 0.0
        %708 = vmatprep.mubr.f32.mxu0 0.0
        %709 = vmatmul.mubr.f32.gmra.mrb[0].mxu0 %v477
        %v710 = vpop.f32.mrb[0].mxu0
        %v711 = vadd.f32 %v473, %v710
        %v712 = vpop.f32.mrb[0].mxu0
        %713 = vmatprep.mubr.f32.mxu0 0.0
        %714 = vmatmul.mubr.f32.gmra.mrb[0].mxu0 %v480
        %v715 = vpop.f32.mrb[0].mxu0
        %v716 = vadd.f32 %v473, %v715
        %v717 = vpop.f32.mrb[0].mxu0
        %718 = vmatprep.mubr.f32.mxu0 0.0
        %719 = vmatmul.mubr.f32.gmra.mrb[0].mxu0 %v483
        %v720 = vpop.f32.mrb[0].mxu0
        %v721 = vadd.f32 %v473, %v720
        %v722 = vpop.f32.mrb[0].mxu0
        %723 = vmatprep.mubr.f32.mxu0 0.0
        %724 = vmatmul.mubr.f32.gmra.mrb[0].mxu0 %v486
        %v725 = vpop.f32.mrb[0].mxu0
        %v726 = vadd.f32 %v473, %v725
        %v727 = vpop.f32.mrb[0].mxu0
        %728 = vmatprep.mubr.f32.mxu0 0.0
        %729 = vmatmul.mubr.f32.gmra.mrb[0].mxu0 %v489
        %v730 = vpop.f32.mrb[0].mxu0
        %v731 = vadd.f32 %v473, %v730
        %v732 = vpop.f32.mrb[0].mxu0
        %733 = vmatprep.mubr.f32.mxu0 0.0
        %734 = vmatmul.mubr.f32.gmra.mrb[0].mxu0 %v492
        %v735 = vpop.f32.mrb[0].mxu0
        %v736 = vadd.f32 %v473, %v735
        %v737 = vpop.f32.mrb[0].mxu0
        %738 = vmatprep.mubr.f32.mxu0 0.0
        %739 = vmatmul.mubr.f32.gmra.mrb[0].mxu0 %v495
        %v740 = vpop.f32.mrb[0].mxu0
        %v741 = vadd.f32 %v473, %v740
        %v742 = vpop.f32.mrb[0].mxu0
        %743 = vmatprep.mubr.f32.mxu0 0.0
        %744 = vmatmul.mubr.f32.gmra.mrb[0].mxu0 %v498
        %v745 = vpop.f32.mrb[0].mxu0
        %v746 = vadd.f32 %v473, %v745
        %v747 = vpop.f32.mrb[0].mxu0
        %748 = vmatprep.mubr.f32.mxu0 0.0
        %749 = vmatmul.mubr.f32.gmra.mrb[0].mxu0 %v501
        %v750 = vpop.f32.mrb[0].mxu0
        %v751 = vadd.f32 %v473, %v750
        %v752 = vpop.f32.mrb[0].mxu0
        %753 = vmatprep.mubr.f32.mxu0 0.0
        %754 = vmatmul.mubr.f32.gmra.mrb[0].mxu0 %v504
        %v755 = vpop.f32.mrb[0].mxu0
        %v756 = vadd.f32 %v473, %v755
        %v757 = vpop.f32.mrb[0].mxu0
        %758 = vmatprep.mubr.f32.mxu0 0.0
        %759 = vmatmul.mubr.f32.gmra.mrb[0].mxu0 %v507
        %v760 = vpop.f32.mrb[0].mxu0
        %v761 = vadd.f32 %v473, %v760
        %v762 = vpop.f32.mrb[0].mxu0
        %763 = vmatprep.mubr.f32.mxu0 0.0
        %764 = vmatmul.mubr.f32.gmra.mrb[0].mxu0 %v510
        %v765 = vpop.f32.mrb[0].mxu0
        %v766 = vadd.f32 %v473, %v765
        %v767 = vpop.f32.mrb[0].mxu0
        %768 = vmatprep.mubr.f32.mxu0 0.0
        %769 = vmatmul.mubr.f32.gmra.mrb[0].mxu0 %v513
        %v770 = vpop.f32.mrb[0].mxu0
        %v771 = vadd.f32 %v473, %v770
        %v772 = vpop.f32.mrb[0].mxu0
        %773 = vmatprep.mubr.f32.mxu0 0.0
        %774 = vmatmul.mubr.f32.gmra.mrb[0].mxu0 %v516
        %v775 = vpop.f32.mrb[0].mxu0
        %v776 = vadd.f32 %v473, %v775
        %v777 = vpop.f32.mrb[0].mxu0
        %778 = vmatprep.mubr.f32.mxu0 0.0
        %779 = vmatmul.mubr.f32.gmra.mrb[0].mxu0 %v519
        %v780 = vpop.f32.mrb[0].mxu0
        %v781 = vadd.f32 %v473, %v780
        %v782 = vpop.f32.mrb[0].mxu0
        %783 = vmatprep.mubr.f32.mxu0 0.0
        %784 = vmatmul.mubr.f32.gmra.mrb[0].mxu0 %v522
        %v785 = vpop.f32.mrb[0].mxu0
        %v786 = vadd.f32 %v473, %v785
        %v787 = vpop.f32.mrb[0].mxu0
        %788 = vmatprep.mubr.f32.mxu0 0.0
        %789 = vmatmul.mubr.f32.gmra.mrb[0].mxu0 %v525
        %v790 = vpop.f32.mrb[0].mxu0
        %v791 = vadd.f32 %v473, %v790
        %v792 = vpop.f32.mrb[0].mxu0
        %793 = vmatprep.mubr.f32.mxu0 0.0
        %794 = vmatmul.mubr.f32.gmra.mrb[0].mxu0 %v528
        %v795 = vpop.f32.mrb[0].mxu0
        %v796 = vadd.f32 %v473, %v795
        %v797 = vpop.f32.mrb[0].mxu0
        %798 = vmatprep.mubr.f32.mxu0 0.0
        %799 = vmatmul.mubr.f32.gmra.mrb[0].mxu0 %v531
        %v800 = vpop.f32.mrb[0].mxu0
        %v801 = vadd.f32 %v473, %v800
        %v802 = vpop.f32.mrb[0].mxu0
        %803 = vmatprep.mubr.f32.mxu0 0.0
        %804 = vmatmul.mubr.f32.gmra.mrb[0].mxu0 %v534
        %v805 = vpop.f32.mrb[0].mxu0
        %v806 = vadd.f32 %v473, %v805
        %v807 = vpop.f32.mrb[0].mxu0
        %808 = vmatprep.mubr.f32.mxu0 0.0
        %809 = vmatmul.mubr.f32.gmra.mrb[0].mxu0 %v537
        %v810 = vpop.f32.mrb[0].mxu0
        %v811 = vadd.f32 %v473, %v810
        %v812 = vpop.f32.mrb[0].mxu0
        %813 = vmatprep.mubr.f32.mxu0 0.0
        %814 = vmatmul.mubr.f32.gmra.mrb[0].mxu0 %v540
        %v815 = vpop.f32.mrb[0].mxu0
        %v816 = vadd.f32 %v473, %v815
        %v817 = vpop.f32.mrb[0].mxu0
        %818 = vmatprep.mubr.f32.mxu0 0.0
        %819 = vmatmul.mubr.f32.gmra.mrb[0].mxu0 %v543
        %v820 = vpop.f32.mrb[0].mxu0
        %v821 = vadd.f32 %v473, %v820
        %v822 = vpop.f32.mrb[0].mxu0
        %823 = vmatprep.mubr.f32.mxu0 0.0
        %824 = vmatmul.mubr.f32.gmra.mrb[0].mxu0 %v546
        %v825 = vpop.f32.mrb[0].mxu0
        %v826 = vadd.f32 %v473, %v825
        %v827 = vpop.f32.mrb[0].mxu0
        %828 = vmatprep.mubr.f32.mxu0 0.0
        %829 = vmatmul.mubr.f32.gmra.mrb[0].mxu0 %v549
        %v830 = vpop.f32.mrb[0].mxu0
        %v831 = vadd.f32 %v473, %v830
        %v832 = vpop.f32.mrb[0].mxu0
        %833 = vmatprep.mubr.f32.mxu0 0.0
        %834 = vmatmul.mubr.f32.gmra.mrb[0].mxu0 %v552
        %v835 = vpop.f32.mrb[0].mxu0
        %v836 = vadd.f32 %v473, %v835
        %v837 = vpop.f32.mrb[0].mxu0
        %838 = vmatprep.mubr.f32.mxu0 0.0
        %839 = vmatmul.mubr.f32.gmra.mrb[0].mxu0 %v555
        %v840 = vpop.f32.mrb[0].mxu0
        %v841 = vadd.f32 %v473, %v840
        %v842 = vpop.f32.mrb[0].mxu0
        %843 = vmatprep.mubr.f32.mxu0 0.0
        %844 = vmatmul.mubr.f32.gmra.mrb[0].mxu0 %v558
        %v845 = vpop.f32.mrb[0].mxu0
        %v846 = vadd.f32 %v473, %v845
        %v847 = vpop.f32.mrb[0].mxu0
        %848 = vmatprep.mubr.f32.mxu0 0.0
        %849 = vmatmul.mubr.f32.gmra.mrb[0].mxu0 %v561
        %v850 = vpop.f32.mrb[0].mxu0
        %v851 = vadd.f32 %v473, %v850
        %v852 = vpop.f32.mrb[0].mxu0
        %853 = vmatprep.mubr.f32.mxu0 0.0
        %854 = vmatmul.mubr.f32.gmra.mrb[0].mxu0 %v564
        %v855 = vpop.f32.mrb[0].mxu0
        %v856 = vadd.f32 %v473, %v855
        %v857 = vpop.f32.mrb[0].mxu0
        %858 = vmatprep.mubr.f32.mxu0 0.0
        %859 = vmatmul.mubr.f32.gmra.mrb[0].mxu0 %v567
        %v860 = vpop.f32.mrb[0].mxu0
        %v861 = vadd.f32 %v473, %v860
        %v862 = vpop.f32.mrb[0].mxu0
        %863 = vmatprep.mubr.f32.mxu0 0.0
        %864 = vmatmul.mubr.f32.gmra.mrb[0].mxu0 %v570
        %v865 = vpop.f32.mrb[0].mxu0
        %v866 = vadd.f32 %v473, %v865
        %v867 = vpop.f32.mrb[0].mxu0
        %868 = vmatprep.mubr.f32.mxu0 0.0
        %869 = vmatmul.mubr.f32.gmra.mrb[0].mxu0 %v573
        %v870 = vpop.f32.mrb[0].mxu0
        %v871 = vadd.f32 %v473, %v870
        %v872 = vpop.f32.mrb[0].mxu0
        %873 = vmatprep.mubr.f32.mxu0 0.0
        %874 = vmatmul.mubr.f32.gmra.mrb[0].mxu0 %v576
        %v875 = vpop.f32.mrb[0].mxu0
        %v876 = vadd.f32 %v473, %v875
        %v877 = vpop.f32.mrb[0].mxu0
        %878 = vmatprep.mubr.f32.mxu0 0.0
        %879 = vmatmul.mubr.f32.gmra.mrb[0].mxu0 %v579
        %v880 = vpop.f32.mrb[0].mxu0
        %v881 = vadd.f32 %v473, %v880
        %v882 = vpop.f32.mrb[0].mxu0
        %883 = vmatprep.mubr.f32.mxu0 0.0
        %884 = vmatmul.mubr.f32.gmra.mrb[0].mxu0 %v582
        %v885 = vpop.f32.mrb[0].mxu0
        %v886 = vadd.f32 %v473, %v885
        %v887 = vpop.f32.mrb[0].mxu0
        %888 = vmatprep.mubr.f32.mxu0 0.0
        %889 = vmatmul.mubr.f32.gmra.mrb[0].mxu0 %v585
        %v890 = vpop.f32.mrb[0].mxu0
        %v891 = vadd.f32 %v473, %v890
        %v892 = vpop.f32.mrb[0].mxu0
        %893 = vmatprep.mubr.f32.mxu0 0.0
        %894 = vmatmul.mubr.f32.gmra.mrb[0].mxu0 %v588
        %v895 = vpop.f32.mrb[0].mxu0
        %v896 = vadd.f32 %v473, %v895
        %v897 = vpop.f32.mrb[0].mxu0
        %898 = vmatprep.mubr.f32.mxu0 0.0
        %899 = vmatmul.mubr.f32.gmra.mrb[0].mxu0 %v591
        %v900 = vpop.f32.mrb[0].mxu0
        %v901 = vadd.f32 %v473, %v900
        %v902 = vpop.f32.mrb[0].mxu0
        %903 = vmatprep.mubr.f32.mxu0 0.0
        %904 = vmatmul.mubr.f32.gmra.mrb[0].mxu0 %v594
        %v905 = vpop.f32.mrb[0].mxu0
        %v906 = vadd.f32 %v473, %v905
        %v907 = vpop.f32.mrb[0].mxu0
        %908 = vmatprep.mubr.f32.mxu0 0.0
        %909 = vmatmul.mubr.f32.gmra.mrb[0].mxu0 %v597
        %v910 = vpop.f32.mrb[0].mxu0
        %v911 = vadd.f32 %v473, %v910
        %v912 = vpop.f32.mrb[0].mxu0
        %913 = vmatprep.mubr.f32.mxu0 0.0
        %914 = vmatmul.mubr.f32.gmra.mrb[0].mxu0 %v600
        %v915 = vpop.f32.mrb[0].mxu0
        %v916 = vadd.f32 %v473, %v915
        %v917 = vpop.f32.mrb[0].mxu0
        %918 = vmatprep.mubr.f32.mxu0 0.0
        %919 = vmatmul.mubr.f32.gmra.mrb[0].mxu0 %v603
        %v920 = vpop.f32.mrb[0].mxu0
        %v921 = vadd.f32 %v473, %v920
        %v922 = vpop.f32.mrb[0].mxu0
        %923 = vmatprep.mubr.f32.mxu0 0.0
        %924 = vmatmul.mubr.f32.gmra.mrb[0].mxu0 %v606
        %v925 = vpop.f32.mrb[0].mxu0
        %v926 = vadd.f32 %v473, %v925
        %v927 = vpop.f32.mrb[0].mxu0
        %928 = vmatprep.mubr.f32.mxu0 0.0
        %929 = vmatmul.mubr.f32.gmra.mrb[0].mxu0 %v609
        %v930 = vpop.f32.mrb[0].mxu0
        %v931 = vadd.f32 %v473, %v930
        %v932 = vpop.f32.mrb[0].mxu0
        %933 = vmatprep.mubr.f32.mxu0 0.0
        %934 = vmatmul.mubr.f32.gmra.mrb[0].mxu0 %v612
        %v935 = vpop.f32.mrb[0].mxu0
        %v936 = vadd.f32 %v473, %v935
        %v937 = vpop.f32.mrb[0].mxu0
        %938 = vmatprep.mubr.f32.mxu0 0.0
        %939 = vmatmul.mubr.f32.gmra.mrb[0].mxu0 %v615
        %v940 = vpop.f32.mrb[0].mxu0
        %v941 = vadd.f32 %v473, %v940
        %v942 = vpop.f32.mrb[0].mxu0
        %943 = vmatprep.mubr.f32.mxu0 0.0
        %944 = vmatmul.mubr.f32.gmra.mrb[0].mxu0 %v618
        %v945 = vpop.f32.mrb[0].mxu0
        %v946 = vadd.f32 %v473, %v945
        %v947 = vpop.f32.mrb[0].mxu0
        %948 = vmatprep.mubr.f32.mxu0 0.0
        %949 = vmatmul.mubr.f32.gmra.mrb[0].mxu0 %v621
        %v950 = vpop.f32.mrb[0].mxu0
        %v951 = vadd.f32 %v473, %v950
        %v952 = vpop.f32.mrb[0].mxu0
        %953 = vmatprep.mubr.f32.mxu0 0.0
        %954 = vmatmul.mubr.f32.gmra.mrb[0].mxu0 %v624
        %v955 = vpop.f32.mrb[0].mxu0
        %v956 = vadd.f32 %v473, %v955
        %v957 = vpop.f32.mrb[0].mxu0
        %958 = vmatprep.mubr.f32.mxu0 0.0
        %959 = vmatmul.mubr.f32.gmra.mrb[0].mxu0 %v627
        %v960 = vpop.f32.mrb[0].mxu0
        %v961 = vadd.f32 %v473, %v960
        %v962 = vpop.f32.mrb[0].mxu0
        %963 = vmatprep.mubr.f32.mxu0 0.0
        %964 = vmatmul.mubr.f32.gmra.mrb[0].mxu0 %v630
        %v965 = vpop.f32.mrb[0].mxu0
        %v966 = vadd.f32 %v473, %v965
        %v967 = vpop.f32.mrb[0].mxu0
        %968 = vmatprep.mubr.f32.mxu0 0.0
        %969 = vmatmul.mubr.f32.gmra.mrb[0].mxu0 %v633
        %v970 = vpop.f32.mrb[0].mxu0
        %v971 = vadd.f32 %v473, %v970
        %v972 = vpop.f32.mrb[0].mxu0
        %973 = vmatprep.mubr.f32.mxu0 0.0
        %974 = vmatmul.mubr.f32.gmra.mrb[0].mxu0 %v636
        %v975 = vpop.f32.mrb[0].mxu0
        %v976 = vadd.f32 %v473, %v975
        %v977 = vpop.f32.mrb[0].mxu0
        %978 = vdwg.mxu0
        %980 = vset.pattern.permute.xlu0 0
        %981 = vperm.xlu0 %980, %v412
        %v982 = vpop.permute.xlu0 %981
        %985 = vset.pattern.permute.xlu0 0
        %986 = vperm.xlu0 %985, %v413
        %v987 = vpop.permute.xlu0 %986
        %990 = vset.pattern.permute.xlu0 0
        %991 = vperm.xlu0 %990, %v414
        %v992 = vpop.permute.xlu0 %991
        %995 = vset.pattern.permute.xlu0 0
        %996 = vperm.xlu0 %995, %v415
        %v997 = vpop.permute.xlu0 %996
        %1000 = vset.pattern.permute.xlu0 0
        %1001 = vperm.xlu0 %1000, %v416
        %v1002 = vpop.permute.xlu0 %1001
        %1005 = vset.pattern.permute.xlu0 0
        %1006 = vperm.xlu0 %1005, %v417
        %v1007 = vpop.permute.xlu0 %1006
        %1010 = vset.pattern.permute.xlu0 0
        %1011 = vperm.xlu0 %1010, %v418
        %v1012 = vpop.permute.xlu0 %1011
        %1015 = vset.pattern.permute.xlu0 0
        %1016 = vperm.xlu0 %1015, %v419
        %v1017 = vpop.permute.xlu0 %1016
        %1020 = vset.pattern.permute.xlu0 0
        %1021 = vperm.xlu0 %1020, %v420
        %v1022 = vpop.permute.xlu0 %1021
        %1025 = vset.pattern.permute.xlu0 0
        %1026 = vperm.xlu0 %1025, %v421
        %v1027 = vpop.permute.xlu0 %1026
        %1030 = vset.pattern.permute.xlu0 0
        %1031 = vperm.xlu0 %1030, %v422
        %v1032 = vpop.permute.xlu0 %1031
        %1035 = vset.pattern.permute.xlu0 0
        %1036 = vperm.xlu0 %1035, %v423
        %v1037 = vpop.permute.xlu0 %1036
        %1040 = vset.pattern.permute.xlu0 0
        %1041 = vperm.xlu0 %1040, %v424
        %v1042 = vpop.permute.xlu0 %1041
        %1045 = vset.pattern.permute.xlu0 0
        %1046 = vperm.xlu0 %1045, %v425
        %v1047 = vpop.permute.xlu0 %1046
        %1050 = vset.pattern.permute.xlu0 0
        %1051 = vperm.xlu0 %1050, %v426
        %v1052 = vpop.permute.xlu0 %1051
        %1055 = vset.pattern.permute.xlu0 0
        %1056 = vperm.xlu0 %1055, %v427
        %v1057 = vpop.permute.xlu0 %1056
        %1060 = vset.pattern.permute.xlu0 0
        %1061 = vperm.xlu0 %1060, %v428
        %v1062 = vpop.permute.xlu0 %1061
        %1065 = vset.pattern.permute.xlu0 0
        %1066 = vperm.xlu0 %1065, %v429
        %v1067 = vpop.permute.xlu0 %1066
        %1070 = vset.pattern.permute.xlu0 0
        %1071 = vperm.xlu0 %1070, %v430
        %v1072 = vpop.permute.xlu0 %1071
        %1075 = vset.pattern.permute.xlu0 0
        %1076 = vperm.xlu0 %1075, %v431
        %v1077 = vpop.permute.xlu0 %1076
        %1080 = vset.pattern.permute.xlu0 0
        %1081 = vperm.xlu0 %1080, %v432
        %v1082 = vpop.permute.xlu0 %1081
        %1085 = vset.pattern.permute.xlu0 0
        %1086 = vperm.xlu0 %1085, %v433
        %v1087 = vpop.permute.xlu0 %1086
        %1090 = vset.pattern.permute.xlu0 0
        %1091 = vperm.xlu0 %1090, %v434
        %v1092 = vpop.permute.xlu0 %1091
        %1095 = vset.pattern.permute.xlu0 0
        %1096 = vperm.xlu0 %1095, %v435
        %v1097 = vpop.permute.xlu0 %1096
        %1100 = vset.pattern.permute.xlu0 0
        %1101 = vperm.xlu0 %1100, %v436
        %v1102 = vpop.permute.xlu0 %1101
        %1105 = vset.pattern.permute.xlu0 0
        %1106 = vperm.xlu0 %1105, %v437
        %v1107 = vpop.permute.xlu0 %1106
        %1110 = vset.pattern.permute.xlu0 0
        %1111 = vperm.xlu0 %1110, %v438
        %v1112 = vpop.permute.xlu0 %1111
        %1115 = vset.pattern.permute.xlu0 0
        %1116 = vperm.xlu0 %1115, %v439
        %v1117 = vpop.permute.xlu0 %1116
        %1120 = vset.pattern.permute.xlu0 0
        %1121 = vperm.xlu0 %1120, %v440
        %v1122 = vpop.permute.xlu0 %1121
        %1125 = vset.pattern.permute.xlu0 0
        %1126 = vperm.xlu0 %1125, %v441
        %v1127 = vpop.permute.xlu0 %1126
        %1130 = vset.pattern.permute.xlu0 0
        %1131 = vperm.xlu0 %1130, %v442
        %v1132 = vpop.permute.xlu0 %1131
        %1135 = vset.pattern.permute.xlu0 0
        %1136 = vperm.xlu0 %1135, %v443
        %v1137 = vpop.permute.xlu0 %1136
        %1140 = vset.pattern.permute.xlu0 0
        %1141 = vperm.xlu0 %1140, %v444
        %v1142 = vpop.permute.xlu0 %1141
        %1145 = vset.pattern.permute.xlu0 0
        %1146 = vperm.xlu0 %1145, %v445
        %v1147 = vpop.permute.xlu0 %1146
        %1150 = vset.pattern.permute.xlu0 0
        %1151 = vperm.xlu0 %1150, %v446
        %v1152 = vpop.permute.xlu0 %1151
        %1155 = vset.pattern.permute.xlu0 0
        %1156 = vperm.xlu0 %1155, %v447
        %v1157 = vpop.permute.xlu0 %1156
        %1160 = vset.pattern.permute.xlu0 0
        %1161 = vperm.xlu0 %1160, %v448
        %v1162 = vpop.permute.xlu0 %1161
        %1165 = vset.pattern.permute.xlu0 0
        %1166 = vperm.xlu0 %1165, %v449
        %v1167 = vpop.permute.xlu0 %1166
        %1170 = vset.pattern.permute.xlu0 0
        %1171 = vperm.xlu0 %1170, %v450
        %v1172 = vpop.permute.xlu0 %1171
        %1175 = vset.pattern.permute.xlu0 0
        %1176 = vperm.xlu0 %1175, %v451
        %v1177 = vpop.permute.xlu0 %1176
        %1180 = vset.pattern.permute.xlu0 0
        %1181 = vperm.xlu0 %1180, %v452
        %v1182 = vpop.permute.xlu0 %1181
        %1185 = vset.pattern.permute.xlu0 0
        %1186 = vperm.xlu0 %1185, %v453
        %v1187 = vpop.permute.xlu0 %1186
        %1190 = vset.pattern.permute.xlu0 0
        %1191 = vperm.xlu0 %1190, %v454
        %v1192 = vpop.permute.xlu0 %1191
        %1195 = vset.pattern.permute.xlu0 0
        %1196 = vperm.xlu0 %1195, %v455
        %v1197 = vpop.permute.xlu0 %1196
        %1200 = vset.pattern.permute.xlu0 0
        %1201 = vperm.xlu0 %1200, %v456
        %v1202 = vpop.permute.xlu0 %1201
        %1205 = vset.pattern.permute.xlu0 0
        %1206 = vperm.xlu0 %1205, %v457
        %v1207 = vpop.permute.xlu0 %1206
        %1210 = vset.pattern.permute.xlu0 0
        %1211 = vperm.xlu0 %1210, %v458
        %v1212 = vpop.permute.xlu0 %1211
        %1215 = vset.pattern.permute.xlu0 0
        %1216 = vperm.xlu0 %1215, %v459
        %v1217 = vpop.permute.xlu0 %1216
        %1220 = vset.pattern.permute.xlu0 0
        %1221 = vperm.xlu0 %1220, %v460
        %v1222 = vpop.permute.xlu0 %1221
        %1225 = vset.pattern.permute.xlu0 0
        %1226 = vperm.xlu0 %1225, %v461
        %v1227 = vpop.permute.xlu0 %1226
        %1230 = vset.pattern.permute.xlu0 0
        %1231 = vperm.xlu0 %1230, %v462
        %v1232 = vpop.permute.xlu0 %1231
        %1235 = vset.pattern.permute.xlu0 0
        %1236 = vperm.xlu0 %1235, %v463
        %v1237 = vpop.permute.xlu0 %1236
        %1240 = vset.pattern.permute.xlu0 0
        %1241 = vperm.xlu0 %1240, %v464
        %v1242 = vpop.permute.xlu0 %1241
        %1245 = vset.pattern.permute.xlu0 0
        %1246 = vperm.xlu0 %1245, %v465
        %v1247 = vpop.permute.xlu0 %1246
        %v1249 = vmul.f32 %v711, %v982
        %v1250 = vmul.f32 %v716, %v987
        %v1251 = vmul.f32 %v721, %v992
        %v1252 = vmul.f32 %v726, %v997
        %v1253 = vmul.f32 %v731, %v1002
        %v1254 = vmul.f32 %v736, %v1007
        %v1255 = vmul.f32 %v741, %v1012
        %v1256 = vmul.f32 %v746, %v1017
        %v1257 = vmul.f32 %v751, %v1022
        %v1258 = vmul.f32 %v756, %v1027
        %v1259 = vmul.f32 %v761, %v1032
        %v1260 = vmul.f32 %v766, %v1037
        %v1261 = vmul.f32 %v771, %v1042
        %v1262 = vmul.f32 %v776, %v1047
        %v1263 = vmul.f32 %v781, %v1052
        %v1264 = vmul.f32 %v786, %v1057
        %v1265 = vmul.f32 %v791, %v1062
        %v1266 = vmul.f32 %v796, %v1067
        %v1267 = vmul.f32 %v801, %v1072
        %v1268 = vmul.f32 %v806, %v1077
        %v1269 = vmul.f32 %v811, %v1082
        %v1270 = vmul.f32 %v816, %v1087
        %v1271 = vmul.f32 %v821, %v1092
        %v1272 = vmul.f32 %v826, %v1097
        %v1273 = vmul.f32 %v831, %v1102
        %v1274 = vmul.f32 %v836, %v1107
        %v1275 = vmul.f32 %v841, %v1112
        %v1276 = vmul.f32 %v846, %v1117
        %v1277 = vmul.f32 %v851, %v1122
        %v1278 = vmul.f32 %v856, %v1127
        %v1279 = vmul.f32 %v861, %v1132
        %v1280 = vmul.f32 %v866, %v1137
        %v1281 = vmul.f32 %v871, %v1142
        %v1282 = vmul.f32 %v876, %v1147
        %v1283 = vmul.f32 %v881, %v1152
        %v1284 = vmul.f32 %v886, %v1157
        %v1285 = vmul.f32 %v891, %v1162
        %v1286 = vmul.f32 %v896, %v1167
        %v1287 = vmul.f32 %v901, %v1172
        %v1288 = vmul.f32 %v906, %v1177
        %v1289 = vmul.f32 %v911, %v1182
        %v1290 = vmul.f32 %v916, %v1187
        %v1291 = vmul.f32 %v921, %v1192
        %v1292 = vmul.f32 %v926, %v1197
        %v1293 = vmul.f32 %v931, %v1202
        %v1294 = vmul.f32 %v936, %v1207
        %v1295 = vmul.f32 %v941, %v1212
        %v1296 = vmul.f32 %v946, %v1217
        %v1297 = vmul.f32 %v951, %v1222
        %v1298 = vmul.f32 %v956, %v1227
        %v1299 = vmul.f32 %v961, %v1232
        %v1300 = vmul.f32 %v966, %v1237
        %v1301 = vmul.f32 %v971, %v1242
        %v1302 = vmul.f32 %v976, %v1247
        %1303 = vst.msk [vmem:[#allocation2] sm:$0xff] %vm475, %v1249
        %1304 = vst.msk [vmem:[#allocation2 + $0x8] sm:$0xff] %vm475, %v1250
        %1305 = vst.msk [vmem:[#allocation2 + $0x10] sm:$0xff] %vm475, %v1251
        %1306 = vst.msk [vmem:[#allocation2 + $0x18] sm:$0xff] %vm475, %v1252
        %1307 = vst.msk [vmem:[#allocation2 + $0x20] sm:$0xff] %vm475, %v1253
        %1308 = vst.msk [vmem:[#allocation2 + $0x28] sm:$0xff] %vm475, %v1254
        %1309 = vst.msk [vmem:[#allocation2 + $0x30] sm:$0xff] %vm475, %v1255
        %1310 = vst.msk [vmem:[#allocation2 + $0x38] sm:$0xff] %vm475, %v1256
        %1311 = vst.msk [vmem:[#allocation2 + $0x40] sm:$0xff] %vm475, %v1257
        %1312 = vst.msk [vmem:[#allocation2 + $0x48] sm:$0xff] %vm475, %v1258
        %1313 = vst.msk [vmem:[#allocation2 + $0x50] sm:$0xff] %vm475, %v1259
        %1314 = vst.msk [vmem:[#allocation2 + $0x58] sm:$0xff] %vm475, %v1260
        %1315 = vst.msk [vmem:[#allocation2 + $0x60] sm:$0xff] %vm475, %v1261
        %1316 = vst.msk [vmem:[#allocation2 + $0x68] sm:$0xff] %vm475, %v1262
        %1317 = vst.msk [vmem:[#allocation2 + $0x70] sm:$0xff] %vm475, %v1263
        %1318 = vst.msk [vmem:[#allocation2 + $0x78] sm:$0xff] %vm475, %v1264
        %1319 = vst.msk [vmem:[#allocation2 + $0x80] sm:$0xff] %vm475, %v1265
        %1320 = vst.msk [vmem:[#allocation2 + $0x88] sm:$0xff] %vm475, %v1266
        %1321 = vst.msk [vmem:[#allocation2 + $0x90] sm:$0xff] %vm475, %v1267
        %1322 = vst.msk [vmem:[#allocation2 + $0x98] sm:$0xff] %vm475, %v1268
        %1323 = vst.msk [vmem:[#allocation2 + $0xa0] sm:$0xff] %vm475, %v1269
        %1324 = vst.msk [vmem:[#allocation2 + $0xa8] sm:$0xff] %vm475, %v1270
        %1325 = vst.msk [vmem:[#allocation2 + $0xb0] sm:$0xff] %vm475, %v1271
        %1326 = vst.msk [vmem:[#allocation2 + $0xb8] sm:$0xff] %vm475, %v1272
        %1327 = vst.msk [vmem:[#allocation2 + $0xc0] sm:$0xff] %vm475, %v1273
        %1328 = vst.msk [vmem:[#allocation2 + $0xc8] sm:$0xff] %vm475, %v1274
        %1329 = vst.msk [vmem:[#allocation2 + $0xd0] sm:$0xff] %vm475, %v1275
        %1330 = vst.msk [vmem:[#allocation2 + $0xd8] sm:$0xff] %vm475, %v1276
        %1331 = vst.msk [vmem:[#allocation2 + $0xe0] sm:$0xff] %vm475, %v1277
        %1332 = vst.msk [vmem:[#allocation2 + $0xe8] sm:$0xff] %vm475, %v1278
        %1333 = vst.msk [vmem:[#allocation2 + $0xf0] sm:$0xff] %vm475, %v1279
        %1334 = vst.msk [vmem:[#allocation2 + $0xf8] sm:$0xff] %vm475, %v1280
        %1335 = vst.msk [vmem:[#allocation2 + $0x100] sm:$0xff] %vm475, %v1281
        %1336 = vst.msk [vmem:[#allocation2 + $0x108] sm:$0xff] %vm475, %v1282
        %1337 = vst.msk [vmem:[#allocation2 + $0x110] sm:$0xff] %vm475, %v1283
        %1338 = vst.msk [vmem:[#allocation2 + $0x118] sm:$0xff] %vm475, %v1284
        %1339 = vst.msk [vmem:[#allocation2 + $0x120] sm:$0xff] %vm475, %v1285
        %1340 = vst.msk [vmem:[#allocation2 + $0x128] sm:$0xff] %vm475, %v1286
        %1341 = vst.msk [vmem:[#allocation2 + $0x130] sm:$0xff] %vm475, %v1287
        %1342 = vst.msk [vmem:[#allocation2 + $0x138] sm:$0xff] %vm475, %v1288
        %1343 = vst.msk [vmem:[#allocation2 + $0x140] sm:$0xff] %vm475, %v1289
        %1344 = vst.msk [vmem:[#allocation2 + $0x148] sm:$0xff] %vm475, %v1290
        %1345 = vst.msk [vmem:[#allocation2 + $0x150] sm:$0xff] %vm475, %v1291
        %1346 = vst.msk [vmem:[#allocation2 + $0x158] sm:$0xff] %vm475, %v1292
        %1347 = vst.msk [vmem:[#allocation2 + $0x160] sm:$0xff] %vm475, %v1293
        %1348 = vst.msk [vmem:[#allocation2 + $0x168] sm:$0xff] %vm475, %v1294
        %1349 = vst.msk [vmem:[#allocation2 + $0x170] sm:$0xff] %vm475, %v1295
        %1350 = vst.msk [vmem:[#allocation2 + $0x178] sm:$0xff] %vm475, %v1296
        %1351 = vst.msk [vmem:[#allocation2 + $0x180] sm:$0xff] %vm475, %v1297
        %1352 = vst.msk [vmem:[#allocation2 + $0x188] sm:$0xff] %vm475, %v1298
        %1353 = vst.msk [vmem:[#allocation2 + $0x190] sm:$0xff] %vm475, %v1299
        %1354 = vst.msk [vmem:[#allocation2 + $0x198] sm:$0xff] %vm475, %v1300
        %1355 = vst.msk [vmem:[#allocation2 + $0x1a0] sm:$0xff] %vm475, %v1301
        %1356 = vst.msk [vmem:[#allocation2 + $0x1a8] sm:$0xff] %vm475, %v1302
        %s1357 = scalar_lea.vmem %s2, 16
        %v1358 = vld [vmem:[%s1357] sm:$0xff]
        %v1359 = vld [vmem:[%s1357 + $0x8] sm:$0xff]
        %s1360 = scalar_lea.vmem %s3, 1
        %v1361 = vld [vmem:[%s1360] sm:$0x1]
        %v1363 = vlaneseq
        %v1364 = vshrl.u32 %v1363, 7
        %v1365 = vsub.s32 0, %v1364
        %v1366 = vrot.slane %v1361, %v1365
        %v1369 = vsel %vm475, %v1358, 0
        %v1372 = vsel %vm475, %v1359, 0
        %1374 = vmatprep.subr.mxu0 0.0
        %1375 = vmatpush1.xpose.msra.mxu0 %v1369
        %1376 = vmatprep.subr.mxu0 0.0
        %1377 = vmatpush1.xpose.msra.mxu0 %v1372
        %1378 = vmatprep.subr.mxu0 0.0
        %1379 = vmatpush1.xpose.msra.mxu0 0.0
        %1380 = vmatprep.subr.mxu0 0.0
        %1381 = vmatpush1.xpose.msra.mxu0 0.0
        %1382 = vmatprep.subr.mxu0 0.0
        %1383 = vmatpush1.xpose.msra.mxu0 0.0
        %1384 = vmatprep.subr.mxu0 0.0
        %1385 = vmatpush1.xpose.msra.mxu0 0.0
        %1386 = vmatprep.subr.mxu0 0.0
        %1387 = vmatpush1.xpose.msra.mxu0 0.0
        %1388 = vmatprep.subr.mxu0 0.0
        %1389 = vmatpush1.xpose.msra.mxu0 0.0
        %1390 = vmatprep.subr.mxu0 0.0
        %1391 = vmatpush1.xpose.msra.mxu0 0.0
        %1392 = vmatprep.subr.mxu0 0.0
        %1393 = vmatpush1.xpose.msra.mxu0 0.0
        %1394 = vmatprep.subr.mxu0 0.0
        %1395 = vmatpush1.xpose.msra.mxu0 0.0
        %1396 = vmatprep.subr.mxu0 0.0
        %1397 = vmatpush1.xpose.msra.mxu0 0.0
        %1398 = vmatprep.subr.mxu0 0.0
        %1399 = vmatpush1.xpose.msra.mxu0 0.0
        %1400 = vmatprep.subr.mxu0 0.0
        %1401 = vmatpush1.xpose.msra.mxu0 0.0
        %1402 = vmatprep.subr.mxu0 0.0
        %1403 = vmatpush1.xpose.msra.mxu0 0.0
        %1404 = vmatprep.subr.mxu0 0.0
        %1405 = vmatpush1.xpose.msra.mxu0 0.0
        %1406 = vmatprep.subr.mxu0 0.0
        %1407 = vmatpush1.xpose.msra.mxu0 0.0
        %1408 = vmatprep.subr.mxu0 0.0
        %1409 = vmatpush1.xpose.msra.mxu0 0.0
        %1410 = vmatprep.subr.mxu0 0.0
        %1411 = vmatpush1.xpose.msra.mxu0 0.0
        %1412 = vmatprep.subr.mxu0 0.0
        %1413 = vmatpush1.xpose.msra.mxu0 0.0
        %1414 = vmatprep.subr.mxu0 0.0
        %1415 = vmatpush1.xpose.msra.mxu0 0.0
        %1416 = vmatprep.subr.mxu0 0.0
        %1417 = vmatpush1.xpose.msra.mxu0 0.0
        %1418 = vmatprep.subr.mxu0 0.0
        %1419 = vmatpush1.xpose.msra.mxu0 0.0
        %1420 = vmatprep.subr.mxu0 0.0
        %1421 = vmatpush1.xpose.msra.mxu0 0.0
        %1422 = vmatprep.subr.mxu0 0.0
        %1423 = vmatpush1.xpose.msra.mxu0 0.0
        %1424 = vmatprep.subr.mxu0 0.0
        %1425 = vmatpush1.xpose.msra.mxu0 0.0
        %1426 = vmatprep.subr.mxu0 0.0
        %1427 = vmatpush1.xpose.msra.mxu0 0.0
        %1428 = vmatprep.subr.mxu0 0.0
        %1429 = vmatpush1.xpose.msra.mxu0 0.0
        %1430 = vmatprep.subr.mxu0 0.0
        %1431 = vmatpush1.xpose.msra.mxu0 0.0
        %1432 = vmatprep.subr.mxu0 0.0
        %1433 = vmatpush1.xpose.msra.mxu0 0.0
        %1434 = vmatprep.subr.mxu0 0.0
        %1435 = vmatpush1.xpose.msra.mxu0 0.0
        %1436 = vmatprep.subr.mxu0 0.0
        %1437 = vmatpush1.xpose.msra.mxu0 0.0
        %1438 = vmatprep.mubr.f32.mxu0 0.0
        %1439 = vmatmul.mubr.f32.gmra.mrb[0].mxu0 %v477
        %v1440 = vpop.f32.mrb[0].mxu0
        %v1441 = vadd.f32 %v1366, %v1440
        %v1442 = vpop.f32.mrb[0].mxu0
        %1443 = vmatprep.mubr.f32.mxu0 0.0
        %1444 = vmatmul.mubr.f32.gmra.mrb[0].mxu0 %v480
        %v1445 = vpop.f32.mrb[0].mxu0
        %v1446 = vadd.f32 %v1366, %v1445
        %v1447 = vpop.f32.mrb[0].mxu0
        %1448 = vmatprep.mubr.f32.mxu0 0.0
        %1449 = vmatmul.mubr.f32.gmra.mrb[0].mxu0 %v483
        %v1450 = vpop.f32.mrb[0].mxu0
        %v1451 = vadd.f32 %v1366, %v1450
        %v1452 = vpop.f32.mrb[0].mxu0
        %1453 = vmatprep.mubr.f32.mxu0 0.0
        %1454 = vmatmul.mubr.f32.gmra.mrb[0].mxu0 %v486
        %v1455 = vpop.f32.mrb[0].mxu0
        %v1456 = vadd.f32 %v1366, %v1455
        %v1457 = vpop.f32.mrb[0].mxu0
        %1458 = vmatprep.mubr.f32.mxu0 0.0
        %1459 = vmatmul.mubr.f32.gmra.mrb[0].mxu0 %v489
        %v1460 = vpop.f32.mrb[0].mxu0
        %v1461 = vadd.f32 %v1366, %v1460
        %v1462 = vpop.f32.mrb[0].mxu0
        %1463 = vmatprep.mubr.f32.mxu0 0.0
        %1464 = vmatmul.mubr.f32.gmra.mrb[0].mxu0 %v492
        %v1465 = vpop.f32.mrb[0].mxu0
        %v1466 = vadd.f32 %v1366, %v1465
        %v1467 = vpop.f32.mrb[0].mxu0
        %1468 = vmatprep.mubr.f32.mxu0 0.0
        %1469 = vmatmul.mubr.f32.gmra.mrb[0].mxu0 %v495
        %v1470 = vpop.f32.mrb[0].mxu0
        %v1471 = vadd.f32 %v1366, %v1470
        %v1472 = vpop.f32.mrb[0].mxu0
        %1473 = vmatprep.mubr.f32.mxu0 0.0
        %1474 = vmatmul.mubr.f32.gmra.mrb[0].mxu0 %v498
        %v1475 = vpop.f32.mrb[0].mxu0
        %v1476 = vadd.f32 %v1366, %v1475
        %v1477 = vpop.f32.mrb[0].mxu0
        %1478 = vmatprep.mubr.f32.mxu0 0.0
        %1479 = vmatmul.mubr.f32.gmra.mrb[0].mxu0 %v501
        %v1480 = vpop.f32.mrb[0].mxu0
        %v1481 = vadd.f32 %v1366, %v1480
        %v1482 = vpop.f32.mrb[0].mxu0
        %1483 = vmatprep.mubr.f32.mxu0 0.0
        %1484 = vmatmul.mubr.f32.gmra.mrb[0].mxu0 %v504
        %v1485 = vpop.f32.mrb[0].mxu0
        %v1486 = vadd.f32 %v1366, %v1485
        %v1487 = vpop.f32.mrb[0].mxu0
        %1488 = vmatprep.mubr.f32.mxu0 0.0
        %1489 = vmatmul.mubr.f32.gmra.mrb[0].mxu0 %v507
        %v1490 = vpop.f32.mrb[0].mxu0
        %v1491 = vadd.f32 %v1366, %v1490
        %v1492 = vpop.f32.mrb[0].mxu0
        %1493 = vmatprep.mubr.f32.mxu0 0.0
        %1494 = vmatmul.mubr.f32.gmra.mrb[0].mxu0 %v510
        %v1495 = vpop.f32.mrb[0].mxu0
        %v1496 = vadd.f32 %v1366, %v1495
        %v1497 = vpop.f32.mrb[0].mxu0
        %1498 = vmatprep.mubr.f32.mxu0 0.0
        %1499 = vmatmul.mubr.f32.gmra.mrb[0].mxu0 %v513
        %v1500 = vpop.f32.mrb[0].mxu0
        %v1501 = vadd.f32 %v1366, %v1500
        %v1502 = vpop.f32.mrb[0].mxu0
        %1503 = vmatprep.mubr.f32.mxu0 0.0
        %1504 = vmatmul.mubr.f32.gmra.mrb[0].mxu0 %v516
        %v1505 = vpop.f32.mrb[0].mxu0
        %v1506 = vadd.f32 %v1366, %v1505
        %v1507 = vpop.f32.mrb[0].mxu0
        %1508 = vmatprep.mubr.f32.mxu0 0.0
        %1509 = vmatmul.mubr.f32.gmra.mrb[0].mxu0 %v519
        %v1510 = vpop.f32.mrb[0].mxu0
        %v1511 = vadd.f32 %v1366, %v1510
        %v1512 = vpop.f32.mrb[0].mxu0
        %1513 = vmatprep.mubr.f32.mxu0 0.0
        %1514 = vmatmul.mubr.f32.gmra.mrb[0].mxu0 %v522
        %v1515 = vpop.f32.mrb[0].mxu0
        %v1516 = vadd.f32 %v1366, %v1515
        %v1517 = vpop.f32.mrb[0].mxu0
        %1518 = vmatprep.mubr.f32.mxu0 0.0
        %1519 = vmatmul.mubr.f32.gmra.mrb[0].mxu0 %v525
        %v1520 = vpop.f32.mrb[0].mxu0
        %v1521 = vadd.f32 %v1366, %v1520
        %v1522 = vpop.f32.mrb[0].mxu0
        %1523 = vmatprep.mubr.f32.mxu0 0.0
        %1524 = vmatmul.mubr.f32.gmra.mrb[0].mxu0 %v528
        %v1525 = vpop.f32.mrb[0].mxu0
        %v1526 = vadd.f32 %v1366, %v1525
        %v1527 = vpop.f32.mrb[0].mxu0
        %1528 = vmatprep.mubr.f32.mxu0 0.0
        %1529 = vmatmul.mubr.f32.gmra.mrb[0].mxu0 %v531
        %v1530 = vpop.f32.mrb[0].mxu0
        %v1531 = vadd.f32 %v1366, %v1530
        %v1532 = vpop.f32.mrb[0].mxu0
        %1533 = vmatprep.mubr.f32.mxu0 0.0
        %1534 = vmatmul.mubr.f32.gmra.mrb[0].mxu0 %v534
        %v1535 = vpop.f32.mrb[0].mxu0
        %v1536 = vadd.f32 %v1366, %v1535
        %v1537 = vpop.f32.mrb[0].mxu0
        %1538 = vmatprep.mubr.f32.mxu0 0.0
        %1539 = vmatmul.mubr.f32.gmra.mrb[0].mxu0 %v537
        %v1540 = vpop.f32.mrb[0].mxu0
        %v1541 = vadd.f32 %v1366, %v1540
        %v1542 = vpop.f32.mrb[0].mxu0
        %1543 = vmatprep.mubr.f32.mxu0 0.0
        %1544 = vmatmul.mubr.f32.gmra.mrb[0].mxu0 %v540
        %v1545 = vpop.f32.mrb[0].mxu0
        %v1546 = vadd.f32 %v1366, %v1545
        %v1547 = vpop.f32.mrb[0].mxu0
        %1548 = vmatprep.mubr.f32.mxu0 0.0
        %1549 = vmatmul.mubr.f32.gmra.mrb[0].mxu0 %v543
        %v1550 = vpop.f32.mrb[0].mxu0
        %v1551 = vadd.f32 %v1366, %v1550
        %v1552 = vpop.f32.mrb[0].mxu0
        %1553 = vmatprep.mubr.f32.mxu0 0.0
        %1554 = vmatmul.mubr.f32.gmra.mrb[0].mxu0 %v546
        %v1555 = vpop.f32.mrb[0].mxu0
        %v1556 = vadd.f32 %v1366, %v1555
        %v1557 = vpop.f32.mrb[0].mxu0
        %1558 = vmatprep.mubr.f32.mxu0 0.0
        %1559 = vmatmul.mubr.f32.gmra.mrb[0].mxu0 %v549
        %v1560 = vpop.f32.mrb[0].mxu0
        %v1561 = vadd.f32 %v1366, %v1560
        %v1562 = vpop.f32.mrb[0].mxu0
        %1563 = vmatprep.mubr.f32.mxu0 0.0
        %1564 = vmatmul.mubr.f32.gmra.mrb[0].mxu0 %v552
        %v1565 = vpop.f32.mrb[0].mxu0
        %v1566 = vadd.f32 %v1366, %v1565
        %v1567 = vpop.f32.mrb[0].mxu0
        %1568 = vmatprep.mubr.f32.mxu0 0.0
        %1569 = vmatmul.mubr.f32.gmra.mrb[0].mxu0 %v555
        %v1570 = vpop.f32.mrb[0].mxu0
        %v1571 = vadd.f32 %v1366, %v1570
        %v1572 = vpop.f32.mrb[0].mxu0
        %1573 = vmatprep.mubr.f32.mxu0 0.0
        %1574 = vmatmul.mubr.f32.gmra.mrb[0].mxu0 %v558
        %v1575 = vpop.f32.mrb[0].mxu0
        %v1576 = vadd.f32 %v1366, %v1575
        %v1577 = vpop.f32.mrb[0].mxu0
        %1578 = vmatprep.mubr.f32.mxu0 0.0
        %1579 = vmatmul.mubr.f32.gmra.mrb[0].mxu0 %v561
        %v1580 = vpop.f32.mrb[0].mxu0
        %v1581 = vadd.f32 %v1366, %v1580
        %v1582 = vpop.f32.mrb[0].mxu0
        %1583 = vmatprep.mubr.f32.mxu0 0.0
        %1584 = vmatmul.mubr.f32.gmra.mrb[0].mxu0 %v564
        %v1585 = vpop.f32.mrb[0].mxu0
        %v1586 = vadd.f32 %v1366, %v1585
        %v1587 = vpop.f32.mrb[0].mxu0
        %1588 = vmatprep.mubr.f32.mxu0 0.0
        %1589 = vmatmul.mubr.f32.gmra.mrb[0].mxu0 %v567
        %v1590 = vpop.f32.mrb[0].mxu0
        %v1591 = vadd.f32 %v1366, %v1590
        %v1592 = vpop.f32.mrb[0].mxu0
        %1593 = vmatprep.mubr.f32.mxu0 0.0
        %1594 = vmatmul.mubr.f32.gmra.mrb[0].mxu0 %v570
        %v1595 = vpop.f32.mrb[0].mxu0
        %v1596 = vadd.f32 %v1366, %v1595
        %v1597 = vpop.f32.mrb[0].mxu0
        %1598 = vmatprep.mubr.f32.mxu0 0.0
        %1599 = vmatmul.mubr.f32.gmra.mrb[0].mxu0 %v573
        %v1600 = vpop.f32.mrb[0].mxu0
        %v1601 = vadd.f32 %v1366, %v1600
        %v1602 = vpop.f32.mrb[0].mxu0
        %1603 = vmatprep.mubr.f32.mxu0 0.0
        %1604 = vmatmul.mubr.f32.gmra.mrb[0].mxu0 %v576
        %v1605 = vpop.f32.mrb[0].mxu0
        %v1606 = vadd.f32 %v1366, %v1605
        %v1607 = vpop.f32.mrb[0].mxu0
        %1608 = vmatprep.mubr.f32.mxu0 0.0
        %1609 = vmatmul.mubr.f32.gmra.mrb[0].mxu0 %v579
        %v1610 = vpop.f32.mrb[0].mxu0
        %v1611 = vadd.f32 %v1366, %v1610
        %v1612 = vpop.f32.mrb[0].mxu0
        %1613 = vmatprep.mubr.f32.mxu0 0.0
        %1614 = vmatmul.mubr.f32.gmra.mrb[0].mxu0 %v582
        %v1615 = vpop.f32.mrb[0].mxu0
        %v1616 = vadd.f32 %v1366, %v1615
        %v1617 = vpop.f32.mrb[0].mxu0
        %1618 = vmatprep.mubr.f32.mxu0 0.0
        %1619 = vmatmul.mubr.f32.gmra.mrb[0].mxu0 %v585
        %v1620 = vpop.f32.mrb[0].mxu0
        %v1621 = vadd.f32 %v1366, %v1620
        %v1622 = vpop.f32.mrb[0].mxu0
        %1623 = vmatprep.mubr.f32.mxu0 0.0
        %1624 = vmatmul.mubr.f32.gmra.mrb[0].mxu0 %v588
        %v1625 = vpop.f32.mrb[0].mxu0
        %v1626 = vadd.f32 %v1366, %v1625
        %v1627 = vpop.f32.mrb[0].mxu0
        %1628 = vmatprep.mubr.f32.mxu0 0.0
        %1629 = vmatmul.mubr.f32.gmra.mrb[0].mxu0 %v591
        %v1630 = vpop.f32.mrb[0].mxu0
        %v1631 = vadd.f32 %v1366, %v1630
        %v1632 = vpop.f32.mrb[0].mxu0
        %1633 = vmatprep.mubr.f32.mxu0 0.0
        %1634 = vmatmul.mubr.f32.gmra.mrb[0].mxu0 %v594
        %v1635 = vpop.f32.mrb[0].mxu0
        %v1636 = vadd.f32 %v1366, %v1635
        %v1637 = vpop.f32.mrb[0].mxu0
        %1638 = vmatprep.mubr.f32.mxu0 0.0
        %1639 = vmatmul.mubr.f32.gmra.mrb[0].mxu0 %v597
        %v1640 = vpop.f32.mrb[0].mxu0
        %v1641 = vadd.f32 %v1366, %v1640
        %v1642 = vpop.f32.mrb[0].mxu0
        %1643 = vmatprep.mubr.f32.mxu0 0.0
        %1644 = vmatmul.mubr.f32.gmra.mrb[0].mxu0 %v600
        %v1645 = vpop.f32.mrb[0].mxu0
        %v1646 = vadd.f32 %v1366, %v1645
        %v1647 = vpop.f32.mrb[0].mxu0
        %1648 = vmatprep.mubr.f32.mxu0 0.0
        %1649 = vmatmul.mubr.f32.gmra.mrb[0].mxu0 %v603
        %v1650 = vpop.f32.mrb[0].mxu0
        %v1651 = vadd.f32 %v1366, %v1650
        %v1652 = vpop.f32.mrb[0].mxu0
        %1653 = vmatprep.mubr.f32.mxu0 0.0
        %1654 = vmatmul.mubr.f32.gmra.mrb[0].mxu0 %v606
        %v1655 = vpop.f32.mrb[0].mxu0
        %v1656 = vadd.f32 %v1366, %v1655
        %v1657 = vpop.f32.mrb[0].mxu0
        %1658 = vmatprep.mubr.f32.mxu0 0.0
        %1659 = vmatmul.mubr.f32.gmra.mrb[0].mxu0 %v609
        %v1660 = vpop.f32.mrb[0].mxu0
        %v1661 = vadd.f32 %v1366, %v1660
        %v1662 = vpop.f32.mrb[0].mxu0
        %1663 = vmatprep.mubr.f32.mxu0 0.0
        %1664 = vmatmul.mubr.f32.gmra.mrb[0].mxu0 %v612
        %v1665 = vpop.f32.mrb[0].mxu0
        %v1666 = vadd.f32 %v1366, %v1665
        %v1667 = vpop.f32.mrb[0].mxu0
        %1668 = vmatprep.mubr.f32.mxu0 0.0
        %1669 = vmatmul.mubr.f32.gmra.mrb[0].mxu0 %v615
        %v1670 = vpop.f32.mrb[0].mxu0
        %v1671 = vadd.f32 %v1366, %v1670
        %v1672 = vpop.f32.mrb[0].mxu0
        %1673 = vmatprep.mubr.f32.mxu0 0.0
        %1674 = vmatmul.mubr.f32.gmra.mrb[0].mxu0 %v618
        %v1675 = vpop.f32.mrb[0].mxu0
        %v1676 = vadd.f32 %v1366, %v1675
        %v1677 = vpop.f32.mrb[0].mxu0
        %1678 = vmatprep.mubr.f32.mxu0 0.0
        %1679 = vmatmul.mubr.f32.gmra.mrb[0].mxu0 %v621
        %v1680 = vpop.f32.mrb[0].mxu0
        %v1681 = vadd.f32 %v1366, %v1680
        %v1682 = vpop.f32.mrb[0].mxu0
        %1683 = vmatprep.mubr.f32.mxu0 0.0
        %1684 = vmatmul.mubr.f32.gmra.mrb[0].mxu0 %v624
        %v1685 = vpop.f32.mrb[0].mxu0
        %v1686 = vadd.f32 %v1366, %v1685
        %v1687 = vpop.f32.mrb[0].mxu0
        %1688 = vmatprep.mubr.f32.mxu0 0.0
        %1689 = vmatmul.mubr.f32.gmra.mrb[0].mxu0 %v627
        %v1690 = vpop.f32.mrb[0].mxu0
        %v1691 = vadd.f32 %v1366, %v1690
        %v1692 = vpop.f32.mrb[0].mxu0
        %1693 = vmatprep.mubr.f32.mxu0 0.0
        %1694 = vmatmul.mubr.f32.gmra.mrb[0].mxu0 %v630
        %v1695 = vpop.f32.mrb[0].mxu0
        %v1696 = vadd.f32 %v1366, %v1695
        %v1697 = vpop.f32.mrb[0].mxu0
        %1698 = vmatprep.mubr.f32.mxu0 0.0
        %1699 = vmatmul.mubr.f32.gmra.mrb[0].mxu0 %v633
        %v1700 = vpop.f32.mrb[0].mxu0
        %v1701 = vadd.f32 %v1366, %v1700
        %v1702 = vpop.f32.mrb[0].mxu0
        %1703 = vmatprep.mubr.f32.mxu0 0.0
        %1704 = vmatmul.mubr.f32.gmra.mrb[0].mxu0 %v636
        %v1705 = vpop.f32.mrb[0].mxu0
        %v1706 = vadd.f32 %v1366, %v1705
        %v1707 = vpop.f32.mrb[0].mxu0
        %1708 = vdwg.mxu0
        %v1709 = vmul.f32 %v1441, %v982
        %v1710 = vmul.f32 %v1446, %v987
        %v1711 = vmul.f32 %v1451, %v992
        %v1712 = vmul.f32 %v1456, %v997
        %v1713 = vmul.f32 %v1461, %v1002
        %v1714 = vmul.f32 %v1466, %v1007
        %v1715 = vmul.f32 %v1471, %v1012
        %v1716 = vmul.f32 %v1476, %v1017
        %v1717 = vmul.f32 %v1481, %v1022
        %v1718 = vmul.f32 %v1486, %v1027
        %v1719 = vmul.f32 %v1491, %v1032
        %v1720 = vmul.f32 %v1496, %v1037
        %v1721 = vmul.f32 %v1501, %v1042
        %v1722 = vmul.f32 %v1506, %v1047
        %v1723 = vmul.f32 %v1511, %v1052
        %v1724 = vmul.f32 %v1516, %v1057
        %v1725 = vmul.f32 %v1521, %v1062
        %v1726 = vmul.f32 %v1526, %v1067
        %v1727 = vmul.f32 %v1531, %v1072
        %v1728 = vmul.f32 %v1536, %v1077
        %v1729 = vmul.f32 %v1541, %v1082
        %v1730 = vmul.f32 %v1546, %v1087
        %v1731 = vmul.f32 %v1551, %v1092
        %v1732 = vmul.f32 %v1556, %v1097
        %v1733 = vmul.f32 %v1561, %v1102
        %v1734 = vmul.f32 %v1566, %v1107
        %v1735 = vmul.f32 %v1571, %v1112
        %v1736 = vmul.f32 %v1576, %v1117
        %v1737 = vmul.f32 %v1581, %v1122
        %v1738 = vmul.f32 %v1586, %v1127
        %v1739 = vmul.f32 %v1591, %v1132
        %v1740 = vmul.f32 %v1596, %v1137
        %v1741 = vmul.f32 %v1601, %v1142
        %v1742 = vmul.f32 %v1606, %v1147
        %v1743 = vmul.f32 %v1611, %v1152
        %v1744 = vmul.f32 %v1616, %v1157
        %v1745 = vmul.f32 %v1621, %v1162
        %v1746 = vmul.f32 %v1626, %v1167
        %v1747 = vmul.f32 %v1631, %v1172
        %v1748 = vmul.f32 %v1636, %v1177
        %v1749 = vmul.f32 %v1641, %v1182
        %v1750 = vmul.f32 %v1646, %v1187
        %v1751 = vmul.f32 %v1651, %v1192
        %v1752 = vmul.f32 %v1656, %v1197
        %v1753 = vmul.f32 %v1661, %v1202
        %v1754 = vmul.f32 %v1666, %v1207
        %v1755 = vmul.f32 %v1671, %v1212
        %v1756 = vmul.f32 %v1676, %v1217
        %v1757 = vmul.f32 %v1681, %v1222
        %v1758 = vmul.f32 %v1686, %v1227
        %v1759 = vmul.f32 %v1691, %v1232
        %v1760 = vmul.f32 %v1696, %v1237
        %v1761 = vmul.f32 %v1701, %v1242
        %v1762 = vmul.f32 %v1706, %v1247
        %s1763 = scalar_lea.vmem [#allocation2], 432
        %1764 = vst.msk [vmem:[%s1763] sm:$0xff] %vm475, %v1709
        %1765 = vst.msk [vmem:[%s1763 + $0x8] sm:$0xff] %vm475, %v1710
        %1766 = vst.msk [vmem:[%s1763 + $0x10] sm:$0xff] %vm475, %v1711
        %1767 = vst.msk [vmem:[%s1763 + $0x18] sm:$0xff] %vm475, %v1712
        %1768 = vst.msk [vmem:[%s1763 + $0x20] sm:$0xff] %vm475, %v1713
        %1769 = vst.msk [vmem:[%s1763 + $0x28] sm:$0xff] %vm475, %v1714
        %1770 = vst.msk [vmem:[%s1763 + $0x30] sm:$0xff] %vm475, %v1715
        %1771 = vst.msk [vmem:[%s1763 + $0x38] sm:$0xff] %vm475, %v1716
        %1772 = vst.msk [vmem:[%s1763 + $0x40] sm:$0xff] %vm475, %v1717
        %1773 = vst.msk [vmem:[%s1763 + $0x48] sm:$0xff] %vm475, %v1718
        %1774 = vst.msk [vmem:[%s1763 + $0x50] sm:$0xff] %vm475, %v1719
        %1775 = vst.msk [vmem:[%s1763 + $0x58] sm:$0xff] %vm475, %v1720
        %1776 = vst.msk [vmem:[%s1763 + $0x60] sm:$0xff] %vm475, %v1721
        %1777 = vst.msk [vmem:[%s1763 + $0x68] sm:$0xff] %vm475, %v1722
        %1778 = vst.msk [vmem:[%s1763 + $0x70] sm:$0xff] %vm475, %v1723
        %1779 = vst.msk [vmem:[%s1763 + $0x78] sm:$0xff] %vm475, %v1724
        %1780 = vst.msk [vmem:[%s1763 + $0x80] sm:$0xff] %vm475, %v1725
        %1781 = vst.msk [vmem:[%s1763 + $0x88] sm:$0xff] %vm475, %v1726
        %1782 = vst.msk [vmem:[%s1763 + $0x90] sm:$0xff] %vm475, %v1727
        %1783 = vst.msk [vmem:[%s1763 + $0x98] sm:$0xff] %vm475, %v1728
        %1784 = vst.msk [vmem:[%s1763 + $0xa0] sm:$0xff] %vm475, %v1729
        %1785 = vst.msk [vmem:[%s1763 + $0xa8] sm:$0xff] %vm475, %v1730
        %1786 = vst.msk [vmem:[%s1763 + $0xb0] sm:$0xff] %vm475, %v1731
        %1787 = vst.msk [vmem:[%s1763 + $0xb8] sm:$0xff] %vm475, %v1732
        %1788 = vst.msk [vmem:[%s1763 + $0xc0] sm:$0xff] %vm475, %v1733
        %1789 = vst.msk [vmem:[%s1763 + $0xc8] sm:$0xff] %vm475, %v1734
        %1790 = vst.msk [vmem:[%s1763 + $0xd0] sm:$0xff] %vm475, %v1735
        %1791 = vst.msk [vmem:[%s1763 + $0xd8] sm:$0xff] %vm475, %v1736
        %1792 = vst.msk [vmem:[%s1763 + $0xe0] sm:$0xff] %vm475, %v1737
        %1793 = vst.msk [vmem:[%s1763 + $0xe8] sm:$0xff] %vm475, %v1738
        %1794 = vst.msk [vmem:[%s1763 + $0xf0] sm:$0xff] %vm475, %v1739
        %1795 = vst.msk [vmem:[%s1763 + $0xf8] sm:$0xff] %vm475, %v1740
        %1796 = vst.msk [vmem:[%s1763 + $0x100] sm:$0xff] %vm475, %v1741
        %1797 = vst.msk [vmem:[%s1763 + $0x108] sm:$0xff] %vm475, %v1742
        %1798 = vst.msk [vmem:[%s1763 + $0x110] sm:$0xff] %vm475, %v1743
        %1799 = vst.msk [vmem:[%s1763 + $0x118] sm:$0xff] %vm475, %v1744
        %1800 = vst.msk [vmem:[%s1763 + $0x120] sm:$0xff] %vm475, %v1745
        %1801 = vst.msk [vmem:[%s1763 + $0x128] sm:$0xff] %vm475, %v1746
        %1802 = vst.msk [vmem:[%s1763 + $0x130] sm:$0xff] %vm475, %v1747
        %1803 = vst.msk [vmem:[%s1763 + $0x138] sm:$0xff] %vm475, %v1748
        %1804 = vst.msk [vmem:[%s1763 + $0x140] sm:$0xff] %vm475, %v1749
        %1805 = vst.msk [vmem:[%s1763 + $0x148] sm:$0xff] %vm475, %v1750
        %1806 = vst.msk [vmem:[%s1763 + $0x150] sm:$0xff] %vm475, %v1751
        %1807 = vst.msk [vmem:[%s1763 + $0x158] sm:$0xff] %vm475, %v1752
        %1808 = vst.msk [vmem:[%s1763 + $0x160] sm:$0xff] %vm475, %v1753
        %1809 = vst.msk [vmem:[%s1763 + $0x168] sm:$0xff] %vm475, %v1754
        %1810 = vst.msk [vmem:[%s1763 + $0x170] sm:$0xff] %vm475, %v1755
        %1811 = vst.msk [vmem:[%s1763 + $0x178] sm:$0xff] %vm475, %v1756
        %1812 = vst.msk [vmem:[%s1763 + $0x180] sm:$0xff] %vm475, %v1757
        %1813 = vst.msk [vmem:[%s1763 + $0x188] sm:$0xff] %vm475, %v1758
        %1814 = vst.msk [vmem:[%s1763 + $0x190] sm:$0xff] %vm475, %v1759
        %1815 = vst.msk [vmem:[%s1763 + $0x198] sm:$0xff] %vm475, %v1760
        %1816 = vst.msk [vmem:[%s1763 + $0x1a0] sm:$0xff] %vm475, %v1761
        %1817 = vst.msk [vmem:[%s1763 + $0x1a8] sm:$0xff] %vm475, %v1762
        %s1818 = scalar_lea.vmem %s2, 32
        %v1819 = vld [vmem:[%s1818] sm:$0xff]
        %v1820 = vld [vmem:[%s1818 + $0x8] sm:$0xff]
        %s1821 = scalar_lea.vmem %s3, 2
        %v1822 = vld [vmem:[%s1821] sm:$0x1]
        %v1824 = vlaneseq
        %v1825 = vshrl.u32 %v1824, 7
        %v1826 = vsub.s32 0, %v1825
        %v1827 = vrot.slane %v1822, %v1826
        %v1830 = vsel %vm475, %v1819, 0
        %v1833 = vsel %vm475, %v1820, 0
        %1835 = vmatprep.subr.mxu0 0.0
        %1836 = vmatpush1.xpose.msra.mxu0 %v1830
        %1837 = vmatprep.subr.mxu0 0.0
        %1838 = vmatpush1.xpose.msra.mxu0 %v1833
        %1839 = vmatprep.subr.mxu0 0.0
        %1840 = vmatpush1.xpose.msra.mxu0 0.0
        %1841 = vmatprep.subr.mxu0 0.0
        %1842 = vmatpush1.xpose.msra.mxu0 0.0
        %1843 = vmatprep.subr.mxu0 0.0
        %1844 = vmatpush1.xpose.msra.mxu0 0.0
        %1845 = vmatprep.subr.mxu0 0.0
        %1846 = vmatpush1.xpose.msra.mxu0 0.0
        %1847 = vmatprep.subr.mxu0 0.0
        %1848 = vmatpush1.xpose.msra.mxu0 0.0
        %1849 = vmatprep.subr.mxu0 0.0
        %1850 = vmatpush1.xpose.msra.mxu0 0.0
        %1851 = vmatprep.subr.mxu0 0.0
        %1852 = vmatpush1.xpose.msra.mxu0 0.0
        %1853 = vmatprep.subr.mxu0 0.0
        %1854 = vmatpush1.xpose.msra.mxu0 0.0
        %1855 = vmatprep.subr.mxu0 0.0
        %1856 = vmatpush1.xpose.msra.mxu0 0.0
        %1857 = vmatprep.subr.mxu0 0.0
        %1858 = vmatpush1.xpose.msra.mxu0 0.0
        %1859 = vmatprep.subr.mxu0 0.0
        %1860 = vmatpush1.xpose.msra.mxu0 0.0
        %1861 = vmatprep.subr.mxu0 0.0
        %1862 = vmatpush1.xpose.msra.mxu0 0.0
        %1863 = vmatprep.subr.mxu0 0.0
        %1864 = vmatpush1.xpose.msra.mxu0 0.0
        %1865 = vmatprep.subr.mxu0 0.0
        %1866 = vmatpush1.xpose.msra.mxu0 0.0
        %1867 = vmatprep.subr.mxu0 0.0
        %1868 = vmatpush1.xpose.msra.mxu0 0.0
        %1869 = vmatprep.subr.mxu0 0.0
        %1870 = vmatpush1.xpose.msra.mxu0 0.0
        %1871 = vmatprep.subr.mxu0 0.0
        %1872 = vmatpush1.xpose.msra.mxu0 0.0
        %1873 = vmatprep.subr.mxu0 0.0
        %1874 = vmatpush1.xpose.msra.mxu0 0.0
        %1875 = vmatprep.subr.mxu0 0.0
        %1876 = vmatpush1.xpose.msra.mxu0 0.0
        %1877 = vmatprep.subr.mxu0 0.0
        %1878 = vmatpush1.xpose.msra.mxu0 0.0
        %1879 = vmatprep.subr.mxu0 0.0
        %1880 = vmatpush1.xpose.msra.mxu0 0.0
        %1881 = vmatprep.subr.mxu0 0.0
        %1882 = vmatpush1.xpose.msra.mxu0 0.0
        %1883 = vmatprep.subr.mxu0 0.0
        %1884 = vmatpush1.xpose.msra.mxu0 0.0
        %1885 = vmatprep.subr.mxu0 0.0
        %1886 = vmatpush1.xpose.msra.mxu0 0.0
        %1887 = vmatprep.subr.mxu0 0.0
        %1888 = vmatpush1.xpose.msra.mxu0 0.0
        %1889 = vmatprep.subr.mxu0 0.0
        %1890 = vmatpush1.xpose.msra.mxu0 0.0
        %1891 = vmatprep.subr.mxu0 0.0
        %1892 = vmatpush1.xpose.msra.mxu0 0.0
        %1893 = vmatprep.subr.mxu0 0.0
        %1894 = vmatpush1.xpose.msra.mxu0 0.0
        %1895 = vmatprep.subr.mxu0 0.0
        %1896 = vmatpush1.xpose.msra.mxu0 0.0
        %1897 = vmatprep.subr.mxu0 0.0
        %1898 = vmatpush1.xpose.msra.mxu0 0.0
        %1899 = vmatprep.mubr.f32.mxu0 0.0
        %1900 = vmatmul.mubr.f32.gmra.mrb[0].mxu0 %v477
        %v1901 = vpop.f32.mrb[0].mxu0
        %v1902 = vadd.f32 %v1827, %v1901
        %v1903 = vpop.f32.mrb[0].mxu0
        %1904 = vmatprep.mubr.f32.mxu0 0.0
        %1905 = vmatmul.mubr.f32.gmra.mrb[0].mxu0 %v480
        %v1906 = vpop.f32.mrb[0].mxu0
        %v1907 = vadd.f32 %v1827, %v1906
        %v1908 = vpop.f32.mrb[0].mxu0
        %1909 = vmatprep.mubr.f32.mxu0 0.0
        %1910 = vmatmul.mubr.f32.gmra.mrb[0].mxu0 %v483
        %v1911 = vpop.f32.mrb[0].mxu0
        %v1912 = vadd.f32 %v1827, %v1911
        %v1913 = vpop.f32.mrb[0].mxu0
        %1914 = vmatprep.mubr.f32.mxu0 0.0
        %1915 = vmatmul.mubr.f32.gmra.mrb[0].mxu0 %v486
        %v1916 = vpop.f32.mrb[0].mxu0
        %v1917 = vadd.f32 %v1827, %v1916
        %v1918 = vpop.f32.mrb[0].mxu0
        %1919 = vmatprep.mubr.f32.mxu0 0.0
        %1920 = vmatmul.mubr.f32.gmra.mrb[0].mxu0 %v489
        %v1921 = vpop.f32.mrb[0].mxu0
        %v1922 = vadd.f32 %v1827, %v1921
        %v1923 = vpop.f32.mrb[0].mxu0
        %1924 = vmatprep.mubr.f32.mxu0 0.0
        %1925 = vmatmul.mubr.f32.gmra.mrb[0].mxu0 %v492
        %v1926 = vpop.f32.mrb[0].mxu0
        %v1927 = vadd.f32 %v1827, %v1926
        %v1928 = vpop.f32.mrb[0].mxu0
        %1929 = vmatprep.mubr.f32.mxu0 0.0
        %1930 = vmatmul.mubr.f32.gmra.mrb[0].mxu0 %v495
        %v1931 = vpop.f32.mrb[0].mxu0
        %v1932 = vadd.f32 %v1827, %v1931
        %v1933 = vpop.f32.mrb[0].mxu0
        %1934 = vmatprep.mubr.f32.mxu0 0.0
        %1935 = vmatmul.mubr.f32.gmra.mrb[0].mxu0 %v498
        %v1936 = vpop.f32.mrb[0].mxu0
        %v1937 = vadd.f32 %v1827, %v1936
        %v1938 = vpop.f32.mrb[0].mxu0
        %1939 = vmatprep.mubr.f32.mxu0 0.0
        %1940 = vmatmul.mubr.f32.gmra.mrb[0].mxu0 %v501
        %v1941 = vpop.f32.mrb[0].mxu0
        %v1942 = vadd.f32 %v1827, %v1941
        %v1943 = vpop.f32.mrb[0].mxu0
        %1944 = vmatprep.mubr.f32.mxu0 0.0
        %1945 = vmatmul.mubr.f32.gmra.mrb[0].mxu0 %v504
        %v1946 = vpop.f32.mrb[0].mxu0
        %v1947 = vadd.f32 %v1827, %v1946
        %v1948 = vpop.f32.mrb[0].mxu0
        %1949 = vmatprep.mubr.f32.mxu0 0.0
        %1950 = vmatmul.mubr.f32.gmra.mrb[0].mxu0 %v507
        %v1951 = vpop.f32.mrb[0].mxu0
        %v1952 = vadd.f32 %v1827, %v1951
        %v1953 = vpop.f32.mrb[0].mxu0
        %1954 = vmatprep.mubr.f32.mxu0 0.0
        %1955 = vmatmul.mubr.f32.gmra.mrb[0].mxu0 %v510
        %v1956 = vpop.f32.mrb[0].mxu0
        %v1957 = vadd.f32 %v1827, %v1956
        %v1958 = vpop.f32.mrb[0].mxu0
        %1959 = vmatprep.mubr.f32.mxu0 0.0
        %1960 = vmatmul.mubr.f32.gmra.mrb[0].mxu0 %v513
        %v1961 = vpop.f32.mrb[0].mxu0
        %v1962 = vadd.f32 %v1827, %v1961
        %v1963 = vpop.f32.mrb[0].mxu0
        %1964 = vmatprep.mubr.f32.mxu0 0.0
        %1965 = vmatmul.mubr.f32.gmra.mrb[0].mxu0 %v516
        %v1966 = vpop.f32.mrb[0].mxu0
        %v1967 = vadd.f32 %v1827, %v1966
        %v1968 = vpop.f32.mrb[0].mxu0
        %1969 = vmatprep.mubr.f32.mxu0 0.0
        %1970 = vmatmul.mubr.f32.gmra.mrb[0].mxu0 %v519
        %v1971 = vpop.f32.mrb[0].mxu0
        %v1972 = vadd.f32 %v1827, %v1971
        %v1973 = vpop.f32.mrb[0].mxu0
        %1974 = vmatprep.mubr.f32.mxu0 0.0
        %1975 = vmatmul.mubr.f32.gmra.mrb[0].mxu0 %v522
        %v1976 = vpop.f32.mrb[0].mxu0
        %v1977 = vadd.f32 %v1827, %v1976
        %v1978 = vpop.f32.mrb[0].mxu0
        %1979 = vmatprep.mubr.f32.mxu0 0.0
        %1980 = vmatmul.mubr.f32.gmra.mrb[0].mxu0 %v525
        %v1981 = vpop.f32.mrb[0].mxu0
        %v1982 = vadd.f32 %v1827, %v1981
        %v1983 = vpop.f32.mrb[0].mxu0
        %1984 = vmatprep.mubr.f32.mxu0 0.0
        %1985 = vmatmul.mubr.f32.gmra.mrb[0].mxu0 %v528
        %v1986 = vpop.f32.mrb[0].mxu0
        %v1987 = vadd.f32 %v1827, %v1986
        %v1988 = vpop.f32.mrb[0].mxu0
        %1989 = vmatprep.mubr.f32.mxu0 0.0
        %1990 = vmatmul.mubr.f32.gmra.mrb[0].mxu0 %v531
        %v1991 = vpop.f32.mrb[0].mxu0
        %v1992 = vadd.f32 %v1827, %v1991
        %v1993 = vpop.f32.mrb[0].mxu0
        %1994 = vmatprep.mubr.f32.mxu0 0.0
        %1995 = vmatmul.mubr.f32.gmra.mrb[0].mxu0 %v534
        %v1996 = vpop.f32.mrb[0].mxu0
        %v1997 = vadd.f32 %v1827, %v1996
        %v1998 = vpop.f32.mrb[0].mxu0
        %1999 = vmatprep.mubr.f32.mxu0 0.0
        %2000 = vmatmul.mubr.f32.gmra.mrb[0].mxu0 %v537
        %v2001 = vpop.f32.mrb[0].mxu0
        %v2002 = vadd.f32 %v1827, %v2001
        %v2003 = vpop.f32.mrb[0].mxu0
        %2004 = vmatprep.mubr.f32.mxu0 0.0
        %2005 = vmatmul.mubr.f32.gmra.mrb[0].mxu0 %v540
        %v2006 = vpop.f32.mrb[0].mxu0
        %v2007 = vadd.f32 %v1827, %v2006
        %v2008 = vpop.f32.mrb[0].mxu0
        %2009 = vmatprep.mubr.f32.mxu0 0.0
        %2010 = vmatmul.mubr.f32.gmra.mrb[0].mxu0 %v543
        %v2011 = vpop.f32.mrb[0].mxu0
        %v2012 = vadd.f32 %v1827, %v2011
        %v2013 = vpop.f32.mrb[0].mxu0
        %2014 = vmatprep.mubr.f32.mxu0 0.0
        %2015 = vmatmul.mubr.f32.gmra.mrb[0].mxu0 %v546
        %v2016 = vpop.f32.mrb[0].mxu0
        %v2017 = vadd.f32 %v1827, %v2016
        %v2018 = vpop.f32.mrb[0].mxu0
        %2019 = vmatprep.mubr.f32.mxu0 0.0
        %2020 = vmatmul.mubr.f32.gmra.mrb[0].mxu0 %v549
        %v2021 = vpop.f32.mrb[0].mxu0
        %v2022 = vadd.f32 %v1827, %v2021
        %v2023 = vpop.f32.mrb[0].mxu0
        %2024 = vmatprep.mubr.f32.mxu0 0.0
        %2025 = vmatmul.mubr.f32.gmra.mrb[0].mxu0 %v552
        %v2026 = vpop.f32.mrb[0].mxu0
        %v2027 = vadd.f32 %v1827, %v2026
        %v2028 = vpop.f32.mrb[0].mxu0
        %2029 = vmatprep.mubr.f32.mxu0 0.0
        %2030 = vmatmul.mubr.f32.gmra.mrb[0].mxu0 %v555
        %v2031 = vpop.f32.mrb[0].mxu0
        %v2032 = vadd.f32 %v1827, %v2031
        %v2033 = vpop.f32.mrb[0].mxu0
        %2034 = vmatprep.mubr.f32.mxu0 0.0
        %2035 = vmatmul.mubr.f32.gmra.mrb[0].mxu0 %v558
        %v2036 = vpop.f32.mrb[0].mxu0
        %v2037 = vadd.f32 %v1827, %v2036
        %v2038 = vpop.f32.mrb[0].mxu0
        %2039 = vmatprep.mubr.f32.mxu0 0.0
        %2040 = vmatmul.mubr.f32.gmra.mrb[0].mxu0 %v561
        %v2041 = vpop.f32.mrb[0].mxu0
        %v2042 = vadd.f32 %v1827, %v2041
        %v2043 = vpop.f32.mrb[0].mxu0
        %2044 = vmatprep.mubr.f32.mxu0 0.0
        %2045 = vmatmul.mubr.f32.gmra.mrb[0].mxu0 %v564
        %v2046 = vpop.f32.mrb[0].mxu0
        %v2047 = vadd.f32 %v1827, %v2046
        %v2048 = vpop.f32.mrb[0].mxu0
        %2049 = vmatprep.mubr.f32.mxu0 0.0
        %2050 = vmatmul.mubr.f32.gmra.mrb[0].mxu0 %v567
        %v2051 = vpop.f32.mrb[0].mxu0
        %v2052 = vadd.f32 %v1827, %v2051
        %v2053 = vpop.f32.mrb[0].mxu0
        %2054 = vmatprep.mubr.f32.mxu0 0.0
        %2055 = vmatmul.mubr.f32.gmra.mrb[0].mxu0 %v570
        %v2056 = vpop.f32.mrb[0].mxu0
        %v2057 = vadd.f32 %v1827, %v2056
        %v2058 = vpop.f32.mrb[0].mxu0
        %2059 = vmatprep.mubr.f32.mxu0 0.0
        %2060 = vmatmul.mubr.f32.gmra.mrb[0].mxu0 %v573
        %v2061 = vpop.f32.mrb[0].mxu0
        %v2062 = vadd.f32 %v1827, %v2061
        %v2063 = vpop.f32.mrb[0].mxu0
        %2064 = vmatprep.mubr.f32.mxu0 0.0
        %2065 = vmatmul.mubr.f32.gmra.mrb[0].mxu0 %v576
        %v2066 = vpop.f32.mrb[0].mxu0
        %v2067 = vadd.f32 %v1827, %v2066
        %v2068 = vpop.f32.mrb[0].mxu0
        %2069 = vmatprep.mubr.f32.mxu0 0.0
        %2070 = vmatmul.mubr.f32.gmra.mrb[0].mxu0 %v579
        %v2071 = vpop.f32.mrb[0].mxu0
        %v2072 = vadd.f32 %v1827, %v2071
        %v2073 = vpop.f32.mrb[0].mxu0
        %2074 = vmatprep.mubr.f32.mxu0 0.0
        %2075 = vmatmul.mubr.f32.gmra.mrb[0].mxu0 %v582
        %v2076 = vpop.f32.mrb[0].mxu0
        %v2077 = vadd.f32 %v1827, %v2076
        %v2078 = vpop.f32.mrb[0].mxu0
        %2079 = vmatprep.mubr.f32.mxu0 0.0
        %2080 = vmatmul.mubr.f32.gmra.mrb[0].mxu0 %v585
        %v2081 = vpop.f32.mrb[0].mxu0
        %v2082 = vadd.f32 %v1827, %v2081
        %v2083 = vpop.f32.mrb[0].mxu0
        %2084 = vmatprep.mubr.f32.mxu0 0.0
        %2085 = vmatmul.mubr.f32.gmra.mrb[0].mxu0 %v588
        %v2086 = vpop.f32.mrb[0].mxu0
        %v2087 = vadd.f32 %v1827, %v2086
        %v2088 = vpop.f32.mrb[0].mxu0
        %2089 = vmatprep.mubr.f32.mxu0 0.0
        %2090 = vmatmul.mubr.f32.gmra.mrb[0].mxu0 %v591
        %v2091 = vpop.f32.mrb[0].mxu0
        %v2092 = vadd.f32 %v1827, %v2091
        %v2093 = vpop.f32.mrb[0].mxu0
        %2094 = vmatprep.mubr.f32.mxu0 0.0
        %2095 = vmatmul.mubr.f32.gmra.mrb[0].mxu0 %v594
        %v2096 = vpop.f32.mrb[0].mxu0
        %v2097 = vadd.f32 %v1827, %v2096
        %v2098 = vpop.f32.mrb[0].mxu0
        %2099 = vmatprep.mubr.f32.mxu0 0.0
        %2100 = vmatmul.mubr.f32.gmra.mrb[0].mxu0 %v597
        %v2101 = vpop.f32.mrb[0].mxu0
        %v2102 = vadd.f32 %v1827, %v2101
        %v2103 = vpop.f32.mrb[0].mxu0
        %2104 = vmatprep.mubr.f32.mxu0 0.0
        %2105 = vmatmul.mubr.f32.gmra.mrb[0].mxu0 %v600
        %v2106 = vpop.f32.mrb[0].mxu0
        %v2107 = vadd.f32 %v1827, %v2106
        %v2108 = vpop.f32.mrb[0].mxu0
        %2109 = vmatprep.mubr.f32.mxu0 0.0
        %2110 = vmatmul.mubr.f32.gmra.mrb[0].mxu0 %v603
        %v2111 = vpop.f32.mrb[0].mxu0
        %v2112 = vadd.f32 %v1827, %v2111
        %v2113 = vpop.f32.mrb[0].mxu0
        %2114 = vmatprep.mubr.f32.mxu0 0.0
        %2115 = vmatmul.mubr.f32.gmra.mrb[0].mxu0 %v606
        %v2116 = vpop.f32.mrb[0].mxu0
        %v2117 = vadd.f32 %v1827, %v2116
        %v2118 = vpop.f32.mrb[0].mxu0
        %2119 = vmatprep.mubr.f32.mxu0 0.0
        %2120 = vmatmul.mubr.f32.gmra.mrb[0].mxu0 %v609
        %v2121 = vpop.f32.mrb[0].mxu0
        %v2122 = vadd.f32 %v1827, %v2121
        %v2123 = vpop.f32.mrb[0].mxu0
        %2124 = vmatprep.mubr.f32.mxu0 0.0
        %2125 = vmatmul.mubr.f32.gmra.mrb[0].mxu0 %v612
        %v2126 = vpop.f32.mrb[0].mxu0
        %v2127 = vadd.f32 %v1827, %v2126
        %v2128 = vpop.f32.mrb[0].mxu0
        %2129 = vmatprep.mubr.f32.mxu0 0.0
        %2130 = vmatmul.mubr.f32.gmra.mrb[0].mxu0 %v615
        %v2131 = vpop.f32.mrb[0].mxu0
        %v2132 = vadd.f32 %v1827, %v2131
        %v2133 = vpop.f32.mrb[0].mxu0
        %2134 = vmatprep.mubr.f32.mxu0 0.0
        %2135 = vmatmul.mubr.f32.gmra.mrb[0].mxu0 %v618
        %v2136 = vpop.f32.mrb[0].mxu0
        %v2137 = vadd.f32 %v1827, %v2136
        %v2138 = vpop.f32.mrb[0].mxu0
        %2139 = vmatprep.mubr.f32.mxu0 0.0
        %2140 = vmatmul.mubr.f32.gmra.mrb[0].mxu0 %v621
        %v2141 = vpop.f32.mrb[0].mxu0
        %v2142 = vadd.f32 %v1827, %v2141
        %v2143 = vpop.f32.mrb[0].mxu0
        %2144 = vmatprep.mubr.f32.mxu0 0.0
        %2145 = vmatmul.mubr.f32.gmra.mrb[0].mxu0 %v624
        %v2146 = vpop.f32.mrb[0].mxu0
        %v2147 = vadd.f32 %v1827, %v2146
        %v2148 = vpop.f32.mrb[0].mxu0
        %2149 = vmatprep.mubr.f32.mxu0 0.0
        %2150 = vmatmul.mubr.f32.gmra.mrb[0].mxu0 %v627
        %v2151 = vpop.f32.mrb[0].mxu0
        %v2152 = vadd.f32 %v1827, %v2151
        %v2153 = vpop.f32.mrb[0].mxu0
        %2154 = vmatprep.mubr.f32.mxu0 0.0
        %2155 = vmatmul.mubr.f32.gmra.mrb[0].mxu0 %v630
        %v2156 = vpop.f32.mrb[0].mxu0
        %v2157 = vadd.f32 %v1827, %v2156
        %v2158 = vpop.f32.mrb[0].mxu0
        %2159 = vmatprep.mubr.f32.mxu0 0.0
        %2160 = vmatmul.mubr.f32.gmra.mrb[0].mxu0 %v633
        %v2161 = vpop.f32.mrb[0].mxu0
        %v2162 = vadd.f32 %v1827, %v2161
        %v2163 = vpop.f32.mrb[0].mxu0
        %2164 = vmatprep.mubr.f32.mxu0 0.0
        %2165 = vmatmul.mubr.f32.gmra.mrb[0].mxu0 %v636
        %v2166 = vpop.f32.mrb[0].mxu0
        %v2167 = vadd.f32 %v1827, %v2166
        %v2168 = vpop.f32.mrb[0].mxu0
        %2169 = vdwg.mxu0
        %v2170 = vmul.f32 %v1902, %v982
        %v2171 = vmul.f32 %v1907, %v987
        %v2172 = vmul.f32 %v1912, %v992
        %v2173 = vmul.f32 %v1917, %v997
        %v2174 = vmul.f32 %v1922, %v1002
        %v2175 = vmul.f32 %v1927, %v1007
        %v2176 = vmul.f32 %v1932, %v1012
        %v2177 = vmul.f32 %v1937, %v1017
        %v2178 = vmul.f32 %v1942, %v1022
        %v2179 = vmul.f32 %v1947, %v1027
        %v2180 = vmul.f32 %v1952, %v1032
        %v2181 = vmul.f32 %v1957, %v1037
        %v2182 = vmul.f32 %v1962, %v1042
        %v2183 = vmul.f32 %v1967, %v1047
        %v2184 = vmul.f32 %v1972, %v1052
        %v2185 = vmul.f32 %v1977, %v1057
        %v2186 = vmul.f32 %v1982, %v1062
        %v2187 = vmul.f32 %v1987, %v1067
        %v2188 = vmul.f32 %v1992, %v1072
        %v2189 = vmul.f32 %v1997, %v1077
        %v2190 = vmul.f32 %v2002, %v1082
        %v2191 = vmul.f32 %v2007, %v1087
        %v2192 = vmul.f32 %v2012, %v1092
        %v2193 = vmul.f32 %v2017, %v1097
        %v2194 = vmul.f32 %v2022, %v1102
        %v2195 = vmul.f32 %v2027, %v1107
        %v2196 = vmul.f32 %v2032, %v1112
        %v2197 = vmul.f32 %v2037, %v1117
        %v2198 = vmul.f32 %v2042, %v1122
        %v2199 = vmul.f32 %v2047, %v1127
        %v2200 = vmul.f32 %v2052, %v1132
        %v2201 = vmul.f32 %v2057, %v1137
        %v2202 = vmul.f32 %v2062, %v1142
        %v2203 = vmul.f32 %v2067, %v1147
        %v2204 = vmul.f32 %v2072, %v1152
        %v2205 = vmul.f32 %v2077, %v1157
        %v2206 = vmul.f32 %v2082, %v1162
        %v2207 = vmul.f32 %v2087, %v1167
        %v2208 = vmul.f32 %v2092, %v1172
        %v2209 = vmul.f32 %v2097, %v1177
        %v2210 = vmul.f32 %v2102, %v1182
        %v2211 = vmul.f32 %v2107, %v1187
        %v2212 = vmul.f32 %v2112, %v1192
        %v2213 = vmul.f32 %v2117, %v1197
        %v2214 = vmul.f32 %v2122, %v1202
        %v2215 = vmul.f32 %v2127, %v1207
        %v2216 = vmul.f32 %v2132, %v1212
        %v2217 = vmul.f32 %v2137, %v1217
        %v2218 = vmul.f32 %v2142, %v1222
        %v2219 = vmul.f32 %v2147, %v1227
        %v2220 = vmul.f32 %v2152, %v1232
        %v2221 = vmul.f32 %v2157, %v1237
        %v2222 = vmul.f32 %v2162, %v1242
        %v2223 = vmul.f32 %v2167, %v1247
        %s2224 = scalar_lea.vmem [#allocation2], 864
        %2225 = vst.msk [vmem:[%s2224] sm:$0xff] %vm475, %v2170
        %2226 = vst.msk [vmem:[%s2224 + $0x8] sm:$0xff] %vm475, %v2171
        %2227 = vst.msk [vmem:[%s2224 + $0x10] sm:$0xff] %vm475, %v2172
        %2228 = vst.msk [vmem:[%s2224 + $0x18] sm:$0xff] %vm475, %v2173
        %2229 = vst.msk [vmem:[%s2224 + $0x20] sm:$0xff] %vm475, %v2174
        %2230 = vst.msk [vmem:[%s2224 + $0x28] sm:$0xff] %vm475, %v2175
        %2231 = vst.msk [vmem:[%s2224 + $0x30] sm:$0xff] %vm475, %v2176
        %2232 = vst.msk [vmem:[%s2224 + $0x38] sm:$0xff] %vm475, %v2177
        %2233 = vst.msk [vmem:[%s2224 + $0x40] sm:$0xff] %vm475, %v2178
        %2234 = vst.msk [vmem:[%s2224 + $0x48] sm:$0xff] %vm475, %v2179
        %2235 = vst.msk [vmem:[%s2224 + $0x50] sm:$0xff] %vm475, %v2180
        %2236 = vst.msk [vmem:[%s2224 + $0x58] sm:$0xff] %vm475, %v2181
        %2237 = vst.msk [vmem:[%s2224 + $0x60] sm:$0xff] %vm475, %v2182
        %2238 = vst.msk [vmem:[%s2224 + $0x68] sm:$0xff] %vm475, %v2183
        %2239 = vst.msk [vmem:[%s2224 + $0x70] sm:$0xff] %vm475, %v2184
        %2240 = vst.msk [vmem:[%s2224 + $0x78] sm:$0xff] %vm475, %v2185
        %2241 = vst.msk [vmem:[%s2224 + $0x80] sm:$0xff] %vm475, %v2186
        %2242 = vst.msk [vmem:[%s2224 + $0x88] sm:$0xff] %vm475, %v2187
        %2243 = vst.msk [vmem:[%s2224 + $0x90] sm:$0xff] %vm475, %v2188
        %2244 = vst.msk [vmem:[%s2224 + $0x98] sm:$0xff] %vm475, %v2189
        %2245 = vst.msk [vmem:[%s2224 + $0xa0] sm:$0xff] %vm475, %v2190
        %2246 = vst.msk [vmem:[%s2224 + $0xa8] sm:$0xff] %vm475, %v2191
        %2247 = vst.msk [vmem:[%s2224 + $0xb0] sm:$0xff] %vm475, %v2192
        %2248 = vst.msk [vmem:[%s2224 + $0xb8] sm:$0xff] %vm475, %v2193
        %2249 = vst.msk [vmem:[%s2224 + $0xc0] sm:$0xff] %vm475, %v2194
        %2250 = vst.msk [vmem:[%s2224 + $0xc8] sm:$0xff] %vm475, %v2195
        %2251 = vst.msk [vmem:[%s2224 + $0xd0] sm:$0xff] %vm475, %v2196
        %2252 = vst.msk [vmem:[%s2224 + $0xd8] sm:$0xff] %vm475, %v2197
        %2253 = vst.msk [vmem:[%s2224 + $0xe0] sm:$0xff] %vm475, %v2198
        %2254 = vst.msk [vmem:[%s2224 + $0xe8] sm:$0xff] %vm475, %v2199
        %2255 = vst.msk [vmem:[%s2224 + $0xf0] sm:$0xff] %vm475, %v2200
        %2256 = vst.msk [vmem:[%s2224 + $0xf8] sm:$0xff] %vm475, %v2201
        %2257 = vst.msk [vmem:[%s2224 + $0x100] sm:$0xff] %vm475, %v2202
        %2258 = vst.msk [vmem:[%s2224 + $0x108] sm:$0xff] %vm475, %v2203
        %2259 = vst.msk [vmem:[%s2224 + $0x110] sm:$0xff] %vm475, %v2204
        %2260 = vst.msk [vmem:[%s2224 + $0x118] sm:$0xff] %vm475, %v2205
        %2261 = vst.msk [vmem:[%s2224 + $0x120] sm:$0xff] %vm475, %v2206
        %2262 = vst.msk [vmem:[%s2224 + $0x128] sm:$0xff] %vm475, %v2207
        %2263 = vst.msk [vmem:[%s2224 + $0x130] sm:$0xff] %vm475, %v2208
        %2264 = vst.msk [vmem:[%s2224 + $0x138] sm:$0xff] %vm475, %v2209
        %2265 = vst.msk [vmem:[%s2224 + $0x140] sm:$0xff] %vm475, %v2210
        %2266 = vst.msk [vmem:[%s2224 + $0x148] sm:$0xff] %vm475, %v2211
        %2267 = vst.msk [vmem:[%s2224 + $0x150] sm:$0xff] %vm475, %v2212
        %2268 = vst.msk [vmem:[%s2224 + $0x158] sm:$0xff] %vm475, %v2213
        %2269 = vst.msk [vmem:[%s2224 + $0x160] sm:$0xff] %vm475, %v2214
        %2270 = vst.msk [vmem:[%s2224 + $0x168] sm:$0xff] %vm475, %v2215
        %2271 = vst.msk [vmem:[%s2224 + $0x170] sm:$0xff] %vm475, %v2216
        %2272 = vst.msk [vmem:[%s2224 + $0x178] sm:$0xff] %vm475, %v2217
        %2273 = vst.msk [vmem:[%s2224 + $0x180] sm:$0xff] %vm475, %v2218
        %2274 = vst.msk [vmem:[%s2224 + $0x188] sm:$0xff] %vm475, %v2219
        %2275 = vst.msk [vmem:[%s2224 + $0x190] sm:$0xff] %vm475, %v2220
        %2276 = vst.msk [vmem:[%s2224 + $0x198] sm:$0xff] %vm475, %v2221
        %2277 = vst.msk [vmem:[%s2224 + $0x1a0] sm:$0xff] %vm475, %v2222
        %2278 = vst.msk [vmem:[%s2224 + $0x1a8] sm:$0xff] %vm475, %v2223
        %v2279 = vld [vmem:[%s4] sm:$0xff]
        %v2280 = vld [vmem:[%s4 + $0x8] sm:$0x1]
        %v2281 = vld [vmem:[#allocation2] sm:$0xff]
        %v2282 = vld [vmem:[#allocation2 + $0x8] sm:$0xff]
        %v2283 = vld [vmem:[#allocation2 + $0x18] sm:$0xff]
        %v2284 = vld [vmem:[#allocation2 + $0x20] sm:$0xff]
        %v2285 = vld [vmem:[#allocation2 + $0x30] sm:$0xff]
        %v2286 = vld [vmem:[#allocation2 + $0x38] sm:$0xff]
        %v2287 = vld [vmem:[#allocation2 + $0x48] sm:$0xff]
        %v2288 = vld [vmem:[#allocation2 + $0x50] sm:$0xff]
        %v2289 = vld [vmem:[#allocation2 + $0x60] sm:$0xff]
        %v2290 = vld [vmem:[#allocation2 + $0x68] sm:$0xff]
        %v2291 = vld [vmem:[#allocation2 + $0x78] sm:$0xff]
        %v2292 = vld [vmem:[#allocation2 + $0x80] sm:$0xff]
        %v2293 = vld [vmem:[#allocation2 + $0x90] sm:$0xff]
        %v2294 = vld [vmem:[#allocation2 + $0x98] sm:$0xff]
        %v2295 = vld [vmem:[#allocation2 + $0xa8] sm:$0xff]
        %v2296 = vld [vmem:[#allocation2 + $0xb0] sm:$0xff]
        %v2297 = vld [vmem:[#allocation2 + $0xc0] sm:$0xff]
        %v2298 = vld [vmem:[#allocation2 + $0xc8] sm:$0xff]
        %v2299 = vld [vmem:[#allocation2 + $0xd8] sm:$0xff]
        %v2300 = vld [vmem:[#allocation2 + $0xe0] sm:$0xff]
        %v2301 = vld [vmem:[#allocation2 + $0xf0] sm:$0xff]
        %v2302 = vld [vmem:[#allocation2 + $0xf8] sm:$0xff]
        %v2303 = vld [vmem:[#allocation2 + $0x108] sm:$0xff]
        %v2304 = vld [vmem:[#allocation2 + $0x110] sm:$0xff]
        %v2305 = vld [vmem:[#allocation2 + $0x120] sm:$0xff]
        %v2306 = vld [vmem:[#allocation2 + $0x128] sm:$0xff]
        %v2307 = vld [vmem:[#allocation2 + $0x138] sm:$0xff]
        %v2308 = vld [vmem:[#allocation2 + $0x140] sm:$0xff]
        %v2309 = vld [vmem:[#allocation2 + $0x150] sm:$0xff]
        %v2310 = vld [vmem:[#allocation2 + $0x158] sm:$0xff]
        %v2311 = vld [vmem:[#allocation2 + $0x168] sm:$0xff]
        %v2312 = vld [vmem:[#allocation2 + $0x170] sm:$0xff]
        %v2313 = vlaneseq
        %v2314 = vshrl.u32 %v2313, 7
        %v2315 = vsub.s32 0, %v2314
        %v2316 = vrot.slane %v2279, %v2315
        %v2317 = vmul.f32 %v2281, %v2316
        %v2318 = vmul.f32 %v2282, %v2316
        %v2319 = vmul.f32 %v2283, %v2316
        %v2320 = vmul.f32 %v2284, %v2316
        %v2321 = vmul.f32 %v2285, %v2316
        %v2322 = vmul.f32 %v2286, %v2316
        %v2323 = vmul.f32 %v2287, %v2316
        %v2324 = vmul.f32 %v2288, %v2316
        %v2325 = vmul.f32 %v2289, %v2316
        %v2326 = vmul.f32 %v2290, %v2316
        %v2327 = vmul.f32 %v2291, %v2316
        %v2328 = vmul.f32 %v2292, %v2316
        %v2329 = vmul.f32 %v2293, %v2316
        %v2330 = vmul.f32 %v2294, %v2316
        %v2331 = vmul.f32 %v2295, %v2316
        %v2332 = vmul.f32 %v2296, %v2316
        %v2333 = vmul.f32 %v2297, %v2316
        %v2334 = vmul.f32 %v2298, %v2316
        %v2335 = vmul.f32 %v2299, %v2316
        %v2336 = vmul.f32 %v2300, %v2316
        %v2337 = vmul.f32 %v2301, %v2316
        %v2338 = vmul.f32 %v2302, %v2316
        %v2339 = vmul.f32 %v2303, %v2316
        %v2340 = vmul.f32 %v2304, %v2316
        %v2341 = vmul.f32 %v2305, %v2316
        %v2342 = vmul.f32 %v2306, %v2316
        %v2343 = vmul.f32 %v2307, %v2316
        %v2344 = vmul.f32 %v2308, %v2316
        %v2345 = vmul.f32 %v2309, %v2316
        %v2346 = vmul.f32 %v2310, %v2316
        %v2347 = vmul.f32 %v2311, %v2316
        %v2348 = vmul.f32 %v2312, %v2316
        %v2349 = vadd.f32 %v2317, 0.0
        %v2350 = vadd.f32 %v2318, 0.0
        %v2351 = vadd.f32 %v2319, 0.0
        %v2352 = vadd.f32 %v2320, 0.0
        %v2353 = vadd.f32 %v2321, 0.0
        %v2354 = vadd.f32 %v2322, 0.0
        %v2355 = vadd.f32 %v2323, 0.0
        %v2356 = vadd.f32 %v2324, 0.0
        %v2357 = vadd.f32 %v2325, 0.0
        %v2358 = vadd.f32 %v2326, 0.0
        %v2359 = vadd.f32 %v2327, 0.0
        %v2360 = vadd.f32 %v2328, 0.0
        %v2361 = vadd.f32 %v2329, 0.0
        %v2362 = vadd.f32 %v2330, 0.0
        %v2363 = vadd.f32 %v2331, 0.0
        %v2364 = vadd.f32 %v2332, 0.0
        %v2365 = vadd.f32 %v2333, 0.0
        %v2366 = vadd.f32 %v2334, 0.0
        %v2367 = vadd.f32 %v2335, 0.0
        %v2368 = vadd.f32 %v2336, 0.0
        %v2369 = vadd.f32 %v2337, 0.0
        %v2370 = vadd.f32 %v2338, 0.0
        %v2371 = vadd.f32 %v2339, 0.0
        %v2372 = vadd.f32 %v2340, 0.0
        %v2373 = vadd.f32 %v2341, 0.0
        %v2374 = vadd.f32 %v2342, 0.0
        %v2375 = vadd.f32 %v2343, 0.0
        %v2376 = vadd.f32 %v2344, 0.0
        %v2377 = vadd.f32 %v2345, 0.0
        %v2378 = vadd.f32 %v2346, 0.0
        %v2379 = vadd.f32 %v2347, 0.0
        %v2380 = vadd.f32 %v2348, 0.0
        %v2381 = vld [vmem:[#allocation2 + $0x1] sm:$0xff]
        %v2382 = vld [vmem:[#allocation2 + $0x9] sm:$0xff]
        %v2383 = vld [vmem:[#allocation2 + $0x19] sm:$0xff]
        %v2384 = vld [vmem:[#allocation2 + $0x21] sm:$0xff]
        %v2385 = vld [vmem:[#allocation2 + $0x31] sm:$0xff]
        %v2386 = vld [vmem:[#allocation2 + $0x39] sm:$0xff]
        %v2387 = vld [vmem:[#allocation2 + $0x49] sm:$0xff]
        %v2388 = vld [vmem:[#allocation2 + $0x51] sm:$0xff]
        %v2389 = vld [vmem:[#allocation2 + $0x61] sm:$0xff]
        %v2390 = vld [vmem:[#allocation2 + $0x69] sm:$0xff]
        %v2391 = vld [vmem:[#allocation2 + $0x79] sm:$0xff]
        %v2392 = vld [vmem:[#allocation2 + $0x81] sm:$0xff]
        %v2393 = vld [vmem:[#allocation2 + $0x91] sm:$0xff]
        %v2394 = vld [vmem:[#allocation2 + $0x99] sm:$0xff]
        %v2395 = vld [vmem:[#allocation2 + $0xa9] sm:$0xff]
        %v2396 = vld [vmem:[#allocation2 + $0xb1] sm:$0xff]
        %v2397 = vld [vmem:[#allocation2 + $0xc1] sm:$0xff]
        %v2398 = vld [vmem:[#allocation2 + $0xc9] sm:$0xff]
        %v2399 = vld [vmem:[#allocation2 + $0xd9] sm:$0xff]
        %v2400 = vld [vmem:[#allocation2 + $0xe1] sm:$0xff]
        %v2401 = vld [vmem:[#allocation2 + $0xf1] sm:$0xff]
        %v2402 = vld [vmem:[#allocation2 + $0xf9] sm:$0xff]
        %v2403 = vld [vmem:[#allocation2 + $0x109] sm:$0xff]
        %v2404 = vld [vmem:[#allocation2 + $0x111] sm:$0xff]
        %v2405 = vld [vmem:[#allocation2 + $0x121] sm:$0xff]
        %v2406 = vld [vmem:[#allocation2 + $0x129] sm:$0xff]
        %v2407 = vld [vmem:[#allocation2 + $0x139] sm:$0xff]
        %v2408 = vld [vmem:[#allocation2 + $0x141] sm:$0xff]
        %v2409 = vld [vmem:[#allocation2 + $0x151] sm:$0xff]
        %v2410 = vld [vmem:[#allocation2 + $0x159] sm:$0xff]
        %v2411 = vld [vmem:[#allocation2 + $0x169] sm:$0xff]
        %v2412 = vld [vmem:[#allocation2 + $0x171] sm:$0xff]
        %v2413 = vlaneseq
        %v2414 = vshrl.u32 %v2413, 7
        %v2415 = vsub.s32 1, %v2414
        %v2416 = vrot.slane %v2279, %v2415
        %v2417 = vmul.f32 %v2381, %v2416
        %v2418 = vmul.f32 %v2382, %v2416
        %v2419 = vmul.f32 %v2383, %v2416
        %v2420 = vmul.f32 %v2384, %v2416
        %v2421 = vmul.f32 %v2385, %v2416
        %v2422 = vmul.f32 %v2386, %v2416
        %v2423 = vmul.f32 %v2387, %v2416
        %v2424 = vmul.f32 %v2388, %v2416
        %v2425 = vmul.f32 %v2389, %v2416
        %v2426 = vmul.f32 %v2390, %v2416
        %v2427 = vmul.f32 %v2391, %v2416
        %v2428 = vmul.f32 %v2392, %v2416
        %v2429 = vmul.f32 %v2393, %v2416
        %v2430 = vmul.f32 %v2394, %v2416
        %v2431 = vmul.f32 %v2395, %v2416
        %v2432 = vmul.f32 %v2396, %v2416
        %v2433 = vmul.f32 %v2397, %v2416
        %v2434 = vmul.f32 %v2398, %v2416
        %v2435 = vmul.f32 %v2399, %v2416
        %v2436 = vmul.f32 %v2400, %v2416
        %v2437 = vmul.f32 %v2401, %v2416
        %v2438 = vmul.f32 %v2402, %v2416
        %v2439 = vmul.f32 %v2403, %v2416
        %v2440 = vmul.f32 %v2404, %v2416
        %v2441 = vmul.f32 %v2405, %v2416
        %v2442 = vmul.f32 %v2406, %v2416
        %v2443 = vmul.f32 %v2407, %v2416
        %v2444 = vmul.f32 %v2408, %v2416
        %v2445 = vmul.f32 %v2409, %v2416
        %v2446 = vmul.f32 %v2410, %v2416
        %v2447 = vmul.f32 %v2411, %v2416
        %v2448 = vmul.f32 %v2412, %v2416
        %v2449 = vadd.f32 %v2349, %v2417
        %v2450 = vadd.f32 %v2350, %v2418
        %v2451 = vadd.f32 %v2351, %v2419
        %v2452 = vadd.f32 %v2352, %v2420
        %v2453 = vadd.f32 %v2353, %v2421
        %v2454 = vadd.f32 %v2354, %v2422
        %v2455 = vadd.f32 %v2355, %v2423
        %v2456 = vadd.f32 %v2356, %v2424
        %v2457 = vadd.f32 %v2357, %v2425
        %v2458 = vadd.f32 %v2358, %v2426
        %v2459 = vadd.f32 %v2359, %v2427
        %v2460 = vadd.f32 %v2360, %v2428
        %v2461 = vadd.f32 %v2361, %v2429
        %v2462 = vadd.f32 %v2362, %v2430
        %v2463 = vadd.f32 %v2363, %v2431
        %v2464 = vadd.f32 %v2364, %v2432
        %v2465 = vadd.f32 %v2365, %v2433
        %v2466 = vadd.f32 %v2366, %v2434
        %v2467 = vadd.f32 %v2367, %v2435
        %v2468 = vadd.f32 %v2368, %v2436
        %v2469 = vadd.f32 %v2369, %v2437
        %v2470 = vadd.f32 %v2370, %v2438
        %v2471 = vadd.f32 %v2371, %v2439
        %v2472 = vadd.f32 %v2372, %v2440
        %v2473 = vadd.f32 %v2373, %v2441
        %v2474 = vadd.f32 %v2374, %v2442
        %v2475 = vadd.f32 %v2375, %v2443
        %v2476 = vadd.f32 %v2376, %v2444
        %v2477 = vadd.f32 %v2377, %v2445
        %v2478 = vadd.f32 %v2378, %v2446
        %v2479 = vadd.f32 %v2379, %v2447
        %v2480 = vadd.f32 %v2380, %v2448
        %v2481 = vld [vmem:[#allocation2 + $0x2] sm:$0xff]
        %v2482 = vld [vmem:[#allocation2 + $0xa] sm:$0xff]
        %v2483 = vld [vmem:[#allocation2 + $0x1a] sm:$0xff]
        %v2484 = vld [vmem:[#allocation2 + $0x22] sm:$0xff]
        %v2485 = vld [vmem:[#allocation2 + $0x32] sm:$0xff]
        %v2486 = vld [vmem:[#allocation2 + $0x3a] sm:$0xff]
        %v2487 = vld [vmem:[#allocation2 + $0x4a] sm:$0xff]
        %v2488 = vld [vmem:[#allocation2 + $0x52] sm:$0xff]
        %v2489 = vld [vmem:[#allocation2 + $0x62] sm:$0xff]
        %v2490 = vld [vmem:[#allocation2 + $0x6a] sm:$0xff]
        %v2491 = vld [vmem:[#allocation2 + $0x7a] sm:$0xff]
        %v2492 = vld [vmem:[#allocation2 + $0x82] sm:$0xff]
        %v2493 = vld [vmem:[#allocation2 + $0x92] sm:$0xff]
        %v2494 = vld [vmem:[#allocation2 + $0x9a] sm:$0xff]
        %v2495 = vld [vmem:[#allocation2 + $0xaa] sm:$0xff]
        %v2496 = vld [vmem:[#allocation2 + $0xb2] sm:$0xff]
        %v2497 = vld [vmem:[#allocation2 + $0xc2] sm:$0xff]
        %v2498 = vld [vmem:[#allocation2 + $0xca] sm:$0xff]
        %v2499 = vld [vmem:[#allocation2 + $0xda] sm:$0xff]
        %v2500 = vld [vmem:[#allocation2 + $0xe2] sm:$0xff]
        %v2501 = vld [vmem:[#allocation2 + $0xf2] sm:$0xff]
        %v2502 = vld [vmem:[#allocation2 + $0xfa] sm:$0xff]
        %v2503 = vld [vmem:[#allocation2 + $0x10a] sm:$0xff]
        %v2504 = vld [vmem:[#allocation2 + $0x112] sm:$0xff]
        %v2505 = vld [vmem:[#allocation2 + $0x122] sm:$0xff]
        %v2506 = vld [vmem:[#allocation2 + $0x12a] sm:$0xff]
        %v2507 = vld [vmem:[#allocation2 + $0x13a] sm:$0xff]
        %v2508 = vld [vmem:[#allocation2 + $0x142] sm:$0xff]
        %v2509 = vld [vmem:[#allocation2 + $0x152] sm:$0xff]
        %v2510 = vld [vmem:[#allocation2 + $0x15a] sm:$0xff]
        %v2511 = vld [vmem:[#allocation2 + $0x16a] sm:$0xff]
        %v2512 = vld [vmem:[#allocation2 + $0x172] sm:$0xff]
        %v2513 = vlaneseq
        %v2514 = vshrl.u32 %v2513, 7
        %v2515 = vsub.s32 2, %v2514
        %v2516 = vrot.slane %v2279, %v2515
        %v2517 = vmul.f32 %v2481, %v2516
        %v2518 = vmul.f32 %v2482, %v2516
        %v2519 = vmul.f32 %v2483, %v2516
        %v2520 = vmul.f32 %v2484, %v2516
        %v2521 = vmul.f32 %v2485, %v2516
        %v2522 = vmul.f32 %v2486, %v2516
        %v2523 = vmul.f32 %v2487, %v2516
        %v2524 = vmul.f32 %v2488, %v2516
        %v2525 = vmul.f32 %v2489, %v2516
        %v2526 = vmul.f32 %v2490, %v2516
        %v2527 = vmul.f32 %v2491, %v2516
        %v2528 = vmul.f32 %v2492, %v2516
        %v2529 = vmul.f32 %v2493, %v2516
        %v2530 = vmul.f32 %v2494, %v2516
        %v2531 = vmul.f32 %v2495, %v2516
        %v2532 = vmul.f32 %v2496, %v2516
        %v2533 = vmul.f32 %v2497, %v2516
        %v2534 = vmul.f32 %v2498, %v2516
        %v2535 = vmul.f32 %v2499, %v2516
        %v2536 = vmul.f32 %v2500, %v2516
        %v2537 = vmul.f32 %v2501, %v2516
        %v2538 = vmul.f32 %v2502, %v2516
        %v2539 = vmul.f32 %v2503, %v2516
        %v2540 = vmul.f32 %v2504, %v2516
        %v2541 = vmul.f32 %v2505, %v2516
        %v2542 = vmul.f32 %v2506, %v2516
        %v2543 = vmul.f32 %v2507, %v2516
        %v2544 = vmul.f32 %v2508, %v2516
        %v2545 = vmul.f32 %v2509, %v2516
        %v2546 = vmul.f32 %v2510, %v2516
        %v2547 = vmul.f32 %v2511, %v2516
        %v2548 = vmul.f32 %v2512, %v2516
        %v2549 = vadd.f32 %v2449, %v2517
        %v2550 = vadd.f32 %v2450, %v2518
        %v2551 = vadd.f32 %v2451, %v2519
        %v2552 = vadd.f32 %v2452, %v2520
        %v2553 = vadd.f32 %v2453, %v2521
        %v2554 = vadd.f32 %v2454, %v2522
        %v2555 = vadd.f32 %v2455, %v2523
        %v2556 = vadd.f32 %v2456, %v2524
        %v2557 = vadd.f32 %v2457, %v2525
        %v2558 = vadd.f32 %v2458, %v2526
        %v2559 = vadd.f32 %v2459, %v2527
        %v2560 = vadd.f32 %v2460, %v2528
        %v2561 = vadd.f32 %v2461, %v2529
        %v2562 = vadd.f32 %v2462, %v2530
        %v2563 = vadd.f32 %v2463, %v2531
        %v2564 = vadd.f32 %v2464, %v2532
        %v2565 = vadd.f32 %v2465, %v2533
        %v2566 = vadd.f32 %v2466, %v2534
        %v2567 = vadd.f32 %v2467, %v2535
        %v2568 = vadd.f32 %v2468, %v2536
        %v2569 = vadd.f32 %v2469, %v2537
        %v2570 = vadd.f32 %v2470, %v2538
        %v2571 = vadd.f32 %v2471, %v2539
        %v2572 = vadd.f32 %v2472, %v2540
        %v2573 = vadd.f32 %v2473, %v2541
        %v2574 = vadd.f32 %v2474, %v2542
        %v2575 = vadd.f32 %v2475, %v2543
        %v2576 = vadd.f32 %v2476, %v2544
        %v2577 = vadd.f32 %v2477, %v2545
        %v2578 = vadd.f32 %v2478, %v2546
        %v2579 = vadd.f32 %v2479, %v2547
        %v2580 = vadd.f32 %v2480, %v2548
        %s2581 = scalar_lea.vmem [#allocation2], 24
        %v2582 = vld [vmem:[%s2581] sm:$0xff]
        %v2583 = vld [vmem:[%s2581 + $0x8] sm:$0xff]
        %v2584 = vld [vmem:[%s2581 + $0x18] sm:$0xff]
        %v2585 = vld [vmem:[%s2581 + $0x20] sm:$0xff]
        %v2586 = vld [vmem:[%s2581 + $0x30] sm:$0xff]
        %v2587 = vld [vmem:[%s2581 + $0x38] sm:$0xff]
        %v2588 = vld [vmem:[%s2581 + $0x48] sm:$0xff]
        %v2589 = vld [vmem:[%s2581 + $0x50] sm:$0xff]
        %v2590 = vld [vmem:[%s2581 + $0x60] sm:$0xff]
        %v2591 = vld [vmem:[%s2581 + $0x68] sm:$0xff]
        %v2592 = vld [vmem:[%s2581 + $0x78] sm:$0xff]
        %v2593 = vld [vmem:[%s2581 + $0x80] sm:$0xff]
        %v2594 = vld [vmem:[%s2581 + $0x90] sm:$0xff]
        %v2595 = vld [vmem:[%s2581 + $0x98] sm:$0xff]
        %v2596 = vld [vmem:[%s2581 + $0xa8] sm:$0xff]
        %v2597 = vld [vmem:[%s2581 + $0xb0] sm:$0xff]
        %v2598 = vld [vmem:[%s2581 + $0xc0] sm:$0xff]
        %v2599 = vld [vmem:[%s2581 + $0xc8] sm:$0xff]
        %v2600 = vld [vmem:[%s2581 + $0xd8] sm:$0xff]
        %v2601 = vld [vmem:[%s2581 + $0xe0] sm:$0xff]
        %v2602 = vld [vmem:[%s2581 + $0xf0] sm:$0xff]
        %v2603 = vld [vmem:[%s2581 + $0xf8] sm:$0xff]
        %v2604 = vld [vmem:[%s2581 + $0x108] sm:$0xff]
        %v2605 = vld [vmem:[%s2581 + $0x110] sm:$0xff]
        %v2606 = vld [vmem:[%s2581 + $0x120] sm:$0xff]
        %v2607 = vld [vmem:[%s2581 + $0x128] sm:$0xff]
        %v2608 = vld [vmem:[%s2581 + $0x138] sm:$0xff]
        %v2609 = vld [vmem:[%s2581 + $0x140] sm:$0xff]
        %v2610 = vld [vmem:[%s2581 + $0x150] sm:$0xff]
        %v2611 = vld [vmem:[%s2581 + $0x158] sm:$0xff]
        %v2612 = vld [vmem:[%s2581 + $0x168] sm:$0xff]
        %v2613 = vld [vmem:[%s2581 + $0x170] sm:$0xff]
        %v2614 = vlaneseq
        %v2615 = vshrl.u32 %v2614, 7
        %v2616 = vsub.s32 3, %v2615
        %v2617 = vrot.slane %v2279, %v2616
        %v2618 = vmul.f32 %v2582, %v2617
        %v2619 = vmul.f32 %v2583, %v2617
        %v2620 = vmul.f32 %v2584, %v2617
        %v2621 = vmul.f32 %v2585, %v2617
        %v2622 = vmul.f32 %v2586, %v2617
        %v2623 = vmul.f32 %v2587, %v2617
        %v2624 = vmul.f32 %v2588, %v2617
        %v2625 = vmul.f32 %v2589, %v2617
        %v2626 = vmul.f32 %v2590, %v2617
        %v2627 = vmul.f32 %v2591, %v2617
        %v2628 = vmul.f32 %v2592, %v2617
        %v2629 = vmul.f32 %v2593, %v2617
        %v2630 = vmul.f32 %v2594, %v2617
        %v2631 = vmul.f32 %v2595, %v2617
        %v2632 = vmul.f32 %v2596, %v2617
        %v2633 = vmul.f32 %v2597, %v2617
        %v2634 = vmul.f32 %v2598, %v2617
        %v2635 = vmul.f32 %v2599, %v2617
        %v2636 = vmul.f32 %v2600, %v2617
        %v2637 = vmul.f32 %v2601, %v2617
        %v2638 = vmul.f32 %v2602, %v2617
        %v2639 = vmul.f32 %v2603, %v2617
        %v2640 = vmul.f32 %v2604, %v2617
        %v2641 = vmul.f32 %v2605, %v2617
        %v2642 = vmul.f32 %v2606, %v2617
        %v2643 = vmul.f32 %v2607, %v2617
        %v2644 = vmul.f32 %v2608, %v2617
        %v2645 = vmul.f32 %v2609, %v2617
        %v2646 = vmul.f32 %v2610, %v2617
        %v2647 = vmul.f32 %v2611, %v2617
        %v2648 = vmul.f32 %v2612, %v2617
        %v2649 = vmul.f32 %v2613, %v2617
        %v2650 = vadd.f32 %v2549, %v2618
        %v2651 = vadd.f32 %v2550, %v2619
        %v2652 = vadd.f32 %v2551, %v2620
        %v2653 = vadd.f32 %v2552, %v2621
        %v2654 = vadd.f32 %v2553, %v2622
        %v2655 = vadd.f32 %v2554, %v2623
        %v2656 = vadd.f32 %v2555, %v2624
        %v2657 = vadd.f32 %v2556, %v2625
        %v2658 = vadd.f32 %v2557, %v2626
        %v2659 = vadd.f32 %v2558, %v2627
        %v2660 = vadd.f32 %v2559, %v2628
        %v2661 = vadd.f32 %v2560, %v2629
        %v2662 = vadd.f32 %v2561, %v2630
        %v2663 = vadd.f32 %v2562, %v2631
        %v2664 = vadd.f32 %v2563, %v2632
        %v2665 = vadd.f32 %v2564, %v2633
        %v2666 = vadd.f32 %v2565, %v2634
        %v2667 = vadd.f32 %v2566, %v2635
        %v2668 = vadd.f32 %v2567, %v2636
        %v2669 = vadd.f32 %v2568, %v2637
        %v2670 = vadd.f32 %v2569, %v2638
        %v2671 = vadd.f32 %v2570, %v2639
        %v2672 = vadd.f32 %v2571, %v2640
        %v2673 = vadd.f32 %v2572, %v2641
        %v2674 = vadd.f32 %v2573, %v2642
        %v2675 = vadd.f32 %v2574, %v2643
        %v2676 = vadd.f32 %v2575, %v2644
        %v2677 = vadd.f32 %v2576, %v2645
        %v2678 = vadd.f32 %v2577, %v2646
        %v2679 = vadd.f32 %v2578, %v2647
        %v2680 = vadd.f32 %v2579, %v2648
        %v2681 = vadd.f32 %v2580, %v2649
        %v2682 = vld [vmem:[%s2581 + $0x1] sm:$0xff]
        %v2683 = vld [vmem:[%s2581 + $0x9] sm:$0xff]
        %v2684 = vld [vmem:[%s2581 + $0x19] sm:$0xff]
        %v2685 = vld [vmem:[%s2581 + $0x21] sm:$0xff]
        %v2686 = vld [vmem:[%s2581 + $0x31] sm:$0xff]
        %v2687 = vld [vmem:[%s2581 + $0x39] sm:$0xff]
        %v2688 = vld [vmem:[%s2581 + $0x49] sm:$0xff]
        %v2689 = vld [vmem:[%s2581 + $0x51] sm:$0xff]
        %v2690 = vld [vmem:[%s2581 + $0x61] sm:$0xff]
        %v2691 = vld [vmem:[%s2581 + $0x69] sm:$0xff]
        %v2692 = vld [vmem:[%s2581 + $0x79] sm:$0xff]
        %v2693 = vld [vmem:[%s2581 + $0x81] sm:$0xff]
        %v2694 = vld [vmem:[%s2581 + $0x91] sm:$0xff]
        %v2695 = vld [vmem:[%s2581 + $0x99] sm:$0xff]
        %v2696 = vld [vmem:[%s2581 + $0xa9] sm:$0xff]
        %v2697 = vld [vmem:[%s2581 + $0xb1] sm:$0xff]
        %v2698 = vld [vmem:[%s2581 + $0xc1] sm:$0xff]
        %v2699 = vld [vmem:[%s2581 + $0xc9] sm:$0xff]
        %v2700 = vld [vmem:[%s2581 + $0xd9] sm:$0xff]
        %v2701 = vld [vmem:[%s2581 + $0xe1] sm:$0xff]
        %v2702 = vld [vmem:[%s2581 + $0xf1] sm:$0xff]
        %v2703 = vld [vmem:[%s2581 + $0xf9] sm:$0xff]
        %v2704 = vld [vmem:[%s2581 + $0x109] sm:$0xff]
        %v2705 = vld [vmem:[%s2581 + $0x111] sm:$0xff]
        %v2706 = vld [vmem:[%s2581 + $0x121] sm:$0xff]
        %v2707 = vld [vmem:[%s2581 + $0x129] sm:$0xff]
        %v2708 = vld [vmem:[%s2581 + $0x139] sm:$0xff]
        %v2709 = vld [vmem:[%s2581 + $0x141] sm:$0xff]
        %v2710 = vld [vmem:[%s2581 + $0x151] sm:$0xff]
        %v2711 = vld [vmem:[%s2581 + $0x159] sm:$0xff]
        %v2712 = vld [vmem:[%s2581 + $0x169] sm:$0xff]
        %v2713 = vld [vmem:[%s2581 + $0x171] sm:$0xff]
        %v2714 = vlaneseq
        %v2715 = vshrl.u32 %v2714, 7
        %v2716 = vsub.s32 4, %v2715
        %v2717 = vrot.slane %v2279, %v2716
        %v2718 = vmul.f32 %v2682, %v2717
        %v2719 = vmul.f32 %v2683, %v2717
        %v2720 = vmul.f32 %v2684, %v2717
        %v2721 = vmul.f32 %v2685, %v2717
        %v2722 = vmul.f32 %v2686, %v2717
        %v2723 = vmul.f32 %v2687, %v2717
        %v2724 = vmul.f32 %v2688, %v2717
        %v2725 = vmul.f32 %v2689, %v2717
        %v2726 = vmul.f32 %v2690, %v2717
        %v2727 = vmul.f32 %v2691, %v2717
        %v2728 = vmul.f32 %v2692, %v2717
        %v2729 = vmul.f32 %v2693, %v2717
        %v2730 = vmul.f32 %v2694, %v2717
        %v2731 = vmul.f32 %v2695, %v2717
        %v2732 = vmul.f32 %v2696, %v2717
        %v2733 = vmul.f32 %v2697, %v2717
        %v2734 = vmul.f32 %v2698, %v2717
        %v2735 = vmul.f32 %v2699, %v2717
        %v2736 = vmul.f32 %v2700, %v2717
        %v2737 = vmul.f32 %v2701, %v2717
        %v2738 = vmul.f32 %v2702, %v2717
        %v2739 = vmul.f32 %v2703, %v2717
        %v2740 = vmul.f32 %v2704, %v2717
        %v2741 = vmul.f32 %v2705, %v2717
        %v2742 = vmul.f32 %v2706, %v2717
        %v2743 = vmul.f32 %v2707, %v2717
        %v2744 = vmul.f32 %v2708, %v2717
        %v2745 = vmul.f32 %v2709, %v2717
        %v2746 = vmul.f32 %v2710, %v2717
        %v2747 = vmul.f32 %v2711, %v2717
        %v2748 = vmul.f32 %v2712, %v2717
        %v2749 = vmul.f32 %v2713, %v2717
        %v2750 = vadd.f32 %v2650, %v2718
        %v2751 = vadd.f32 %v2651, %v2719
        %v2752 = vadd.f32 %v2652, %v2720
        %v2753 = vadd.f32 %v2653, %v2721
        %v2754 = vadd.f32 %v2654, %v2722
        %v2755 = vadd.f32 %v2655, %v2723
        %v2756 = vadd.f32 %v2656, %v2724
        %v2757 = vadd.f32 %v2657, %v2725
        %v2758 = vadd.f32 %v2658, %v2726
        %v2759 = vadd.f32 %v2659, %v2727
        %v2760 = vadd.f32 %v2660, %v2728
        %v2761 = vadd.f32 %v2661, %v2729
        %v2762 = vadd.f32 %v2662, %v2730
        %v2763 = vadd.f32 %v2663, %v2731
        %v2764 = vadd.f32 %v2664, %v2732
        %v2765 = vadd.f32 %v2665, %v2733
        %v2766 = vadd.f32 %v2666, %v2734
        %v2767 = vadd.f32 %v2667, %v2735
        %v2768 = vadd.f32 %v2668, %v2736
        %v2769 = vadd.f32 %v2669, %v2737
        %v2770 = vadd.f32 %v2670, %v2738
        %v2771 = vadd.f32 %v2671, %v2739
        %v2772 = vadd.f32 %v2672, %v2740
        %v2773 = vadd.f32 %v2673, %v2741
        %v2774 = vadd.f32 %v2674, %v2742
        %v2775 = vadd.f32 %v2675, %v2743
        %v2776 = vadd.f32 %v2676, %v2744
        %v2777 = vadd.f32 %v2677, %v2745
        %v2778 = vadd.f32 %v2678, %v2746
        %v2779 = vadd.f32 %v2679, %v2747
        %v2780 = vadd.f32 %v2680, %v2748
        %v2781 = vadd.f32 %v2681, %v2749
        %v2782 = vld [vmem:[%s2581 + $0x2] sm:$0xff]
        %v2783 = vld [vmem:[%s2581 + $0xa] sm:$0xff]
        %v2784 = vld [vmem:[%s2581 + $0x1a] sm:$0xff]
        %v2785 = vld [vmem:[%s2581 + $0x22] sm:$0xff]
        %v2786 = vld [vmem:[%s2581 + $0x32] sm:$0xff]
        %v2787 = vld [vmem:[%s2581 + $0x3a] sm:$0xff]
        %v2788 = vld [vmem:[%s2581 + $0x4a] sm:$0xff]
        %v2789 = vld [vmem:[%s2581 + $0x52] sm:$0xff]
        %v2790 = vld [vmem:[%s2581 + $0x62] sm:$0xff]
        %v2791 = vld [vmem:[%s2581 + $0x6a] sm:$0xff]
        %v2792 = vld [vmem:[%s2581 + $0x7a] sm:$0xff]
        %v2793 = vld [vmem:[%s2581 + $0x82] sm:$0xff]
        %v2794 = vld [vmem:[%s2581 + $0x92] sm:$0xff]
        %v2795 = vld [vmem:[%s2581 + $0x9a] sm:$0xff]
        %v2796 = vld [vmem:[%s2581 + $0xaa] sm:$0xff]
        %v2797 = vld [vmem:[%s2581 + $0xb2] sm:$0xff]
        %v2798 = vld [vmem:[%s2581 + $0xc2] sm:$0xff]
        %v2799 = vld [vmem:[%s2581 + $0xca] sm:$0xff]
        %v2800 = vld [vmem:[%s2581 + $0xda] sm:$0xff]
        %v2801 = vld [vmem:[%s2581 + $0xe2] sm:$0xff]
        %v2802 = vld [vmem:[%s2581 + $0xf2] sm:$0xff]
        %v2803 = vld [vmem:[%s2581 + $0xfa] sm:$0xff]
        %v2804 = vld [vmem:[%s2581 + $0x10a] sm:$0xff]
        %v2805 = vld [vmem:[%s2581 + $0x112] sm:$0xff]
        %v2806 = vld [vmem:[%s2581 + $0x122] sm:$0xff]
        %v2807 = vld [vmem:[%s2581 + $0x12a] sm:$0xff]
        %v2808 = vld [vmem:[%s2581 + $0x13a] sm:$0xff]
        %v2809 = vld [vmem:[%s2581 + $0x142] sm:$0xff]
        %v2810 = vld [vmem:[%s2581 + $0x152] sm:$0xff]
        %v2811 = vld [vmem:[%s2581 + $0x15a] sm:$0xff]
        %v2812 = vld [vmem:[%s2581 + $0x16a] sm:$0xff]
        %v2813 = vld [vmem:[%s2581 + $0x172] sm:$0xff]
        %v2814 = vlaneseq
        %v2815 = vshrl.u32 %v2814, 7
        %v2816 = vsub.s32 5, %v2815
        %v2817 = vrot.slane %v2279, %v2816
        %v2818 = vmul.f32 %v2782, %v2817
        %v2819 = vmul.f32 %v2783, %v2817
        %v2820 = vmul.f32 %v2784, %v2817
        %v2821 = vmul.f32 %v2785, %v2817
        %v2822 = vmul.f32 %v2786, %v2817
        %v2823 = vmul.f32 %v2787, %v2817
        %v2824 = vmul.f32 %v2788, %v2817
        %v2825 = vmul.f32 %v2789, %v2817
        %v2826 = vmul.f32 %v2790, %v2817
        %v2827 = vmul.f32 %v2791, %v2817
        %v2828 = vmul.f32 %v2792, %v2817
        %v2829 = vmul.f32 %v2793, %v2817
        %v2830 = vmul.f32 %v2794, %v2817
        %v2831 = vmul.f32 %v2795, %v2817
        %v2832 = vmul.f32 %v2796, %v2817
        %v2833 = vmul.f32 %v2797, %v2817
        %v2834 = vmul.f32 %v2798, %v2817
        %v2835 = vmul.f32 %v2799, %v2817
        %v2836 = vmul.f32 %v2800, %v2817
        %v2837 = vmul.f32 %v2801, %v2817
        %v2838 = vmul.f32 %v2802, %v2817
        %v2839 = vmul.f32 %v2803, %v2817
        %v2840 = vmul.f32 %v2804, %v2817
        %v2841 = vmul.f32 %v2805, %v2817
        %v2842 = vmul.f32 %v2806, %v2817
        %v2843 = vmul.f32 %v2807, %v2817
        %v2844 = vmul.f32 %v2808, %v2817
        %v2845 = vmul.f32 %v2809, %v2817
        %v2846 = vmul.f32 %v2810, %v2817
        %v2847 = vmul.f32 %v2811, %v2817
        %v2848 = vmul.f32 %v2812, %v2817
        %v2849 = vmul.f32 %v2813, %v2817
        %v2850 = vadd.f32 %v2750, %v2818
        %v2851 = vadd.f32 %v2751, %v2819
        %v2852 = vadd.f32 %v2752, %v2820
        %v2853 = vadd.f32 %v2753, %v2821
        %v2854 = vadd.f32 %v2754, %v2822
        %v2855 = vadd.f32 %v2755, %v2823
        %v2856 = vadd.f32 %v2756, %v2824
        %v2857 = vadd.f32 %v2757, %v2825
        %v2858 = vadd.f32 %v2758, %v2826
        %v2859 = vadd.f32 %v2759, %v2827
        %v2860 = vadd.f32 %v2760, %v2828
        %v2861 = vadd.f32 %v2761, %v2829
        %v2862 = vadd.f32 %v2762, %v2830
        %v2863 = vadd.f32 %v2763, %v2831
        %v2864 = vadd.f32 %v2764, %v2832
        %v2865 = vadd.f32 %v2765, %v2833
        %v2866 = vadd.f32 %v2766, %v2834
        %v2867 = vadd.f32 %v2767, %v2835
        %v2868 = vadd.f32 %v2768, %v2836
        %v2869 = vadd.f32 %v2769, %v2837
        %v2870 = vadd.f32 %v2770, %v2838
        %v2871 = vadd.f32 %v2771, %v2839
        %v2872 = vadd.f32 %v2772, %v2840
        %v2873 = vadd.f32 %v2773, %v2841
        %v2874 = vadd.f32 %v2774, %v2842
        %v2875 = vadd.f32 %v2775, %v2843
        %v2876 = vadd.f32 %v2776, %v2844
        %v2877 = vadd.f32 %v2777, %v2845
        %v2878 = vadd.f32 %v2778, %v2846
        %v2879 = vadd.f32 %v2779, %v2847
        %v2880 = vadd.f32 %v2780, %v2848
        %v2881 = vadd.f32 %v2781, %v2849
        %s2882 = scalar_lea.vmem [#allocation2], 48
        %v2883 = vld [vmem:[%s2882] sm:$0xff]
        %v2884 = vld [vmem:[%s2882 + $0x8] sm:$0xff]
        %v2885 = vld [vmem:[%s2882 + $0x18] sm:$0xff]
        %v2886 = vld [vmem:[%s2882 + $0x20] sm:$0xff]
        %v2887 = vld [vmem:[%s2882 + $0x30] sm:$0xff]
        %v2888 = vld [vmem:[%s2882 + $0x38] sm:$0xff]
        %v2889 = vld [vmem:[%s2882 + $0x48] sm:$0xff]
        %v2890 = vld [vmem:[%s2882 + $0x50] sm:$0xff]
        %v2891 = vld [vmem:[%s2882 + $0x60] sm:$0xff]
        %v2892 = vld [vmem:[%s2882 + $0x68] sm:$0xff]
        %v2893 = vld [vmem:[%s2882 + $0x78] sm:$0xff]
        %v2894 = vld [vmem:[%s2882 + $0x80] sm:$0xff]
        %v2895 = vld [vmem:[%s2882 + $0x90] sm:$0xff]
        %v2896 = vld [vmem:[%s2882 + $0x98] sm:$0xff]
        %v2897 = vld [vmem:[%s2882 + $0xa8] sm:$0xff]
        %v2898 = vld [vmem:[%s2882 + $0xb0] sm:$0xff]
        %v2899 = vld [vmem:[%s2882 + $0xc0] sm:$0xff]
        %v2900 = vld [vmem:[%s2882 + $0xc8] sm:$0xff]
        %v2901 = vld [vmem:[%s2882 + $0xd8] sm:$0xff]
        %v2902 = vld [vmem:[%s2882 + $0xe0] sm:$0xff]
        %v2903 = vld [vmem:[%s2882 + $0xf0] sm:$0xff]
        %v2904 = vld [vmem:[%s2882 + $0xf8] sm:$0xff]
        %v2905 = vld [vmem:[%s2882 + $0x108] sm:$0xff]
        %v2906 = vld [vmem:[%s2882 + $0x110] sm:$0xff]
        %v2907 = vld [vmem:[%s2882 + $0x120] sm:$0xff]
        %v2908 = vld [vmem:[%s2882 + $0x128] sm:$0xff]
        %v2909 = vld [vmem:[%s2882 + $0x138] sm:$0xff]
        %v2910 = vld [vmem:[%s2882 + $0x140] sm:$0xff]
        %v2911 = vld [vmem:[%s2882 + $0x150] sm:$0xff]
        %v2912 = vld [vmem:[%s2882 + $0x158] sm:$0xff]
        %v2913 = vld [vmem:[%s2882 + $0x168] sm:$0xff]
        %v2914 = vld [vmem:[%s2882 + $0x170] sm:$0xff]
        %v2915 = vlaneseq
        %v2916 = vshrl.u32 %v2915, 7
        %v2917 = vsub.s32 6, %v2916
        %v2918 = vrot.slane %v2279, %v2917
        %v2919 = vmul.f32 %v2883, %v2918
        %v2920 = vmul.f32 %v2884, %v2918
        %v2921 = vmul.f32 %v2885, %v2918
        %v2922 = vmul.f32 %v2886, %v2918
        %v2923 = vmul.f32 %v2887, %v2918
        %v2924 = vmul.f32 %v2888, %v2918
        %v2925 = vmul.f32 %v2889, %v2918
        %v2926 = vmul.f32 %v2890, %v2918
        %v2927 = vmul.f32 %v2891, %v2918
        %v2928 = vmul.f32 %v2892, %v2918
        %v2929 = vmul.f32 %v2893, %v2918
        %v2930 = vmul.f32 %v2894, %v2918
        %v2931 = vmul.f32 %v2895, %v2918
        %v2932 = vmul.f32 %v2896, %v2918
        %v2933 = vmul.f32 %v2897, %v2918
        %v2934 = vmul.f32 %v2898, %v2918
        %v2935 = vmul.f32 %v2899, %v2918
        %v2936 = vmul.f32 %v2900, %v2918
        %v2937 = vmul.f32 %v2901, %v2918
        %v2938 = vmul.f32 %v2902, %v2918
        %v2939 = vmul.f32 %v2903, %v2918
        %v2940 = vmul.f32 %v2904, %v2918
        %v2941 = vmul.f32 %v2905, %v2918
        %v2942 = vmul.f32 %v2906, %v2918
        %v2943 = vmul.f32 %v2907, %v2918
        %v2944 = vmul.f32 %v2908, %v2918
        %v2945 = vmul.f32 %v2909, %v2918
        %v2946 = vmul.f32 %v2910, %v2918
        %v2947 = vmul.f32 %v2911, %v2918
        %v2948 = vmul.f32 %v2912, %v2918
        %v2949 = vmul.f32 %v2913, %v2918
        %v2950 = vmul.f32 %v2914, %v2918
        %v2951 = vadd.f32 %v2850, %v2919
        %v2952 = vadd.f32 %v2851, %v2920
        %v2953 = vadd.f32 %v2852, %v2921
        %v2954 = vadd.f32 %v2853, %v2922
        %v2955 = vadd.f32 %v2854, %v2923
        %v2956 = vadd.f32 %v2855, %v2924
        %v2957 = vadd.f32 %v2856, %v2925
        %v2958 = vadd.f32 %v2857, %v2926
        %v2959 = vadd.f32 %v2858, %v2927
        %v2960 = vadd.f32 %v2859, %v2928
        %v2961 = vadd.f32 %v2860, %v2929
        %v2962 = vadd.f32 %v2861, %v2930
        %v2963 = vadd.f32 %v2862, %v2931
        %v2964 = vadd.f32 %v2863, %v2932
        %v2965 = vadd.f32 %v2864, %v2933
        %v2966 = vadd.f32 %v2865, %v2934
        %v2967 = vadd.f32 %v2866, %v2935
        %v2968 = vadd.f32 %v2867, %v2936
        %v2969 = vadd.f32 %v2868, %v2937
        %v2970 = vadd.f32 %v2869, %v2938
        %v2971 = vadd.f32 %v2870, %v2939
        %v2972 = vadd.f32 %v2871, %v2940
        %v2973 = vadd.f32 %v2872, %v2941
        %v2974 = vadd.f32 %v2873, %v2942
        %v2975 = vadd.f32 %v2874, %v2943
        %v2976 = vadd.f32 %v2875, %v2944
        %v2977 = vadd.f32 %v2876, %v2945
        %v2978 = vadd.f32 %v2877, %v2946
        %v2979 = vadd.f32 %v2878, %v2947
        %v2980 = vadd.f32 %v2879, %v2948
        %v2981 = vadd.f32 %v2880, %v2949
        %v2982 = vadd.f32 %v2881, %v2950
        %v2983 = vld [vmem:[%s2882 + $0x1] sm:$0xff]
        %v2984 = vld [vmem:[%s2882 + $0x9] sm:$0xff]
        %v2985 = vld [vmem:[%s2882 + $0x19] sm:$0xff]
        %v2986 = vld [vmem:[%s2882 + $0x21] sm:$0xff]
        %v2987 = vld [vmem:[%s2882 + $0x31] sm:$0xff]
        %v2988 = vld [vmem:[%s2882 + $0x39] sm:$0xff]
        %v2989 = vld [vmem:[%s2882 + $0x49] sm:$0xff]
        %v2990 = vld [vmem:[%s2882 + $0x51] sm:$0xff]
        %v2991 = vld [vmem:[%s2882 + $0x61] sm:$0xff]
        %v2992 = vld [vmem:[%s2882 + $0x69] sm:$0xff]
        %v2993 = vld [vmem:[%s2882 + $0x79] sm:$0xff]
        %v2994 = vld [vmem:[%s2882 + $0x81] sm:$0xff]
        %v2995 = vld [vmem:[%s2882 + $0x91] sm:$0xff]
        %v2996 = vld [vmem:[%s2882 + $0x99] sm:$0xff]
        %v2997 = vld [vmem:[%s2882 + $0xa9] sm:$0xff]
        %v2998 = vld [vmem:[%s2882 + $0xb1] sm:$0xff]
        %v2999 = vld [vmem:[%s2882 + $0xc1] sm:$0xff]
        %v3000 = vld [vmem:[%s2882 + $0xc9] sm:$0xff]
        %v3001 = vld [vmem:[%s2882 + $0xd9] sm:$0xff]
        %v3002 = vld [vmem:[%s2882 + $0xe1] sm:$0xff]
        %v3003 = vld [vmem:[%s2882 + $0xf1] sm:$0xff]
        %v3004 = vld [vmem:[%s2882 + $0xf9] sm:$0xff]
        %v3005 = vld [vmem:[%s2882 + $0x109] sm:$0xff]
        %v3006 = vld [vmem:[%s2882 + $0x111] sm:$0xff]
        %v3007 = vld [vmem:[%s2882 + $0x121] sm:$0xff]
        %v3008 = vld [vmem:[%s2882 + $0x129] sm:$0xff]
        %v3009 = vld [vmem:[%s2882 + $0x139] sm:$0xff]
        %v3010 = vld [vmem:[%s2882 + $0x141] sm:$0xff]
        %v3011 = vld [vmem:[%s2882 + $0x151] sm:$0xff]
        %v3012 = vld [vmem:[%s2882 + $0x159] sm:$0xff]
        %v3013 = vld [vmem:[%s2882 + $0x169] sm:$0xff]
        %v3014 = vld [vmem:[%s2882 + $0x171] sm:$0xff]
        %v3015 = vlaneseq
        %v3016 = vshrl.u32 %v3015, 7
        %v3017 = vsub.s32 7, %v3016
        %v3018 = vrot.slane %v2279, %v3017
        %v3019 = vmul.f32 %v2983, %v3018
        %v3020 = vmul.f32 %v2984, %v3018
        %v3021 = vmul.f32 %v2985, %v3018
        %v3022 = vmul.f32 %v2986, %v3018
        %v3023 = vmul.f32 %v2987, %v3018
        %v3024 = vmul.f32 %v2988, %v3018
        %v3025 = vmul.f32 %v2989, %v3018
        %v3026 = vmul.f32 %v2990, %v3018
        %v3027 = vmul.f32 %v2991, %v3018
        %v3028 = vmul.f32 %v2992, %v3018
        %v3029 = vmul.f32 %v2993, %v3018
        %v3030 = vmul.f32 %v2994, %v3018
        %v3031 = vmul.f32 %v2995, %v3018
        %v3032 = vmul.f32 %v2996, %v3018
        %v3033 = vmul.f32 %v2997, %v3018
        %v3034 = vmul.f32 %v2998, %v3018
        %v3035 = vmul.f32 %v2999, %v3018
        %v3036 = vmul.f32 %v3000, %v3018
        %v3037 = vmul.f32 %v3001, %v3018
        %v3038 = vmul.f32 %v3002, %v3018
        %v3039 = vmul.f32 %v3003, %v3018
        %v3040 = vmul.f32 %v3004, %v3018
        %v3041 = vmul.f32 %v3005, %v3018
        %v3042 = vmul.f32 %v3006, %v3018
        %v3043 = vmul.f32 %v3007, %v3018
        %v3044 = vmul.f32 %v3008, %v3018
        %v3045 = vmul.f32 %v3009, %v3018
        %v3046 = vmul.f32 %v3010, %v3018
        %v3047 = vmul.f32 %v3011, %v3018
        %v3048 = vmul.f32 %v3012, %v3018
        %v3049 = vmul.f32 %v3013, %v3018
        %v3050 = vmul.f32 %v3014, %v3018
        %v3051 = vadd.f32 %v2951, %v3019
        %v3052 = vadd.f32 %v2952, %v3020
        %v3053 = vadd.f32 %v2953, %v3021
        %v3054 = vadd.f32 %v2954, %v3022
        %v3055 = vadd.f32 %v2955, %v3023
        %v3056 = vadd.f32 %v2956, %v3024
        %v3057 = vadd.f32 %v2957, %v3025
        %v3058 = vadd.f32 %v2958, %v3026
        %v3059 = vadd.f32 %v2959, %v3027
        %v3060 = vadd.f32 %v2960, %v3028
        %v3061 = vadd.f32 %v2961, %v3029
        %v3062 = vadd.f32 %v2962, %v3030
        %v3063 = vadd.f32 %v2963, %v3031
        %v3064 = vadd.f32 %v2964, %v3032
        %v3065 = vadd.f32 %v2965, %v3033
        %v3066 = vadd.f32 %v2966, %v3034
        %v3067 = vadd.f32 %v2967, %v3035
        %v3068 = vadd.f32 %v2968, %v3036
        %v3069 = vadd.f32 %v2969, %v3037
        %v3070 = vadd.f32 %v2970, %v3038
        %v3071 = vadd.f32 %v2971, %v3039
        %v3072 = vadd.f32 %v2972, %v3040
        %v3073 = vadd.f32 %v2973, %v3041
        %v3074 = vadd.f32 %v2974, %v3042
        %v3075 = vadd.f32 %v2975, %v3043
        %v3076 = vadd.f32 %v2976, %v3044
        %v3077 = vadd.f32 %v2977, %v3045
        %v3078 = vadd.f32 %v2978, %v3046
        %v3079 = vadd.f32 %v2979, %v3047
        %v3080 = vadd.f32 %v2980, %v3048
        %v3081 = vadd.f32 %v2981, %v3049
        %v3082 = vadd.f32 %v2982, %v3050
        %v3083 = vld [vmem:[%s2882 + $0x2] sm:$0xff]
        %v3084 = vld [vmem:[%s2882 + $0xa] sm:$0xff]
        %v3085 = vld [vmem:[%s2882 + $0x1a] sm:$0xff]
        %v3086 = vld [vmem:[%s2882 + $0x22] sm:$0xff]
        %v3087 = vld [vmem:[%s2882 + $0x32] sm:$0xff]
        %v3088 = vld [vmem:[%s2882 + $0x3a] sm:$0xff]
        %v3089 = vld [vmem:[%s2882 + $0x4a] sm:$0xff]
        %v3090 = vld [vmem:[%s2882 + $0x52] sm:$0xff]
        %v3091 = vld [vmem:[%s2882 + $0x62] sm:$0xff]
        %v3092 = vld [vmem:[%s2882 + $0x6a] sm:$0xff]
        %v3093 = vld [vmem:[%s2882 + $0x7a] sm:$0xff]
        %v3094 = vld [vmem:[%s2882 + $0x82] sm:$0xff]
        %v3095 = vld [vmem:[%s2882 + $0x92] sm:$0xff]
        %v3096 = vld [vmem:[%s2882 + $0x9a] sm:$0xff]
        %v3097 = vld [vmem:[%s2882 + $0xaa] sm:$0xff]
        %v3098 = vld [vmem:[%s2882 + $0xb2] sm:$0xff]
        %v3099 = vld [vmem:[%s2882 + $0xc2] sm:$0xff]
        %v3100 = vld [vmem:[%s2882 + $0xca] sm:$0xff]
        %v3101 = vld [vmem:[%s2882 + $0xda] sm:$0xff]
        %v3102 = vld [vmem:[%s2882 + $0xe2] sm:$0xff]
        %v3103 = vld [vmem:[%s2882 + $0xf2] sm:$0xff]
        %v3104 = vld [vmem:[%s2882 + $0xfa] sm:$0xff]
        %v3105 = vld [vmem:[%s2882 + $0x10a] sm:$0xff]
        %v3106 = vld [vmem:[%s2882 + $0x112] sm:$0xff]
        %v3107 = vld [vmem:[%s2882 + $0x122] sm:$0xff]
        %v3108 = vld [vmem:[%s2882 + $0x12a] sm:$0xff]
        %v3109 = vld [vmem:[%s2882 + $0x13a] sm:$0xff]
        %v3110 = vld [vmem:[%s2882 + $0x142] sm:$0xff]
        %v3111 = vld [vmem:[%s2882 + $0x152] sm:$0xff]
        %v3112 = vld [vmem:[%s2882 + $0x15a] sm:$0xff]
        %v3113 = vld [vmem:[%s2882 + $0x16a] sm:$0xff]
        %v3114 = vld [vmem:[%s2882 + $0x172] sm:$0xff]
        %v3115 = vlaneseq
        %v3116 = vshrl.u32 %v3115, 7
        %v3117 = vsub.s32 0, %v3116
        %v3118 = vrot.slane %v2280, %v3117
        %v3119 = vmul.f32 %v3083, %v3118
        %v3120 = vmul.f32 %v3084, %v3118
        %v3121 = vmul.f32 %v3085, %v3118
        %v3122 = vmul.f32 %v3086, %v3118
        %v3123 = vmul.f32 %v3087, %v3118
        %v3124 = vmul.f32 %v3088, %v3118
        %v3125 = vmul.f32 %v3089, %v3118
        %v3126 = vmul.f32 %v3090, %v3118
        %v3127 = vmul.f32 %v3091, %v3118
        %v3128 = vmul.f32 %v3092, %v3118
        %v3129 = vmul.f32 %v3093, %v3118
        %v3130 = vmul.f32 %v3094, %v3118
        %v3131 = vmul.f32 %v3095, %v3118
        %v3132 = vmul.f32 %v3096, %v3118
        %v3133 = vmul.f32 %v3097, %v3118
        %v3134 = vmul.f32 %v3098, %v3118
        %v3135 = vmul.f32 %v3099, %v3118
        %v3136 = vmul.f32 %v3100, %v3118
        %v3137 = vmul.f32 %v3101, %v3118
        %v3138 = vmul.f32 %v3102, %v3118
        %v3139 = vmul.f32 %v3103, %v3118
        %v3140 = vmul.f32 %v3104, %v3118
        %v3141 = vmul.f32 %v3105, %v3118
        %v3142 = vmul.f32 %v3106, %v3118
        %v3143 = vmul.f32 %v3107, %v3118
        %v3144 = vmul.f32 %v3108, %v3118
        %v3145 = vmul.f32 %v3109, %v3118
        %v3146 = vmul.f32 %v3110, %v3118
        %v3147 = vmul.f32 %v3111, %v3118
        %v3148 = vmul.f32 %v3112, %v3118
        %v3149 = vmul.f32 %v3113, %v3118
        %v3150 = vmul.f32 %v3114, %v3118
        %v3151 = vadd.f32 %v3051, %v3119
        %v3152 = vadd.f32 %v3052, %v3120
        %v3153 = vadd.f32 %v3053, %v3121
        %v3154 = vadd.f32 %v3054, %v3122
        %v3155 = vadd.f32 %v3055, %v3123
        %v3156 = vadd.f32 %v3056, %v3124
        %v3157 = vadd.f32 %v3057, %v3125
        %v3158 = vadd.f32 %v3058, %v3126
        %v3159 = vadd.f32 %v3059, %v3127
        %v3160 = vadd.f32 %v3060, %v3128
        %v3161 = vadd.f32 %v3061, %v3129
        %v3162 = vadd.f32 %v3062, %v3130
        %v3163 = vadd.f32 %v3063, %v3131
        %v3164 = vadd.f32 %v3064, %v3132
        %v3165 = vadd.f32 %v3065, %v3133
        %v3166 = vadd.f32 %v3066, %v3134
        %v3167 = vadd.f32 %v3067, %v3135
        %v3168 = vadd.f32 %v3068, %v3136
        %v3169 = vadd.f32 %v3069, %v3137
        %v3170 = vadd.f32 %v3070, %v3138
        %v3171 = vadd.f32 %v3071, %v3139
        %v3172 = vadd.f32 %v3072, %v3140
        %v3173 = vadd.f32 %v3073, %v3141
        %v3174 = vadd.f32 %v3074, %v3142
        %v3175 = vadd.f32 %v3075, %v3143
        %v3176 = vadd.f32 %v3076, %v3144
        %v3177 = vadd.f32 %v3077, %v3145
        %v3178 = vadd.f32 %v3078, %v3146
        %v3179 = vadd.f32 %v3079, %v3147
        %v3180 = vadd.f32 %v3080, %v3148
        %v3181 = vadd.f32 %v3081, %v3149
        %v3182 = vadd.f32 %v3082, %v3150
        %v3183 = vld [vmem:[%s5] sm:$0x1]
        %v3185 = vlaneseq
        %v3186 = vshrl.u32 %v3185, 7
        %v3187 = vsub.s32 0, %v3186
        %v3188 = vrot.slane %v3183, %v3187
        %v3190 = vadd.f32 %v3151, %v3188
        %v3191 = vadd.f32 %v3152, %v3188
        %v3192 = vadd.f32 %v3153, %v3188
        %v3193 = vadd.f32 %v3154, %v3188
        %v3194 = vadd.f32 %v3155, %v3188
        %v3195 = vadd.f32 %v3156, %v3188
        %v3196 = vadd.f32 %v3157, %v3188
        %v3197 = vadd.f32 %v3158, %v3188
        %v3198 = vadd.f32 %v3159, %v3188
        %v3199 = vadd.f32 %v3160, %v3188
        %v3200 = vadd.f32 %v3161, %v3188
        %v3201 = vadd.f32 %v3162, %v3188
        %v3202 = vadd.f32 %v3163, %v3188
        %v3203 = vadd.f32 %v3164, %v3188
        %v3204 = vadd.f32 %v3165, %v3188
        %v3205 = vadd.f32 %v3166, %v3188
        %v3206 = vadd.f32 %v3167, %v3188
        %v3207 = vadd.f32 %v3168, %v3188
        %v3208 = vadd.f32 %v3169, %v3188
        %v3209 = vadd.f32 %v3170, %v3188
        %v3210 = vadd.f32 %v3171, %v3188
        %v3211 = vadd.f32 %v3172, %v3188
        %v3212 = vadd.f32 %v3173, %v3188
        %v3213 = vadd.f32 %v3174, %v3188
        %v3214 = vadd.f32 %v3175, %v3188
        %v3215 = vadd.f32 %v3176, %v3188
        %v3216 = vadd.f32 %v3177, %v3188
        %v3217 = vadd.f32 %v3178, %v3188
        %v3218 = vadd.f32 %v3179, %v3188
        %v3219 = vadd.f32 %v3180, %v3188
        %v3220 = vadd.f32 %v3181, %v3188
        %v3221 = vadd.f32 %v3182, %v3188
        %s3222 = scalar_lea.vmem %s4, 16
        %v3223 = vld [vmem:[%s3222] sm:$0xff]
        %v3224 = vld [vmem:[%s3222 + $0x8] sm:$0x1]
        %v3225 = vld [vmem:[%s1763] sm:$0xff]
        %v3226 = vld [vmem:[%s1763 + $0x8] sm:$0xff]
        %v3227 = vld [vmem:[%s1763 + $0x18] sm:$0xff]
        %v3228 = vld [vmem:[%s1763 + $0x20] sm:$0xff]
        %v3229 = vld [vmem:[%s1763 + $0x30] sm:$0xff]
        %v3230 = vld [vmem:[%s1763 + $0x38] sm:$0xff]
        %v3231 = vld [vmem:[%s1763 + $0x48] sm:$0xff]
        %v3232 = vld [vmem:[%s1763 + $0x50] sm:$0xff]
        %v3233 = vld [vmem:[%s1763 + $0x60] sm:$0xff]
        %v3234 = vld [vmem:[%s1763 + $0x68] sm:$0xff]
        %v3235 = vld [vmem:[%s1763 + $0x78] sm:$0xff]
        %v3236 = vld [vmem:[%s1763 + $0x80] sm:$0xff]
        %v3237 = vld [vmem:[%s1763 + $0x90] sm:$0xff]
        %v3238 = vld [vmem:[%s1763 + $0x98] sm:$0xff]
        %v3239 = vld [vmem:[%s1763 + $0xa8] sm:$0xff]
        %v3240 = vld [vmem:[%s1763 + $0xb0] sm:$0xff]
        %v3241 = vld [vmem:[%s1763 + $0xc0] sm:$0xff]
        %v3242 = vld [vmem:[%s1763 + $0xc8] sm:$0xff]
        %v3243 = vld [vmem:[%s1763 + $0xd8] sm:$0xff]
        %v3244 = vld [vmem:[%s1763 + $0xe0] sm:$0xff]
        %v3245 = vld [vmem:[%s1763 + $0xf0] sm:$0xff]
        %v3246 = vld [vmem:[%s1763 + $0xf8] sm:$0xff]
        %v3247 = vld [vmem:[%s1763 + $0x108] sm:$0xff]
        %v3248 = vld [vmem:[%s1763 + $0x110] sm:$0xff]
        %v3249 = vld [vmem:[%s1763 + $0x120] sm:$0xff]
        %v3250 = vld [vmem:[%s1763 + $0x128] sm:$0xff]
        %v3251 = vld [vmem:[%s1763 + $0x138] sm:$0xff]
        %v3252 = vld [vmem:[%s1763 + $0x140] sm:$0xff]
        %v3253 = vld [vmem:[%s1763 + $0x150] sm:$0xff]
        %v3254 = vld [vmem:[%s1763 + $0x158] sm:$0xff]
        %v3255 = vld [vmem:[%s1763 + $0x168] sm:$0xff]
        %v3256 = vld [vmem:[%s1763 + $0x170] sm:$0xff]
        %v3257 = vlaneseq
        %v3258 = vshrl.u32 %v3257, 7
        %v3259 = vsub.s32 0, %v3258
        %v3260 = vrot.slane %v3223, %v3259
        %v3261 = vmul.f32 %v3225, %v3260
        %v3262 = vmul.f32 %v3226, %v3260
        %v3263 = vmul.f32 %v3227, %v3260
        %v3264 = vmul.f32 %v3228, %v3260
        %v3265 = vmul.f32 %v3229, %v3260
        %v3266 = vmul.f32 %v3230, %v3260
        %v3267 = vmul.f32 %v3231, %v3260
        %v3268 = vmul.f32 %v3232, %v3260
        %v3269 = vmul.f32 %v3233, %v3260
        %v3270 = vmul.f32 %v3234, %v3260
        %v3271 = vmul.f32 %v3235, %v3260
        %v3272 = vmul.f32 %v3236, %v3260
        %v3273 = vmul.f32 %v3237, %v3260
        %v3274 = vmul.f32 %v3238, %v3260
        %v3275 = vmul.f32 %v3239, %v3260
        %v3276 = vmul.f32 %v3240, %v3260
        %v3277 = vmul.f32 %v3241, %v3260
        %v3278 = vmul.f32 %v3242, %v3260
        %v3279 = vmul.f32 %v3243, %v3260
        %v3280 = vmul.f32 %v3244, %v3260
        %v3281 = vmul.f32 %v3245, %v3260
        %v3282 = vmul.f32 %v3246, %v3260
        %v3283 = vmul.f32 %v3247, %v3260
        %v3284 = vmul.f32 %v3248, %v3260
        %v3285 = vmul.f32 %v3249, %v3260
        %v3286 = vmul.f32 %v3250, %v3260
        %v3287 = vmul.f32 %v3251, %v3260
        %v3288 = vmul.f32 %v3252, %v3260
        %v3289 = vmul.f32 %v3253, %v3260
        %v3290 = vmul.f32 %v3254, %v3260
        %v3291 = vmul.f32 %v3255, %v3260
        %v3292 = vmul.f32 %v3256, %v3260
        %v3293 = vadd.f32 %v3261, 0.0
        %v3294 = vadd.f32 %v3262, 0.0
        %v3295 = vadd.f32 %v3263, 0.0
        %v3296 = vadd.f32 %v3264, 0.0
        %v3297 = vadd.f32 %v3265, 0.0
        %v3298 = vadd.f32 %v3266, 0.0
        %v3299 = vadd.f32 %v3267, 0.0
        %v3300 = vadd.f32 %v3268, 0.0
        %v3301 = vadd.f32 %v3269, 0.0
        %v3302 = vadd.f32 %v3270, 0.0
        %v3303 = vadd.f32 %v3271, 0.0
        %v3304 = vadd.f32 %v3272, 0.0
        %v3305 = vadd.f32 %v3273, 0.0
        %v3306 = vadd.f32 %v3274, 0.0
        %v3307 = vadd.f32 %v3275, 0.0
        %v3308 = vadd.f32 %v3276, 0.0
        %v3309 = vadd.f32 %v3277, 0.0
        %v3310 = vadd.f32 %v3278, 0.0
        %v3311 = vadd.f32 %v3279, 0.0
        %v3312 = vadd.f32 %v3280, 0.0
        %v3313 = vadd.f32 %v3281, 0.0
        %v3314 = vadd.f32 %v3282, 0.0
        %v3315 = vadd.f32 %v3283, 0.0
        %v3316 = vadd.f32 %v3284, 0.0
        %v3317 = vadd.f32 %v3285, 0.0
        %v3318 = vadd.f32 %v3286, 0.0
        %v3319 = vadd.f32 %v3287, 0.0
        %v3320 = vadd.f32 %v3288, 0.0
        %v3321 = vadd.f32 %v3289, 0.0
        %v3322 = vadd.f32 %v3290, 0.0
        %v3323 = vadd.f32 %v3291, 0.0
        %v3324 = vadd.f32 %v3292, 0.0
        %v3325 = vld [vmem:[%s1763 + $0x1] sm:$0xff]
        %v3326 = vld [vmem:[%s1763 + $0x9] sm:$0xff]
        %v3327 = vld [vmem:[%s1763 + $0x19] sm:$0xff]
        %v3328 = vld [vmem:[%s1763 + $0x21] sm:$0xff]
        %v3329 = vld [vmem:[%s1763 + $0x31] sm:$0xff]
        %v3330 = vld [vmem:[%s1763 + $0x39] sm:$0xff]
        %v3331 = vld [vmem:[%s1763 + $0x49] sm:$0xff]
        %v3332 = vld [vmem:[%s1763 + $0x51] sm:$0xff]
        %v3333 = vld [vmem:[%s1763 + $0x61] sm:$0xff]
        %v3334 = vld [vmem:[%s1763 + $0x69] sm:$0xff]
        %v3335 = vld [vmem:[%s1763 + $0x79] sm:$0xff]
        %v3336 = vld [vmem:[%s1763 + $0x81] sm:$0xff]
        %v3337 = vld [vmem:[%s1763 + $0x91] sm:$0xff]
        %v3338 = vld [vmem:[%s1763 + $0x99] sm:$0xff]
        %v3339 = vld [vmem:[%s1763 + $0xa9] sm:$0xff]
        %v3340 = vld [vmem:[%s1763 + $0xb1] sm:$0xff]
        %v3341 = vld [vmem:[%s1763 + $0xc1] sm:$0xff]
        %v3342 = vld [vmem:[%s1763 + $0xc9] sm:$0xff]
        %v3343 = vld [vmem:[%s1763 + $0xd9] sm:$0xff]
        %v3344 = vld [vmem:[%s1763 + $0xe1] sm:$0xff]
        %v3345 = vld [vmem:[%s1763 + $0xf1] sm:$0xff]
        %v3346 = vld [vmem:[%s1763 + $0xf9] sm:$0xff]
        %v3347 = vld [vmem:[%s1763 + $0x109] sm:$0xff]
        %v3348 = vld [vmem:[%s1763 + $0x111] sm:$0xff]
        %v3349 = vld [vmem:[%s1763 + $0x121] sm:$0xff]
        %v3350 = vld [vmem:[%s1763 + $0x129] sm:$0xff]
        %v3351 = vld [vmem:[%s1763 + $0x139] sm:$0xff]
        %v3352 = vld [vmem:[%s1763 + $0x141] sm:$0xff]
        %v3353 = vld [vmem:[%s1763 + $0x151] sm:$0xff]
        %v3354 = vld [vmem:[%s1763 + $0x159] sm:$0xff]
        %v3355 = vld [vmem:[%s1763 + $0x169] sm:$0xff]
        %v3356 = vld [vmem:[%s1763 + $0x171] sm:$0xff]
        %v3357 = vlaneseq
        %v3358 = vshrl.u32 %v3357, 7
        %v3359 = vsub.s32 1, %v3358
        %v3360 = vrot.slane %v3223, %v3359
        %v3361 = vmul.f32 %v3325, %v3360
        %v3362 = vmul.f32 %v3326, %v3360
        %v3363 = vmul.f32 %v3327, %v3360
        %v3364 = vmul.f32 %v3328, %v3360
        %v3365 = vmul.f32 %v3329, %v3360
        %v3366 = vmul.f32 %v3330, %v3360
        %v3367 = vmul.f32 %v3331, %v3360
        %v3368 = vmul.f32 %v3332, %v3360
        %v3369 = vmul.f32 %v3333, %v3360
        %v3370 = vmul.f32 %v3334, %v3360
        %v3371 = vmul.f32 %v3335, %v3360
        %v3372 = vmul.f32 %v3336, %v3360
        %v3373 = vmul.f32 %v3337, %v3360
        %v3374 = vmul.f32 %v3338, %v3360
        %v3375 = vmul.f32 %v3339, %v3360
        %v3376 = vmul.f32 %v3340, %v3360
        %v3377 = vmul.f32 %v3341, %v3360
        %v3378 = vmul.f32 %v3342, %v3360
        %v3379 = vmul.f32 %v3343, %v3360
        %v3380 = vmul.f32 %v3344, %v3360
        %v3381 = vmul.f32 %v3345, %v3360
        %v3382 = vmul.f32 %v3346, %v3360
        %v3383 = vmul.f32 %v3347, %v3360
        %v3384 = vmul.f32 %v3348, %v3360
        %v3385 = vmul.f32 %v3349, %v3360
        %v3386 = vmul.f32 %v3350, %v3360
        %v3387 = vmul.f32 %v3351, %v3360
        %v3388 = vmul.f32 %v3352, %v3360
        %v3389 = vmul.f32 %v3353, %v3360
        %v3390 = vmul.f32 %v3354, %v3360
        %v3391 = vmul.f32 %v3355, %v3360
        %v3392 = vmul.f32 %v3356, %v3360
        %v3393 = vadd.f32 %v3293, %v3361
        %v3394 = vadd.f32 %v3294, %v3362
        %v3395 = vadd.f32 %v3295, %v3363
        %v3396 = vadd.f32 %v3296, %v3364
        %v3397 = vadd.f32 %v3297, %v3365
        %v3398 = vadd.f32 %v3298, %v3366
        %v3399 = vadd.f32 %v3299, %v3367
        %v3400 = vadd.f32 %v3300, %v3368
        %v3401 = vadd.f32 %v3301, %v3369
        %v3402 = vadd.f32 %v3302, %v3370
        %v3403 = vadd.f32 %v3303, %v3371
        %v3404 = vadd.f32 %v3304, %v3372
        %v3405 = vadd.f32 %v3305, %v3373
        %v3406 = vadd.f32 %v3306, %v3374
        %v3407 = vadd.f32 %v3307, %v3375
        %v3408 = vadd.f32 %v3308, %v3376
        %v3409 = vadd.f32 %v3309, %v3377
        %v3410 = vadd.f32 %v3310, %v3378
        %v3411 = vadd.f32 %v3311, %v3379
        %v3412 = vadd.f32 %v3312, %v3380
        %v3413 = vadd.f32 %v3313, %v3381
        %v3414 = vadd.f32 %v3314, %v3382
        %v3415 = vadd.f32 %v3315, %v3383
        %v3416 = vadd.f32 %v3316, %v3384
        %v3417 = vadd.f32 %v3317, %v3385
        %v3418 = vadd.f32 %v3318, %v3386
        %v3419 = vadd.f32 %v3319, %v3387
        %v3420 = vadd.f32 %v3320, %v3388
        %v3421 = vadd.f32 %v3321, %v3389
        %v3422 = vadd.f32 %v3322, %v3390
        %v3423 = vadd.f32 %v3323, %v3391
        %v3424 = vadd.f32 %v3324, %v3392
        %v3425 = vld [vmem:[%s1763 + $0x2] sm:$0xff]
        %v3426 = vld [vmem:[%s1763 + $0xa] sm:$0xff]
        %v3427 = vld [vmem:[%s1763 + $0x1a] sm:$0xff]
        %v3428 = vld [vmem:[%s1763 + $0x22] sm:$0xff]
        %v3429 = vld [vmem:[%s1763 + $0x32] sm:$0xff]
        %v3430 = vld [vmem:[%s1763 + $0x3a] sm:$0xff]
        %v3431 = vld [vmem:[%s1763 + $0x4a] sm:$0xff]
        %v3432 = vld [vmem:[%s1763 + $0x52] sm:$0xff]
        %v3433 = vld [vmem:[%s1763 + $0x62] sm:$0xff]
        %v3434 = vld [vmem:[%s1763 + $0x6a] sm:$0xff]
        %v3435 = vld [vmem:[%s1763 + $0x7a] sm:$0xff]
        %v3436 = vld [vmem:[%s1763 + $0x82] sm:$0xff]
        %v3437 = vld [vmem:[%s1763 + $0x92] sm:$0xff]
        %v3438 = vld [vmem:[%s1763 + $0x9a] sm:$0xff]
        %v3439 = vld [vmem:[%s1763 + $0xaa] sm:$0xff]
        %v3440 = vld [vmem:[%s1763 + $0xb2] sm:$0xff]
        %v3441 = vld [vmem:[%s1763 + $0xc2] sm:$0xff]
        %v3442 = vld [vmem:[%s1763 + $0xca] sm:$0xff]
        %v3443 = vld [vmem:[%s1763 + $0xda] sm:$0xff]
        %v3444 = vld [vmem:[%s1763 + $0xe2] sm:$0xff]
        %v3445 = vld [vmem:[%s1763 + $0xf2] sm:$0xff]
        %v3446 = vld [vmem:[%s1763 + $0xfa] sm:$0xff]
        %v3447 = vld [vmem:[%s1763 + $0x10a] sm:$0xff]
        %v3448 = vld [vmem:[%s1763 + $0x112] sm:$0xff]
        %v3449 = vld [vmem:[%s1763 + $0x122] sm:$0xff]
        %v3450 = vld [vmem:[%s1763 + $0x12a] sm:$0xff]
        %v3451 = vld [vmem:[%s1763 + $0x13a] sm:$0xff]
        %v3452 = vld [vmem:[%s1763 + $0x142] sm:$0xff]
        %v3453 = vld [vmem:[%s1763 + $0x152] sm:$0xff]
        %v3454 = vld [vmem:[%s1763 + $0x15a] sm:$0xff]
        %v3455 = vld [vmem:[%s1763 + $0x16a] sm:$0xff]
        %v3456 = vld [vmem:[%s1763 + $0x172] sm:$0xff]
        %v3457 = vlaneseq
        %v3458 = vshrl.u32 %v3457, 7
        %v3459 = vsub.s32 2, %v3458
        %v3460 = vrot.slane %v3223, %v3459
        %v3461 = vmul.f32 %v3425, %v3460
        %v3462 = vmul.f32 %v3426, %v3460
        %v3463 = vmul.f32 %v3427, %v3460
        %v3464 = vmul.f32 %v3428, %v3460
        %v3465 = vmul.f32 %v3429, %v3460
        %v3466 = vmul.f32 %v3430, %v3460
        %v3467 = vmul.f32 %v3431, %v3460
        %v3468 = vmul.f32 %v3432, %v3460
        %v3469 = vmul.f32 %v3433, %v3460
        %v3470 = vmul.f32 %v3434, %v3460
        %v3471 = vmul.f32 %v3435, %v3460
        %v3472 = vmul.f32 %v3436, %v3460
        %v3473 = vmul.f32 %v3437, %v3460
        %v3474 = vmul.f32 %v3438, %v3460
        %v3475 = vmul.f32 %v3439, %v3460
        %v3476 = vmul.f32 %v3440, %v3460
        %v3477 = vmul.f32 %v3441, %v3460
        %v3478 = vmul.f32 %v3442, %v3460
        %v3479 = vmul.f32 %v3443, %v3460
        %v3480 = vmul.f32 %v3444, %v3460
        %v3481 = vmul.f32 %v3445, %v3460
        %v3482 = vmul.f32 %v3446, %v3460
        %v3483 = vmul.f32 %v3447, %v3460
        %v3484 = vmul.f32 %v3448, %v3460
        %v3485 = vmul.f32 %v3449, %v3460
        %v3486 = vmul.f32 %v3450, %v3460
        %v3487 = vmul.f32 %v3451, %v3460
        %v3488 = vmul.f32 %v3452, %v3460
        %v3489 = vmul.f32 %v3453, %v3460
        %v3490 = vmul.f32 %v3454, %v3460
        %v3491 = vmul.f32 %v3455, %v3460
        %v3492 = vmul.f32 %v3456, %v3460
        %v3493 = vadd.f32 %v3393, %v3461
        %v3494 = vadd.f32 %v3394, %v3462
        %v3495 = vadd.f32 %v3395, %v3463
        %v3496 = vadd.f32 %v3396, %v3464
        %v3497 = vadd.f32 %v3397, %v3465
        %v3498 = vadd.f32 %v3398, %v3466
        %v3499 = vadd.f32 %v3399, %v3467
        %v3500 = vadd.f32 %v3400, %v3468
        %v3501 = vadd.f32 %v3401, %v3469
        %v3502 = vadd.f32 %v3402, %v3470
        %v3503 = vadd.f32 %v3403, %v3471
        %v3504 = vadd.f32 %v3404, %v3472
        %v3505 = vadd.f32 %v3405, %v3473
        %v3506 = vadd.f32 %v3406, %v3474
        %v3507 = vadd.f32 %v3407, %v3475
        %v3508 = vadd.f32 %v3408, %v3476
        %v3509 = vadd.f32 %v3409, %v3477
        %v3510 = vadd.f32 %v3410, %v3478
        %v3511 = vadd.f32 %v3411, %v3479
        %v3512 = vadd.f32 %v3412, %v3480
        %v3513 = vadd.f32 %v3413, %v3481
        %v3514 = vadd.f32 %v3414, %v3482
        %v3515 = vadd.f32 %v3415, %v3483
        %v3516 = vadd.f32 %v3416, %v3484
        %v3517 = vadd.f32 %v3417, %v3485
        %v3518 = vadd.f32 %v3418, %v3486
        %v3519 = vadd.f32 %v3419, %v3487
        %v3520 = vadd.f32 %v3420, %v3488
        %v3521 = vadd.f32 %v3421, %v3489
        %v3522 = vadd.f32 %v3422, %v3490
        %v3523 = vadd.f32 %v3423, %v3491
        %v3524 = vadd.f32 %v3424, %v3492
        %s3525 = scalar_lea.vmem [#allocation2], 456
        %v3526 = vld [vmem:[%s3525] sm:$0xff]
        %v3527 = vld [vmem:[%s3525 + $0x8] sm:$0xff]
        %v3528 = vld [vmem:[%s3525 + $0x18] sm:$0xff]
        %v3529 = vld [vmem:[%s3525 + $0x20] sm:$0xff]
        %v3530 = vld [vmem:[%s3525 + $0x30] sm:$0xff]
        %v3531 = vld [vmem:[%s3525 + $0x38] sm:$0xff]
        %v3532 = vld [vmem:[%s3525 + $0x48] sm:$0xff]
        %v3533 = vld [vmem:[%s3525 + $0x50] sm:$0xff]
        %v3534 = vld [vmem:[%s3525 + $0x60] sm:$0xff]
        %v3535 = vld [vmem:[%s3525 + $0x68] sm:$0xff]
        %v3536 = vld [vmem:[%s3525 + $0x78] sm:$0xff]
        %v3537 = vld [vmem:[%s3525 + $0x80] sm:$0xff]
        %v3538 = vld [vmem:[%s3525 + $0x90] sm:$0xff]
        %v3539 = vld [vmem:[%s3525 + $0x98] sm:$0xff]
        %v3540 = vld [vmem:[%s3525 + $0xa8] sm:$0xff]
        %v3541 = vld [vmem:[%s3525 + $0xb0] sm:$0xff]
        %v3542 = vld [vmem:[%s3525 + $0xc0] sm:$0xff]
        %v3543 = vld [vmem:[%s3525 + $0xc8] sm:$0xff]
        %v3544 = vld [vmem:[%s3525 + $0xd8] sm:$0xff]
        %v3545 = vld [vmem:[%s3525 + $0xe0] sm:$0xff]
        %v3546 = vld [vmem:[%s3525 + $0xf0] sm:$0xff]
        %v3547 = vld [vmem:[%s3525 + $0xf8] sm:$0xff]
        %v3548 = vld [vmem:[%s3525 + $0x108] sm:$0xff]
        %v3549 = vld [vmem:[%s3525 + $0x110] sm:$0xff]
        %v3550 = vld [vmem:[%s3525 + $0x120] sm:$0xff]
        %v3551 = vld [vmem:[%s3525 + $0x128] sm:$0xff]
        %v3552 = vld [vmem:[%s3525 + $0x138] sm:$0xff]
        %v3553 = vld [vmem:[%s3525 + $0x140] sm:$0xff]
        %v3554 = vld [vmem:[%s3525 + $0x150] sm:$0xff]
        %v3555 = vld [vmem:[%s3525 + $0x158] sm:$0xff]
        %v3556 = vld [vmem:[%s3525 + $0x168] sm:$0xff]
        %v3557 = vld [vmem:[%s3525 + $0x170] sm:$0xff]
        %v3558 = vlaneseq
        %v3559 = vshrl.u32 %v3558, 7
        %v3560 = vsub.s32 3, %v3559
        %v3561 = vrot.slane %v3223, %v3560
        %v3562 = vmul.f32 %v3526, %v3561
        %v3563 = vmul.f32 %v3527, %v3561
        %v3564 = vmul.f32 %v3528, %v3561
        %v3565 = vmul.f32 %v3529, %v3561
        %v3566 = vmul.f32 %v3530, %v3561
        %v3567 = vmul.f32 %v3531, %v3561
        %v3568 = vmul.f32 %v3532, %v3561
        %v3569 = vmul.f32 %v3533, %v3561
        %v3570 = vmul.f32 %v3534, %v3561
        %v3571 = vmul.f32 %v3535, %v3561
        %v3572 = vmul.f32 %v3536, %v3561
        %v3573 = vmul.f32 %v3537, %v3561
        %v3574 = vmul.f32 %v3538, %v3561
        %v3575 = vmul.f32 %v3539, %v3561
        %v3576 = vmul.f32 %v3540, %v3561
        %v3577 = vmul.f32 %v3541, %v3561
        %v3578 = vmul.f32 %v3542, %v3561
        %v3579 = vmul.f32 %v3543, %v3561
        %v3580 = vmul.f32 %v3544, %v3561
        %v3581 = vmul.f32 %v3545, %v3561
        %v3582 = vmul.f32 %v3546, %v3561
        %v3583 = vmul.f32 %v3547, %v3561
        %v3584 = vmul.f32 %v3548, %v3561
        %v3585 = vmul.f32 %v3549, %v3561
        %v3586 = vmul.f32 %v3550, %v3561
        %v3587 = vmul.f32 %v3551, %v3561
        %v3588 = vmul.f32 %v3552, %v3561
        %v3589 = vmul.f32 %v3553, %v3561
        %v3590 = vmul.f32 %v3554, %v3561
        %v3591 = vmul.f32 %v3555, %v3561
        %v3592 = vmul.f32 %v3556, %v3561
        %v3593 = vmul.f32 %v3557, %v3561
        %v3594 = vadd.f32 %v3493, %v3562
        %v3595 = vadd.f32 %v3494, %v3563
        %v3596 = vadd.f32 %v3495, %v3564
        %v3597 = vadd.f32 %v3496, %v3565
        %v3598 = vadd.f32 %v3497, %v3566
        %v3599 = vadd.f32 %v3498, %v3567
        %v3600 = vadd.f32 %v3499, %v3568
        %v3601 = vadd.f32 %v3500, %v3569
        %v3602 = vadd.f32 %v3501, %v3570
        %v3603 = vadd.f32 %v3502, %v3571
        %v3604 = vadd.f32 %v3503, %v3572
        %v3605 = vadd.f32 %v3504, %v3573
        %v3606 = vadd.f32 %v3505, %v3574
        %v3607 = vadd.f32 %v3506, %v3575
        %v3608 = vadd.f32 %v3507, %v3576
        %v3609 = vadd.f32 %v3508, %v3577
        %v3610 = vadd.f32 %v3509, %v3578
        %v3611 = vadd.f32 %v3510, %v3579
        %v3612 = vadd.f32 %v3511, %v3580
        %v3613 = vadd.f32 %v3512, %v3581
        %v3614 = vadd.f32 %v3513, %v3582
        %v3615 = vadd.f32 %v3514, %v3583
        %v3616 = vadd.f32 %v3515, %v3584
        %v3617 = vadd.f32 %v3516, %v3585
        %v3618 = vadd.f32 %v3517, %v3586
        %v3619 = vadd.f32 %v3518, %v3587
        %v3620 = vadd.f32 %v3519, %v3588
        %v3621 = vadd.f32 %v3520, %v3589
        %v3622 = vadd.f32 %v3521, %v3590
        %v3623 = vadd.f32 %v3522, %v3591
        %v3624 = vadd.f32 %v3523, %v3592
        %v3625 = vadd.f32 %v3524, %v3593
        %v3626 = vld [vmem:[%s3525 + $0x1] sm:$0xff]
        %v3627 = vld [vmem:[%s3525 + $0x9] sm:$0xff]
        %v3628 = vld [vmem:[%s3525 + $0x19] sm:$0xff]
        %v3629 = vld [vmem:[%s3525 + $0x21] sm:$0xff]
        %v3630 = vld [vmem:[%s3525 + $0x31] sm:$0xff]
        %v3631 = vld [vmem:[%s3525 + $0x39] sm:$0xff]
        %v3632 = vld [vmem:[%s3525 + $0x49] sm:$0xff]
        %v3633 = vld [vmem:[%s3525 + $0x51] sm:$0xff]
        %v3634 = vld [vmem:[%s3525 + $0x61] sm:$0xff]
        %v3635 = vld [vmem:[%s3525 + $0x69] sm:$0xff]
        %v3636 = vld [vmem:[%s3525 + $0x79] sm:$0xff]
        %v3637 = vld [vmem:[%s3525 + $0x81] sm:$0xff]
        %v3638 = vld [vmem:[%s3525 + $0x91] sm:$0xff]
        %v3639 = vld [vmem:[%s3525 + $0x99] sm:$0xff]
        %v3640 = vld [vmem:[%s3525 + $0xa9] sm:$0xff]
        %v3641 = vld [vmem:[%s3525 + $0xb1] sm:$0xff]
        %v3642 = vld [vmem:[%s3525 + $0xc1] sm:$0xff]
        %v3643 = vld [vmem:[%s3525 + $0xc9] sm:$0xff]
        %v3644 = vld [vmem:[%s3525 + $0xd9] sm:$0xff]
        %v3645 = vld [vmem:[%s3525 + $0xe1] sm:$0xff]
        %v3646 = vld [vmem:[%s3525 + $0xf1] sm:$0xff]
        %v3647 = vld [vmem:[%s3525 + $0xf9] sm:$0xff]
        %v3648 = vld [vmem:[%s3525 + $0x109] sm:$0xff]
        %v3649 = vld [vmem:[%s3525 + $0x111] sm:$0xff]
        %v3650 = vld [vmem:[%s3525 + $0x121] sm:$0xff]
        %v3651 = vld [vmem:[%s3525 + $0x129] sm:$0xff]
        %v3652 = vld [vmem:[%s3525 + $0x139] sm:$0xff]
        %v3653 = vld [vmem:[%s3525 + $0x141] sm:$0xff]
        %v3654 = vld [vmem:[%s3525 + $0x151] sm:$0xff]
        %v3655 = vld [vmem:[%s3525 + $0x159] sm:$0xff]
        %v3656 = vld [vmem:[%s3525 + $0x169] sm:$0xff]
        %v3657 = vld [vmem:[%s3525 + $0x171] sm:$0xff]
        %v3658 = vlaneseq
        %v3659 = vshrl.u32 %v3658, 7
        %v3660 = vsub.s32 4, %v3659
        %v3661 = vrot.slane %v3223, %v3660
        %v3662 = vmul.f32 %v3626, %v3661
        %v3663 = vmul.f32 %v3627, %v3661
        %v3664 = vmul.f32 %v3628, %v3661
        %v3665 = vmul.f32 %v3629, %v3661
        %v3666 = vmul.f32 %v3630, %v3661
        %v3667 = vmul.f32 %v3631, %v3661
        %v3668 = vmul.f32 %v3632, %v3661
        %v3669 = vmul.f32 %v3633, %v3661
        %v3670 = vmul.f32 %v3634, %v3661
        %v3671 = vmul.f32 %v3635, %v3661
        %v3672 = vmul.f32 %v3636, %v3661
        %v3673 = vmul.f32 %v3637, %v3661
        %v3674 = vmul.f32 %v3638, %v3661
        %v3675 = vmul.f32 %v3639, %v3661
        %v3676 = vmul.f32 %v3640, %v3661
        %v3677 = vmul.f32 %v3641, %v3661
        %v3678 = vmul.f32 %v3642, %v3661
        %v3679 = vmul.f32 %v3643, %v3661
        %v3680 = vmul.f32 %v3644, %v3661
        %v3681 = vmul.f32 %v3645, %v3661
        %v3682 = vmul.f32 %v3646, %v3661
        %v3683 = vmul.f32 %v3647, %v3661
        %v3684 = vmul.f32 %v3648, %v3661
        %v3685 = vmul.f32 %v3649, %v3661
        %v3686 = vmul.f32 %v3650, %v3661
        %v3687 = vmul.f32 %v3651, %v3661
        %v3688 = vmul.f32 %v3652, %v3661
        %v3689 = vmul.f32 %v3653, %v3661
        %v3690 = vmul.f32 %v3654, %v3661
        %v3691 = vmul.f32 %v3655, %v3661
        %v3692 = vmul.f32 %v3656, %v3661
        %v3693 = vmul.f32 %v3657, %v3661
        %v3694 = vadd.f32 %v3594, %v3662
        %v3695 = vadd.f32 %v3595, %v3663
        %v3696 = vadd.f32 %v3596, %v3664
        %v3697 = vadd.f32 %v3597, %v3665
        %v3698 = vadd.f32 %v3598, %v3666
        %v3699 = vadd.f32 %v3599, %v3667
        %v3700 = vadd.f32 %v3600, %v3668
        %v3701 = vadd.f32 %v3601, %v3669
        %v3702 = vadd.f32 %v3602, %v3670
        %v3703 = vadd.f32 %v3603, %v3671
        %v3704 = vadd.f32 %v3604, %v3672
        %v3705 = vadd.f32 %v3605, %v3673
        %v3706 = vadd.f32 %v3606, %v3674
        %v3707 = vadd.f32 %v3607, %v3675
        %v3708 = vadd.f32 %v3608, %v3676
        %v3709 = vadd.f32 %v3609, %v3677
        %v3710 = vadd.f32 %v3610, %v3678
        %v3711 = vadd.f32 %v3611, %v3679
        %v3712 = vadd.f32 %v3612, %v3680
        %v3713 = vadd.f32 %v3613, %v3681
        %v3714 = vadd.f32 %v3614, %v3682
        %v3715 = vadd.f32 %v3615, %v3683
        %v3716 = vadd.f32 %v3616, %v3684
        %v3717 = vadd.f32 %v3617, %v3685
        %v3718 = vadd.f32 %v3618, %v3686
        %v3719 = vadd.f32 %v3619, %v3687
        %v3720 = vadd.f32 %v3620, %v3688
        %v3721 = vadd.f32 %v3621, %v3689
        %v3722 = vadd.f32 %v3622, %v3690
        %v3723 = vadd.f32 %v3623, %v3691
        %v3724 = vadd.f32 %v3624, %v3692
        %v3725 = vadd.f32 %v3625, %v3693
        %v3726 = vld [vmem:[%s3525 + $0x2] sm:$0xff]
        %v3727 = vld [vmem:[%s3525 + $0xa] sm:$0xff]
        %v3728 = vld [vmem:[%s3525 + $0x1a] sm:$0xff]
        %v3729 = vld [vmem:[%s3525 + $0x22] sm:$0xff]
        %v3730 = vld [vmem:[%s3525 + $0x32] sm:$0xff]
        %v3731 = vld [vmem:[%s3525 + $0x3a] sm:$0xff]
        %v3732 = vld [vmem:[%s3525 + $0x4a] sm:$0xff]
        %v3733 = vld [vmem:[%s3525 + $0x52] sm:$0xff]
        %v3734 = vld [vmem:[%s3525 + $0x62] sm:$0xff]
        %v3735 = vld [vmem:[%s3525 + $0x6a] sm:$0xff]
        %v3736 = vld [vmem:[%s3525 + $0x7a] sm:$0xff]
        %v3737 = vld [vmem:[%s3525 + $0x82] sm:$0xff]
        %v3738 = vld [vmem:[%s3525 + $0x92] sm:$0xff]
        %v3739 = vld [vmem:[%s3525 + $0x9a] sm:$0xff]
        %v3740 = vld [vmem:[%s3525 + $0xaa] sm:$0xff]
        %v3741 = vld [vmem:[%s3525 + $0xb2] sm:$0xff]
        %v3742 = vld [vmem:[%s3525 + $0xc2] sm:$0xff]
        %v3743 = vld [vmem:[%s3525 + $0xca] sm:$0xff]
        %v3744 = vld [vmem:[%s3525 + $0xda] sm:$0xff]
        %v3745 = vld [vmem:[%s3525 + $0xe2] sm:$0xff]
        %v3746 = vld [vmem:[%s3525 + $0xf2] sm:$0xff]
        %v3747 = vld [vmem:[%s3525 + $0xfa] sm:$0xff]
        %v3748 = vld [vmem:[%s3525 + $0x10a] sm:$0xff]
        %v3749 = vld [vmem:[%s3525 + $0x112] sm:$0xff]
        %v3750 = vld [vmem:[%s3525 + $0x122] sm:$0xff]
        %v3751 = vld [vmem:[%s3525 + $0x12a] sm:$0xff]
        %v3752 = vld [vmem:[%s3525 + $0x13a] sm:$0xff]
        %v3753 = vld [vmem:[%s3525 + $0x142] sm:$0xff]
        %v3754 = vld [vmem:[%s3525 + $0x152] sm:$0xff]
        %v3755 = vld [vmem:[%s3525 + $0x15a] sm:$0xff]
        %v3756 = vld [vmem:[%s3525 + $0x16a] sm:$0xff]
        %v3757 = vld [vmem:[%s3525 + $0x172] sm:$0xff]
        %v3758 = vlaneseq
        %v3759 = vshrl.u32 %v3758, 7
        %v3760 = vsub.s32 5, %v3759
        %v3761 = vrot.slane %v3223, %v3760
        %v3762 = vmul.f32 %v3726, %v3761
        %v3763 = vmul.f32 %v3727, %v3761
        %v3764 = vmul.f32 %v3728, %v3761
        %v3765 = vmul.f32 %v3729, %v3761
        %v3766 = vmul.f32 %v3730, %v3761
        %v3767 = vmul.f32 %v3731, %v3761
        %v3768 = vmul.f32 %v3732, %v3761
        %v3769 = vmul.f32 %v3733, %v3761
        %v3770 = vmul.f32 %v3734, %v3761
        %v3771 = vmul.f32 %v3735, %v3761
        %v3772 = vmul.f32 %v3736, %v3761
        %v3773 = vmul.f32 %v3737, %v3761
        %v3774 = vmul.f32 %v3738, %v3761
        %v3775 = vmul.f32 %v3739, %v3761
        %v3776 = vmul.f32 %v3740, %v3761
        %v3777 = vmul.f32 %v3741, %v3761
        %v3778 = vmul.f32 %v3742, %v3761
        %v3779 = vmul.f32 %v3743, %v3761
        %v3780 = vmul.f32 %v3744, %v3761
        %v3781 = vmul.f32 %v3745, %v3761
        %v3782 = vmul.f32 %v3746, %v3761
        %v3783 = vmul.f32 %v3747, %v3761
        %v3784 = vmul.f32 %v3748, %v3761
        %v3785 = vmul.f32 %v3749, %v3761
        %v3786 = vmul.f32 %v3750, %v3761
        %v3787 = vmul.f32 %v3751, %v3761
        %v3788 = vmul.f32 %v3752, %v3761
        %v3789 = vmul.f32 %v3753, %v3761
        %v3790 = vmul.f32 %v3754, %v3761
        %v3791 = vmul.f32 %v3755, %v3761
        %v3792 = vmul.f32 %v3756, %v3761
        %v3793 = vmul.f32 %v3757, %v3761
        %v3794 = vadd.f32 %v3694, %v3762
        %v3795 = vadd.f32 %v3695, %v3763
        %v3796 = vadd.f32 %v3696, %v3764
        %v3797 = vadd.f32 %v3697, %v3765
        %v3798 = vadd.f32 %v3698, %v3766
        %v3799 = vadd.f32 %v3699, %v3767
        %v3800 = vadd.f32 %v3700, %v3768
        %v3801 = vadd.f32 %v3701, %v3769
        %v3802 = vadd.f32 %v3702, %v3770
        %v3803 = vadd.f32 %v3703, %v3771
        %v3804 = vadd.f32 %v3704, %v3772
        %v3805 = vadd.f32 %v3705, %v3773
        %v3806 = vadd.f32 %v3706, %v3774
        %v3807 = vadd.f32 %v3707, %v3775
        %v3808 = vadd.f32 %v3708, %v3776
        %v3809 = vadd.f32 %v3709, %v3777
        %v3810 = vadd.f32 %v3710, %v3778
        %v3811 = vadd.f32 %v3711, %v3779
        %v3812 = vadd.f32 %v3712, %v3780
        %v3813 = vadd.f32 %v3713, %v3781
        %v3814 = vadd.f32 %v3714, %v3782
        %v3815 = vadd.f32 %v3715, %v3783
        %v3816 = vadd.f32 %v3716, %v3784
        %v3817 = vadd.f32 %v3717, %v3785
        %v3818 = vadd.f32 %v3718, %v3786
        %v3819 = vadd.f32 %v3719, %v3787
        %v3820 = vadd.f32 %v3720, %v3788
        %v3821 = vadd.f32 %v3721, %v3789
        %v3822 = vadd.f32 %v3722, %v3790
        %v3823 = vadd.f32 %v3723, %v3791
        %v3824 = vadd.f32 %v3724, %v3792
        %v3825 = vadd.f32 %v3725, %v3793
        %s3826 = scalar_lea.vmem [#allocation2], 480
        %v3827 = vld [vmem:[%s3826] sm:$0xff]
        %v3828 = vld [vmem:[%s3826 + $0x8] sm:$0xff]
        %v3829 = vld [vmem:[%s3826 + $0x18] sm:$0xff]
        %v3830 = vld [vmem:[%s3826 + $0x20] sm:$0xff]
        %v3831 = vld [vmem:[%s3826 + $0x30] sm:$0xff]
        %v3832 = vld [vmem:[%s3826 + $0x38] sm:$0xff]
        %v3833 = vld [vmem:[%s3826 + $0x48] sm:$0xff]
        %v3834 = vld [vmem:[%s3826 + $0x50] sm:$0xff]
        %v3835 = vld [vmem:[%s3826 + $0x60] sm:$0xff]
        %v3836 = vld [vmem:[%s3826 + $0x68] sm:$0xff]
        %v3837 = vld [vmem:[%s3826 + $0x78] sm:$0xff]
        %v3838 = vld [vmem:[%s3826 + $0x80] sm:$0xff]
        %v3839 = vld [vmem:[%s3826 + $0x90] sm:$0xff]
        %v3840 = vld [vmem:[%s3826 + $0x98] sm:$0xff]
        %v3841 = vld [vmem:[%s3826 + $0xa8] sm:$0xff]
        %v3842 = vld [vmem:[%s3826 + $0xb0] sm:$0xff]
        %v3843 = vld [vmem:[%s3826 + $0xc0] sm:$0xff]
        %v3844 = vld [vmem:[%s3826 + $0xc8] sm:$0xff]
        %v3845 = vld [vmem:[%s3826 + $0xd8] sm:$0xff]
        %v3846 = vld [vmem:[%s3826 + $0xe0] sm:$0xff]
        %v3847 = vld [vmem:[%s3826 + $0xf0] sm:$0xff]
        %v3848 = vld [vmem:[%s3826 + $0xf8] sm:$0xff]
        %v3849 = vld [vmem:[%s3826 + $0x108] sm:$0xff]
        %v3850 = vld [vmem:[%s3826 + $0x110] sm:$0xff]
        %v3851 = vld [vmem:[%s3826 + $0x120] sm:$0xff]
        %v3852 = vld [vmem:[%s3826 + $0x128] sm:$0xff]
        %v3853 = vld [vmem:[%s3826 + $0x138] sm:$0xff]
        %v3854 = vld [vmem:[%s3826 + $0x140] sm:$0xff]
        %v3855 = vld [vmem:[%s3826 + $0x150] sm:$0xff]
        %v3856 = vld [vmem:[%s3826 + $0x158] sm:$0xff]
        %v3857 = vld [vmem:[%s3826 + $0x168] sm:$0xff]
        %v3858 = vld [vmem:[%s3826 + $0x170] sm:$0xff]
        %v3859 = vlaneseq
        %v3860 = vshrl.u32 %v3859, 7
        %v3861 = vsub.s32 6, %v3860
        %v3862 = vrot.slane %v3223, %v3861
        %v3863 = vmul.f32 %v3827, %v3862
        %v3864 = vmul.f32 %v3828, %v3862
        %v3865 = vmul.f32 %v3829, %v3862
        %v3866 = vmul.f32 %v3830, %v3862
        %v3867 = vmul.f32 %v3831, %v3862
        %v3868 = vmul.f32 %v3832, %v3862
        %v3869 = vmul.f32 %v3833, %v3862
        %v3870 = vmul.f32 %v3834, %v3862
        %v3871 = vmul.f32 %v3835, %v3862
        %v3872 = vmul.f32 %v3836, %v3862
        %v3873 = vmul.f32 %v3837, %v3862
        %v3874 = vmul.f32 %v3838, %v3862
        %v3875 = vmul.f32 %v3839, %v3862
        %v3876 = vmul.f32 %v3840, %v3862
        %v3877 = vmul.f32 %v3841, %v3862
        %v3878 = vmul.f32 %v3842, %v3862
        %v3879 = vmul.f32 %v3843, %v3862
        %v3880 = vmul.f32 %v3844, %v3862
        %v3881 = vmul.f32 %v3845, %v3862
        %v3882 = vmul.f32 %v3846, %v3862
        %v3883 = vmul.f32 %v3847, %v3862
        %v3884 = vmul.f32 %v3848, %v3862
        %v3885 = vmul.f32 %v3849, %v3862
        %v3886 = vmul.f32 %v3850, %v3862
        %v3887 = vmul.f32 %v3851, %v3862
        %v3888 = vmul.f32 %v3852, %v3862
        %v3889 = vmul.f32 %v3853, %v3862
        %v3890 = vmul.f32 %v3854, %v3862
        %v3891 = vmul.f32 %v3855, %v3862
        %v3892 = vmul.f32 %v3856, %v3862
        %v3893 = vmul.f32 %v3857, %v3862
        %v3894 = vmul.f32 %v3858, %v3862
        %v3895 = vadd.f32 %v3794, %v3863
        %v3896 = vadd.f32 %v3795, %v3864
        %v3897 = vadd.f32 %v3796, %v3865
        %v3898 = vadd.f32 %v3797, %v3866
        %v3899 = vadd.f32 %v3798, %v3867
        %v3900 = vadd.f32 %v3799, %v3868
        %v3901 = vadd.f32 %v3800, %v3869
        %v3902 = vadd.f32 %v3801, %v3870
        %v3903 = vadd.f32 %v3802, %v3871
        %v3904 = vadd.f32 %v3803, %v3872
        %v3905 = vadd.f32 %v3804, %v3873
        %v3906 = vadd.f32 %v3805, %v3874
        %v3907 = vadd.f32 %v3806, %v3875
        %v3908 = vadd.f32 %v3807, %v3876
        %v3909 = vadd.f32 %v3808, %v3877
        %v3910 = vadd.f32 %v3809, %v3878
        %v3911 = vadd.f32 %v3810, %v3879
        %v3912 = vadd.f32 %v3811, %v3880
        %v3913 = vadd.f32 %v3812, %v3881
        %v3914 = vadd.f32 %v3813, %v3882
        %v3915 = vadd.f32 %v3814, %v3883
        %v3916 = vadd.f32 %v3815, %v3884
        %v3917 = vadd.f32 %v3816, %v3885
        %v3918 = vadd.f32 %v3817, %v3886
        %v3919 = vadd.f32 %v3818, %v3887
        %v3920 = vadd.f32 %v3819, %v3888
        %v3921 = vadd.f32 %v3820, %v3889
        %v3922 = vadd.f32 %v3821, %v3890
        %v3923 = vadd.f32 %v3822, %v3891
        %v3924 = vadd.f32 %v3823, %v3892
        %v3925 = vadd.f32 %v3824, %v3893
        %v3926 = vadd.f32 %v3825, %v3894
        %v3927 = vld [vmem:[%s3826 + $0x1] sm:$0xff]
        %v3928 = vld [vmem:[%s3826 + $0x9] sm:$0xff]
        %v3929 = vld [vmem:[%s3826 + $0x19] sm:$0xff]
        %v3930 = vld [vmem:[%s3826 + $0x21] sm:$0xff]
        %v3931 = vld [vmem:[%s3826 + $0x31] sm:$0xff]
        %v3932 = vld [vmem:[%s3826 + $0x39] sm:$0xff]
        %v3933 = vld [vmem:[%s3826 + $0x49] sm:$0xff]
        %v3934 = vld [vmem:[%s3826 + $0x51] sm:$0xff]
        %v3935 = vld [vmem:[%s3826 + $0x61] sm:$0xff]
        %v3936 = vld [vmem:[%s3826 + $0x69] sm:$0xff]
        %v3937 = vld [vmem:[%s3826 + $0x79] sm:$0xff]
        %v3938 = vld [vmem:[%s3826 + $0x81] sm:$0xff]
        %v3939 = vld [vmem:[%s3826 + $0x91] sm:$0xff]
        %v3940 = vld [vmem:[%s3826 + $0x99] sm:$0xff]
        %v3941 = vld [vmem:[%s3826 + $0xa9] sm:$0xff]
        %v3942 = vld [vmem:[%s3826 + $0xb1] sm:$0xff]
        %v3943 = vld [vmem:[%s3826 + $0xc1] sm:$0xff]
        %v3944 = vld [vmem:[%s3826 + $0xc9] sm:$0xff]
        %v3945 = vld [vmem:[%s3826 + $0xd9] sm:$0xff]
        %v3946 = vld [vmem:[%s3826 + $0xe1] sm:$0xff]
        %v3947 = vld [vmem:[%s3826 + $0xf1] sm:$0xff]
        %v3948 = vld [vmem:[%s3826 + $0xf9] sm:$0xff]
        %v3949 = vld [vmem:[%s3826 + $0x109] sm:$0xff]
        %v3950 = vld [vmem:[%s3826 + $0x111] sm:$0xff]
        %v3951 = vld [vmem:[%s3826 + $0x121] sm:$0xff]
        %v3952 = vld [vmem:[%s3826 + $0x129] sm:$0xff]
        %v3953 = vld [vmem:[%s3826 + $0x139] sm:$0xff]
        %v3954 = vld [vmem:[%s3826 + $0x141] sm:$0xff]
        %v3955 = vld [vmem:[%s3826 + $0x151] sm:$0xff]
        %v3956 = vld [vmem:[%s3826 + $0x159] sm:$0xff]
        %v3957 = vld [vmem:[%s3826 + $0x169] sm:$0xff]
        %v3958 = vld [vmem:[%s3826 + $0x171] sm:$0xff]
        %v3959 = vlaneseq
        %v3960 = vshrl.u32 %v3959, 7
        %v3961 = vsub.s32 7, %v3960
        %v3962 = vrot.slane %v3223, %v3961
        %v3963 = vmul.f32 %v3927, %v3962
        %v3964 = vmul.f32 %v3928, %v3962
        %v3965 = vmul.f32 %v3929, %v3962
        %v3966 = vmul.f32 %v3930, %v3962
        %v3967 = vmul.f32 %v3931, %v3962
        %v3968 = vmul.f32 %v3932, %v3962
        %v3969 = vmul.f32 %v3933, %v3962
        %v3970 = vmul.f32 %v3934, %v3962
        %v3971 = vmul.f32 %v3935, %v3962
        %v3972 = vmul.f32 %v3936, %v3962
        %v3973 = vmul.f32 %v3937, %v3962
        %v3974 = vmul.f32 %v3938, %v3962
        %v3975 = vmul.f32 %v3939, %v3962
        %v3976 = vmul.f32 %v3940, %v3962
        %v3977 = vmul.f32 %v3941, %v3962
        %v3978 = vmul.f32 %v3942, %v3962
        %v3979 = vmul.f32 %v3943, %v3962
        %v3980 = vmul.f32 %v3944, %v3962
        %v3981 = vmul.f32 %v3945, %v3962
        %v3982 = vmul.f32 %v3946, %v3962
        %v3983 = vmul.f32 %v3947, %v3962
        %v3984 = vmul.f32 %v3948, %v3962
        %v3985 = vmul.f32 %v3949, %v3962
        %v3986 = vmul.f32 %v3950, %v3962
        %v3987 = vmul.f32 %v3951, %v3962
        %v3988 = vmul.f32 %v3952, %v3962
        %v3989 = vmul.f32 %v3953, %v3962
        %v3990 = vmul.f32 %v3954, %v3962
        %v3991 = vmul.f32 %v3955, %v3962
        %v3992 = vmul.f32 %v3956, %v3962
        %v3993 = vmul.f32 %v3957, %v3962
        %v3994 = vmul.f32 %v3958, %v3962
        %v3995 = vadd.f32 %v3895, %v3963
        %v3996 = vadd.f32 %v3896, %v3964
        %v3997 = vadd.f32 %v3897, %v3965
        %v3998 = vadd.f32 %v3898, %v3966
        %v3999 = vadd.f32 %v3899, %v3967
        %v4000 = vadd.f32 %v3900, %v3968
        %v4001 = vadd.f32 %v3901, %v3969
        %v4002 = vadd.f32 %v3902, %v3970
        %v4003 = vadd.f32 %v3903, %v3971
        %v4004 = vadd.f32 %v3904, %v3972
        %v4005 = vadd.f32 %v3905, %v3973
        %v4006 = vadd.f32 %v3906, %v3974
        %v4007 = vadd.f32 %v3907, %v3975
        %v4008 = vadd.f32 %v3908, %v3976
        %v4009 = vadd.f32 %v3909, %v3977
        %v4010 = vadd.f32 %v3910, %v3978
        %v4011 = vadd.f32 %v3911, %v3979
        %v4012 = vadd.f32 %v3912, %v3980
        %v4013 = vadd.f32 %v3913, %v3981
        %v4014 = vadd.f32 %v3914, %v3982
        %v4015 = vadd.f32 %v3915, %v3983
        %v4016 = vadd.f32 %v3916, %v3984
        %v4017 = vadd.f32 %v3917, %v3985
        %v4018 = vadd.f32 %v3918, %v3986
        %v4019 = vadd.f32 %v3919, %v3987
        %v4020 = vadd.f32 %v3920, %v3988
        %v4021 = vadd.f32 %v3921, %v3989
        %v4022 = vadd.f32 %v3922, %v3990
        %v4023 = vadd.f32 %v3923, %v3991
        %v4024 = vadd.f32 %v3924, %v3992
        %v4025 = vadd.f32 %v3925, %v3993
        %v4026 = vadd.f32 %v3926, %v3994
        %v4027 = vld [vmem:[%s3826 + $0x2] sm:$0xff]
        %v4028 = vld [vmem:[%s3826 + $0xa] sm:$0xff]
        %v4029 = vld [vmem:[%s3826 + $0x1a] sm:$0xff]
        %v4030 = vld [vmem:[%s3826 + $0x22] sm:$0xff]
        %v4031 = vld [vmem:[%s3826 + $0x32] sm:$0xff]
        %v4032 = vld [vmem:[%s3826 + $0x3a] sm:$0xff]
        %v4033 = vld [vmem:[%s3826 + $0x4a] sm:$0xff]
        %v4034 = vld [vmem:[%s3826 + $0x52] sm:$0xff]
        %v4035 = vld [vmem:[%s3826 + $0x62] sm:$0xff]
        %v4036 = vld [vmem:[%s3826 + $0x6a] sm:$0xff]
        %v4037 = vld [vmem:[%s3826 + $0x7a] sm:$0xff]
        %v4038 = vld [vmem:[%s3826 + $0x82] sm:$0xff]
        %v4039 = vld [vmem:[%s3826 + $0x92] sm:$0xff]
        %v4040 = vld [vmem:[%s3826 + $0x9a] sm:$0xff]
        %v4041 = vld [vmem:[%s3826 + $0xaa] sm:$0xff]
        %v4042 = vld [vmem:[%s3826 + $0xb2] sm:$0xff]
        %v4043 = vld [vmem:[%s3826 + $0xc2] sm:$0xff]
        %v4044 = vld [vmem:[%s3826 + $0xca] sm:$0xff]
        %v4045 = vld [vmem:[%s3826 + $0xda] sm:$0xff]
        %v4046 = vld [vmem:[%s3826 + $0xe2] sm:$0xff]
        %v4047 = vld [vmem:[%s3826 + $0xf2] sm:$0xff]
        %v4048 = vld [vmem:[%s3826 + $0xfa] sm:$0xff]
        %v4049 = vld [vmem:[%s3826 + $0x10a] sm:$0xff]
        %v4050 = vld [vmem:[%s3826 + $0x112] sm:$0xff]
        %v4051 = vld [vmem:[%s3826 + $0x122] sm:$0xff]
        %v4052 = vld [vmem:[%s3826 + $0x12a] sm:$0xff]
        %v4053 = vld [vmem:[%s3826 + $0x13a] sm:$0xff]
        %v4054 = vld [vmem:[%s3826 + $0x142] sm:$0xff]
        %v4055 = vld [vmem:[%s3826 + $0x152] sm:$0xff]
        %v4056 = vld [vmem:[%s3826 + $0x15a] sm:$0xff]
        %v4057 = vld [vmem:[%s3826 + $0x16a] sm:$0xff]
        %v4058 = vld [vmem:[%s3826 + $0x172] sm:$0xff]
        %v4059 = vlaneseq
        %v4060 = vshrl.u32 %v4059, 7
        %v4061 = vsub.s32 0, %v4060
        %v4062 = vrot.slane %v3224, %v4061
        %v4063 = vmul.f32 %v4027, %v4062
        %v4064 = vmul.f32 %v4028, %v4062
        %v4065 = vmul.f32 %v4029, %v4062
        %v4066 = vmul.f32 %v4030, %v4062
        %v4067 = vmul.f32 %v4031, %v4062
        %v4068 = vmul.f32 %v4032, %v4062
        %v4069 = vmul.f32 %v4033, %v4062
        %v4070 = vmul.f32 %v4034, %v4062
        %v4071 = vmul.f32 %v4035, %v4062
        %v4072 = vmul.f32 %v4036, %v4062
        %v4073 = vmul.f32 %v4037, %v4062
        %v4074 = vmul.f32 %v4038, %v4062
        %v4075 = vmul.f32 %v4039, %v4062
        %v4076 = vmul.f32 %v4040, %v4062
        %v4077 = vmul.f32 %v4041, %v4062
        %v4078 = vmul.f32 %v4042, %v4062
        %v4079 = vmul.f32 %v4043, %v4062
        %v4080 = vmul.f32 %v4044, %v4062
        %v4081 = vmul.f32 %v4045, %v4062
        %v4082 = vmul.f32 %v4046, %v4062
        %v4083 = vmul.f32 %v4047, %v4062
        %v4084 = vmul.f32 %v4048, %v4062
        %v4085 = vmul.f32 %v4049, %v4062
        %v4086 = vmul.f32 %v4050, %v4062
        %v4087 = vmul.f32 %v4051, %v4062
        %v4088 = vmul.f32 %v4052, %v4062
        %v4089 = vmul.f32 %v4053, %v4062
        %v4090 = vmul.f32 %v4054, %v4062
        %v4091 = vmul.f32 %v4055, %v4062
        %v4092 = vmul.f32 %v4056, %v4062
        %v4093 = vmul.f32 %v4057, %v4062
        %v4094 = vmul.f32 %v4058, %v4062
        %v4095 = vadd.f32 %v3995, %v4063
        %v4096 = vadd.f32 %v3996, %v4064
        %v4097 = vadd.f32 %v3997, %v4065
        %v4098 = vadd.f32 %v3998, %v4066
        %v4099 = vadd.f32 %v3999, %v4067
        %v4100 = vadd.f32 %v4000, %v4068
        %v4101 = vadd.f32 %v4001, %v4069
        %v4102 = vadd.f32 %v4002, %v4070
        %v4103 = vadd.f32 %v4003, %v4071
        %v4104 = vadd.f32 %v4004, %v4072
        %v4105 = vadd.f32 %v4005, %v4073
        %v4106 = vadd.f32 %v4006, %v4074
        %v4107 = vadd.f32 %v4007, %v4075
        %v4108 = vadd.f32 %v4008, %v4076
        %v4109 = vadd.f32 %v4009, %v4077
        %v4110 = vadd.f32 %v4010, %v4078
        %v4111 = vadd.f32 %v4011, %v4079
        %v4112 = vadd.f32 %v4012, %v4080
        %v4113 = vadd.f32 %v4013, %v4081
        %v4114 = vadd.f32 %v4014, %v4082
        %v4115 = vadd.f32 %v4015, %v4083
        %v4116 = vadd.f32 %v4016, %v4084
        %v4117 = vadd.f32 %v4017, %v4085
        %v4118 = vadd.f32 %v4018, %v4086
        %v4119 = vadd.f32 %v4019, %v4087
        %v4120 = vadd.f32 %v4020, %v4088
        %v4121 = vadd.f32 %v4021, %v4089
        %v4122 = vadd.f32 %v4022, %v4090
        %v4123 = vadd.f32 %v4023, %v4091
        %v4124 = vadd.f32 %v4024, %v4092
        %v4125 = vadd.f32 %v4025, %v4093
        %v4126 = vadd.f32 %v4026, %v4094
        %s4127 = scalar_lea.vmem %s5, 1
        %v4128 = vld [vmem:[%s4127] sm:$0x1]
        %v4130 = vlaneseq
        %v4131 = vshrl.u32 %v4130, 7
        %v4132 = vsub.s32 0, %v4131
        %v4133 = vrot.slane %v4128, %v4132
        %v4135 = vadd.f32 %v4095, %v4133
        %v4136 = vadd.f32 %v4096, %v4133
        %v4137 = vadd.f32 %v4097, %v4133
        %v4138 = vadd.f32 %v4098, %v4133
        %v4139 = vadd.f32 %v4099, %v4133
        %v4140 = vadd.f32 %v4100, %v4133
        %v4141 = vadd.f32 %v4101, %v4133
        %v4142 = vadd.f32 %v4102, %v4133
        %v4143 = vadd.f32 %v4103, %v4133
        %v4144 = vadd.f32 %v4104, %v4133
        %v4145 = vadd.f32 %v4105, %v4133
        %v4146 = vadd.f32 %v4106, %v4133
        %v4147 = vadd.f32 %v4107, %v4133
        %v4148 = vadd.f32 %v4108, %v4133
        %v4149 = vadd.f32 %v4109, %v4133
        %v4150 = vadd.f32 %v4110, %v4133
        %v4151 = vadd.f32 %v4111, %v4133
        %v4152 = vadd.f32 %v4112, %v4133
        %v4153 = vadd.f32 %v4113, %v4133
        %v4154 = vadd.f32 %v4114, %v4133
        %v4155 = vadd.f32 %v4115, %v4133
        %v4156 = vadd.f32 %v4116, %v4133
        %v4157 = vadd.f32 %v4117, %v4133
        %v4158 = vadd.f32 %v4118, %v4133
        %v4159 = vadd.f32 %v4119, %v4133
        %v4160 = vadd.f32 %v4120, %v4133
        %v4161 = vadd.f32 %v4121, %v4133
        %v4162 = vadd.f32 %v4122, %v4133
        %v4163 = vadd.f32 %v4123, %v4133
        %v4164 = vadd.f32 %v4124, %v4133
        %v4165 = vadd.f32 %v4125, %v4133
        %v4166 = vadd.f32 %v4126, %v4133
        %s4167 = scalar_lea.vmem %s4, 32
        %v4168 = vld [vmem:[%s4167] sm:$0xff]
        %v4169 = vld [vmem:[%s4167 + $0x8] sm:$0x1]
        %v4170 = vld [vmem:[%s2224] sm:$0xff]
        %v4171 = vld [vmem:[%s2224 + $0x8] sm:$0xff]
        %v4172 = vld [vmem:[%s2224 + $0x18] sm:$0xff]
        %v4173 = vld [vmem:[%s2224 + $0x20] sm:$0xff]
        %v4174 = vld [vmem:[%s2224 + $0x30] sm:$0xff]
        %v4175 = vld [vmem:[%s2224 + $0x38] sm:$0xff]
        %v4176 = vld [vmem:[%s2224 + $0x48] sm:$0xff]
        %v4177 = vld [vmem:[%s2224 + $0x50] sm:$0xff]
        %v4178 = vld [vmem:[%s2224 + $0x60] sm:$0xff]
        %v4179 = vld [vmem:[%s2224 + $0x68] sm:$0xff]
        %v4180 = vld [vmem:[%s2224 + $0x78] sm:$0xff]
        %v4181 = vld [vmem:[%s2224 + $0x80] sm:$0xff]
        %v4182 = vld [vmem:[%s2224 + $0x90] sm:$0xff]
        %v4183 = vld [vmem:[%s2224 + $0x98] sm:$0xff]
        %v4184 = vld [vmem:[%s2224 + $0xa8] sm:$0xff]
        %v4185 = vld [vmem:[%s2224 + $0xb0] sm:$0xff]
        %v4186 = vld [vmem:[%s2224 + $0xc0] sm:$0xff]
        %v4187 = vld [vmem:[%s2224 + $0xc8] sm:$0xff]
        %v4188 = vld [vmem:[%s2224 + $0xd8] sm:$0xff]
        %v4189 = vld [vmem:[%s2224 + $0xe0] sm:$0xff]
        %v4190 = vld [vmem:[%s2224 + $0xf0] sm:$0xff]
        %v4191 = vld [vmem:[%s2224 + $0xf8] sm:$0xff]
        %v4192 = vld [vmem:[%s2224 + $0x108] sm:$0xff]
        %v4193 = vld [vmem:[%s2224 + $0x110] sm:$0xff]
        %v4194 = vld [vmem:[%s2224 + $0x120] sm:$0xff]
        %v4195 = vld [vmem:[%s2224 + $0x128] sm:$0xff]
        %v4196 = vld [vmem:[%s2224 + $0x138] sm:$0xff]
        %v4197 = vld [vmem:[%s2224 + $0x140] sm:$0xff]
        %v4198 = vld [vmem:[%s2224 + $0x150] sm:$0xff]
        %v4199 = vld [vmem:[%s2224 + $0x158] sm:$0xff]
        %v4200 = vld [vmem:[%s2224 + $0x168] sm:$0xff]
        %v4201 = vld [vmem:[%s2224 + $0x170] sm:$0xff]
        %v4202 = vlaneseq
        %v4203 = vshrl.u32 %v4202, 7
        %v4204 = vsub.s32 0, %v4203
        %v4205 = vrot.slane %v4168, %v4204
        %v4206 = vmul.f32 %v4170, %v4205
        %v4207 = vmul.f32 %v4171, %v4205
        %v4208 = vmul.f32 %v4172, %v4205
        %v4209 = vmul.f32 %v4173, %v4205
        %v4210 = vmul.f32 %v4174, %v4205
        %v4211 = vmul.f32 %v4175, %v4205
        %v4212 = vmul.f32 %v4176, %v4205
        %v4213 = vmul.f32 %v4177, %v4205
        %v4214 = vmul.f32 %v4178, %v4205
        %v4215 = vmul.f32 %v4179, %v4205
        %v4216 = vmul.f32 %v4180, %v4205
        %v4217 = vmul.f32 %v4181, %v4205
        %v4218 = vmul.f32 %v4182, %v4205
        %v4219 = vmul.f32 %v4183, %v4205
        %v4220 = vmul.f32 %v4184, %v4205
        %v4221 = vmul.f32 %v4185, %v4205
        %v4222 = vmul.f32 %v4186, %v4205
        %v4223 = vmul.f32 %v4187, %v4205
        %v4224 = vmul.f32 %v4188, %v4205
        %v4225 = vmul.f32 %v4189, %v4205
        %v4226 = vmul.f32 %v4190, %v4205
        %v4227 = vmul.f32 %v4191, %v4205
        %v4228 = vmul.f32 %v4192, %v4205
        %v4229 = vmul.f32 %v4193, %v4205
        %v4230 = vmul.f32 %v4194, %v4205
        %v4231 = vmul.f32 %v4195, %v4205
        %v4232 = vmul.f32 %v4196, %v4205
        %v4233 = vmul.f32 %v4197, %v4205
        %v4234 = vmul.f32 %v4198, %v4205
        %v4235 = vmul.f32 %v4199, %v4205
        %v4236 = vmul.f32 %v4200, %v4205
        %v4237 = vmul.f32 %v4201, %v4205
        %v4238 = vadd.f32 %v4206, 0.0
        %v4239 = vadd.f32 %v4207, 0.0
        %v4240 = vadd.f32 %v4208, 0.0
        %v4241 = vadd.f32 %v4209, 0.0
        %v4242 = vadd.f32 %v4210, 0.0
        %v4243 = vadd.f32 %v4211, 0.0
        %v4244 = vadd.f32 %v4212, 0.0
        %v4245 = vadd.f32 %v4213, 0.0
        %v4246 = vadd.f32 %v4214, 0.0
        %v4247 = vadd.f32 %v4215, 0.0
        %v4248 = vadd.f32 %v4216, 0.0
        %v4249 = vadd.f32 %v4217, 0.0
        %v4250 = vadd.f32 %v4218, 0.0
        %v4251 = vadd.f32 %v4219, 0.0
        %v4252 = vadd.f32 %v4220, 0.0
        %v4253 = vadd.f32 %v4221, 0.0
        %v4254 = vadd.f32 %v4222, 0.0
        %v4255 = vadd.f32 %v4223, 0.0
        %v4256 = vadd.f32 %v4224, 0.0
        %v4257 = vadd.f32 %v4225, 0.0
        %v4258 = vadd.f32 %v4226, 0.0
        %v4259 = vadd.f32 %v4227, 0.0
        %v4260 = vadd.f32 %v4228, 0.0
        %v4261 = vadd.f32 %v4229, 0.0
        %v4262 = vadd.f32 %v4230, 0.0
        %v4263 = vadd.f32 %v4231, 0.0
        %v4264 = vadd.f32 %v4232, 0.0
        %v4265 = vadd.f32 %v4233, 0.0
        %v4266 = vadd.f32 %v4234, 0.0
        %v4267 = vadd.f32 %v4235, 0.0
        %v4268 = vadd.f32 %v4236, 0.0
        %v4269 = vadd.f32 %v4237, 0.0
        %v4270 = vld [vmem:[%s2224 + $0x1] sm:$0xff]
        %v4271 = vld [vmem:[%s2224 + $0x9] sm:$0xff]
        %v4272 = vld [vmem:[%s2224 + $0x19] sm:$0xff]
        %v4273 = vld [vmem:[%s2224 + $0x21] sm:$0xff]
        %v4274 = vld [vmem:[%s2224 + $0x31] sm:$0xff]
        %v4275 = vld [vmem:[%s2224 + $0x39] sm:$0xff]
        %v4276 = vld [vmem:[%s2224 + $0x49] sm:$0xff]
        %v4277 = vld [vmem:[%s2224 + $0x51] sm:$0xff]
        %v4278 = vld [vmem:[%s2224 + $0x61] sm:$0xff]
        %v4279 = vld [vmem:[%s2224 + $0x69] sm:$0xff]
        %v4280 = vld [vmem:[%s2224 + $0x79] sm:$0xff]
        %v4281 = vld [vmem:[%s2224 + $0x81] sm:$0xff]
        %v4282 = vld [vmem:[%s2224 + $0x91] sm:$0xff]
        %v4283 = vld [vmem:[%s2224 + $0x99] sm:$0xff]
        %v4284 = vld [vmem:[%s2224 + $0xa9] sm:$0xff]
        %v4285 = vld [vmem:[%s2224 + $0xb1] sm:$0xff]
        %v4286 = vld [vmem:[%s2224 + $0xc1] sm:$0xff]
        %v4287 = vld [vmem:[%s2224 + $0xc9] sm:$0xff]
        %v4288 = vld [vmem:[%s2224 + $0xd9] sm:$0xff]
        %v4289 = vld [vmem:[%s2224 + $0xe1] sm:$0xff]
        %v4290 = vld [vmem:[%s2224 + $0xf1] sm:$0xff]
        %v4291 = vld [vmem:[%s2224 + $0xf9] sm:$0xff]
        %v4292 = vld [vmem:[%s2224 + $0x109] sm:$0xff]
        %v4293 = vld [vmem:[%s2224 + $0x111] sm:$0xff]
        %v4294 = vld [vmem:[%s2224 + $0x121] sm:$0xff]
        %v4295 = vld [vmem:[%s2224 + $0x129] sm:$0xff]
        %v4296 = vld [vmem:[%s2224 + $0x139] sm:$0xff]
        %v4297 = vld [vmem:[%s2224 + $0x141] sm:$0xff]
        %v4298 = vld [vmem:[%s2224 + $0x151] sm:$0xff]
        %v4299 = vld [vmem:[%s2224 + $0x159] sm:$0xff]
        %v4300 = vld [vmem:[%s2224 + $0x169] sm:$0xff]
        %v4301 = vld [vmem:[%s2224 + $0x171] sm:$0xff]
        %v4302 = vlaneseq
        %v4303 = vshrl.u32 %v4302, 7
        %v4304 = vsub.s32 1, %v4303
        %v4305 = vrot.slane %v4168, %v4304
        %v4306 = vmul.f32 %v4270, %v4305
        %v4307 = vmul.f32 %v4271, %v4305
        %v4308 = vmul.f32 %v4272, %v4305
        %v4309 = vmul.f32 %v4273, %v4305
        %v4310 = vmul.f32 %v4274, %v4305
        %v4311 = vmul.f32 %v4275, %v4305
        %v4312 = vmul.f32 %v4276, %v4305
        %v4313 = vmul.f32 %v4277, %v4305
        %v4314 = vmul.f32 %v4278, %v4305
        %v4315 = vmul.f32 %v4279, %v4305
        %v4316 = vmul.f32 %v4280, %v4305
        %v4317 = vmul.f32 %v4281, %v4305
        %v4318 = vmul.f32 %v4282, %v4305
        %v4319 = vmul.f32 %v4283, %v4305
        %v4320 = vmul.f32 %v4284, %v4305
        %v4321 = vmul.f32 %v4285, %v4305
        %v4322 = vmul.f32 %v4286, %v4305
        %v4323 = vmul.f32 %v4287, %v4305
        %v4324 = vmul.f32 %v4288, %v4305
        %v4325 = vmul.f32 %v4289, %v4305
        %v4326 = vmul.f32 %v4290, %v4305
        %v4327 = vmul.f32 %v4291, %v4305
        %v4328 = vmul.f32 %v4292, %v4305
        %v4329 = vmul.f32 %v4293, %v4305
        %v4330 = vmul.f32 %v4294, %v4305
        %v4331 = vmul.f32 %v4295, %v4305
        %v4332 = vmul.f32 %v4296, %v4305
        %v4333 = vmul.f32 %v4297, %v4305
        %v4334 = vmul.f32 %v4298, %v4305
        %v4335 = vmul.f32 %v4299, %v4305
        %v4336 = vmul.f32 %v4300, %v4305
        %v4337 = vmul.f32 %v4301, %v4305
        %v4338 = vadd.f32 %v4238, %v4306
        %v4339 = vadd.f32 %v4239, %v4307
        %v4340 = vadd.f32 %v4240, %v4308
        %v4341 = vadd.f32 %v4241, %v4309
        %v4342 = vadd.f32 %v4242, %v4310
        %v4343 = vadd.f32 %v4243, %v4311
        %v4344 = vadd.f32 %v4244, %v4312
        %v4345 = vadd.f32 %v4245, %v4313
        %v4346 = vadd.f32 %v4246, %v4314
        %v4347 = vadd.f32 %v4247, %v4315
        %v4348 = vadd.f32 %v4248, %v4316
        %v4349 = vadd.f32 %v4249, %v4317
        %v4350 = vadd.f32 %v4250, %v4318
        %v4351 = vadd.f32 %v4251, %v4319
        %v4352 = vadd.f32 %v4252, %v4320
        %v4353 = vadd.f32 %v4253, %v4321
        %v4354 = vadd.f32 %v4254, %v4322
        %v4355 = vadd.f32 %v4255, %v4323
        %v4356 = vadd.f32 %v4256, %v4324
        %v4357 = vadd.f32 %v4257, %v4325
        %v4358 = vadd.f32 %v4258, %v4326
        %v4359 = vadd.f32 %v4259, %v4327
        %v4360 = vadd.f32 %v4260, %v4328
        %v4361 = vadd.f32 %v4261, %v4329
        %v4362 = vadd.f32 %v4262, %v4330
        %v4363 = vadd.f32 %v4263, %v4331
        %v4364 = vadd.f32 %v4264, %v4332
        %v4365 = vadd.f32 %v4265, %v4333
        %v4366 = vadd.f32 %v4266, %v4334
        %v4367 = vadd.f32 %v4267, %v4335
        %v4368 = vadd.f32 %v4268, %v4336
        %v4369 = vadd.f32 %v4269, %v4337
        %v4370 = vld [vmem:[%s2224 + $0x2] sm:$0xff]
        %v4371 = vld [vmem:[%s2224 + $0xa] sm:$0xff]
        %v4372 = vld [vmem:[%s2224 + $0x1a] sm:$0xff]
        %v4373 = vld [vmem:[%s2224 + $0x22] sm:$0xff]
        %v4374 = vld [vmem:[%s2224 + $0x32] sm:$0xff]
        %v4375 = vld [vmem:[%s2224 + $0x3a] sm:$0xff]
        %v4376 = vld [vmem:[%s2224 + $0x4a] sm:$0xff]
        %v4377 = vld [vmem:[%s2224 + $0x52] sm:$0xff]
        %v4378 = vld [vmem:[%s2224 + $0x62] sm:$0xff]
        %v4379 = vld [vmem:[%s2224 + $0x6a] sm:$0xff]
        %v4380 = vld [vmem:[%s2224 + $0x7a] sm:$0xff]
        %v4381 = vld [vmem:[%s2224 + $0x82] sm:$0xff]
        %v4382 = vld [vmem:[%s2224 + $0x92] sm:$0xff]
        %v4383 = vld [vmem:[%s2224 + $0x9a] sm:$0xff]
        %v4384 = vld [vmem:[%s2224 + $0xaa] sm:$0xff]
        %v4385 = vld [vmem:[%s2224 + $0xb2] sm:$0xff]
        %v4386 = vld [vmem:[%s2224 + $0xc2] sm:$0xff]
        %v4387 = vld [vmem:[%s2224 + $0xca] sm:$0xff]
        %v4388 = vld [vmem:[%s2224 + $0xda] sm:$0xff]
        %v4389 = vld [vmem:[%s2224 + $0xe2] sm:$0xff]
        %v4390 = vld [vmem:[%s2224 + $0xf2] sm:$0xff]
        %v4391 = vld [vmem:[%s2224 + $0xfa] sm:$0xff]
        %v4392 = vld [vmem:[%s2224 + $0x10a] sm:$0xff]
        %v4393 = vld [vmem:[%s2224 + $0x112] sm:$0xff]
        %v4394 = vld [vmem:[%s2224 + $0x122] sm:$0xff]
        %v4395 = vld [vmem:[%s2224 + $0x12a] sm:$0xff]
        %v4396 = vld [vmem:[%s2224 + $0x13a] sm:$0xff]
        %v4397 = vld [vmem:[%s2224 + $0x142] sm:$0xff]
        %v4398 = vld [vmem:[%s2224 + $0x152] sm:$0xff]
        %v4399 = vld [vmem:[%s2224 + $0x15a] sm:$0xff]
        %v4400 = vld [vmem:[%s2224 + $0x16a] sm:$0xff]
        %v4401 = vld [vmem:[%s2224 + $0x172] sm:$0xff]
        %v4402 = vlaneseq
        %v4403 = vshrl.u32 %v4402, 7
        %v4404 = vsub.s32 2, %v4403
        %v4405 = vrot.slane %v4168, %v4404
        %v4406 = vmul.f32 %v4370, %v4405
        %v4407 = vmul.f32 %v4371, %v4405
        %v4408 = vmul.f32 %v4372, %v4405
        %v4409 = vmul.f32 %v4373, %v4405
        %v4410 = vmul.f32 %v4374, %v4405
        %v4411 = vmul.f32 %v4375, %v4405
        %v4412 = vmul.f32 %v4376, %v4405
        %v4413 = vmul.f32 %v4377, %v4405
        %v4414 = vmul.f32 %v4378, %v4405
        %v4415 = vmul.f32 %v4379, %v4405
        %v4416 = vmul.f32 %v4380, %v4405
        %v4417 = vmul.f32 %v4381, %v4405
        %v4418 = vmul.f32 %v4382, %v4405
        %v4419 = vmul.f32 %v4383, %v4405
        %v4420 = vmul.f32 %v4384, %v4405
        %v4421 = vmul.f32 %v4385, %v4405
        %v4422 = vmul.f32 %v4386, %v4405
        %v4423 = vmul.f32 %v4387, %v4405
        %v4424 = vmul.f32 %v4388, %v4405
        %v4425 = vmul.f32 %v4389, %v4405
        %v4426 = vmul.f32 %v4390, %v4405
        %v4427 = vmul.f32 %v4391, %v4405
        %v4428 = vmul.f32 %v4392, %v4405
        %v4429 = vmul.f32 %v4393, %v4405
        %v4430 = vmul.f32 %v4394, %v4405
        %v4431 = vmul.f32 %v4395, %v4405
        %v4432 = vmul.f32 %v4396, %v4405
        %v4433 = vmul.f32 %v4397, %v4405
        %v4434 = vmul.f32 %v4398, %v4405
        %v4435 = vmul.f32 %v4399, %v4405
        %v4436 = vmul.f32 %v4400, %v4405
        %v4437 = vmul.f32 %v4401, %v4405
        %v4438 = vadd.f32 %v4338, %v4406
        %v4439 = vadd.f32 %v4339, %v4407
        %v4440 = vadd.f32 %v4340, %v4408
        %v4441 = vadd.f32 %v4341, %v4409
        %v4442 = vadd.f32 %v4342, %v4410
        %v4443 = vadd.f32 %v4343, %v4411
        %v4444 = vadd.f32 %v4344, %v4412
        %v4445 = vadd.f32 %v4345, %v4413
        %v4446 = vadd.f32 %v4346, %v4414
        %v4447 = vadd.f32 %v4347, %v4415
        %v4448 = vadd.f32 %v4348, %v4416
        %v4449 = vadd.f32 %v4349, %v4417
        %v4450 = vadd.f32 %v4350, %v4418
        %v4451 = vadd.f32 %v4351, %v4419
        %v4452 = vadd.f32 %v4352, %v4420
        %v4453 = vadd.f32 %v4353, %v4421
        %v4454 = vadd.f32 %v4354, %v4422
        %v4455 = vadd.f32 %v4355, %v4423
        %v4456 = vadd.f32 %v4356, %v4424
        %v4457 = vadd.f32 %v4357, %v4425
        %v4458 = vadd.f32 %v4358, %v4426
        %v4459 = vadd.f32 %v4359, %v4427
        %v4460 = vadd.f32 %v4360, %v4428
        %v4461 = vadd.f32 %v4361, %v4429
        %v4462 = vadd.f32 %v4362, %v4430
        %v4463 = vadd.f32 %v4363, %v4431
        %v4464 = vadd.f32 %v4364, %v4432
        %v4465 = vadd.f32 %v4365, %v4433
        %v4466 = vadd.f32 %v4366, %v4434
        %v4467 = vadd.f32 %v4367, %v4435
        %v4468 = vadd.f32 %v4368, %v4436
        %v4469 = vadd.f32 %v4369, %v4437
        %s4470 = scalar_lea.vmem [#allocation2], 888
        %v4471 = vld [vmem:[%s4470] sm:$0xff]
        %v4472 = vld [vmem:[%s4470 + $0x8] sm:$0xff]
        %v4473 = vld [vmem:[%s4470 + $0x18] sm:$0xff]
        %v4474 = vld [vmem:[%s4470 + $0x20] sm:$0xff]
        %v4475 = vld [vmem:[%s4470 + $0x30] sm:$0xff]
        %v4476 = vld [vmem:[%s4470 + $0x38] sm:$0xff]
        %v4477 = vld [vmem:[%s4470 + $0x48] sm:$0xff]
        %v4478 = vld [vmem:[%s4470 + $0x50] sm:$0xff]
        %v4479 = vld [vmem:[%s4470 + $0x60] sm:$0xff]
        %v4480 = vld [vmem:[%s4470 + $0x68] sm:$0xff]
        %v4481 = vld [vmem:[%s4470 + $0x78] sm:$0xff]
        %v4482 = vld [vmem:[%s4470 + $0x80] sm:$0xff]
        %v4483 = vld [vmem:[%s4470 + $0x90] sm:$0xff]
        %v4484 = vld [vmem:[%s4470 + $0x98] sm:$0xff]
        %v4485 = vld [vmem:[%s4470 + $0xa8] sm:$0xff]
        %v4486 = vld [vmem:[%s4470 + $0xb0] sm:$0xff]
        %v4487 = vld [vmem:[%s4470 + $0xc0] sm:$0xff]
        %v4488 = vld [vmem:[%s4470 + $0xc8] sm:$0xff]
        %v4489 = vld [vmem:[%s4470 + $0xd8] sm:$0xff]
        %v4490 = vld [vmem:[%s4470 + $0xe0] sm:$0xff]
        %v4491 = vld [vmem:[%s4470 + $0xf0] sm:$0xff]
        %v4492 = vld [vmem:[%s4470 + $0xf8] sm:$0xff]
        %v4493 = vld [vmem:[%s4470 + $0x108] sm:$0xff]
        %v4494 = vld [vmem:[%s4470 + $0x110] sm:$0xff]
        %v4495 = vld [vmem:[%s4470 + $0x120] sm:$0xff]
        %v4496 = vld [vmem:[%s4470 + $0x128] sm:$0xff]
        %v4497 = vld [vmem:[%s4470 + $0x138] sm:$0xff]
        %v4498 = vld [vmem:[%s4470 + $0x140] sm:$0xff]
        %v4499 = vld [vmem:[%s4470 + $0x150] sm:$0xff]
        %v4500 = vld [vmem:[%s4470 + $0x158] sm:$0xff]
        %v4501 = vld [vmem:[%s4470 + $0x168] sm:$0xff]
        %v4502 = vld [vmem:[%s4470 + $0x170] sm:$0xff]
        %v4503 = vlaneseq
        %v4504 = vshrl.u32 %v4503, 7
        %v4505 = vsub.s32 3, %v4504
        %v4506 = vrot.slane %v4168, %v4505
        %v4507 = vmul.f32 %v4471, %v4506
        %v4508 = vmul.f32 %v4472, %v4506
        %v4509 = vmul.f32 %v4473, %v4506
        %v4510 = vmul.f32 %v4474, %v4506
        %v4511 = vmul.f32 %v4475, %v4506
        %v4512 = vmul.f32 %v4476, %v4506
        %v4513 = vmul.f32 %v4477, %v4506
        %v4514 = vmul.f32 %v4478, %v4506
        %v4515 = vmul.f32 %v4479, %v4506
        %v4516 = vmul.f32 %v4480, %v4506
        %v4517 = vmul.f32 %v4481, %v4506
        %v4518 = vmul.f32 %v4482, %v4506
        %v4519 = vmul.f32 %v4483, %v4506
        %v4520 = vmul.f32 %v4484, %v4506
        %v4521 = vmul.f32 %v4485, %v4506
        %v4522 = vmul.f32 %v4486, %v4506
        %v4523 = vmul.f32 %v4487, %v4506
        %v4524 = vmul.f32 %v4488, %v4506
        %v4525 = vmul.f32 %v4489, %v4506
        %v4526 = vmul.f32 %v4490, %v4506
        %v4527 = vmul.f32 %v4491, %v4506
        %v4528 = vmul.f32 %v4492, %v4506
        %v4529 = vmul.f32 %v4493, %v4506
        %v4530 = vmul.f32 %v4494, %v4506
        %v4531 = vmul.f32 %v4495, %v4506
        %v4532 = vmul.f32 %v4496, %v4506
        %v4533 = vmul.f32 %v4497, %v4506
        %v4534 = vmul.f32 %v4498, %v4506
        %v4535 = vmul.f32 %v4499, %v4506
        %v4536 = vmul.f32 %v4500, %v4506
        %v4537 = vmul.f32 %v4501, %v4506
        %v4538 = vmul.f32 %v4502, %v4506
        %v4539 = vadd.f32 %v4438, %v4507
        %v4540 = vadd.f32 %v4439, %v4508
        %v4541 = vadd.f32 %v4440, %v4509
        %v4542 = vadd.f32 %v4441, %v4510
        %v4543 = vadd.f32 %v4442, %v4511
        %v4544 = vadd.f32 %v4443, %v4512
        %v4545 = vadd.f32 %v4444, %v4513
        %v4546 = vadd.f32 %v4445, %v4514
        %v4547 = vadd.f32 %v4446, %v4515
        %v4548 = vadd.f32 %v4447, %v4516
        %v4549 = vadd.f32 %v4448, %v4517
        %v4550 = vadd.f32 %v4449, %v4518
        %v4551 = vadd.f32 %v4450, %v4519
        %v4552 = vadd.f32 %v4451, %v4520
        %v4553 = vadd.f32 %v4452, %v4521
        %v4554 = vadd.f32 %v4453, %v4522
        %v4555 = vadd.f32 %v4454, %v4523
        %v4556 = vadd.f32 %v4455, %v4524
        %v4557 = vadd.f32 %v4456, %v4525
        %v4558 = vadd.f32 %v4457, %v4526
        %v4559 = vadd.f32 %v4458, %v4527
        %v4560 = vadd.f32 %v4459, %v4528
        %v4561 = vadd.f32 %v4460, %v4529
        %v4562 = vadd.f32 %v4461, %v4530
        %v4563 = vadd.f32 %v4462, %v4531
        %v4564 = vadd.f32 %v4463, %v4532
        %v4565 = vadd.f32 %v4464, %v4533
        %v4566 = vadd.f32 %v4465, %v4534
        %v4567 = vadd.f32 %v4466, %v4535
        %v4568 = vadd.f32 %v4467, %v4536
        %v4569 = vadd.f32 %v4468, %v4537
        %v4570 = vadd.f32 %v4469, %v4538
        %v4571 = vld [vmem:[%s4470 + $0x1] sm:$0xff]
        %v4572 = vld [vmem:[%s4470 + $0x9] sm:$0xff]
        %v4573 = vld [vmem:[%s4470 + $0x19] sm:$0xff]
        %v4574 = vld [vmem:[%s4470 + $0x21] sm:$0xff]
        %v4575 = vld [vmem:[%s4470 + $0x31] sm:$0xff]
        %v4576 = vld [vmem:[%s4470 + $0x39] sm:$0xff]
        %v4577 = vld [vmem:[%s4470 + $0x49] sm:$0xff]
        %v4578 = vld [vmem:[%s4470 + $0x51] sm:$0xff]
        %v4579 = vld [vmem:[%s4470 + $0x61] sm:$0xff]
        %v4580 = vld [vmem:[%s4470 + $0x69] sm:$0xff]
        %v4581 = vld [vmem:[%s4470 + $0x79] sm:$0xff]
        %v4582 = vld [vmem:[%s4470 + $0x81] sm:$0xff]
        %v4583 = vld [vmem:[%s4470 + $0x91] sm:$0xff]
        %v4584 = vld [vmem:[%s4470 + $0x99] sm:$0xff]
        %v4585 = vld [vmem:[%s4470 + $0xa9] sm:$0xff]
        %v4586 = vld [vmem:[%s4470 + $0xb1] sm:$0xff]
        %v4587 = vld [vmem:[%s4470 + $0xc1] sm:$0xff]
        %v4588 = vld [vmem:[%s4470 + $0xc9] sm:$0xff]
        %v4589 = vld [vmem:[%s4470 + $0xd9] sm:$0xff]
        %v4590 = vld [vmem:[%s4470 + $0xe1] sm:$0xff]
        %v4591 = vld [vmem:[%s4470 + $0xf1] sm:$0xff]
        %v4592 = vld [vmem:[%s4470 + $0xf9] sm:$0xff]
        %v4593 = vld [vmem:[%s4470 + $0x109] sm:$0xff]
        %v4594 = vld [vmem:[%s4470 + $0x111] sm:$0xff]
        %v4595 = vld [vmem:[%s4470 + $0x121] sm:$0xff]
        %v4596 = vld [vmem:[%s4470 + $0x129] sm:$0xff]
        %v4597 = vld [vmem:[%s4470 + $0x139] sm:$0xff]
        %v4598 = vld [vmem:[%s4470 + $0x141] sm:$0xff]
        %v4599 = vld [vmem:[%s4470 + $0x151] sm:$0xff]
        %v4600 = vld [vmem:[%s4470 + $0x159] sm:$0xff]
        %v4601 = vld [vmem:[%s4470 + $0x169] sm:$0xff]
        %v4602 = vld [vmem:[%s4470 + $0x171] sm:$0xff]
        %v4603 = vlaneseq
        %v4604 = vshrl.u32 %v4603, 7
        %v4605 = vsub.s32 4, %v4604
        %v4606 = vrot.slane %v4168, %v4605
        %v4607 = vmul.f32 %v4571, %v4606
        %v4608 = vmul.f32 %v4572, %v4606
        %v4609 = vmul.f32 %v4573, %v4606
        %v4610 = vmul.f32 %v4574, %v4606
        %v4611 = vmul.f32 %v4575, %v4606
        %v4612 = vmul.f32 %v4576, %v4606
        %v4613 = vmul.f32 %v4577, %v4606
        %v4614 = vmul.f32 %v4578, %v4606
        %v4615 = vmul.f32 %v4579, %v4606
        %v4616 = vmul.f32 %v4580, %v4606
        %v4617 = vmul.f32 %v4581, %v4606
        %v4618 = vmul.f32 %v4582, %v4606
        %v4619 = vmul.f32 %v4583, %v4606
        %v4620 = vmul.f32 %v4584, %v4606
        %v4621 = vmul.f32 %v4585, %v4606
        %v4622 = vmul.f32 %v4586, %v4606
        %v4623 = vmul.f32 %v4587, %v4606
        %v4624 = vmul.f32 %v4588, %v4606
        %v4625 = vmul.f32 %v4589, %v4606
        %v4626 = vmul.f32 %v4590, %v4606
        %v4627 = vmul.f32 %v4591, %v4606
        %v4628 = vmul.f32 %v4592, %v4606
        %v4629 = vmul.f32 %v4593, %v4606
        %v4630 = vmul.f32 %v4594, %v4606
        %v4631 = vmul.f32 %v4595, %v4606
        %v4632 = vmul.f32 %v4596, %v4606
        %v4633 = vmul.f32 %v4597, %v4606
        %v4634 = vmul.f32 %v4598, %v4606
        %v4635 = vmul.f32 %v4599, %v4606
        %v4636 = vmul.f32 %v4600, %v4606
        %v4637 = vmul.f32 %v4601, %v4606
        %v4638 = vmul.f32 %v4602, %v4606
        %v4639 = vadd.f32 %v4539, %v4607
        %v4640 = vadd.f32 %v4540, %v4608
        %v4641 = vadd.f32 %v4541, %v4609
        %v4642 = vadd.f32 %v4542, %v4610
        %v4643 = vadd.f32 %v4543, %v4611
        %v4644 = vadd.f32 %v4544, %v4612
        %v4645 = vadd.f32 %v4545, %v4613
        %v4646 = vadd.f32 %v4546, %v4614
        %v4647 = vadd.f32 %v4547, %v4615
        %v4648 = vadd.f32 %v4548, %v4616
        %v4649 = vadd.f32 %v4549, %v4617
        %v4650 = vadd.f32 %v4550, %v4618
        %v4651 = vadd.f32 %v4551, %v4619
        %v4652 = vadd.f32 %v4552, %v4620
        %v4653 = vadd.f32 %v4553, %v4621
        %v4654 = vadd.f32 %v4554, %v4622
        %v4655 = vadd.f32 %v4555, %v4623
        %v4656 = vadd.f32 %v4556, %v4624
        %v4657 = vadd.f32 %v4557, %v4625
        %v4658 = vadd.f32 %v4558, %v4626
        %v4659 = vadd.f32 %v4559, %v4627
        %v4660 = vadd.f32 %v4560, %v4628
        %v4661 = vadd.f32 %v4561, %v4629
        %v4662 = vadd.f32 %v4562, %v4630
        %v4663 = vadd.f32 %v4563, %v4631
        %v4664 = vadd.f32 %v4564, %v4632
        %v4665 = vadd.f32 %v4565, %v4633
        %v4666 = vadd.f32 %v4566, %v4634
        %v4667 = vadd.f32 %v4567, %v4635
        %v4668 = vadd.f32 %v4568, %v4636
        %v4669 = vadd.f32 %v4569, %v4637
        %v4670 = vadd.f32 %v4570, %v4638
        %v4671 = vld [vmem:[%s4470 + $0x2] sm:$0xff]
        %v4672 = vld [vmem:[%s4470 + $0xa] sm:$0xff]
        %v4673 = vld [vmem:[%s4470 + $0x1a] sm:$0xff]
        %v4674 = vld [vmem:[%s4470 + $0x22] sm:$0xff]
        %v4675 = vld [vmem:[%s4470 + $0x32] sm:$0xff]
        %v4676 = vld [vmem:[%s4470 + $0x3a] sm:$0xff]
        %v4677 = vld [vmem:[%s4470 + $0x4a] sm:$0xff]
        %v4678 = vld [vmem:[%s4470 + $0x52] sm:$0xff]
        %v4679 = vld [vmem:[%s4470 + $0x62] sm:$0xff]
        %v4680 = vld [vmem:[%s4470 + $0x6a] sm:$0xff]
        %v4681 = vld [vmem:[%s4470 + $0x7a] sm:$0xff]
        %v4682 = vld [vmem:[%s4470 + $0x82] sm:$0xff]
        %v4683 = vld [vmem:[%s4470 + $0x92] sm:$0xff]
        %v4684 = vld [vmem:[%s4470 + $0x9a] sm:$0xff]
        %v4685 = vld [vmem:[%s4470 + $0xaa] sm:$0xff]
        %v4686 = vld [vmem:[%s4470 + $0xb2] sm:$0xff]
        %v4687 = vld [vmem:[%s4470 + $0xc2] sm:$0xff]
        %v4688 = vld [vmem:[%s4470 + $0xca] sm:$0xff]
        %v4689 = vld [vmem:[%s4470 + $0xda] sm:$0xff]
        %v4690 = vld [vmem:[%s4470 + $0xe2] sm:$0xff]
        %v4691 = vld [vmem:[%s4470 + $0xf2] sm:$0xff]
        %v4692 = vld [vmem:[%s4470 + $0xfa] sm:$0xff]
        %v4693 = vld [vmem:[%s4470 + $0x10a] sm:$0xff]
        %v4694 = vld [vmem:[%s4470 + $0x112] sm:$0xff]
        %v4695 = vld [vmem:[%s4470 + $0x122] sm:$0xff]
        %v4696 = vld [vmem:[%s4470 + $0x12a] sm:$0xff]
        %v4697 = vld [vmem:[%s4470 + $0x13a] sm:$0xff]
        %v4698 = vld [vmem:[%s4470 + $0x142] sm:$0xff]
        %v4699 = vld [vmem:[%s4470 + $0x152] sm:$0xff]
        %v4700 = vld [vmem:[%s4470 + $0x15a] sm:$0xff]
        %v4701 = vld [vmem:[%s4470 + $0x16a] sm:$0xff]
        %v4702 = vld [vmem:[%s4470 + $0x172] sm:$0xff]
        %v4703 = vlaneseq
        %v4704 = vshrl.u32 %v4703, 7
        %v4705 = vsub.s32 5, %v4704
        %v4706 = vrot.slane %v4168, %v4705
        %v4707 = vmul.f32 %v4671, %v4706
        %v4708 = vmul.f32 %v4672, %v4706
        %v4709 = vmul.f32 %v4673, %v4706
        %v4710 = vmul.f32 %v4674, %v4706
        %v4711 = vmul.f32 %v4675, %v4706
        %v4712 = vmul.f32 %v4676, %v4706
        %v4713 = vmul.f32 %v4677, %v4706
        %v4714 = vmul.f32 %v4678, %v4706
        %v4715 = vmul.f32 %v4679, %v4706
        %v4716 = vmul.f32 %v4680, %v4706
        %v4717 = vmul.f32 %v4681, %v4706
        %v4718 = vmul.f32 %v4682, %v4706
        %v4719 = vmul.f32 %v4683, %v4706
        %v4720 = vmul.f32 %v4684, %v4706
        %v4721 = vmul.f32 %v4685, %v4706
        %v4722 = vmul.f32 %v4686, %v4706
        %v4723 = vmul.f32 %v4687, %v4706
        %v4724 = vmul.f32 %v4688, %v4706
        %v4725 = vmul.f32 %v4689, %v4706
        %v4726 = vmul.f32 %v4690, %v4706
        %v4727 = vmul.f32 %v4691, %v4706
        %v4728 = vmul.f32 %v4692, %v4706
        %v4729 = vmul.f32 %v4693, %v4706
        %v4730 = vmul.f32 %v4694, %v4706
        %v4731 = vmul.f32 %v4695, %v4706
        %v4732 = vmul.f32 %v4696, %v4706
        %v4733 = vmul.f32 %v4697, %v4706
        %v4734 = vmul.f32 %v4698, %v4706
        %v4735 = vmul.f32 %v4699, %v4706
        %v4736 = vmul.f32 %v4700, %v4706
        %v4737 = vmul.f32 %v4701, %v4706
        %v4738 = vmul.f32 %v4702, %v4706
        %v4739 = vadd.f32 %v4639, %v4707
        %v4740 = vadd.f32 %v4640, %v4708
        %v4741 = vadd.f32 %v4641, %v4709
        %v4742 = vadd.f32 %v4642, %v4710
        %v4743 = vadd.f32 %v4643, %v4711
        %v4744 = vadd.f32 %v4644, %v4712
        %v4745 = vadd.f32 %v4645, %v4713
        %v4746 = vadd.f32 %v4646, %v4714
        %v4747 = vadd.f32 %v4647, %v4715
        %v4748 = vadd.f32 %v4648, %v4716
        %v4749 = vadd.f32 %v4649, %v4717
        %v4750 = vadd.f32 %v4650, %v4718
        %v4751 = vadd.f32 %v4651, %v4719
        %v4752 = vadd.f32 %v4652, %v4720
        %v4753 = vadd.f32 %v4653, %v4721
        %v4754 = vadd.f32 %v4654, %v4722
        %v4755 = vadd.f32 %v4655, %v4723
        %v4756 = vadd.f32 %v4656, %v4724
        %v4757 = vadd.f32 %v4657, %v4725
        %v4758 = vadd.f32 %v4658, %v4726
        %v4759 = vadd.f32 %v4659, %v4727
        %v4760 = vadd.f32 %v4660, %v4728
        %v4761 = vadd.f32 %v4661, %v4729
        %v4762 = vadd.f32 %v4662, %v4730
        %v4763 = vadd.f32 %v4663, %v4731
        %v4764 = vadd.f32 %v4664, %v4732
        %v4765 = vadd.f32 %v4665, %v4733
        %v4766 = vadd.f32 %v4666, %v4734
        %v4767 = vadd.f32 %v4667, %v4735
        %v4768 = vadd.f32 %v4668, %v4736
        %v4769 = vadd.f32 %v4669, %v4737
        %v4770 = vadd.f32 %v4670, %v4738
        %s4771 = scalar_lea.vmem [#allocation2], 912
        %v4772 = vld [vmem:[%s4771] sm:$0xff]
        %v4773 = vld [vmem:[%s4771 + $0x8] sm:$0xff]
        %v4774 = vld [vmem:[%s4771 + $0x18] sm:$0xff]
        %v4775 = vld [vmem:[%s4771 + $0x20] sm:$0xff]
        %v4776 = vld [vmem:[%s4771 + $0x30] sm:$0xff]
        %v4777 = vld [vmem:[%s4771 + $0x38] sm:$0xff]
        %v4778 = vld [vmem:[%s4771 + $0x48] sm:$0xff]
        %v4779 = vld [vmem:[%s4771 + $0x50] sm:$0xff]
        %v4780 = vld [vmem:[%s4771 + $0x60] sm:$0xff]
        %v4781 = vld [vmem:[%s4771 + $0x68] sm:$0xff]
        %v4782 = vld [vmem:[%s4771 + $0x78] sm:$0xff]
        %v4783 = vld [vmem:[%s4771 + $0x80] sm:$0xff]
        %v4784 = vld [vmem:[%s4771 + $0x90] sm:$0xff]
        %v4785 = vld [vmem:[%s4771 + $0x98] sm:$0xff]
        %v4786 = vld [vmem:[%s4771 + $0xa8] sm:$0xff]
        %v4787 = vld [vmem:[%s4771 + $0xb0] sm:$0xff]
        %v4788 = vld [vmem:[%s4771 + $0xc0] sm:$0xff]
        %v4789 = vld [vmem:[%s4771 + $0xc8] sm:$0xff]
        %v4790 = vld [vmem:[%s4771 + $0xd8] sm:$0xff]
        %v4791 = vld [vmem:[%s4771 + $0xe0] sm:$0xff]
        %v4792 = vld [vmem:[%s4771 + $0xf0] sm:$0xff]
        %v4793 = vld [vmem:[%s4771 + $0xf8] sm:$0xff]
        %v4794 = vld [vmem:[%s4771 + $0x108] sm:$0xff]
        %v4795 = vld [vmem:[%s4771 + $0x110] sm:$0xff]
        %v4796 = vld [vmem:[%s4771 + $0x120] sm:$0xff]
        %v4797 = vld [vmem:[%s4771 + $0x128] sm:$0xff]
        %v4798 = vld [vmem:[%s4771 + $0x138] sm:$0xff]
        %v4799 = vld [vmem:[%s4771 + $0x140] sm:$0xff]
        %v4800 = vld [vmem:[%s4771 + $0x150] sm:$0xff]
        %v4801 = vld [vmem:[%s4771 + $0x158] sm:$0xff]
        %v4802 = vld [vmem:[%s4771 + $0x168] sm:$0xff]
        %v4803 = vld [vmem:[%s4771 + $0x170] sm:$0xff]
        %v4804 = vlaneseq
        %v4805 = vshrl.u32 %v4804, 7
        %v4806 = vsub.s32 6, %v4805
        %v4807 = vrot.slane %v4168, %v4806
        %v4808 = vmul.f32 %v4772, %v4807
        %v4809 = vmul.f32 %v4773, %v4807
        %v4810 = vmul.f32 %v4774, %v4807
        %v4811 = vmul.f32 %v4775, %v4807
        %v4812 = vmul.f32 %v4776, %v4807
        %v4813 = vmul.f32 %v4777, %v4807
        %v4814 = vmul.f32 %v4778, %v4807
        %v4815 = vmul.f32 %v4779, %v4807
        %v4816 = vmul.f32 %v4780, %v4807
        %v4817 = vmul.f32 %v4781, %v4807
        %v4818 = vmul.f32 %v4782, %v4807
        %v4819 = vmul.f32 %v4783, %v4807
        %v4820 = vmul.f32 %v4784, %v4807
        %v4821 = vmul.f32 %v4785, %v4807
        %v4822 = vmul.f32 %v4786, %v4807
        %v4823 = vmul.f32 %v4787, %v4807
        %v4824 = vmul.f32 %v4788, %v4807
        %v4825 = vmul.f32 %v4789, %v4807
        %v4826 = vmul.f32 %v4790, %v4807
        %v4827 = vmul.f32 %v4791, %v4807
        %v4828 = vmul.f32 %v4792, %v4807
        %v4829 = vmul.f32 %v4793, %v4807
        %v4830 = vmul.f32 %v4794, %v4807
        %v4831 = vmul.f32 %v4795, %v4807
        %v4832 = vmul.f32 %v4796, %v4807
        %v4833 = vmul.f32 %v4797, %v4807
        %v4834 = vmul.f32 %v4798, %v4807
        %v4835 = vmul.f32 %v4799, %v4807
        %v4836 = vmul.f32 %v4800, %v4807
        %v4837 = vmul.f32 %v4801, %v4807
        %v4838 = vmul.f32 %v4802, %v4807
        %v4839 = vmul.f32 %v4803, %v4807
        %v4840 = vadd.f32 %v4739, %v4808
        %v4841 = vadd.f32 %v4740, %v4809
        %v4842 = vadd.f32 %v4741, %v4810
        %v4843 = vadd.f32 %v4742, %v4811
        %v4844 = vadd.f32 %v4743, %v4812
        %v4845 = vadd.f32 %v4744, %v4813
        %v4846 = vadd.f32 %v4745, %v4814
        %v4847 = vadd.f32 %v4746, %v4815
        %v4848 = vadd.f32 %v4747, %v4816
        %v4849 = vadd.f32 %v4748, %v4817
        %v4850 = vadd.f32 %v4749, %v4818
        %v4851 = vadd.f32 %v4750, %v4819
        %v4852 = vadd.f32 %v4751, %v4820
        %v4853 = vadd.f32 %v4752, %v4821
        %v4854 = vadd.f32 %v4753, %v4822
        %v4855 = vadd.f32 %v4754, %v4823
        %v4856 = vadd.f32 %v4755, %v4824
        %v4857 = vadd.f32 %v4756, %v4825
        %v4858 = vadd.f32 %v4757, %v4826
        %v4859 = vadd.f32 %v4758, %v4827
        %v4860 = vadd.f32 %v4759, %v4828
        %v4861 = vadd.f32 %v4760, %v4829
        %v4862 = vadd.f32 %v4761, %v4830
        %v4863 = vadd.f32 %v4762, %v4831
        %v4864 = vadd.f32 %v4763, %v4832
        %v4865 = vadd.f32 %v4764, %v4833
        %v4866 = vadd.f32 %v4765, %v4834
        %v4867 = vadd.f32 %v4766, %v4835
        %v4868 = vadd.f32 %v4767, %v4836
        %v4869 = vadd.f32 %v4768, %v4837
        %v4870 = vadd.f32 %v4769, %v4838
        %v4871 = vadd.f32 %v4770, %v4839
        %v4872 = vld [vmem:[%s4771 + $0x1] sm:$0xff]
        %v4873 = vld [vmem:[%s4771 + $0x9] sm:$0xff]
        %v4874 = vld [vmem:[%s4771 + $0x19] sm:$0xff]
        %v4875 = vld [vmem:[%s4771 + $0x21] sm:$0xff]
        %v4876 = vld [vmem:[%s4771 + $0x31] sm:$0xff]
        %v4877 = vld [vmem:[%s4771 + $0x39] sm:$0xff]
        %v4878 = vld [vmem:[%s4771 + $0x49] sm:$0xff]
        %v4879 = vld [vmem:[%s4771 + $0x51] sm:$0xff]
        %v4880 = vld [vmem:[%s4771 + $0x61] sm:$0xff]
        %v4881 = vld [vmem:[%s4771 + $0x69] sm:$0xff]
        %v4882 = vld [vmem:[%s4771 + $0x79] sm:$0xff]
        %v4883 = vld [vmem:[%s4771 + $0x81] sm:$0xff]
        %v4884 = vld [vmem:[%s4771 + $0x91] sm:$0xff]
        %v4885 = vld [vmem:[%s4771 + $0x99] sm:$0xff]
        %v4886 = vld [vmem:[%s4771 + $0xa9] sm:$0xff]
        %v4887 = vld [vmem:[%s4771 + $0xb1] sm:$0xff]
        %v4888 = vld [vmem:[%s4771 + $0xc1] sm:$0xff]
        %v4889 = vld [vmem:[%s4771 + $0xc9] sm:$0xff]
        %v4890 = vld [vmem:[%s4771 + $0xd9] sm:$0xff]
        %v4891 = vld [vmem:[%s4771 + $0xe1] sm:$0xff]
        %v4892 = vld [vmem:[%s4771 + $0xf1] sm:$0xff]
        %v4893 = vld [vmem:[%s4771 + $0xf9] sm:$0xff]
        %v4894 = vld [vmem:[%s4771 + $0x109] sm:$0xff]
        %v4895 = vld [vmem:[%s4771 + $0x111] sm:$0xff]
        %v4896 = vld [vmem:[%s4771 + $0x121] sm:$0xff]
        %v4897 = vld [vmem:[%s4771 + $0x129] sm:$0xff]
        %v4898 = vld [vmem:[%s4771 + $0x139] sm:$0xff]
        %v4899 = vld [vmem:[%s4771 + $0x141] sm:$0xff]
        %v4900 = vld [vmem:[%s4771 + $0x151] sm:$0xff]
        %v4901 = vld [vmem:[%s4771 + $0x159] sm:$0xff]
        %v4902 = vld [vmem:[%s4771 + $0x169] sm:$0xff]
        %v4903 = vld [vmem:[%s4771 + $0x171] sm:$0xff]
        %v4904 = vlaneseq
        %v4905 = vshrl.u32 %v4904, 7
        %v4906 = vsub.s32 7, %v4905
        %v4907 = vrot.slane %v4168, %v4906
        %v4908 = vmul.f32 %v4872, %v4907
        %v4909 = vmul.f32 %v4873, %v4907
        %v4910 = vmul.f32 %v4874, %v4907
        %v4911 = vmul.f32 %v4875, %v4907
        %v4912 = vmul.f32 %v4876, %v4907
        %v4913 = vmul.f32 %v4877, %v4907
        %v4914 = vmul.f32 %v4878, %v4907
        %v4915 = vmul.f32 %v4879, %v4907
        %v4916 = vmul.f32 %v4880, %v4907
        %v4917 = vmul.f32 %v4881, %v4907
        %v4918 = vmul.f32 %v4882, %v4907
        %v4919 = vmul.f32 %v4883, %v4907
        %v4920 = vmul.f32 %v4884, %v4907
        %v4921 = vmul.f32 %v4885, %v4907
        %v4922 = vmul.f32 %v4886, %v4907
        %v4923 = vmul.f32 %v4887, %v4907
        %v4924 = vmul.f32 %v4888, %v4907
        %v4925 = vmul.f32 %v4889, %v4907
        %v4926 = vmul.f32 %v4890, %v4907
        %v4927 = vmul.f32 %v4891, %v4907
        %v4928 = vmul.f32 %v4892, %v4907
        %v4929 = vmul.f32 %v4893, %v4907
        %v4930 = vmul.f32 %v4894, %v4907
        %v4931 = vmul.f32 %v4895, %v4907
        %v4932 = vmul.f32 %v4896, %v4907
        %v4933 = vmul.f32 %v4897, %v4907
        %v4934 = vmul.f32 %v4898, %v4907
        %v4935 = vmul.f32 %v4899, %v4907
        %v4936 = vmul.f32 %v4900, %v4907
        %v4937 = vmul.f32 %v4901, %v4907
        %v4938 = vmul.f32 %v4902, %v4907
        %v4939 = vmul.f32 %v4903, %v4907
        %v4940 = vadd.f32 %v4840, %v4908
        %v4941 = vadd.f32 %v4841, %v4909
        %v4942 = vadd.f32 %v4842, %v4910
        %v4943 = vadd.f32 %v4843, %v4911
        %v4944 = vadd.f32 %v4844, %v4912
        %v4945 = vadd.f32 %v4845, %v4913
        %v4946 = vadd.f32 %v4846, %v4914
        %v4947 = vadd.f32 %v4847, %v4915
        %v4948 = vadd.f32 %v4848, %v4916
        %v4949 = vadd.f32 %v4849, %v4917
        %v4950 = vadd.f32 %v4850, %v4918
        %v4951 = vadd.f32 %v4851, %v4919
        %v4952 = vadd.f32 %v4852, %v4920
        %v4953 = vadd.f32 %v4853, %v4921
        %v4954 = vadd.f32 %v4854, %v4922
        %v4955 = vadd.f32 %v4855, %v4923
        %v4956 = vadd.f32 %v4856, %v4924
        %v4957 = vadd.f32 %v4857, %v4925
        %v4958 = vadd.f32 %v4858, %v4926
        %v4959 = vadd.f32 %v4859, %v4927
        %v4960 = vadd.f32 %v4860, %v4928
        %v4961 = vadd.f32 %v4861, %v4929
        %v4962 = vadd.f32 %v4862, %v4930
        %v4963 = vadd.f32 %v4863, %v4931
        %v4964 = vadd.f32 %v4864, %v4932
        %v4965 = vadd.f32 %v4865, %v4933
        %v4966 = vadd.f32 %v4866, %v4934
        %v4967 = vadd.f32 %v4867, %v4935
        %v4968 = vadd.f32 %v4868, %v4936
        %v4969 = vadd.f32 %v4869, %v4937
        %v4970 = vadd.f32 %v4870, %v4938
        %v4971 = vadd.f32 %v4871, %v4939
        %v4972 = vld [vmem:[%s4771 + $0x2] sm:$0xff]
        %v4973 = vld [vmem:[%s4771 + $0xa] sm:$0xff]
        %v4974 = vld [vmem:[%s4771 + $0x1a] sm:$0xff]
        %v4975 = vld [vmem:[%s4771 + $0x22] sm:$0xff]
        %v4976 = vld [vmem:[%s4771 + $0x32] sm:$0xff]
        %v4977 = vld [vmem:[%s4771 + $0x3a] sm:$0xff]
        %v4978 = vld [vmem:[%s4771 + $0x4a] sm:$0xff]
        %v4979 = vld [vmem:[%s4771 + $0x52] sm:$0xff]
        %v4980 = vld [vmem:[%s4771 + $0x62] sm:$0xff]
        %v4981 = vld [vmem:[%s4771 + $0x6a] sm:$0xff]
        %v4982 = vld [vmem:[%s4771 + $0x7a] sm:$0xff]
        %v4983 = vld [vmem:[%s4771 + $0x82] sm:$0xff]
        %v4984 = vld [vmem:[%s4771 + $0x92] sm:$0xff]
        %v4985 = vld [vmem:[%s4771 + $0x9a] sm:$0xff]
        %v4986 = vld [vmem:[%s4771 + $0xaa] sm:$0xff]
        %v4987 = vld [vmem:[%s4771 + $0xb2] sm:$0xff]
        %v4988 = vld [vmem:[%s4771 + $0xc2] sm:$0xff]
        %v4989 = vld [vmem:[%s4771 + $0xca] sm:$0xff]
        %v4990 = vld [vmem:[%s4771 + $0xda] sm:$0xff]
        %v4991 = vld [vmem:[%s4771 + $0xe2] sm:$0xff]
        %v4992 = vld [vmem:[%s4771 + $0xf2] sm:$0xff]
        %v4993 = vld [vmem:[%s4771 + $0xfa] sm:$0xff]
        %v4994 = vld [vmem:[%s4771 + $0x10a] sm:$0xff]
        %v4995 = vld [vmem:[%s4771 + $0x112] sm:$0xff]
        %v4996 = vld [vmem:[%s4771 + $0x122] sm:$0xff]
        %v4997 = vld [vmem:[%s4771 + $0x12a] sm:$0xff]
        %v4998 = vld [vmem:[%s4771 + $0x13a] sm:$0xff]
        %v4999 = vld [vmem:[%s4771 + $0x142] sm:$0xff]
        %v5000 = vld [vmem:[%s4771 + $0x152] sm:$0xff]
        %v5001 = vld [vmem:[%s4771 + $0x15a] sm:$0xff]
        %v5002 = vld [vmem:[%s4771 + $0x16a] sm:$0xff]
        %v5003 = vld [vmem:[%s4771 + $0x172] sm:$0xff]
        %v5004 = vlaneseq
        %v5005 = vshrl.u32 %v5004, 7
        %v5006 = vsub.s32 0, %v5005
        %v5007 = vrot.slane %v4169, %v5006
        %v5008 = vmul.f32 %v4972, %v5007
        %v5009 = vmul.f32 %v4973, %v5007
        %v5010 = vmul.f32 %v4974, %v5007
        %v5011 = vmul.f32 %v4975, %v5007
        %v5012 = vmul.f32 %v4976, %v5007
        %v5013 = vmul.f32 %v4977, %v5007
        %v5014 = vmul.f32 %v4978, %v5007
        %v5015 = vmul.f32 %v4979, %v5007
        %v5016 = vmul.f32 %v4980, %v5007
        %v5017 = vmul.f32 %v4981, %v5007
        %v5018 = vmul.f32 %v4982, %v5007
        %v5019 = vmul.f32 %v4983, %v5007
        %v5020 = vmul.f32 %v4984, %v5007
        %v5021 = vmul.f32 %v4985, %v5007
        %v5022 = vmul.f32 %v4986, %v5007
        %v5023 = vmul.f32 %v4987, %v5007
        %v5024 = vmul.f32 %v4988, %v5007
        %v5025 = vmul.f32 %v4989, %v5007
        %v5026 = vmul.f32 %v4990, %v5007
        %v5027 = vmul.f32 %v4991, %v5007
        %v5028 = vmul.f32 %v4992, %v5007
        %v5029 = vmul.f32 %v4993, %v5007
        %v5030 = vmul.f32 %v4994, %v5007
        %v5031 = vmul.f32 %v4995, %v5007
        %v5032 = vmul.f32 %v4996, %v5007
        %v5033 = vmul.f32 %v4997, %v5007
        %v5034 = vmul.f32 %v4998, %v5007
        %v5035 = vmul.f32 %v4999, %v5007
        %v5036 = vmul.f32 %v5000, %v5007
        %v5037 = vmul.f32 %v5001, %v5007
        %v5038 = vmul.f32 %v5002, %v5007
        %v5039 = vmul.f32 %v5003, %v5007
        %v5040 = vadd.f32 %v4940, %v5008
        %v5041 = vadd.f32 %v4941, %v5009
        %v5042 = vadd.f32 %v4942, %v5010
        %v5043 = vadd.f32 %v4943, %v5011
        %v5044 = vadd.f32 %v4944, %v5012
        %v5045 = vadd.f32 %v4945, %v5013
        %v5046 = vadd.f32 %v4946, %v5014
        %v5047 = vadd.f32 %v4947, %v5015
        %v5048 = vadd.f32 %v4948, %v5016
        %v5049 = vadd.f32 %v4949, %v5017
        %v5050 = vadd.f32 %v4950, %v5018
        %v5051 = vadd.f32 %v4951, %v5019
        %v5052 = vadd.f32 %v4952, %v5020
        %v5053 = vadd.f32 %v4953, %v5021
        %v5054 = vadd.f32 %v4954, %v5022
        %v5055 = vadd.f32 %v4955, %v5023
        %v5056 = vadd.f32 %v4956, %v5024
        %v5057 = vadd.f32 %v4957, %v5025
        %v5058 = vadd.f32 %v4958, %v5026
        %v5059 = vadd.f32 %v4959, %v5027
        %v5060 = vadd.f32 %v4960, %v5028
        %v5061 = vadd.f32 %v4961, %v5029
        %v5062 = vadd.f32 %v4962, %v5030
        %v5063 = vadd.f32 %v4963, %v5031
        %v5064 = vadd.f32 %v4964, %v5032
        %v5065 = vadd.f32 %v4965, %v5033
        %v5066 = vadd.f32 %v4966, %v5034
        %v5067 = vadd.f32 %v4967, %v5035
        %v5068 = vadd.f32 %v4968, %v5036
        %v5069 = vadd.f32 %v4969, %v5037
        %v5070 = vadd.f32 %v4970, %v5038
        %v5071 = vadd.f32 %v4971, %v5039
        %s5072 = scalar_lea.vmem %s5, 2
        %v5073 = vld [vmem:[%s5072] sm:$0x1]
        %v5075 = vlaneseq
        %v5076 = vshrl.u32 %v5075, 7
        %v5077 = vsub.s32 0, %v5076
        %v5078 = vrot.slane %v5073, %v5077
        %v5080 = vadd.f32 %v5040, %v5078
        %v5081 = vadd.f32 %v5041, %v5078
        %v5082 = vadd.f32 %v5042, %v5078
        %v5083 = vadd.f32 %v5043, %v5078
        %v5084 = vadd.f32 %v5044, %v5078
        %v5085 = vadd.f32 %v5045, %v5078
        %v5086 = vadd.f32 %v5046, %v5078
        %v5087 = vadd.f32 %v5047, %v5078
        %v5088 = vadd.f32 %v5048, %v5078
        %v5089 = vadd.f32 %v5049, %v5078
        %v5090 = vadd.f32 %v5050, %v5078
        %v5091 = vadd.f32 %v5051, %v5078
        %v5092 = vadd.f32 %v5052, %v5078
        %v5093 = vadd.f32 %v5053, %v5078
        %v5094 = vadd.f32 %v5054, %v5078
        %v5095 = vadd.f32 %v5055, %v5078
        %v5096 = vadd.f32 %v5056, %v5078
        %v5097 = vadd.f32 %v5057, %v5078
        %v5098 = vadd.f32 %v5058, %v5078
        %v5099 = vadd.f32 %v5059, %v5078
        %v5100 = vadd.f32 %v5060, %v5078
        %v5101 = vadd.f32 %v5061, %v5078
        %v5102 = vadd.f32 %v5062, %v5078
        %v5103 = vadd.f32 %v5063, %v5078
        %v5104 = vadd.f32 %v5064, %v5078
        %v5105 = vadd.f32 %v5065, %v5078
        %v5106 = vadd.f32 %v5066, %v5078
        %v5107 = vadd.f32 %v5067, %v5078
        %v5108 = vadd.f32 %v5068, %v5078
        %v5109 = vadd.f32 %v5069, %v5078
        %v5110 = vadd.f32 %v5070, %v5078
        %v5111 = vadd.f32 %v5071, %v5078
        %5112 = vxpose.xlu0.b32.start [1/16] %v3190, 128
        %5113 = vxpose.xlu0.b32.cont [2/16] %v3191, 128
        %5114 = vxpose.xlu0.b32.cont [3/16] %v3192, 128
        %5115 = vxpose.xlu0.b32.cont [4/16] %v3193, 128
        %5116 = vxpose.xlu0.b32.cont [5/16] %v3194, 128
        %5117 = vxpose.xlu0.b32.cont [6/16] %v3195, 128
        %5118 = vxpose.xlu0.b32.cont [7/16] %v3196, 128
        %5119 = vxpose.xlu0.b32.cont [8/16] %v3197, 128
        %5120 = vxpose.xlu0.b32.cont [9/16] %v3198, 128
        %5121 = vxpose.xlu0.b32.cont [10/16] %v3199, 128
        %5122 = vxpose.xlu0.b32.cont [11/16] %v3200, 128
        %5123 = vxpose.xlu0.b32.cont [12/16] %v3201, 128
        %5124 = vxpose.xlu0.b32.cont [13/16] %v3202, 128
        %5125 = vxpose.xlu0.b32.cont [14/16] %v3203, 128
        %5126 = vxpose.xlu0.b32.cont [15/16] %v3204, 128
        %5127 = vxpose.xlu0.b32.end [16/16] %v3205, 128
        %v5128 = vpop.trf.xlu0
        %v5129 = vpop.trf.xlu0
        %v5130 = vpop.trf.xlu0
        %v5131 = vpop.trf.xlu0
        %v5132 = vpop.trf.xlu0
        %v5133 = vpop.trf.xlu0
        %v5134 = vpop.trf.xlu0
        %v5135 = vpop.trf.xlu0
        %v5136 = vpop.trf.xlu0
        %v5137 = vpop.trf.xlu0
        %v5138 = vpop.trf.xlu0
        %v5139 = vpop.trf.xlu0
        %v5140 = vpop.trf.xlu0
        %v5141 = vpop.trf.xlu0
        %v5142 = vpop.trf.xlu0
        %v5143 = vpop.trf.xlu0
        %5144 = vxpose.xlu0.b32.start [1/16] %v3206, 128
        %5145 = vxpose.xlu0.b32.cont [2/16] %v3207, 128
        %5146 = vxpose.xlu0.b32.cont [3/16] %v3208, 128
        %5147 = vxpose.xlu0.b32.cont [4/16] %v3209, 128
        %5148 = vxpose.xlu0.b32.cont [5/16] %v3210, 128
        %5149 = vxpose.xlu0.b32.cont [6/16] %v3211, 128
        %5150 = vxpose.xlu0.b32.cont [7/16] %v3212, 128
        %5151 = vxpose.xlu0.b32.cont [8/16] %v3213, 128
        %5152 = vxpose.xlu0.b32.cont [9/16] %v3214, 128
        %5153 = vxpose.xlu0.b32.cont [10/16] %v3215, 128
        %5154 = vxpose.xlu0.b32.cont [11/16] %v3216, 128
        %5155 = vxpose.xlu0.b32.cont [12/16] %v3217, 128
        %5156 = vxpose.xlu0.b32.cont [13/16] %v3218, 128
        %5157 = vxpose.xlu0.b32.cont [14/16] %v3219, 128
        %5158 = vxpose.xlu0.b32.cont [15/16] %v3220, 128
        %5159 = vxpose.xlu0.b32.end [16/16] %v3221, 128
        %v5160 = vpop.trf.xlu0
        %v5161 = vpop.trf.xlu0
        %v5162 = vpop.trf.xlu0
        %v5163 = vpop.trf.xlu0
        %v5164 = vpop.trf.xlu0
        %v5165 = vpop.trf.xlu0
        %v5166 = vpop.trf.xlu0
        %v5167 = vpop.trf.xlu0
        %v5168 = vpop.trf.xlu0
        %v5169 = vpop.trf.xlu0
        %v5170 = vpop.trf.xlu0
        %v5171 = vpop.trf.xlu0
        %v5172 = vpop.trf.xlu0
        %v5173 = vpop.trf.xlu0
        %v5174 = vpop.trf.xlu0
        %v5175 = vpop.trf.xlu0
        %v5176 = vmul.f32 %v5128, %v5128
        %v5177 = vmul.f32 %v5160, %v5160
        %v5178 = vmul.f32 %v5129, %v5129
        %v5179 = vmul.f32 %v5161, %v5161
        %v5180 = vadd.f32 %v5176, %v5177
        %5181 = vadd.xlane.f32.xlu0 %v5180
        %v5182 = vpop.xlane.xlu0 %5181
        %v5183 = vadd.f32 %v5178, %v5179
        %5184 = vadd.xlane.f32.xlu0 %v5183
        %v5185 = vpop.xlane.xlu0 %5184
        %v5186 = vmax.f32 %v5182, 1e-24
        %v5187 = vmax.f32 %v5185, 1e-24
        %v5188 = vrsqrt.pop %v5186
        %v5189 = vrsqrt.pop %v5187
        %v5190 = vmul.f32 %v5128, %v5188
        %v5191 = vmul.f32 %v5160, %v5188
        %v5192 = vmul.f32 %v5129, %v5189
        %v5193 = vmul.f32 %v5161, %v5189
        %v5194 = vmul.f32 %v4135, %v4135
        %v5195 = vmul.f32 %v4136, %v4136
        %v5196 = vmul.f32 %v4137, %v4137
        %v5197 = vmul.f32 %v4138, %v4138
        %v5198 = vmul.f32 %v4139, %v4139
        %v5199 = vmul.f32 %v4140, %v4140
        %v5200 = vmul.f32 %v4141, %v4141
        %v5201 = vmul.f32 %v4142, %v4142
        %v5202 = vmul.f32 %v4143, %v4143
        %v5203 = vmul.f32 %v4144, %v4144
        %v5204 = vmul.f32 %v4145, %v4145
        %v5205 = vmul.f32 %v4146, %v4146
        %v5206 = vmul.f32 %v4147, %v4147
        %v5207 = vmul.f32 %v4148, %v4148
        %v5208 = vmul.f32 %v4149, %v4149
        %v5209 = vmul.f32 %v4150, %v4150
        %v5210 = vmul.f32 %v4151, %v4151
        %v5211 = vmul.f32 %v4152, %v4152
        %v5212 = vmul.f32 %v4153, %v4153
        %v5213 = vmul.f32 %v4154, %v4154
        %v5214 = vmul.f32 %v4155, %v4155
        %v5215 = vmul.f32 %v4156, %v4156
        %v5216 = vmul.f32 %v4157, %v4157
        %v5217 = vmul.f32 %v4158, %v4158
        %v5218 = vmul.f32 %v4159, %v4159
        %v5219 = vmul.f32 %v4160, %v4160
        %v5220 = vmul.f32 %v4161, %v4161
        %v5221 = vmul.f32 %v4162, %v4162
        %v5222 = vmul.f32 %v4163, %v4163
        %v5223 = vmul.f32 %v4164, %v4164
        %v5224 = vmul.f32 %v4165, %v4165
        %v5225 = vmul.f32 %v4166, %v4166
        %v5226 = vsel %vm475, %v5194, 0.0
        %v5227 = vsel %vm475, %v5195, 0.0
        %v5228 = vadd.f32 %v5226, %v5227
        %v5229 = vsel %vm475, %v5196, 0.0
        %v5230 = vadd.f32 %v5228, %v5229
        %v5231 = vsel %vm475, %v5197, 0.0
        %v5232 = vadd.f32 %v5230, %v5231
        %v5233 = vsel %vm475, %v5198, 0.0
        %v5234 = vadd.f32 %v5232, %v5233
        %v5235 = vsel %vm475, %v5199, 0.0
        %v5236 = vadd.f32 %v5234, %v5235
        %v5237 = vsel %vm475, %v5200, 0.0
        %v5238 = vadd.f32 %v5236, %v5237
        %v5239 = vsel %vm475, %v5201, 0.0
        %v5240 = vadd.f32 %v5238, %v5239
        %v5241 = vsel %vm475, %v5202, 0.0
        %v5242 = vadd.f32 %v5240, %v5241
        %v5243 = vsel %vm475, %v5203, 0.0
        %v5244 = vadd.f32 %v5242, %v5243
        %v5245 = vsel %vm475, %v5204, 0.0
        %v5246 = vadd.f32 %v5244, %v5245
        %v5247 = vsel %vm475, %v5205, 0.0
        %v5248 = vadd.f32 %v5246, %v5247
        %v5249 = vsel %vm475, %v5206, 0.0
        %v5250 = vadd.f32 %v5248, %v5249
        %v5251 = vsel %vm475, %v5207, 0.0
        %v5252 = vadd.f32 %v5250, %v5251
        %v5253 = vsel %vm475, %v5208, 0.0
        %v5254 = vadd.f32 %v5252, %v5253
        %v5255 = vsel %vm475, %v5209, 0.0
        %v5256 = vadd.f32 %v5254, %v5255
        %v5257 = vsel %vm475, %v5210, 0.0
        %v5258 = vadd.f32 %v5256, %v5257
        %v5259 = vsel %vm475, %v5211, 0.0
        %v5260 = vadd.f32 %v5258, %v5259
        %v5261 = vsel %vm475, %v5212, 0.0
        %v5262 = vadd.f32 %v5260, %v5261
        %v5263 = vsel %vm475, %v5213, 0.0
        %v5264 = vadd.f32 %v5262, %v5263
        %v5265 = vsel %vm475, %v5214, 0.0
        %v5266 = vadd.f32 %v5264, %v5265
        %v5267 = vsel %vm475, %v5215, 0.0
        %v5268 = vadd.f32 %v5266, %v5267
        %v5269 = vsel %vm475, %v5216, 0.0
        %v5270 = vadd.f32 %v5268, %v5269
        %v5271 = vsel %vm475, %v5217, 0.0
        %v5272 = vadd.f32 %v5270, %v5271
        %v5273 = vsel %vm475, %v5218, 0.0
        %v5274 = vadd.f32 %v5272, %v5273
        %v5275 = vsel %vm475, %v5219, 0.0
        %v5276 = vadd.f32 %v5274, %v5275
        %v5277 = vsel %vm475, %v5220, 0.0
        %v5278 = vadd.f32 %v5276, %v5277
        %v5279 = vsel %vm475, %v5221, 0.0
        %v5280 = vadd.f32 %v5278, %v5279
        %v5281 = vsel %vm475, %v5222, 0.0
        %v5282 = vadd.f32 %v5280, %v5281
        %v5283 = vsel %vm475, %v5223, 0.0
        %v5284 = vadd.f32 %v5282, %v5283
        %v5285 = vsel %vm475, %v5224, 0.0
        %v5286 = vadd.f32 %v5284, %v5285
        %v5287 = vsel %vm475, %v5225, 0.0
        %v5288 = vadd.f32 %v5286, %v5287
        %v5289 = vrot.slane %v5288, 4
        %v5290 = vadd.f32 %v5288, %v5289
        %v5291 = vrot.slane %v5290, 2
        %v5292 = vadd.f32 %v5290, %v5291
        %v5293 = vrot.slane %v5292, 1
        %v5294 = vadd.f32 %v5292, %v5293
        %v5295 = vmax.f32 %v5294, 1e-24
        %v5296 = vrsqrt.pop %v5295
        %v5297 = vmul.f32 %v4135, %v5296
        %v5298 = vmul.f32 %v4136, %v5296
        %v5299 = vmul.f32 %v4137, %v5296
        %v5300 = vmul.f32 %v4138, %v5296
        %v5301 = vmul.f32 %v4139, %v5296
        %v5302 = vmul.f32 %v4140, %v5296
        %v5303 = vmul.f32 %v4141, %v5296
        %v5304 = vmul.f32 %v4142, %v5296
        %v5305 = vmul.f32 %v4143, %v5296
        %v5306 = vmul.f32 %v4144, %v5296
        %v5307 = vmul.f32 %v4145, %v5296
        %v5308 = vmul.f32 %v4146, %v5296
        %v5309 = vmul.f32 %v4147, %v5296
        %v5310 = vmul.f32 %v4148, %v5296
        %v5311 = vmul.f32 %v4149, %v5296
        %v5312 = vmul.f32 %v4150, %v5296
        %v5313 = vmul.f32 %v4151, %v5296
        %v5314 = vmul.f32 %v4152, %v5296
        %v5315 = vmul.f32 %v4153, %v5296
        %v5316 = vmul.f32 %v4154, %v5296
        %v5317 = vmul.f32 %v4155, %v5296
        %v5318 = vmul.f32 %v4156, %v5296
        %v5319 = vmul.f32 %v4157, %v5296
        %v5320 = vmul.f32 %v4158, %v5296
        %v5321 = vmul.f32 %v4159, %v5296
        %v5322 = vmul.f32 %v4160, %v5296
        %v5323 = vmul.f32 %v4161, %v5296
        %v5324 = vmul.f32 %v4162, %v5296
        %v5325 = vmul.f32 %v4163, %v5296
        %v5326 = vmul.f32 %v4164, %v5296
        %v5327 = vmul.f32 %v4165, %v5296
        %v5328 = vmul.f32 %v4166, %v5296
        %5329 = vmatprep.subr.mxu0 0.0
        %5330 = vmatpush1.msra.mxu0 %v5297
        %5331 = vmatprep.subr.mxu0 0.0
        %5332 = vmatpush1.msra.mxu0 %v5298
        %5333 = vmatprep.subr.mxu0 0.0
        %5334 = vmatpush1.msra.mxu0 %v5299
        %5335 = vmatprep.subr.mxu0 0.0
        %5336 = vmatpush1.msra.mxu0 %v5300
        %5337 = vmatprep.subr.mxu0 0.0
        %5338 = vmatpush1.msra.mxu0 %v5301
        %5339 = vmatprep.subr.mxu0 0.0
        %5340 = vmatpush1.msra.mxu0 %v5302
        %5341 = vmatprep.subr.mxu0 0.0
        %5342 = vmatpush1.msra.mxu0 %v5303
        %5343 = vmatprep.subr.mxu0 0.0
        %5344 = vmatpush1.msra.mxu0 %v5304
        %5345 = vmatprep.subr.mxu0 0.0
        %5346 = vmatpush1.msra.mxu0 %v5305
        %5347 = vmatprep.subr.mxu0 0.0
        %5348 = vmatpush1.msra.mxu0 %v5306
        %5349 = vmatprep.subr.mxu0 0.0
        %5350 = vmatpush1.msra.mxu0 %v5307
        %5351 = vmatprep.subr.mxu0 0.0
        %5352 = vmatpush1.msra.mxu0 %v5308
        %5353 = vmatprep.subr.mxu0 0.0
        %5354 = vmatpush1.msra.mxu0 %v5309
        %5355 = vmatprep.subr.mxu0 0.0
        %5356 = vmatpush1.msra.mxu0 %v5310
        %5357 = vmatprep.subr.mxu0 0.0
        %5358 = vmatpush1.msra.mxu0 %v5311
        %5359 = vmatprep.subr.mxu0 0.0
        %5360 = vmatpush1.msra.mxu0 %v5312
        %5361 = vmatprep.subr.mxu0 0.0
        %5362 = vmatpush1.msra.mxu0 %v5313
        %5363 = vmatprep.subr.mxu0 0.0
        %5364 = vmatpush1.msra.mxu0 %v5314
        %5365 = vmatprep.subr.mxu0 0.0
        %5366 = vmatpush1.msra.mxu0 %v5315
        %5367 = vmatprep.subr.mxu0 0.0
        %5368 = vmatpush1.msra.mxu0 %v5316
        %5369 = vmatprep.subr.mxu0 0.0
        %5370 = vmatpush1.msra.mxu0 %v5317
        %5371 = vmatprep.subr.mxu0 0.0
        %5372 = vmatpush1.msra.mxu0 %v5318
        %5373 = vmatprep.subr.mxu0 0.0
        %5374 = vmatpush1.msra.mxu0 %v5319
        %5375 = vmatprep.subr.mxu0 0.0
        %5376 = vmatpush1.msra.mxu0 %v5320
        %5377 = vmatprep.subr.mxu0 0.0
        %5378 = vmatpush1.msra.mxu0 %v5321
        %5379 = vmatprep.subr.mxu0 0.0
        %5380 = vmatpush1.msra.mxu0 %v5322
        %5381 = vmatprep.subr.mxu0 0.0
        %5382 = vmatpush1.msra.mxu0 %v5323
        %5383 = vmatprep.subr.mxu0 0.0
        %5384 = vmatpush1.msra.mxu0 %v5324
        %5385 = vmatprep.subr.mxu0 0.0
        %5386 = vmatpush1.msra.mxu0 %v5325
        %5387 = vmatprep.subr.mxu0 0.0
        %5388 = vmatpush1.msra.mxu0 %v5326
        %5389 = vmatprep.subr.mxu0 0.0
        %5390 = vmatpush1.msra.mxu0 %v5327
        %5391 = vmatprep.subr.mxu0 0.0
        %5392 = vmatpush1.msra.mxu0 %v5328
        %5393 = vmatprep.mubr.f32.mxu0 %v5191
        %5394 = vmatmul.mubr.f32.gmra.mrb[0].mxu0 %v5190
        %v5395 = vpop.f32.mrb[0].mxu0
        %v5396 = vadd.f32 0.0, %v5395
        %v5397 = vpop.f32.mrb[0].mxu0
        %5398 = vmatprep.mubr.f32.mxu0 %v5193
        %5399 = vmatmul.mubr.f32.gmra.mrb[0].mxu0 %v5192
        %v5400 = vpop.f32.mrb[0].mxu0
        %v5401 = vadd.f32 0.0, %v5400
        %v5402 = vpop.f32.mrb[0].mxu0
        %5403 = vdwg.mxu0
        %v5404 = vld [vmem:[%s8] sm:$0xff]
        %v5405 = vld [vmem:[%s8 + $0x8] sm:$0xff]
        %5407 = vset.pattern.permute.xlu0 0
        %5408 = vperm.xlu0 %5407, %v5404
        %v5409 = vpop.permute.xlu0 %5408
        %5412 = vset.pattern.permute.xlu0 0
        %5413 = vperm.xlu0 %5412, %v5405
        %v5414 = vpop.permute.xlu0 %5413
        %v5416 = vmul.f32 %v5396, %v5409
        %v5417 = vmul.f32 %v5401, %v5414
        %v5418 = vld [vmem:[%s9] sm:$0xff]
        %v5419 = vld [vmem:[%s9 + $0x8] sm:$0xff]
        %v5420 = vadd.f32 %v5416, %v5418
        %v5421 = vadd.f32 %v5417, %v5419
        %v5422 = vsel %vm475, %v5420, -inf
        %5423 = vmax.xlane.f32.xlu0 %v5422
        %v5424 = vpop.xlane.xlu0 %5423
        %v5425 = vsel %vm475, %v5421, -inf
        %5426 = vmax.xlane.f32.xlu0 %v5425
        %v5427 = vpop.xlane.xlu0 %5426
        %v5428 = vsub.f32 %v5420, %v5424
        %v5429 = vsub.f32 %v5421, %v5427
        %v5430 = vmul.f32 %v5428, 1.442695
        %v5431 = vpow.pop %v5430
        %v5432 = vmul.f32 %v5429, 1.442695
        %v5433 = vpow.pop %v5432
        %v5434 = vsel %vm475, %v5431, 0.0
        %5435 = vadd.xlane.f32.xlu0 %v5434
        %v5436 = vpop.xlane.xlu0 %5435
        %v5437 = vsel %vm475, %v5433, 0.0
        %5438 = vadd.xlane.f32.xlu0 %v5437
        %v5439 = vpop.xlane.xlu0 %5438
        %v5440 = vrcp.pop %v5436
        %v5441 = vrcp.pop %v5439
        %v5442 = vmul.f32 %v5431, %v5440
        %v5443 = vmul.f32 %v5433, %v5441
        %v5445 = vsel %vm475, %v5442, 0
        %v5448 = vsel %vm475, %v5443, 0
        %v5451 = vsel %vm475, %v5080, 0
        %v5454 = vsel %vm475, %v5081, 0
        %v5457 = vsel %vm475, %v5082, 0
        %v5460 = vsel %vm475, %v5083, 0
        %v5463 = vsel %vm475, %v5084, 0
        %v5466 = vsel %vm475, %v5085, 0
        %v5469 = vsel %vm475, %v5086, 0
        %v5472 = vsel %vm475, %v5087, 0
        %v5475 = vsel %vm475, %v5088, 0
        %v5478 = vsel %vm475, %v5089, 0
        %v5481 = vsel %vm475, %v5090, 0
        %v5484 = vsel %vm475, %v5091, 0
        %v5487 = vsel %vm475, %v5092, 0
        %v5490 = vsel %vm475, %v5093, 0
        %v5493 = vsel %vm475, %v5094, 0
        %v5496 = vsel %vm475, %v5095, 0
        %v5499 = vsel %vm475, %v5096, 0
        %v5502 = vsel %vm475, %v5097, 0
        %v5505 = vsel %vm475, %v5098, 0
        %v5508 = vsel %vm475, %v5099, 0
        %v5511 = vsel %vm475, %v5100, 0
        %v5514 = vsel %vm475, %v5101, 0
        %v5517 = vsel %vm475, %v5102, 0
        %v5520 = vsel %vm475, %v5103, 0
        %v5523 = vsel %vm475, %v5104, 0
        %v5526 = vsel %vm475, %v5105, 0
        %v5529 = vsel %vm475, %v5106, 0
        %v5532 = vsel %vm475, %v5107, 0
        %v5535 = vsel %vm475, %v5108, 0
        %v5538 = vsel %vm475, %v5109, 0
        %v5541 = vsel %vm475, %v5110, 0
        %v5544 = vsel %vm475, %v5111, 0
        %5546 = vmatprep.subr.mxu0 0.0
        %5547 = vmatpush1.xpose.msra.mxu0 %v5451
        %5548 = vmatprep.subr.mxu0 0.0
        %5549 = vmatpush1.xpose.msra.mxu0 %v5454
        %5550 = vmatprep.subr.mxu0 0.0
        %5551 = vmatpush1.xpose.msra.mxu0 %v5457
        %5552 = vmatprep.subr.mxu0 0.0
        %5553 = vmatpush1.xpose.msra.mxu0 %v5460
        %5554 = vmatprep.subr.mxu0 0.0
        %5555 = vmatpush1.xpose.msra.mxu0 %v5463
        %5556 = vmatprep.subr.mxu0 0.0
        %5557 = vmatpush1.xpose.msra.mxu0 %v5466
        %5558 = vmatprep.subr.mxu0 0.0
        %5559 = vmatpush1.xpose.msra.mxu0 %v5469
        %5560 = vmatprep.subr.mxu0 0.0
        %5561 = vmatpush1.xpose.msra.mxu0 %v5472
        %5562 = vmatprep.subr.mxu0 0.0
        %5563 = vmatpush1.xpose.msra.mxu0 %v5475
        %5564 = vmatprep.subr.mxu0 0.0
        %5565 = vmatpush1.xpose.msra.mxu0 %v5478
        %5566 = vmatprep.subr.mxu0 0.0
        %5567 = vmatpush1.xpose.msra.mxu0 %v5481
        %5568 = vmatprep.subr.mxu0 0.0
        %5569 = vmatpush1.xpose.msra.mxu0 %v5484
        %5570 = vmatprep.subr.mxu0 0.0
        %5571 = vmatpush1.xpose.msra.mxu0 %v5487
        %5572 = vmatprep.subr.mxu0 0.0
        %5573 = vmatpush1.xpose.msra.mxu0 %v5490
        %5574 = vmatprep.subr.mxu0 0.0
        %5575 = vmatpush1.xpose.msra.mxu0 %v5493
        %5576 = vmatprep.subr.mxu0 0.0
        %5577 = vmatpush1.xpose.msra.mxu0 %v5496
        %5578 = vmatprep.subr.mxu0 0.0
        %5579 = vmatpush1.xpose.msra.mxu0 %v5499
        %5580 = vmatprep.subr.mxu0 0.0
        %5581 = vmatpush1.xpose.msra.mxu0 %v5502
        %5582 = vmatprep.subr.mxu0 0.0
        %5583 = vmatpush1.xpose.msra.mxu0 %v5505
        %5584 = vmatprep.subr.mxu0 0.0
        %5585 = vmatpush1.xpose.msra.mxu0 %v5508
        %5586 = vmatprep.subr.mxu0 0.0
        %5587 = vmatpush1.xpose.msra.mxu0 %v5511
        %5588 = vmatprep.subr.mxu0 0.0
        %5589 = vmatpush1.xpose.msra.mxu0 %v5514
        %5590 = vmatprep.subr.mxu0 0.0
        %5591 = vmatpush1.xpose.msra.mxu0 %v5517
        %5592 = vmatprep.subr.mxu0 0.0
        %5593 = vmatpush1.xpose.msra.mxu0 %v5520
        %5594 = vmatprep.subr.mxu0 0.0
        %5595 = vmatpush1.xpose.msra.mxu0 %v5523
        %5596 = vmatprep.subr.mxu0 0.0
        %5597 = vmatpush1.xpose.msra.mxu0 %v5526
        %5598 = vmatprep.subr.mxu0 0.0
        %5599 = vmatpush1.xpose.msra.mxu0 %v5529
        %5600 = vmatprep.subr.mxu0 0.0
        %5601 = vmatpush1.xpose.msra.mxu0 %v5532
        %5602 = vmatprep.subr.mxu0 0.0
        %5603 = vmatpush1.xpose.msra.mxu0 %v5535
        %5604 = vmatprep.subr.mxu0 0.0
        %5605 = vmatpush1.xpose.msra.mxu0 %v5538
        %5606 = vmatprep.subr.mxu0 0.0
        %5607 = vmatpush1.xpose.msra.mxu0 %v5541
        %5608 = vmatprep.subr.mxu0 0.0
        %5609 = vmatpush1.xpose.msra.mxu0 %v5544
        %5610 = vmatprep.mubr.f32.mxu0 0.0
        %5611 = vmatmul.mubr.f32.gmra.mrb[0].mxu0 %v5445
        %v5612 = vpop.f32.mrb[0].mxu0
        %v5613 = vadd.f32 0.0, %v5612
        %v5614 = vpop.f32.mrb[0].mxu0
        %v5615 = vadd.f32 0.0, %v5614
        %5616 = vmatprep.mubr.f32.mxu0 0.0
        %5617 = vmatmul.mubr.f32.gmra.mrb[0].mxu0 %v5448
        %v5618 = vpop.f32.mrb[0].mxu0
        %v5619 = vadd.f32 0.0, %v5618
        %v5620 = vpop.f32.mrb[0].mxu0
        %v5621 = vadd.f32 0.0, %v5620
        %5622 = vdwg.mxu0
        %v5623 = vld [vmem:[%s6] sm:$0xff]
        %v5624 = vld [vmem:[%s6 + $0x8] sm:$0xff]
        %v5625 = vld [vmem:[%s7] sm:$0xff]
        %v5626 = vld [vmem:[%s7 + $0x8] sm:$0xff]
        %5628 = vset.pattern.permute.xlu0 0
        %5629 = vperm.xlu0 %5628, %v5625
        %v5630 = vpop.permute.xlu0 %5629
        %5633 = vset.pattern.permute.xlu0 0
        %5634 = vperm.xlu0 %5633, %v5626
        %v5635 = vpop.permute.xlu0 %5634
        %v5638 = vsel %vm475, %v5623, 0
        %v5641 = vsel %vm475, %v5624, 0
        %5643 = vmatprep.subr.mxu0 %v5615
        %5644 = vmatpush1.msra.mxu0 %v5613
        %5645 = vmatprep.subr.mxu0 %v5621
        %5646 = vmatpush1.msra.mxu0 %v5619
        %5647 = vmatprep.subr.mxu0 0.0
        %5648 = vmatpush1.msra.mxu0 0.0
        %5649 = vmatprep.subr.mxu0 0.0
        %5650 = vmatpush1.msra.mxu0 0.0
        %5651 = vmatprep.subr.mxu0 0.0
        %5652 = vmatpush1.msra.mxu0 0.0
        %5653 = vmatprep.subr.mxu0 0.0
        %5654 = vmatpush1.msra.mxu0 0.0
        %5655 = vmatprep.subr.mxu0 0.0
        %5656 = vmatpush1.msra.mxu0 0.0
        %5657 = vmatprep.subr.mxu0 0.0
        %5658 = vmatpush1.msra.mxu0 0.0
        %5659 = vmatprep.subr.mxu0 0.0
        %5660 = vmatpush1.msra.mxu0 0.0
        %5661 = vmatprep.subr.mxu0 0.0
        %5662 = vmatpush1.msra.mxu0 0.0
        %5663 = vmatprep.subr.mxu0 0.0
        %5664 = vmatpush1.msra.mxu0 0.0
        %5665 = vmatprep.subr.mxu0 0.0
        %5666 = vmatpush1.msra.mxu0 0.0
        %5667 = vmatprep.subr.mxu0 0.0
        %5668 = vmatpush1.msra.mxu0 0.0
        %5669 = vmatprep.subr.mxu0 0.0
        %5670 = vmatpush1.msra.mxu0 0.0
        %5671 = vmatprep.subr.mxu0 0.0
        %5672 = vmatpush1.msra.mxu0 0.0
        %5673 = vmatprep.subr.mxu0 0.0
        %5674 = vmatpush1.msra.mxu0 0.0
        %5675 = vmatprep.subr.mxu0 0.0
        %5676 = vmatpush1.msra.mxu0 0.0
        %5677 = vmatprep.subr.mxu0 0.0
        %5678 = vmatpush1.msra.mxu0 0.0
        %5679 = vmatprep.subr.mxu0 0.0
        %5680 = vmatpush1.msra.mxu0 0.0
        %5681 = vmatprep.subr.mxu0 0.0
        %5682 = vmatpush1.msra.mxu0 0.0
        %5683 = vmatprep.subr.mxu0 0.0
        %5684 = vmatpush1.msra.mxu0 0.0
        %5685 = vmatprep.subr.mxu0 0.0
        %5686 = vmatpush1.msra.mxu0 0.0
        %5687 = vmatprep.subr.mxu0 0.0
        %5688 = vmatpush1.msra.mxu0 0.0
        %5689 = vmatprep.subr.mxu0 0.0
        %5690 = vmatpush1.msra.mxu0 0.0
        %5691 = vmatprep.subr.mxu0 0.0
        %5692 = vmatpush1.msra.mxu0 0.0
        %5693 = vmatprep.subr.mxu0 0.0
        %5694 = vmatpush1.msra.mxu0 0.0
        %5695 = vmatprep.subr.mxu0 0.0
        %5696 = vmatpush1.msra.mxu0 0.0
        %5697 = vmatprep.subr.mxu0 0.0
        %5698 = vmatpush1.msra.mxu0 0.0
        %5699 = vmatprep.subr.mxu0 0.0
        %5700 = vmatpush1.msra.mxu0 0.0
        %5701 = vmatprep.subr.mxu0 0.0
        %5702 = vmatpush1.msra.mxu0 0.0
        %5703 = vmatprep.subr.mxu0 0.0
        %5704 = vmatpush1.msra.mxu0 0.0
        %5705 = vmatprep.subr.mxu0 0.0
        %5706 = vmatpush1.msra.mxu0 0.0
        %5707 = vmatprep.mubr.f32.mxu0 0.0
        %5708 = vmatmul.mubr.f32.gmra.mrb[0].mxu0 %v5638
        %v5709 = vpop.f32.mrb[0].mxu0
        %v5710 = vadd.f32 %v5630, %v5709
        %v5711 = vpop.f32.mrb[0].mxu0
        %v5712 = vadd.f32 %v5630, %v5711
        %5713 = vmatprep.mubr.f32.mxu0 0.0
        %5714 = vmatmul.mubr.f32.gmra.mrb[0].mxu0 %v5641
        %v5715 = vpop.f32.mrb[0].mxu0
        %v5716 = vadd.f32 %v5635, %v5715
        %v5717 = vpop.f32.mrb[0].mxu0
        %v5718 = vadd.f32 %v5635, %v5717
        %5719 = vdwg.mxu0
        %5720 = vst [vmem:[%s352] sm:$0xff] %v5710
        %5721 = vst [vmem:[%s352 + $0x8] sm:$0xff] %v5712
        %5722 = vst [vmem:[%s352 + $0x10] sm:$0xff] %v5716
        %5723 = vst [vmem:[%s352 + $0x18] sm:$0xff] %v5718
        %s5724 = sand.u32 %s247, 1
        %s5725 = scalar_lea.sflag [#allocation4], %s5724
        %s5726 = sand.u32 %s247, 1
        %s5727 = smul.addr %s5726, 32
        %s5728 = scalar_lea.vmem [#allocation3], %s5727
        // Predicated region
        $region61: #{tpu_custom_call.1} parent=59 // pred_check
          %p5729 = pneg %p257
        $region62: #{tpu_custom_call.1} parent=59 // pred_check_branch
          %5731 = sbr.rel (%p5729) target = $region64
        $region63: #{tpu_custom_call.1} parent=59 // pred_region
          %s5733 = ssub.s32 512, 512
          %5734 = vsyncadd %s5725, %s5733
          %s5735 = smul.addr %s24, 4
          %s5736 = smul.addr %s5735, 128
          %s5737 = scalar_lea.hbm %s10, %s5736
          %s5738 = sshll.u32 %s5728, 4
          %s5739 = int_to_ptr.vmem [resolvable:$true] %s5738
          %5744 = dma.vmem_to_hbm [thread:$0]  %s5739, 512, %s5737, %s5725, 256, 256, 16
        $region64: #{tpu_custom_call.1} parent=59 // pred_fallthru
          _
      $region60: #{tpu_custom_call.1} parent=5 // pred_fallthru
        _
      %p5745 = scmp.le.s32.totalorder 2, %s19
      // Predicated region
      $region65: #{tpu_custom_call.1} parent=5 // pred_check
        %p5746 = pneg %p5745
      $region66: #{tpu_custom_call.1} parent=5 // pred_check_branch
        %5748 = sbr.rel (%p5746) target = $region68
      $region67: #{tpu_custom_call.1} parent=5 // pred_region
        %s5749 = ssub.s32 %s19, 2
        // Predicated region
        $region69: #{tpu_custom_call.1} parent=67 // pred_check
          %p5750 = pneg %p263
        $region70: #{tpu_custom_call.1} parent=67 // pred_check_branch
          %5752 = sbr.rel (%p5750) target = $region72
        $region71: #{tpu_custom_call.1} parent=67 // pred_region
          %s5753 = sand.u32 %s248, 1
          %s5754 = scalar_lea.sflag [#allocation4], %s5753
          %s5755 = sand.u32 %s248, 1
          %s5756 = smul.addr %s5755, 32
          %s5757 = scalar_lea.vmem [#allocation3], %s5756
          %5758 = dma.done %s5754, 512
        $region72: #{tpu_custom_call.1} parent=67 // pred_fallthru
          _
      $region68: #{tpu_custom_call.1} parent=5 // pred_fallthru
        _
    $region6: #{tpu_custom_call.1} parent=1 // loop_footer
      %s23 = sadd.s32 1, %s19
    $region7: #{tpu_custom_call.1} parent=1 // loop_footer_branch
      %18 = sbr.rel target = $region3
    $region8: #{tpu_custom_call.1} parent=1 // loop_exit
      _
    %5759 = vsyncpa [#allocation4], 1
    %s5760 = scalar_lea.sflag [#allocation4], 1
    %5761 = vsyncpa %s5760, 1

</llo_original>
